<compile_context>
chip_gen: v5e
topology: v5e:2x2
jax: 0.10.0
libtpu: 0.0.40
codegen_flags: <defaults>
</compile_context>

<pallas_src>
import functools
import math

import jax
import jax.numpy as jnp
from jax import lax
from jax.experimental import pallas as pl
from jax.experimental.pallas import tpu as pltpu


def _round_up(x, m):
    return (x + m - 1) // m * m


def _default_vmem_limit():
    # Review: raise toward ~112 MiB on v5e/v6e (128 MiB physical), keep
    # headroom (<64 MiB) on v7x.  0.875 * capacity does both.
    try:
        cap = int(pltpu.get_tpu_info().vmem_capacity_bytes)
        return min(cap * 7 // 8, 112 * 1024 * 1024)
    except Exception:
        return 64 * 1024 * 1024


def _const_spec(shape, single_buffer):
    """BlockSpec for a weight whose block index never changes.

    Single-buffered when possible (constant index map => double buffering
    only wastes VMEM; critical for Whisper-large on v7x)."""
    zeros = (0,) * len(shape)
    index_map = lambda *_: zeros
    if single_buffer:
        try:
            return pl.BlockSpec(shape, index_map, pipeline_mode=pl.Buffered(1))
        except Exception:
            pass
    return pl.BlockSpec(shape, index_map)


def _ane_layer_norm(h, w, b, eps=1e-5):
    # h: (T, C) f32; normalize over the channel axis (dim 1 of the PyTorch
    # (B, C, 1, S) tensor).  ANE form: (norm + bias) * weight.
    mu = jnp.mean(h, axis=-1, keepdims=True)
    z = h - mu
    var = jnp.mean(z * z, axis=-1, keepdims=True)
    norm = z * lax.rsqrt(var + eps)
    return (norm + b) * w


# --------------------------------------------------------------------------
# kernel 1: LN1 + fused QKV projection (K/V computed exactly once per token)
# --------------------------------------------------------------------------
def _qkv_prologue_kernel(x_ref, ln1w_ref, ln1b_ref,
                         wq_ref, bq_ref, wk_ref, wv_ref, bv_ref,
                         q_ref, k_ref, v_ref):
    n_heads, head_dim = q_ref.shape[1], q_ref.shape[3]
    h = _ane_layer_norm(x_ref[0], ln1w_ref[...],
                        ln1b_ref[...]).astype(jnp.bfloat16)
    # Full-width (T, C) @ (C, C) matmuls; attention scale is pre-folded into
    # wq / bq by the wrapper.
    q = (jnp.dot(h, wq_ref[...], preferred_element_type=jnp.float32)
         + bq_ref[...]).astype(jnp.bfloat16)
    k = jnp.dot(h, wk_ref[...],
                preferred_element_type=jnp.float32).astype(jnp.bfloat16)
    v = (jnp.dot(h, wv_ref[...], preferred_element_type=jnp.float32)
         + bv_ref[...]).astype(jnp.bfloat16)
    for hh in range(n_heads):                     # static lane-slice head split
        sl = slice(hh * head_dim, (hh + 1) * head_dim)
        q_ref[0, hh] = q[:, sl]
        k_ref[0, hh] = k[:, sl]
        v_ref[0, hh] = v[:, sl]


# --------------------------------------------------------------------------
# kernel 2: online-softmax self-attention + out-proj + residual 1
# --------------------------------------------------------------------------
def _attention_kernel(seq_len, mask_needed,
                      x_ref, q_ref, k_ref, v_ref, wo_ref, bo_ref, o_ref,
                      m_scr, l_scr, acc_scr, ctx_scr):
    ki = pl.program_id(2)
    nk = pl.num_programs(2)
    n_heads, head_dim = q_ref.shape[1], q_ref.shape[3]
    block_k = k_ref.shape[2]

    @pl.when(ki == 0)
    def _init():
        m_scr[...] = jnp.full(m_scr.shape, -1e30, dtype=m_scr.dtype)
        l_scr[...] = jnp.zeros(l_scr.shape, dtype=l_scr.dtype)
        acc_scr[...] = jnp.zeros(acc_scr.shape, dtype=acc_scr.dtype)

    # Batched over heads; no per-head matmul loop.
    s = jnp.einsum('hqd,hkd->hqk', q_ref[0], k_ref[0],
                   preferred_element_type=jnp.float32)        # (H, TQ, TK) f32
    if mask_needed:
        # Mask padded key positions (finite fill to avoid inf-inf NaNs).
        key_idx = ki * block_k + lax.broadcasted_iota(
            jnp.int32, (1, 1, block_k), 2)
        s = jnp.where(key_idx < seq_len, s, -1e30)

    m_prev = m_scr[...]
    m_new = jnp.maximum(m_prev, jnp.max(s, axis=-1, keepdims=True))
    alpha = jnp.exp(m_prev - m_new)
    p = jnp.exp(s - m_new)
    l_scr[...] = alpha * l_scr[...] + jnp.sum(p, axis=-1, keepdims=True)
    acc_scr[...] = alpha * acc_scr[...] + jnp.einsum(
        'hqk,hkd->hqd', p.astype(jnp.bfloat16), v_ref[0],
        preferred_element_type=jnp.float32)
    m_scr[...] = m_new

    @pl.when(ki == nk - 1)
    def _finalize():
        # Exact f32 divide (numerical parity with the PyTorch reference).
        ctx = (acc_scr[...] / l_scr[...]).astype(jnp.bfloat16)  # (H, TQ, Dh)
        for hh in range(n_heads):            # merge heads back to (TQ, C)
            ctx_scr[:, hh * head_dim:(hh + 1) * head_dim] = ctx[hh]
        # Single full-width out-projection instead of H narrow matmuls.
        attn = jnp.dot(ctx_scr[...], wo_ref[...],
                       preferred_element_type=jnp.float32) + bo_ref[...]
        o_ref[0] = x_ref[0] + attn           # residual 1 (f32)


# --------------------------------------------------------------------------
# kernel 3: LN2 + fc1 -> exact GELU -> fc2 (tiled over F) + residual 2
# --------------------------------------------------------------------------
def _ffn_kernel(h1_ref, ln2w_ref, ln2b_ref, w1_ref, b1_ref, w2_ref, b2_ref,
                o_ref, h2_scr, y_scr):
    fi = pl.program_id(2)
    nf = pl.num_programs(2)

    @pl.when(fi == 0)
    def _init():
        h2_scr[...] = _ane_layer_norm(h1_ref[0], ln2w_ref[...],
                                      ln2b_ref[...]).astype(jnp.bfloat16)
        y_scr[...] = jnp.zeros(y_scr.shape, dtype=y_scr.dtype)

    f = jnp.dot(h2_scr[...], w1_ref[...],
                preferred_element_type=jnp.float32) + b1_ref[...]
    f = jax.nn.gelu(f, approximate=False)          # Whisper "gelu" (erf-based)
    y_scr[...] += jnp.dot(f.astype(jnp.bfloat16), w2_ref[...],
                          preferred_element_type=jnp.float32)

    @pl.when(fi == nf - 1)
    def _finalize():
        o_ref[0] = h1_ref[0] + y_scr[...] + b2_ref[...]   # residual 2 (f32)


# --------------------------------------------------------------------------
# wrapper
# --------------------------------------------------------------------------
def _forward(x_nc1s, params, *, n_heads, block_q, block_k, block_f,
             single_buffer_weights):
    B, C, one, S = x_nc1s.shape
    assert one == 1 and C % n_heads == 0
    head_dim = C // n_heads
    F = params["w1"].shape[1]
    bf16, f32 = jnp.bfloat16, jnp.float32

    block_q = min(block_q, _round_up(S, 8))
    block_k = min(block_k, _round_up(S, 8))
    assert block_q % 8 == 0 and block_k % 8 == 0
    s_pad = _round_up(S, max(block_q, block_k))
    assert s_pad % block_q == 0 and s_pad % block_k == 0, (
        "block_q / block_k must divide the padded sequence length")
    if block_f is None:
        block_f = F                 # FFN weights fully resident (v5e / v6e)
    block_f = min(block_f, F)
    assert F % block_f == 0 and (block_f == F or block_f % 128 == 0)

    # Layout glue: NCHW (B, C, 1, S) -> (B, S, C); zero-pad the sequence.
    x = jnp.transpose(x_nc1s[:, :, 0, :], (0, 2, 1)).astype(f32)
    if s_pad != S:
        x = jnp.pad(x, ((0, 0), (0, s_pad - S), (0, 0)))

    # Attention scale folded into Wq / bq (weight-side, free at runtime).
    scale = 1.0 / math.sqrt(head_dim)
    wq = (params["wq"] * scale).astype(bf16)
    bq = (params["bq"] * scale).astype(f32)
    wk = params["wk"].astype(bf16)
    wv = params["wv"].astype(bf16)
    bv = params["bv"].astype(f32)
    wo = params["wo"].astype(bf16)
    bo = params["bo"].astype(f32)
    w1 = params["w1"].astype(bf16)
    b1 = params["b1"].astype(f32)
    w2 = params["w2"].astype(bf16)
    b2 = params["b2"].astype(f32)
    ln1w, ln1b = params["ln1_w"].astype(f32), params["ln1_b"].astype(f32)
    ln2w, ln2b = params["ln2_w"].astype(f32), params["ln2_b"].astype(f32)

    vmem_limit = _default_vmem_limit()

    def cparams(sem):
        return pltpu.CompilerParams(dimension_semantics=sem,
                                    vmem_limit_bytes=vmem_limit)

    const = lambda shape: _const_spec(shape, single_buffer_weights)

    H, Dh = n_heads, head_dim
    n_seq = s_pad // block_q
    n_kv = s_pad // block_k

    # ---- kernel 1: LN1 + fused QKV projection -> HBM (B, H, S, Dh) bf16 ----
    qkv_shape = jax.ShapeDtypeStruct((B, H, s_pad, Dh), bf16)
    qkv_spec = pl.BlockSpec((1, H, block_q, Dh), lambda b, si: (b, 0, si, 0))
    q, k, v = pl.pallas_call(
        _qkv_prologue_kernel,
        out_shape=(qkv_shape, qkv_shape, qkv_shape),
        grid=(B, n_seq),
        in_specs=[
            pl.BlockSpec((1, block_q, C), lambda b, si: (b, si, 0)),
            const((1, C)), const((1, C)),           # ln1 w, b
            const((C, C)), const((1, C)),           # wq (scaled), bq (scaled)
            const((C, C)),                          # wk (no bias in Whisper)
            const((C, C)), const((1, C)),           # wv, bv
        ],
        out_specs=(qkv_spec, qkv_spec, qkv_spec),
        compiler_params=cparams(("parallel", "parallel")),
    )(x, ln1w, ln1b, wq, bq, wk, wv, bv)

    # ---- kernel 2: flash attention + out-proj + residual 1 ----
    mask_needed = s_pad != S
    h1 = pl.pallas_call(
        functools.partial(_attention_kernel, S, mask_needed),
        out_shape=jax.ShapeDtypeStruct((B, s_pad, C), f32),
        grid=(B, n_seq, n_kv),
        in_specs=[
            pl.BlockSpec((1, block_q, C), lambda b, qi, ki: (b, qi, 0)),  # x (residual)
            pl.BlockSpec((1, H, block_q, Dh), lambda b, qi, ki: (b, 0, qi, 0)),
            pl.BlockSpec((1, H, block_k, Dh), lambda b, qi, ki: (b, 0, ki, 0)),
            pl.BlockSpec((1, H, block_k, Dh), lambda b, qi, ki: (b, 0, ki, 0)),
            const((C, C)), const((1, C)),                                 # wo, bo
        ],
        out_specs=pl.BlockSpec((1, block_q, C), lambda b, qi, ki: (b, qi, 0)),
        scratch_shapes=[
            pltpu.VMEM((H, block_q, 1), f32),     # running row max
            pltpu.VMEM((H, block_q, 1), f32),     # running row sum
            pltpu.VMEM((H, block_q, Dh), f32),    # weighted-V accumulator
            pltpu.VMEM((block_q, C), bf16),       # merged-head buffer
        ],
        compiler_params=cparams(("parallel", "parallel", "arbitrary")),
    )(x, q, k, v, wo, bo)

    # ---- kernel 3: LN2 + FFN (tiled over F) + residual 2 ----
    n_f = F // block_f
    resident = (n_f == 1)
    w1_spec = const((C, block_f)) if resident else pl.BlockSpec(
        (C, block_f), lambda b, qi, fi: (0, fi))
    b1_spec = const((1, block_f)) if resident else pl.BlockSpec(
        (1, block_f), lambda b, qi, fi: (0, fi))
    w2_spec = const((block_f, C)) if resident else pl.BlockSpec(
        (block_f, C), lambda b, qi, fi: (fi, 0))
    # TODO(synk): when block_f < F the fc1/fc2 blocks are re-streamed from HBM
    # once per (batch, q-tile); if that becomes HBM-bound, switch to a
    # persistent (s_pad, C) f32 accumulator with the F axis outermost.
    out = pl.pallas_call(
        _ffn_kernel,
        out_shape=jax.ShapeDtypeStruct((B, s_pad, C), f32),
        grid=(B, n_seq, n_f),
        in_specs=[
            pl.BlockSpec((1, block_q, C), lambda b, qi, fi: (b, qi, 0)),
            const((1, C)), const((1, C)),          # ln2 w, b
            w1_spec, b1_spec, w2_spec, const((1, C)),
        ],
        out_specs=pl.BlockSpec((1, block_q, C), lambda b, qi, fi: (b, qi, 0)),
        scratch_shapes=[
            pltpu.VMEM((block_q, C), bf16),        # LN2(h1), cached per q tile
            pltpu.VMEM((block_q, C), f32),         # fc2 accumulator
        ],
        compiler_params=cparams(("parallel", "parallel", "arbitrary")),
    )(h1, ln2w, ln2b, w1, b1, w2, b2)

    out = out[:, :S, :]                            # drop sequence padding
    return jnp.transpose(out, (0, 2, 1))[:, :, None, :]   # -> (B, C, 1, S)


def whisper_audio_encoder_layer(x_nc1s, params, *, n_heads,
                                block_q=256, block_k=256, block_f=None):
    """x_nc1s: (B, d_model, 1, S) float32 -> (B, d_model, 1, S) float32.

    block_f=None keeps fc1/fc2 weights resident (v5e/v6e); set block_f to
    e.g. 1024-2048 on v7x so the FFN weights stream and fit 64 MiB VMEM."""
    try:
        return _forward(x_nc1s, params, n_heads=n_heads, block_q=block_q,
                        block_k=block_k, block_f=block_f,
                        single_buffer_weights=True)
    except Exception:
        # Fallback if pl.Buffered(1) single-buffering is rejected by this
        # jax/libtpu version; semantics are identical, only VMEM use differs.
        return _forward(x_nc1s, params, n_heads=n_heads, block_q=block_q,
                        block_k=block_k, block_f=block_f,
                        single_buffer_weights=False)


def init_params(key, d_model, ffn_dim):
    """Deterministic synthetic weights.  Conv2d(co, ci, 1, 1) weights are
    stored pre-squeezed & pre-transposed as (ci, co), so h @ W equals the 1x1
    conv along channels."""
    ks = jax.random.split(key, 12)
    std = 0.02
    n = lambda k, shp: (std * jax.random.normal(k, shp)).astype(jnp.float32)
    C, F = d_model, ffn_dim
    return {
        "ln1_w": jnp.ones((1, C), jnp.float32),
        "ln1_b": n(ks[0], (1, C)),
        "wq": n(ks[1], (C, C)), "bq": n(ks[2], (1, C)),
        "wk": n(ks[3], (C, C)),                  # k_proj has no bias (Whisper)
        "wv": n(ks[4], (C, C)), "bv": n(ks[5], (1, C)),
        "wo": n(ks[6], (C, C)), "bo": n(ks[7], (1, C)),
        "ln2_w": jnp.ones((1, C), jnp.float32),
        "ln2_b": n(ks[8], (1, C)),
        "w1": n(ks[9], (C, F)), "b1": n(ks[10], (1, F)),
        "w2": n(ks[11], (F, C)), "b2": jnp.zeros((1, C), jnp.float32),
    }


if __name__ == "__main__":
    # Small lane-aligned config consistent with the module's forward:
    #   input_embeds: (batch, d_model, 1, encoder_seq_len)
    # SEQ=200 (not a tile multiple) exercises the padding + key-mask path;
    # block_f=256 (< FFN) exercises the FFN F-axis reduction path.
    B, D_MODEL, SEQ, N_HEADS, FFN = 2, 128, 200, 4, 512

    key = jax.random.PRNGKey(0)
    k_x, k_p = jax.random.split(key)
    x = jax.random.normal(k_x, (B, D_MODEL, 1, SEQ), dtype=jnp.float32)
    params = init_params(k_p, D_MODEL, FFN)

    out = whisper_audio_encoder_layer(x, params, n_heads=N_HEADS,
                                      block_q=128, block_k=128, block_f=256)
    out = jax.block_until_ready(out)
    assert out.shape == (B, D_MODEL, 1, SEQ), out.shape
    assert bool(jnp.all(jnp.isfinite(out)))
    print("KERNEL_OK")
</pallas_src>

<mosaic_0001>
module attributes {stable_mosaic.version = 11 : i64} {
  func.func @_qkv_prologue_kernel(%arg0: i32, %arg1: i32, %arg2: memref<1x128x128xf32, #tpu.memory_space<vmem>>, %arg3: memref<1x128xf32, #tpu.memory_space<vmem>>, %arg4: memref<1x128xf32, #tpu.memory_space<vmem>>, %arg5: memref<128x128xbf16, #tpu.memory_space<vmem>>, %arg6: memref<1x128xf32, #tpu.memory_space<vmem>>, %arg7: memref<128x128xbf16, #tpu.memory_space<vmem>>, %arg8: memref<128x128xbf16, #tpu.memory_space<vmem>>, %arg9: memref<1x128xf32, #tpu.memory_space<vmem>>, %arg10: memref<1x4x128x32xbf16, #tpu.memory_space<vmem>>, %arg11: memref<1x4x128x32xbf16, #tpu.memory_space<vmem>>, %arg12: memref<1x4x128x32xbf16, #tpu.memory_space<vmem>>) attributes {dimension_semantics = [#tpu.dimension_semantics<parallel>, #tpu.dimension_semantics<parallel>], iteration_bounds = array<i64: 2, 2>, scalar_prefetch = 0 : i64, scratch_operands = 0 : i64, tpu.core_type = #tpu.core_type<tc>, window_params = [{transform_indices = @transform_0, window_bounds = array<i64: 1, 128, 128>}, {pipeline_mode = #tpu.pipeline_mode<synchronous>, transform_indices = @transform_1, window_bounds = array<i64: 1, 128>}, {pipeline_mode = #tpu.pipeline_mode<synchronous>, transform_indices = @transform_2, window_bounds = array<i64: 1, 128>}, {pipeline_mode = #tpu.pipeline_mode<synchronous>, transform_indices = @transform_3, window_bounds = array<i64: 128, 128>}, {pipeline_mode = #tpu.pipeline_mode<synchronous>, transform_indices = @transform_4, window_bounds = array<i64: 1, 128>}, {pipeline_mode = #tpu.pipeline_mode<synchronous>, transform_indices = @transform_5, window_bounds = array<i64: 128, 128>}, {pipeline_mode = #tpu.pipeline_mode<synchronous>, transform_indices = @transform_6, window_bounds = array<i64: 128, 128>}, {pipeline_mode = #tpu.pipeline_mode<synchronous>, transform_indices = @transform_7, window_bounds = array<i64: 1, 128>}, {transform_indices = @transform_8, window_bounds = array<i64: 1, 4, 128, 32>}, {transform_indices = @transform_9, window_bounds = array<i64: 1, 4, 128, 32>}, {transform_indices = @transform_10, window_bounds = array<i64: 1, 4, 128, 32>}]} {
    %c0 = arith.constant 0 : index
    %c0_0 = arith.constant 0 : index
    %c0_1 = arith.constant 0 : index
    %0 = vector.load %arg2[%c0, %c0_0, %c0_1] : memref<1x128x128xf32, #tpu.memory_space<vmem>>, vector<1x128x128xf32>
    %1 = vector.shape_cast %0 : vector<1x128x128xf32> to vector<128x128xf32>
    %c0_2 = arith.constant 0 : index
    %c0_3 = arith.constant 0 : index
    %2 = vector.load %arg3[%c0_2, %c0_3] : memref<1x128xf32, #tpu.memory_space<vmem>>, vector<1x128xf32>
    %c0_4 = arith.constant 0 : index
    %c0_5 = arith.constant 0 : index
    %3 = vector.load %arg4[%c0_4, %c0_5] : memref<1x128xf32, #tpu.memory_space<vmem>>, vector<1x128xf32>
    %cst = arith.constant dense<0.000000e+00> : vector<128xf32>
    %4 = vector.multi_reduction <add>, %1, %cst [1] : vector<128x128xf32> to vector<128xf32>
    %5 = vector.shape_cast %4 : vector<128xf32> to vector<128x1xf32>
    %cst_6 = arith.constant 1.280000e+02 : f32
    %6 = vector.broadcast %cst_6 : f32 to vector<128x1xf32>
    %7 = arith.divf %5, %6 : vector<128x1xf32>
    %8 = vector.broadcast %7 : vector<128x1xf32> to vector<128x128xf32>
    %9 = arith.subf %1, %8 : vector<128x128xf32>
    %10 = arith.mulf %9, %9 : vector<128x128xf32>
    %cst_7 = arith.constant dense<0.000000e+00> : vector<128xf32>
    %11 = vector.multi_reduction <add>, %10, %cst_7 [1] : vector<128x128xf32> to vector<128xf32>
    %12 = vector.shape_cast %11 : vector<128xf32> to vector<128x1xf32>
    %cst_8 = arith.constant 1.280000e+02 : f32
    %13 = vector.broadcast %cst_8 : f32 to vector<128x1xf32>
    %14 = arith.divf %12, %13 : vector<128x1xf32>
    %cst_9 = arith.constant 9.99999974E-6 : f32
    %15 = vector.broadcast %cst_9 : f32 to vector<128x1xf32>
    %16 = arith.addf %14, %15 : vector<128x1xf32>
    %17 = math.rsqrt %16 : vector<128x1xf32>
    %18 = vector.broadcast %17 : vector<128x1xf32> to vector<128x128xf32>
    %19 = arith.mulf %9, %18 : vector<128x128xf32>
    %20 = vector.broadcast %3 : vector<1x128xf32> to vector<128x128xf32>
    %21 = arith.addf %19, %20 : vector<128x128xf32>
    %22 = vector.broadcast %2 : vector<1x128xf32> to vector<128x128xf32>
    %23 = arith.mulf %21, %22 : vector<128x128xf32>
    %24 = arith.truncf %23 : vector<128x128xf32> to vector<128x128xbf16>
    %c0_10 = arith.constant 0 : index
    %c0_11 = arith.constant 0 : index
    %25 = vector.load %arg5[%c0_10, %c0_11] : memref<128x128xbf16, #tpu.memory_space<vmem>>, vector<128x128xbf16>
    %cst_12 = arith.constant dense<0.000000e+00> : vector<128x128xf32>
    %26 = tpu.matmul %24, %25, %cst_12 {dimension_numbers = #tpu.dot_dimension_numbers<[1], [0], [0], [1], [0, 0, 1, 1], [], []>} : vector<128x128xbf16>, vector<128x128xbf16>, vector<128x128xf32> -> vector<128x128xf32>
    %c0_13 = arith.constant 0 : index
    %c0_14 = arith.constant 0 : index
    %27 = vector.load %arg6[%c0_13, %c0_14] : memref<1x128xf32, #tpu.memory_space<vmem>>, vector<1x128xf32>
    %28 = vector.broadcast %27 : vector<1x128xf32> to vector<128x128xf32>
    %29 = arith.addf %26, %28 : vector<128x128xf32>
    %30 = arith.truncf %29 : vector<128x128xf32> to vector<128x128xbf16>
    %c0_15 = arith.constant 0 : index
    %c0_16 = arith.constant 0 : index
    %31 = vector.load %arg7[%c0_15, %c0_16] : memref<128x128xbf16, #tpu.memory_space<vmem>>, vector<128x128xbf16>
    %cst_17 = arith.constant dense<0.000000e+00> : vector<128x128xf32>
    %32 = tpu.matmul %24, %31, %cst_17 {dimension_numbers = #tpu.dot_dimension_numbers<[1], [0], [0], [1], [0, 0, 1, 1], [], []>} : vector<128x128xbf16>, vector<128x128xbf16>, vector<128x128xf32> -> vector<128x128xf32>
    %33 = arith.truncf %32 : vector<128x128xf32> to vector<128x128xbf16>
    %c0_18 = arith.constant 0 : index
    %c0_19 = arith.constant 0 : index
    %34 = vector.load %arg8[%c0_18, %c0_19] : memref<128x128xbf16, #tpu.memory_space<vmem>>, vector<128x128xbf16>
    %cst_20 = arith.constant dense<0.000000e+00> : vector<128x128xf32>
    %35 = tpu.matmul %24, %34, %cst_20 {dimension_numbers = #tpu.dot_dimension_numbers<[1], [0], [0], [1], [0, 0, 1, 1], [], []>} : vector<128x128xbf16>, vector<128x128xbf16>, vector<128x128xf32> -> vector<128x128xf32>
    %c0_21 = arith.constant 0 : index
    %c0_22 = arith.constant 0 : index
    %36 = vector.load %arg9[%c0_21, %c0_22] : memref<1x128xf32, #tpu.memory_space<vmem>>, vector<1x128xf32>
    %37 = vector.broadcast %36 : vector<1x128xf32> to vector<128x128xf32>
    %38 = arith.addf %35, %37 : vector<128x128xf32>
    %39 = arith.truncf %38 : vector<128x128xf32> to vector<128x128xbf16>
    %40 = vector.extract_strided_slice %30 {offsets = [0, 0], sizes = [128, 32], strides = [1, 1]} : vector<128x128xbf16> to vector<128x32xbf16>
    %c0_23 = arith.constant 0 : index
    %c0_24 = arith.constant 0 : index
    %c0_25 = arith.constant 0 : index
    %c0_26 = arith.constant 0 : index
    %41 = vector.load %arg10[%c0_23, %c0_24, %c0_25, %c0_26] : memref<1x4x128x32xbf16, #tpu.memory_space<vmem>>, vector<1x1x128x32xbf16>
    %42 = vector.shape_cast %41 : vector<1x1x128x32xbf16> to vector<128x32xbf16>
    %43 = vector.shape_cast %40 : vector<128x32xbf16> to vector<1x1x128x32xbf16>
    tpu.vector_store %arg10[%c0_23, %c0_24, %c0_25, %c0_26], %43 {strides = array<i32>} : memref<1x4x128x32xbf16, #tpu.memory_space<vmem>>, vector<1x1x128x32xbf16>,
    %44 = vector.extract_strided_slice %33 {offsets = [0, 0], sizes = [128, 32], strides = [1, 1]} : vector<128x128xbf16> to vector<128x32xbf16>
    %c0_27 = arith.constant 0 : index
    %c0_28 = arith.constant 0 : index
    %c0_29 = arith.constant 0 : index
    %c0_30 = arith.constant 0 : index
    %45 = vector.load %arg11[%c0_27, %c0_28, %c0_29, %c0_30] : memref<1x4x128x32xbf16, #tpu.memory_space<vmem>>, vector<1x1x128x32xbf16>
    %46 = vector.shape_cast %45 : vector<1x1x128x32xbf16> to vector<128x32xbf16>
    %47 = vector.shape_cast %44 : vector<128x32xbf16> to vector<1x1x128x32xbf16>
    tpu.vector_store %arg11[%c0_27, %c0_28, %c0_29, %c0_30], %47 {strides = array<i32>} : memref<1x4x128x32xbf16, #tpu.memory_space<vmem>>, vector<1x1x128x32xbf16>,
    %48 = vector.extract_strided_slice %39 {offsets = [0, 0], sizes = [128, 32], strides = [1, 1]} : vector<128x128xbf16> to vector<128x32xbf16>
    %c0_31 = arith.constant 0 : index
    %c0_32 = arith.constant 0 : index
    %c0_33 = arith.constant 0 : index
    %c0_34 = arith.constant 0 : index
    %49 = vector.load %arg12[%c0_31, %c0_32, %c0_33, %c0_34] : memref<1x4x128x32xbf16, #tpu.memory_space<vmem>>, vector<1x1x128x32xbf16>
    %50 = vector.shape_cast %49 : vector<1x1x128x32xbf16> to vector<128x32xbf16>
    %51 = vector.shape_cast %48 : vector<128x32xbf16> to vector<1x1x128x32xbf16>
    tpu.vector_store %arg12[%c0_31, %c0_32, %c0_33, %c0_34], %51 {strides = array<i32>} : memref<1x4x128x32xbf16, #tpu.memory_space<vmem>>, vector<1x1x128x32xbf16>,
    %52 = vector.extract_strided_slice %30 {offsets = [0, 32], sizes = [128, 32], strides = [1, 1]} : vector<128x128xbf16> to vector<128x32xbf16>
    %c0_35 = arith.constant 0 : index
    %c1 = arith.constant 1 : index
    %c0_36 = arith.constant 0 : index
    %c0_37 = arith.constant 0 : index
    %53 = vector.load %arg10[%c0_35, %c1, %c0_36, %c0_37] : memref<1x4x128x32xbf16, #tpu.memory_space<vmem>>, vector<1x1x128x32xbf16>
    %54 = vector.shape_cast %53 : vector<1x1x128x32xbf16> to vector<128x32xbf16>
    %55 = vector.shape_cast %52 : vector<128x32xbf16> to vector<1x1x128x32xbf16>
    tpu.vector_store %arg10[%c0_35, %c1, %c0_36, %c0_37], %55 {strides = array<i32>} : memref<1x4x128x32xbf16, #tpu.memory_space<vmem>>, vector<1x1x128x32xbf16>,
    %56 = vector.extract_strided_slice %33 {offsets = [0, 32], sizes = [128, 32], strides = [1, 1]} : vector<128x128xbf16> to vector<128x32xbf16>
    %c0_38 = arith.constant 0 : index
    %c1_39 = arith.constant 1 : index
    %c0_40 = arith.constant 0 : index
    %c0_41 = arith.constant 0 : index
    %57 = vector.load %arg11[%c0_38, %c1_39, %c0_40, %c0_41] : memref<1x4x128x32xbf16, #tpu.memory_space<vmem>>, vector<1x1x128x32xbf16>
    %58 = vector.shape_cast %57 : vector<1x1x128x32xbf16> to vector<128x32xbf16>
    %59 = vector.shape_cast %56 : vector<128x32xbf16> to vector<1x1x128x32xbf16>
    tpu.vector_store %arg11[%c0_38, %c1_39, %c0_40, %c0_41], %59 {strides = array<i32>} : memref<1x4x128x32xbf16, #tpu.memory_space<vmem>>, vector<1x1x128x32xbf16>,
    %60 = vector.extract_strided_slice %39 {offsets = [0, 32], sizes = [128, 32], strides = [1, 1]} : vector<128x128xbf16> to vector<128x32xbf16>
    %c0_42 = arith.constant 0 : index
    %c1_43 = arith.constant 1 : index
    %c0_44 = arith.constant 0 : index
    %c0_45 = arith.constant 0 : index
    %61 = vector.load %arg12[%c0_42, %c1_43, %c0_44, %c0_45] : memref<1x4x128x32xbf16, #tpu.memory_space<vmem>>, vector<1x1x128x32xbf16>
    %62 = vector.shape_cast %61 : vector<1x1x128x32xbf16> to vector<128x32xbf16>
    %63 = vector.shape_cast %60 : vector<128x32xbf16> to vector<1x1x128x32xbf16>
    tpu.vector_store %arg12[%c0_42, %c1_43, %c0_44, %c0_45], %63 {strides = array<i32>} : memref<1x4x128x32xbf16, #tpu.memory_space<vmem>>, vector<1x1x128x32xbf16>,
    %64 = vector.extract_strided_slice %30 {offsets = [0, 64], sizes = [128, 32], strides = [1, 1]} : vector<128x128xbf16> to vector<128x32xbf16>
    %c0_46 = arith.constant 0 : index
    %c2 = arith.constant 2 : index
    %c0_47 = arith.constant 0 : index
    %c0_48 = arith.constant 0 : index
    %65 = vector.load %arg10[%c0_46, %c2, %c0_47, %c0_48] : memref<1x4x128x32xbf16, #tpu.memory_space<vmem>>, vector<1x1x128x32xbf16>
    %66 = vector.shape_cast %65 : vector<1x1x128x32xbf16> to vector<128x32xbf16>
    %67 = vector.shape_cast %64 : vector<128x32xbf16> to vector<1x1x128x32xbf16>
    tpu.vector_store %arg10[%c0_46, %c2, %c0_47, %c0_48], %67 {strides = array<i32>} : memref<1x4x128x32xbf16, #tpu.memory_space<vmem>>, vector<1x1x128x32xbf16>,
    %68 = vector.extract_strided_slice %33 {offsets = [0, 64], sizes = [128, 32], strides = [1, 1]} : vector<128x128xbf16> to vector<128x32xbf16>
    %c0_49 = arith.constant 0 : index
    %c2_50 = arith.constant 2 : index
    %c0_51 = arith.constant 0 : index
    %c0_52 = arith.constant 0 : index
    %69 = vector.load %arg11[%c0_49, %c2_50, %c0_51, %c0_52] : memref<1x4x128x32xbf16, #tpu.memory_space<vmem>>, vector<1x1x128x32xbf16>
    %70 = vector.shape_cast %69 : vector<1x1x128x32xbf16> to vector<128x32xbf16>
    %71 = vector.shape_cast %68 : vector<128x32xbf16> to vector<1x1x128x32xbf16>
    tpu.vector_store %arg11[%c0_49, %c2_50, %c0_51, %c0_52], %71 {strides = array<i32>} : memref<1x4x128x32xbf16, #tpu.memory_space<vmem>>, vector<1x1x128x32xbf16>,
    %72 = vector.extract_strided_slice %39 {offsets = [0, 64], sizes = [128, 32], strides = [1, 1]} : vector<128x128xbf16> to vector<128x32xbf16>
    %c0_53 = arith.constant 0 : index
    %c2_54 = arith.constant 2 : index
    %c0_55 = arith.constant 0 : index
    %c0_56 = arith.constant 0 : index
    %73 = vector.load %arg12[%c0_53, %c2_54, %c0_55, %c0_56] : memref<1x4x128x32xbf16, #tpu.memory_space<vmem>>, vector<1x1x128x32xbf16>
    %74 = vector.shape_cast %73 : vector<1x1x128x32xbf16> to vector<128x32xbf16>
    %75 = vector.shape_cast %72 : vector<128x32xbf16> to vector<1x1x128x32xbf16>
    tpu.vector_store %arg12[%c0_53, %c2_54, %c0_55, %c0_56], %75 {strides = array<i32>} : memref<1x4x128x32xbf16, #tpu.memory_space<vmem>>, vector<1x1x128x32xbf16>,
    %76 = vector.extract_strided_slice %30 {offsets = [0, 96], sizes = [128, 32], strides = [1, 1]} : vector<128x128xbf16> to vector<128x32xbf16>
    %c0_57 = arith.constant 0 : index
    %c3 = arith.constant 3 : index
    %c0_58 = arith.constant 0 : index
    %c0_59 = arith.constant 0 : index
    %77 = vector.load %arg10[%c0_57, %c3, %c0_58, %c0_59] : memref<1x4x128x32xbf16, #tpu.memory_space<vmem>>, vector<1x1x128x32xbf16>
    %78 = vector.shape_cast %77 : vector<1x1x128x32xbf16> to vector<128x32xbf16>
    %79 = vector.shape_cast %76 : vector<128x32xbf16> to vector<1x1x128x32xbf16>
    tpu.vector_store %arg10[%c0_57, %c3, %c0_58, %c0_59], %79 {strides = array<i32>} : memref<1x4x128x32xbf16, #tpu.memory_space<vmem>>, vector<1x1x128x32xbf16>,
    %80 = vector.extract_strided_slice %33 {offsets = [0, 96], sizes = [128, 32], strides = [1, 1]} : vector<128x128xbf16> to vector<128x32xbf16>
    %c0_60 = arith.constant 0 : index
    %c3_61 = arith.constant 3 : index
    %c0_62 = arith.constant 0 : index
    %c0_63 = arith.constant 0 : index
    %81 = vector.load %arg11[%c0_60, %c3_61, %c0_62, %c0_63] : memref<1x4x128x32xbf16, #tpu.memory_space<vmem>>, vector<1x1x128x32xbf16>
    %82 = vector.shape_cast %81 : vector<1x1x128x32xbf16> to vector<128x32xbf16>
    %83 = vector.shape_cast %80 : vector<128x32xbf16> to vector<1x1x128x32xbf16>
    tpu.vector_store %arg11[%c0_60, %c3_61, %c0_62, %c0_63], %83 {strides = array<i32>} : memref<1x4x128x32xbf16, #tpu.memory_space<vmem>>, vector<1x1x128x32xbf16>,
    %84 = vector.extract_strided_slice %39 {offsets = [0, 96], sizes = [128, 32], strides = [1, 1]} : vector<128x128xbf16> to vector<128x32xbf16>
    %c0_64 = arith.constant 0 : index
    %c3_65 = arith.constant 3 : index
    %c0_66 = arith.constant 0 : index
    %c0_67 = arith.constant 0 : index
    %85 = vector.load %arg12[%c0_64, %c3_65, %c0_66, %c0_67] : memref<1x4x128x32xbf16, #tpu.memory_space<vmem>>, vector<1x1x128x32xbf16>
    %86 = vector.shape_cast %85 : vector<1x1x128x32xbf16> to vector<128x32xbf16>
    %87 = vector.shape_cast %84 : vector<128x32xbf16> to vector<1x1x128x32xbf16>
    tpu.vector_store %arg12[%c0_64, %c3_65, %c0_66, %c0_67], %87 {strides = array<i32>} : memref<1x4x128x32xbf16, #tpu.memory_space<vmem>>, vector<1x1x128x32xbf16>,
    return
  }
  func.func @transform_0(%arg0: i32, %arg1: i32) -> (i32, i32, i32) {
    %c0_i32 = arith.constant 0 : i32
    %c0_i32_0 = arith.constant 0 : i32
    return %arg0, %arg1, %c0_i32 : i32, i32, i32
  }
  func.func @transform_1(%arg0: i32, %arg1: i32) -> (i32, i32) {
    %c0_i32 = arith.constant 0 : i32
    %c0_i32_0 = arith.constant 0 : i32
    %c0_i32_1 = arith.constant 0 : i32
    return %c0_i32, %c0_i32_0 : i32, i32
  }
  func.func @transform_2(%arg0: i32, %arg1: i32) -> (i32, i32) {
    %c0_i32 = arith.constant 0 : i32
    %c0_i32_0 = arith.constant 0 : i32
    %c0_i32_1 = arith.constant 0 : i32
    return %c0_i32, %c0_i32_0 : i32, i32
  }
  func.func @transform_3(%arg0: i32, %arg1: i32) -> (i32, i32) {
    %c0_i32 = arith.constant 0 : i32
    %c0_i32_0 = arith.constant 0 : i32
    %c0_i32_1 = arith.constant 0 : i32
    return %c0_i32, %c0_i32_0 : i32, i32
  }
  func.func @transform_4(%arg0: i32, %arg1: i32) -> (i32, i32) {
    %c0_i32 = arith.constant 0 : i32
    %c0_i32_0 = arith.constant 0 : i32
    %c0_i32_1 = arith.constant 0 : i32
    return %c0_i32, %c0_i32_0 : i32, i32
  }
  func.func @transform_5(%arg0: i32, %arg1: i32) -> (i32, i32) {
    %c0_i32 = arith.constant 0 : i32
    %c0_i32_0 = arith.constant 0 : i32
    %c0_i32_1 = arith.constant 0 : i32
    return %c0_i32, %c0_i32_0 : i32, i32
  }
  func.func @transform_6(%arg0: i32, %arg1: i32) -> (i32, i32) {
    %c0_i32 = arith.constant 0 : i32
    %c0_i32_0 = arith.constant 0 : i32
    %c0_i32_1 = arith.constant 0 : i32
    return %c0_i32, %c0_i32_0 : i32, i32
  }
  func.func @transform_7(%arg0: i32, %arg1: i32) -> (i32, i32) {
    %c0_i32 = arith.constant 0 : i32
    %c0_i32_0 = arith.constant 0 : i32
    %c0_i32_1 = arith.constant 0 : i32
    return %c0_i32, %c0_i32_0 : i32, i32
  }
  func.func @transform_8(%arg0: i32, %arg1: i32) -> (i32, i32, i32, i32) {
    %c0_i32 = arith.constant 0 : i32
    %c0_i32_0 = arith.constant 0 : i32
    %c0_i32_1 = arith.constant 0 : i32
    return %arg0, %c0_i32, %arg1, %c0_i32_0 : i32, i32, i32, i32
  }
  func.func @transform_9(%arg0: i32, %arg1: i32) -> (i32, i32, i32, i32) {
    %c0_i32 = arith.constant 0 : i32
    %c0_i32_0 = arith.constant 0 : i32
    %c0_i32_1 = arith.constant 0 : i32
    return %arg0, %c0_i32, %arg1, %c0_i32_0 : i32, i32, i32, i32
  }
  func.func @transform_10(%arg0: i32, %arg1: i32) -> (i32, i32, i32, i32) {
    %c0_i32 = arith.constant 0 : i32
    %c0_i32_0 = arith.constant 0 : i32
    %c0_i32_1 = arith.constant 0 : i32
    return %arg0, %c0_i32, %arg1, %c0_i32_0 : i32, i32, i32, i32
  }
}

module attributes {stable_mosaic.version = 11 : i64} {
  func.func @_qkv_prologue_kernel(%arg0: i32, %arg1: i32, %arg2: memref<1x128x128xf32, #tpu.memory_space<vmem>>, %arg3: memref<1x128xf32, #tpu.memory_space<vmem>>, %arg4: memref<1x128xf32, #tpu.memory_space<vmem>>, %arg5: memref<128x128xbf16, #tpu.memory_space<vmem>>, %arg6: memref<1x128xf32, #tpu.memory_space<vmem>>, %arg7: memref<128x128xbf16, #tpu.memory_space<vmem>>, %arg8: memref<128x128xbf16, #tpu.memory_space<vmem>>, %arg9: memref<1x128xf32, #tpu.memory_space<vmem>>, %arg10: memref<1x4x128x32xbf16, #tpu.memory_space<vmem>>, %arg11: memref<1x4x128x32xbf16, #tpu.memory_space<vmem>>, %arg12: memref<1x4x128x32xbf16, #tpu.memory_space<vmem>>) attributes {dimension_semantics = [#tpu.dimension_semantics<parallel>, #tpu.dimension_semantics<parallel>], iteration_bounds = array<i64: 2, 2>, scalar_prefetch = 0 : i64, scratch_operands = 0 : i64, tpu.core_type = #tpu.core_type<tc>, window_params = [{transform_indices = @transform_0, window_bounds = array<i64: 1, 128, 128>}, {pipeline_mode = #tpu.pipeline_mode<synchronous>, transform_indices = @transform_1, window_bounds = array<i64: 1, 128>}, {pipeline_mode = #tpu.pipeline_mode<synchronous>, transform_indices = @transform_2, window_bounds = array<i64: 1, 128>}, {pipeline_mode = #tpu.pipeline_mode<synchronous>, transform_indices = @transform_3, window_bounds = array<i64: 128, 128>}, {pipeline_mode = #tpu.pipeline_mode<synchronous>, transform_indices = @transform_4, window_bounds = array<i64: 1, 128>}, {pipeline_mode = #tpu.pipeline_mode<synchronous>, transform_indices = @transform_5, window_bounds = array<i64: 128, 128>}, {pipeline_mode = #tpu.pipeline_mode<synchronous>, transform_indices = @transform_6, window_bounds = array<i64: 128, 128>}, {pipeline_mode = #tpu.pipeline_mode<synchronous>, transform_indices = @transform_7, window_bounds = array<i64: 1, 128>}, {transform_indices = @transform_8, window_bounds = array<i64: 1, 4, 128, 32>}, {transform_indices = @transform_9, window_bounds = array<i64: 1, 4, 128, 32>}, {transform_indices = @transform_10, window_bounds = array<i64: 1, 4, 128, 32>}]} {
    %c0 = arith.constant 0 : index
    %c0_0 = arith.constant 0 : index
    %c0_1 = arith.constant 0 : index
    %0 = vector.load %arg2[%c0, %c0_0, %c0_1] : memref<1x128x128xf32, #tpu.memory_space<vmem>>, vector<1x128x128xf32>
    %1 = vector.shape_cast %0 : vector<1x128x128xf32> to vector<128x128xf32>
    %c0_2 = arith.constant 0 : index
    %c0_3 = arith.constant 0 : index
    %2 = vector.load %arg3[%c0_2, %c0_3] : memref<1x128xf32, #tpu.memory_space<vmem>>, vector<1x128xf32>
    %c0_4 = arith.constant 0 : index
    %c0_5 = arith.constant 0 : index
    %3 = vector.load %arg4[%c0_4, %c0_5] : memref<1x128xf32, #tpu.memory_space<vmem>>, vector<1x128xf32>
    %cst = arith.constant dense<0.000000e+00> : vector<128xf32>
    %4 = vector.multi_reduction <add>, %1, %cst [1] : vector<128x128xf32> to vector<128xf32>
    %5 = vector.shape_cast %4 : vector<128xf32> to vector<128x1xf32>
    %cst_6 = arith.constant 1.280000e+02 : f32
    %6 = vector.broadcast %cst_6 : f32 to vector<128x1xf32>
    %7 = arith.divf %5, %6 : vector<128x1xf32>
    %8 = vector.broadcast %7 : vector<128x1xf32> to vector<128x128xf32>
    %9 = arith.subf %1, %8 : vector<128x128xf32>
    %10 = arith.mulf %9, %9 : vector<128x128xf32>
    %cst_7 = arith.constant dense<0.000000e+00> : vector<128xf32>
    %11 = vector.multi_reduction <add>, %10, %cst_7 [1] : vector<128x128xf32> to vector<128xf32>
    %12 = vector.shape_cast %11 : vector<128xf32> to vector<128x1xf32>
    %cst_8 = arith.constant 1.280000e+02 : f32
    %13 = vector.broadcast %cst_8 : f32 to vector<128x1xf32>
    %14 = arith.divf %12, %13 : vector<128x1xf32>
    %cst_9 = arith.constant 9.99999974E-6 : f32
    %15 = vector.broadcast %cst_9 : f32 to vector<128x1xf32>
    %16 = arith.addf %14, %15 : vector<128x1xf32>
    %17 = math.rsqrt %16 : vector<128x1xf32>
    %18 = vector.broadcast %17 : vector<128x1xf32> to vector<128x128xf32>
    %19 = arith.mulf %9, %18 : vector<128x128xf32>
    %20 = vector.broadcast %3 : vector<1x128xf32> to vector<128x128xf32>
    %21 = arith.addf %19, %20 : vector<128x128xf32>
    %22 = vector.broadcast %2 : vector<1x128xf32> to vector<128x128xf32>
    %23 = arith.mulf %21, %22 : vector<128x128xf32>
    %24 = arith.truncf %23 : vector<128x128xf32> to vector<128x128xbf16>
    %c0_10 = arith.constant 0 : index
    %c0_11 = arith.constant 0 : index
    %25 = vector.load %arg5[%c0_10, %c0_11] : memref<128x128xbf16, #tpu.memory_space<vmem>>, vector<128x128xbf16>
    %cst_12 = arith.constant dense<0.000000e+00> : vector<128x128xf32>
    %26 = tpu.matmul %24, %25, %cst_12 {dimension_numbers = #tpu.dot_dimension_numbers<[1], [0], [0], [1], [0, 0, 1, 1], [], []>} : vector<128x128xbf16>, vector<128x128xbf16>, vector<128x128xf32> -> vector<128x128xf32>
    %c0_13 = arith.constant 0 : index
    %c0_14 = arith.constant 0 : index
    %27 = vector.load %arg6[%c0_13, %c0_14] : memref<1x128xf32, #tpu.memory_space<vmem>>, vector<1x128xf32>
    %28 = vector.broadcast %27 : vector<1x128xf32> to vector<128x128xf32>
    %29 = arith.addf %26, %28 : vector<128x128xf32>
    %30 = arith.truncf %29 : vector<128x128xf32> to vector<128x128xbf16>
    %c0_15 = arith.constant 0 : index
    %c0_16 = arith.constant 0 : index
    %31 = vector.load %arg7[%c0_15, %c0_16] : memref<128x128xbf16, #tpu.memory_space<vmem>>, vector<128x128xbf16>
    %cst_17 = arith.constant dense<0.000000e+00> : vector<128x128xf32>
    %32 = tpu.matmul %24, %31, %cst_17 {dimension_numbers = #tpu.dot_dimension_numbers<[1], [0], [0], [1], [0, 0, 1, 1], [], []>} : vector<128x128xbf16>, vector<128x128xbf16>, vector<128x128xf32> -> vector<128x128xf32>
    %33 = arith.truncf %32 : vector<128x128xf32> to vector<128x128xbf16>
    %c0_18 = arith.constant 0 : index
    %c0_19 = arith.constant 0 : index
    %34 = vector.load %arg8[%c0_18, %c0_19] : memref<128x128xbf16, #tpu.memory_space<vmem>>, vector<128x128xbf16>
    %cst_20 = arith.constant dense<0.000000e+00> : vector<128x128xf32>
    %35 = tpu.matmul %24, %34, %cst_20 {dimension_numbers = #tpu.dot_dimension_numbers<[1], [0], [0], [1], [0, 0, 1, 1], [], []>} : vector<128x128xbf16>, vector<128x128xbf16>, vector<128x128xf32> -> vector<128x128xf32>
    %c0_21 = arith.constant 0 : index
    %c0_22 = arith.constant 0 : index
    %36 = vector.load %arg9[%c0_21, %c0_22] : memref<1x128xf32, #tpu.memory_space<vmem>>, vector<1x128xf32>
    %37 = vector.broadcast %36 : vector<1x128xf32> to vector<128x128xf32>
    %38 = arith.addf %35, %37 : vector<128x128xf32>
    %39 = arith.truncf %38 : vector<128x128xf32> to vector<128x128xbf16>
    %40 = vector.extract_strided_slice %30 {offsets = [0, 0], sizes = [128, 32], strides = [1, 1]} : vector<128x128xbf16> to vector<128x32xbf16>
    %c0_23 = arith.constant 0 : index
    %c0_24 = arith.constant 0 : index
    %c0_25 = arith.constant 0 : index
    %c0_26 = arith.constant 0 : index
    %41 = vector.load %arg10[%c0_23, %c0_24, %c0_25, %c0_26] : memref<1x4x128x32xbf16, #tpu.memory_space<vmem>>, vector<1x1x128x32xbf16>
    %42 = vector.shape_cast %41 : vector<1x1x128x32xbf16> to vector<128x32xbf16>
    %43 = vector.shape_cast %40 : vector<128x32xbf16> to vector<1x1x128x32xbf16>
    tpu.vector_store %arg10[%c0_23, %c0_24, %c0_25, %c0_26], %43 {strides = array<i32>} : memref<1x4x128x32xbf16, #tpu.memory_space<vmem>>, vector<1x1x128x32xbf16>,
    %44 = vector.extract_strided_slice %33 {offsets = [0, 0], sizes = [128, 32], strides = [1, 1]} : vector<128x128xbf16> to vector<128x32xbf16>
    %c0_27 = arith.constant 0 : index
    %c0_28 = arith.constant 0 : index
    %c0_29 = arith.constant 0 : index
    %c0_30 = arith.constant 0 : index
    %45 = vector.load %arg11[%c0_27, %c0_28, %c0_29, %c0_30] : memref<1x4x128x32xbf16, #tpu.memory_space<vmem>>, vector<1x1x128x32xbf16>
    %46 = vector.shape_cast %45 : vector<1x1x128x32xbf16> to vector<128x32xbf16>
    %47 = vector.shape_cast %44 : vector<128x32xbf16> to vector<1x1x128x32xbf16>
    tpu.vector_store %arg11[%c0_27, %c0_28, %c0_29, %c0_30], %47 {strides = array<i32>} : memref<1x4x128x32xbf16, #tpu.memory_space<vmem>>, vector<1x1x128x32xbf16>,
    %48 = vector.extract_strided_slice %39 {offsets = [0, 0], sizes = [128, 32], strides = [1, 1]} : vector<128x128xbf16> to vector<128x32xbf16>
    %c0_31 = arith.constant 0 : index
    %c0_32 = arith.constant 0 : index
    %c0_33 = arith.constant 0 : index
    %c0_34 = arith.constant 0 : index
    %49 = vector.load %arg12[%c0_31, %c0_32, %c0_33, %c0_34] : memref<1x4x128x32xbf16, #tpu.memory_space<vmem>>, vector<1x1x128x32xbf16>
    %50 = vector.shape_cast %49 : vector<1x1x128x32xbf16> to vector<128x32xbf16>
    %51 = vector.shape_cast %48 : vector<128x32xbf16> to vector<1x1x128x32xbf16>
    tpu.vector_store %arg12[%c0_31, %c0_32, %c0_33, %c0_34], %51 {strides = array<i32>} : memref<1x4x128x32xbf16, #tpu.memory_space<vmem>>, vector<1x1x128x32xbf16>,
    %52 = vector.extract_strided_slice %30 {offsets = [0, 32], sizes = [128, 32], strides = [1, 1]} : vector<128x128xbf16> to vector<128x32xbf16>
    %c0_35 = arith.constant 0 : index
    %c1 = arith.constant 1 : index
    %c0_36 = arith.constant 0 : index
    %c0_37 = arith.constant 0 : index
    %53 = vector.load %arg10[%c0_35, %c1, %c0_36, %c0_37] : memref<1x4x128x32xbf16, #tpu.memory_space<vmem>>, vector<1x1x128x32xbf16>
    %54 = vector.shape_cast %53 : vector<1x1x128x32xbf16> to vector<128x32xbf16>
    %55 = vector.shape_cast %52 : vector<128x32xbf16> to vector<1x1x128x32xbf16>
    tpu.vector_store %arg10[%c0_35, %c1, %c0_36, %c0_37], %55 {strides = array<i32>} : memref<1x4x128x32xbf16, #tpu.memory_space<vmem>>, vector<1x1x128x32xbf16>,
    %56 = vector.extract_strided_slice %33 {offsets = [0, 32], sizes = [128, 32], strides = [1, 1]} : vector<128x128xbf16> to vector<128x32xbf16>
    %c0_38 = arith.constant 0 : index
    %c1_39 = arith.constant 1 : index
    %c0_40 = arith.constant 0 : index
    %c0_41 = arith.constant 0 : index
    %57 = vector.load %arg11[%c0_38, %c1_39, %c0_40, %c0_41] : memref<1x4x128x32xbf16, #tpu.memory_space<vmem>>, vector<1x1x128x32xbf16>
    %58 = vector.shape_cast %57 : vector<1x1x128x32xbf16> to vector<128x32xbf16>
    %59 = vector.shape_cast %56 : vector<128x32xbf16> to vector<1x1x128x32xbf16>
    tpu.vector_store %arg11[%c0_38, %c1_39, %c0_40, %c0_41], %59 {strides = array<i32>} : memref<1x4x128x32xbf16, #tpu.memory_space<vmem>>, vector<1x1x128x32xbf16>,
    %60 = vector.extract_strided_slice %39 {offsets = [0, 32], sizes = [128, 32], strides = [1, 1]} : vector<128x128xbf16> to vector<128x32xbf16>
    %c0_42 = arith.constant 0 : index
    %c1_43 = arith.constant 1 : index
    %c0_44 = arith.constant 0 : index
    %c0_45 = arith.constant 0 : index
    %61 = vector.load %arg12[%c0_42, %c1_43, %c0_44, %c0_45] : memref<1x4x128x32xbf16, #tpu.memory_space<vmem>>, vector<1x1x128x32xbf16>
    %62 = vector.shape_cast %61 : vector<1x1x128x32xbf16> to vector<128x32xbf16>
    %63 = vector.shape_cast %60 : vector<128x32xbf16> to vector<1x1x128x32xbf16>
    tpu.vector_store %arg12[%c0_42, %c1_43, %c0_44, %c0_45], %63 {strides = array<i32>} : memref<1x4x128x32xbf16, #tpu.memory_space<vmem>>, vector<1x1x128x32xbf16>,
    %64 = vector.extract_strided_slice %30 {offsets = [0, 64], sizes = [128, 32], strides = [1, 1]} : vector<128x128xbf16> to vector<128x32xbf16>
    %c0_46 = arith.constant 0 : index
    %c2 = arith.constant 2 : index
    %c0_47 = arith.constant 0 : index
    %c0_48 = arith.constant 0 : index
    %65 = vector.load %arg10[%c0_46, %c2, %c0_47, %c0_48] : memref<1x4x128x32xbf16, #tpu.memory_space<vmem>>, vector<1x1x128x32xbf16>
    %66 = vector.shape_cast %65 : vector<1x1x128x32xbf16> to vector<128x32xbf16>
    %67 = vector.shape_cast %64 : vector<128x32xbf16> to vector<1x1x128x32xbf16>
    tpu.vector_store %arg10[%c0_46, %c2, %c0_47, %c0_48], %67 {strides = array<i32>} : memref<1x4x128x32xbf16, #tpu.memory_space<vmem>>, vector<1x1x128x32xbf16>,
    %68 = vector.extract_strided_slice %33 {offsets = [0, 64], sizes = [128, 32], strides = [1, 1]} : vector<128x128xbf16> to vector<128x32xbf16>
    %c0_49 = arith.constant 0 : index
    %c2_50 = arith.constant 2 : index
    %c0_51 = arith.constant 0 : index
    %c0_52 = arith.constant 0 : index
    %69 = vector.load %arg11[%c0_49, %c2_50, %c0_51, %c0_52] : memref<1x4x128x32xbf16, #tpu.memory_space<vmem>>, vector<1x1x128x32xbf16>
    %70 = vector.shape_cast %69 : vector<1x1x128x32xbf16> to vector<128x32xbf16>
    %71 = vector.shape_cast %68 : vector<128x32xbf16> to vector<1x1x128x32xbf16>
    tpu.vector_store %arg11[%c0_49, %c2_50, %c0_51, %c0_52], %71 {strides = array<i32>} : memref<1x4x128x32xbf16, #tpu.memory_space<vmem>>, vector<1x1x128x32xbf16>,
    %72 = vector.extract_strided_slice %39 {offsets = [0, 64], sizes = [128, 32], strides = [1, 1]} : vector<128x128xbf16> to vector<128x32xbf16>
    %c0_53 = arith.constant 0 : index
    %c2_54 = arith.constant 2 : index
    %c0_55 = arith.constant 0 : index
    %c0_56 = arith.constant 0 : index
    %73 = vector.load %arg12[%c0_53, %c2_54, %c0_55, %c0_56] : memref<1x4x128x32xbf16, #tpu.memory_space<vmem>>, vector<1x1x128x32xbf16>
    %74 = vector.shape_cast %73 : vector<1x1x128x32xbf16> to vector<128x32xbf16>
    %75 = vector.shape_cast %72 : vector<128x32xbf16> to vector<1x1x128x32xbf16>
    tpu.vector_store %arg12[%c0_53, %c2_54, %c0_55, %c0_56], %75 {strides = array<i32>} : memref<1x4x128x32xbf16, #tpu.memory_space<vmem>>, vector<1x1x128x32xbf16>,
    %76 = vector.extract_strided_slice %30 {offsets = [0, 96], sizes = [128, 32], strides = [1, 1]} : vector<128x128xbf16> to vector<128x32xbf16>
    %c0_57 = arith.constant 0 : index
    %c3 = arith.constant 3 : index
    %c0_58 = arith.constant 0 : index
    %c0_59 = arith.constant 0 : index
    %77 = vector.load %arg10[%c0_57, %c3, %c0_58, %c0_59] : memref<1x4x128x32xbf16, #tpu.memory_space<vmem>>, vector<1x1x128x32xbf16>
    %78 = vector.shape_cast %77 : vector<1x1x128x32xbf16> to vector<128x32xbf16>
    %79 = vector.shape_cast %76 : vector<128x32xbf16> to vector<1x1x128x32xbf16>
    tpu.vector_store %arg10[%c0_57, %c3, %c0_58, %c0_59], %79 {strides = array<i32>} : memref<1x4x128x32xbf16, #tpu.memory_space<vmem>>, vector<1x1x128x32xbf16>,
    %80 = vector.extract_strided_slice %33 {offsets = [0, 96], sizes = [128, 32], strides = [1, 1]} : vector<128x128xbf16> to vector<128x32xbf16>
    %c0_60 = arith.constant 0 : index
    %c3_61 = arith.constant 3 : index
    %c0_62 = arith.constant 0 : index
    %c0_63 = arith.constant 0 : index
    %81 = vector.load %arg11[%c0_60, %c3_61, %c0_62, %c0_63] : memref<1x4x128x32xbf16, #tpu.memory_space<vmem>>, vector<1x1x128x32xbf16>
    %82 = vector.shape_cast %81 : vector<1x1x128x32xbf16> to vector<128x32xbf16>
    %83 = vector.shape_cast %80 : vector<128x32xbf16> to vector<1x1x128x32xbf16>
    tpu.vector_store %arg11[%c0_60, %c3_61, %c0_62, %c0_63], %83 {strides = array<i32>} : memref<1x4x128x32xbf16, #tpu.memory_space<vmem>>, vector<1x1x128x32xbf16>,
    %84 = vector.extract_strided_slice %39 {offsets = [0, 96], sizes = [128, 32], strides = [1, 1]} : vector<128x128xbf16> to vector<128x32xbf16>
    %c0_64 = arith.constant 0 : index
    %c3_65 = arith.constant 3 : index
    %c0_66 = arith.constant 0 : index
    %c0_67 = arith.constant 0 : index
    %85 = vector.load %arg12[%c0_64, %c3_65, %c0_66, %c0_67] : memref<1x4x128x32xbf16, #tpu.memory_space<vmem>>, vector<1x1x128x32xbf16>
    %86 = vector.shape_cast %85 : vector<1x1x128x32xbf16> to vector<128x32xbf16>
    %87 = vector.shape_cast %84 : vector<128x32xbf16> to vector<1x1x128x32xbf16>
    tpu.vector_store %arg12[%c0_64, %c3_65, %c0_66, %c0_67], %87 {strides = array<i32>} : memref<1x4x128x32xbf16, #tpu.memory_space<vmem>>, vector<1x1x128x32xbf16>,
    return
  }
  func.func @transform_0(%arg0: i32, %arg1: i32) -> (i32, i32, i32) {
    %c0_i32 = arith.constant 0 : i32
    %c0_i32_0 = arith.constant 0 : i32
    return %arg0, %arg1, %c0_i32 : i32, i32, i32
  }
  func.func @transform_1(%arg0: i32, %arg1: i32) -> (i32, i32) {
    %c0_i32 = arith.constant 0 : i32
    %c0_i32_0 = arith.constant 0 : i32
    %c0_i32_1 = arith.constant 0 : i32
    return %c0_i32, %c0_i32_0 : i32, i32
  }
  func.func @transform_2(%arg0: i32, %arg1: i32) -> (i32, i32) {
    %c0_i32 = arith.constant 0 : i32
    %c0_i32_0 = arith.constant 0 : i32
    %c0_i32_1 = arith.constant 0 : i32
    return %c0_i32, %c0_i32_0 : i32, i32
  }
  func.func @transform_3(%arg0: i32, %arg1: i32) -> (i32, i32) {
    %c0_i32 = arith.constant 0 : i32
    %c0_i32_0 = arith.constant 0 : i32
    %c0_i32_1 = arith.constant 0 : i32
    return %c0_i32, %c0_i32_0 : i32, i32
  }
  func.func @transform_4(%arg0: i32, %arg1: i32) -> (i32, i32) {
    %c0_i32 = arith.constant 0 : i32
    %c0_i32_0 = arith.constant 0 : i32
    %c0_i32_1 = arith.constant 0 : i32
    return %c0_i32, %c0_i32_0 : i32, i32
  }
  func.func @transform_5(%arg0: i32, %arg1: i32) -> (i32, i32) {
    %c0_i32 = arith.constant 0 : i32
    %c0_i32_0 = arith.constant 0 : i32
    %c0_i32_1 = arith.constant 0 : i32
    return %c0_i32, %c0_i32_0 : i32, i32
  }
  func.func @transform_6(%arg0: i32, %arg1: i32) -> (i32, i32) {
    %c0_i32 = arith.constant 0 : i32
    %c0_i32_0 = arith.constant 0 : i32
    %c0_i32_1 = arith.constant 0 : i32
    return %c0_i32, %c0_i32_0 : i32, i32
  }
  func.func @transform_7(%arg0: i32, %arg1: i32) -> (i32, i32) {
    %c0_i32 = arith.constant 0 : i32
    %c0_i32_0 = arith.constant 0 : i32
    %c0_i32_1 = arith.constant 0 : i32
    return %c0_i32, %c0_i32_0 : i32, i32
  }
  func.func @transform_8(%arg0: i32, %arg1: i32) -> (i32, i32, i32, i32) {
    %c0_i32 = arith.constant 0 : i32
    %c0_i32_0 = arith.constant 0 : i32
    %c0_i32_1 = arith.constant 0 : i32
    return %arg0, %c0_i32, %arg1, %c0_i32_0 : i32, i32, i32, i32
  }
  func.func @transform_9(%arg0: i32, %arg1: i32) -> (i32, i32, i32, i32) {
    %c0_i32 = arith.constant 0 : i32
    %c0_i32_0 = arith.constant 0 : i32
    %c0_i32_1 = arith.constant 0 : i32
    return %arg0, %c0_i32, %arg1, %c0_i32_0 : i32, i32, i32, i32
  }
  func.func @transform_10(%arg0: i32, %arg1: i32) -> (i32, i32, i32, i32) {
    %c0_i32 = arith.constant 0 : i32
    %c0_i32_0 = arith.constant 0 : i32
    %c0_i32_1 = arith.constant 0 : i32
    return %arg0, %c0_i32, %arg1, %c0_i32_0 : i32, i32, i32, i32
  }
}

</mosaic_0001>

<llo_original>
// kernel: tpu_custom_call.1
$region0: #{tpu_custom_call.1}
  #allocation0 [shape = 'u32[]', space=smem, size = 0x4, offset = 0x4, fixed_abs, tag = 'smem constant byte address 0x4 - core index']
  #allocation1 [shape = 'u32[72,128]{1,0:T(1,128)}', space=vmem, size = 0x9000, scoped, tag = 'internal scratch']
  %s0 = inlined_call_operand.hbm [shape: f32[2,256,128], index: 0, kind: input, shape index: {}]
  %s1 = inlined_call_operand.hbm [shape: f32[1,128], index: 1, kind: input, shape index: {}]
  %s2 = inlined_call_operand.vmem [shape: f32[1,128], index: 2, kind: input, shape index: {}]
  %s3 = inlined_call_operand.hbm [shape: bf16[128,128], index: 3, kind: input, shape index: {}]
  %s4 = inlined_call_operand.vmem [shape: f32[1,128], index: 4, kind: input, shape index: {}]
  %s5 = inlined_call_operand.hbm [shape: bf16[128,128], index: 5, kind: input, shape index: {}]
  %s6 = inlined_call_operand.hbm [shape: bf16[128,128], index: 6, kind: input, shape index: {}]
  %s7 = inlined_call_operand.vmem [shape: f32[1,128], index: 7, kind: input, shape index: {}]
  %s8 = inlined_call_operand.vmem [shape: bf16[2,4,256,32], index: 8, kind: output, shape index: {0}]
  %s9 = inlined_call_operand.vmem [shape: bf16[2,4,256,32], index: 9, kind: output, shape index: {1}]
  %s10 = inlined_call_operand.vmem [shape: bf16[2,4,256,32], index: 10, kind: output, shape index: {2}]
  %11 = xla_tuple %s8, %s9, %s10
  %s12 = sld [smem:[#allocation0]]
  $region212: #{tpu_custom_call.1} parent=0
    _
  %s14 = ssub.s32 1, %s12
  %s15 = scalar_select 0, %s14, %s12
  $region1: #{tpu_custom_call.1} parent=0
    #allocation2 [shape = 'u8[131072]{0}', space=vmem, size = 0x20000, scoped, tag = 'input window, operand 0']
    #allocation3 [shape = 's32[2]{0}', space=sflag, size = 0x8, scoped, tag = 'scoped memory for tpu_custom_call.1']
    #allocation4 [shape = 'u8[512]{0}', space=vmem, size = 0x400, scoped, tag = 'input window, operand 1, single buffered']
    #allocation5 [shape = 's32[1]{0}', space=sflag, size = 0x4, scoped, tag = 'scoped memory for tpu_custom_call.1']
    #allocation6 [shape = 'u8[32768]{0}', space=vmem, size = 0x8000, scoped, tag = 'input window, operand 3, single buffered']
    #allocation7 [shape = 'u8[32768]{0}', space=vmem, size = 0x8000, scoped, tag = 'input window, operand 5, single buffered']
    #allocation8 [shape = 's32[1]{0}', space=sflag, size = 0x4, scoped, tag = 'scoped memory for tpu_custom_call.1']
    #allocation9 [shape = 'u8[32768]{0}', space=vmem, size = 0x8000, scoped, tag = 'input window, operand 6, single buffered']
    #allocation10 [shape = 'u8[262144]{0}', space=vmem, size = 0x40000, scoped, tag = 'output window, operand 0']
    #allocation11 [shape = 'u8[262144]{0}', space=vmem, size = 0x40000, scoped, tag = 'output window, operand 1']
    #allocation12 [shape = 'u8[262144]{0}', space=vmem, size = 0x40000, scoped, tag = 'output window, operand 2']
    %16 = vsyncpa [#allocation3], 0
    %s17 = scalar_lea.sflag [#allocation3], 1
    %18 = vsyncpa %s17, 0
    %19 = vsyncpa [#allocation5], 0
    %20 = vsyncpa [#allocation8], 0
    loop: start=0, step=1, limit=6
    $region2: #{tpu_custom_call.1} parent=1 // loop_pre_header
      _
    $region3: #{tpu_custom_call.1} parent=1 // loop_header
      %s22 = sphi 0, %s26
      %p23 = scmp.ge.s32.totalorder %s22, 6
      %s29 = sphi 0, %s41
      %s30 = sphi 0, %s37
      %s31 = sphi 0, %s29
      %s32 = sphi 0, %s30
      %s33 = sphi 0, %s31
      %s34 = sphi 0, %s32
      %s46 = sphi 0, %s48
      %s49 = sphi 0, %s46
      %s50 = sphi 0, %s49
      %s66 = sphi 0, %s50
      %s70 = sphi 0, %s70
      %s72 = sphi 0, %s70
      %s73 = sphi 0, %s72
      %s87 = sphi 0, %s73
      %s91 = sphi 0, %s91
      %s93 = sphi 0, %s91
      %s94 = sphi 0, %s93
      %s108 = sphi 0, %s94
      %s112 = sphi 0, %s112
      %s114 = sphi 0, %s112
      %s115 = sphi 0, %s114
      %s129 = sphi 0, %s115
      %s133 = sphi 0, %s133
      %s135 = sphi 0, %s133
      %s136 = sphi 0, %s135
      %s150 = sphi 0, %s136
      %s154 = sphi 0, %s154
      %s156 = sphi 0, %s154
      %s157 = sphi 0, %s156
      %s171 = sphi 0, %s157
      %s175 = sphi 0, %s175
      %s177 = sphi 0, %s175
      %s178 = sphi 0, %s177
      %s192 = sphi 0, %s178
      %s196 = sphi 0, %s196
      %s198 = sphi 0, %s196
      %s199 = sphi 0, %s198
      %s213 = sphi 0, %s199
      %s221 = sphi 0, %s223
      %s224 = sphi 0, %s221
      %s225 = sphi 0, %s224
      %s241 = sphi 0, %s225
      %s249 = sphi 0, %s251
      %s252 = sphi 0, %s249
      %s253 = sphi 0, %s252
      %s269 = sphi 0, %s253
      %s277 = sphi 0, %s279
      %s280 = sphi 0, %s277
      %s281 = sphi 0, %s280
      %s297 = sphi 0, %s281
    $region4: #{tpu_custom_call.1} parent=1 // loop_header_branch
      %25 = sbr.rel (%p23) target = $region8
    $region5: #{tpu_custom_call.1} parent=1 // loop_body
      %s27 = ssub.s32 %s22, 1
      %s28 = ssub.s32 %s22, 2
      %s35 = sadd.s32 1, %s30
      %p36 = scmp.ge.s32.totalorder %s35, 2
      %s37 = scalar_select %p36, 0, %s35
      %s38 = sadd.s32 1, %s29
      %s39 = scalar_select %p36, %s38, %s29
      %p40 = scmp.ge.s32.totalorder %s39, 2
      %s41 = scalar_select %p40, 0, %s39
      %s42 = ssub.s32 %s29, %s41
      %s43 = ssub.s32 %s30, %s37
      %s44 = sor.u32 %s42, %s43
      %p45 = scmp.eq.s32.totalorder %s44, 0
      %s47 = sadd.s32 %s46, 1
      %s48 = scalar_select %p45, %s46, %s47
      %p51 = pneg %p45
      %p52 = scmp.eq.s32.totalorder %s22, 3
      %p53 = por %p51, %p52
      %p54 = scmp.ne.s32.totalorder %s46, %s49
      %p55 = scmp.eq.s32.totalorder %s22, 0
      %p56 = por %p54, %p55
      %p57 = scmp.ne.s32.totalorder %s46, %s49
      %p58 = scmp.eq.s32.totalorder %s27, 3
      %p59 = por %p57, %p58
      %p60 = scmp.ne.s32.totalorder %s49, %s50
      %p61 = scmp.eq.s32.totalorder %s27, 0
      %p62 = por %p60, %p61
      %p63 = scmp.ne.s32.totalorder %s49, %s50
      %p64 = scmp.eq.s32.totalorder %s28, 3
      %p65 = por %p63, %p64
      %p67 = scmp.ne.s32.totalorder %s50, %s66
      %p68 = scmp.eq.s32.totalorder %s28, 0
      %p69 = por %p67, %p68
      %s71 = sadd.s32 %s70, 1
      %p74 = scmp.eq.s32.totalorder %s22, 3
      %p75 = scmp.ne.s32.totalorder %s70, %s72
      %p76 = scmp.eq.s32.totalorder %s22, 0
      %p77 = por %p75, %p76
      %p78 = scmp.ne.s32.totalorder %s70, %s72
      %p79 = scmp.eq.s32.totalorder %s27, 3
      %p80 = por %p78, %p79
      %p81 = scmp.ne.s32.totalorder %s72, %s73
      %p82 = scmp.eq.s32.totalorder %s27, 0
      %p83 = por %p81, %p82
      %p84 = scmp.ne.s32.totalorder %s72, %s73
      %p85 = scmp.eq.s32.totalorder %s28, 3
      %p86 = por %p84, %p85
      %p88 = scmp.ne.s32.totalorder %s73, %s87
      %p89 = scmp.eq.s32.totalorder %s28, 0
      %p90 = por %p88, %p89
      %s92 = sadd.s32 %s91, 1
      %p95 = scmp.eq.s32.totalorder %s22, 3
      %p96 = scmp.ne.s32.totalorder %s91, %s93
      %p97 = scmp.eq.s32.totalorder %s22, 0
      %p98 = por %p96, %p97
      %p99 = scmp.ne.s32.totalorder %s91, %s93
      %p100 = scmp.eq.s32.totalorder %s27, 3
      %p101 = por %p99, %p100
      %p102 = scmp.ne.s32.totalorder %s93, %s94
      %p103 = scmp.eq.s32.totalorder %s27, 0
      %p104 = por %p102, %p103
      %p105 = scmp.ne.s32.totalorder %s93, %s94
      %p106 = scmp.eq.s32.totalorder %s28, 3
      %p107 = por %p105, %p106
      %p109 = scmp.ne.s32.totalorder %s94, %s108
      %p110 = scmp.eq.s32.totalorder %s28, 0
      %p111 = por %p109, %p110
      %s113 = sadd.s32 %s112, 1
      %p116 = scmp.eq.s32.totalorder %s22, 3
      %p117 = scmp.ne.s32.totalorder %s112, %s114
      %p118 = scmp.eq.s32.totalorder %s22, 0
      %p119 = por %p117, %p118
      %p120 = scmp.ne.s32.totalorder %s112, %s114
      %p121 = scmp.eq.s32.totalorder %s27, 3
      %p122 = por %p120, %p121
      %p123 = scmp.ne.s32.totalorder %s114, %s115
      %p124 = scmp.eq.s32.totalorder %s27, 0
      %p125 = por %p123, %p124
      %p126 = scmp.ne.s32.totalorder %s114, %s115
      %p127 = scmp.eq.s32.totalorder %s28, 3
      %p128 = por %p126, %p127
      %p130 = scmp.ne.s32.totalorder %s115, %s129
      %p131 = scmp.eq.s32.totalorder %s28, 0
      %p132 = por %p130, %p131
      %s134 = sadd.s32 %s133, 1
      %p137 = scmp.eq.s32.totalorder %s22, 3
      %p138 = scmp.ne.s32.totalorder %s133, %s135
      %p139 = scmp.eq.s32.totalorder %s22, 0
      %p140 = por %p138, %p139
      %p141 = scmp.ne.s32.totalorder %s133, %s135
      %p142 = scmp.eq.s32.totalorder %s27, 3
      %p143 = por %p141, %p142
      %p144 = scmp.ne.s32.totalorder %s135, %s136
      %p145 = scmp.eq.s32.totalorder %s27, 0
      %p146 = por %p144, %p145
      %p147 = scmp.ne.s32.totalorder %s135, %s136
      %p148 = scmp.eq.s32.totalorder %s28, 3
      %p149 = por %p147, %p148
      %p151 = scmp.ne.s32.totalorder %s136, %s150
      %p152 = scmp.eq.s32.totalorder %s28, 0
      %p153 = por %p151, %p152
      %s155 = sadd.s32 %s154, 1
      %p158 = scmp.eq.s32.totalorder %s22, 3
      %p159 = scmp.ne.s32.totalorder %s154, %s156
      %p160 = scmp.eq.s32.totalorder %s22, 0
      %p161 = por %p159, %p160
      %p162 = scmp.ne.s32.totalorder %s154, %s156
      %p163 = scmp.eq.s32.totalorder %s27, 3
      %p164 = por %p162, %p163
      %p165 = scmp.ne.s32.totalorder %s156, %s157
      %p166 = scmp.eq.s32.totalorder %s27, 0
      %p167 = por %p165, %p166
      %p168 = scmp.ne.s32.totalorder %s156, %s157
      %p169 = scmp.eq.s32.totalorder %s28, 3
      %p170 = por %p168, %p169
      %p172 = scmp.ne.s32.totalorder %s157, %s171
      %p173 = scmp.eq.s32.totalorder %s28, 0
      %p174 = por %p172, %p173
      %s176 = sadd.s32 %s175, 1
      %p179 = scmp.eq.s32.totalorder %s22, 3
      %p180 = scmp.ne.s32.totalorder %s175, %s177
      %p181 = scmp.eq.s32.totalorder %s22, 0
      %p182 = por %p180, %p181
      %p183 = scmp.ne.s32.totalorder %s175, %s177
      %p184 = scmp.eq.s32.totalorder %s27, 3
      %p185 = por %p183, %p184
      %p186 = scmp.ne.s32.totalorder %s177, %s178
      %p187 = scmp.eq.s32.totalorder %s27, 0
      %p188 = por %p186, %p187
      %p189 = scmp.ne.s32.totalorder %s177, %s178
      %p190 = scmp.eq.s32.totalorder %s28, 3
      %p191 = por %p189, %p190
      %p193 = scmp.ne.s32.totalorder %s178, %s192
      %p194 = scmp.eq.s32.totalorder %s28, 0
      %p195 = por %p193, %p194
      %s197 = sadd.s32 %s196, 1
      %p200 = scmp.eq.s32.totalorder %s22, 3
      %p201 = scmp.ne.s32.totalorder %s196, %s198
      %p202 = scmp.eq.s32.totalorder %s22, 0
      %p203 = por %p201, %p202
      %p204 = scmp.ne.s32.totalorder %s196, %s198
      %p205 = scmp.eq.s32.totalorder %s27, 3
      %p206 = por %p204, %p205
      %p207 = scmp.ne.s32.totalorder %s198, %s199
      %p208 = scmp.eq.s32.totalorder %s27, 0
      %p209 = por %p207, %p208
      %p210 = scmp.ne.s32.totalorder %s198, %s199
      %p211 = scmp.eq.s32.totalorder %s28, 3
      %p212 = por %p210, %p211
      %p214 = scmp.ne.s32.totalorder %s199, %s213
      %p215 = scmp.eq.s32.totalorder %s28, 0
      %p216 = por %p214, %p215
      %s217 = ssub.s32 %s29, %s41
      %s218 = ssub.s32 %s30, %s37
      %s219 = sor.u32 %s217, %s218
      %p220 = scmp.eq.s32.totalorder %s219, 0
      %s222 = sadd.s32 %s221, 1
      %s223 = scalar_select %p220, %s221, %s222
      %p226 = pneg %p220
      %p227 = scmp.eq.s32.totalorder %s22, 3
      %p228 = por %p226, %p227
      %p229 = scmp.ne.s32.totalorder %s221, %s224
      %p230 = scmp.eq.s32.totalorder %s22, 0
      %p231 = por %p229, %p230
      %p232 = scmp.ne.s32.totalorder %s221, %s224
      %p233 = scmp.eq.s32.totalorder %s27, 3
      %p234 = por %p232, %p233
      %p235 = scmp.ne.s32.totalorder %s224, %s225
      %p236 = scmp.eq.s32.totalorder %s27, 0
      %p237 = por %p235, %p236
      %p238 = scmp.ne.s32.totalorder %s224, %s225
      %p239 = scmp.eq.s32.totalorder %s28, 3
      %p240 = por %p238, %p239
      %p242 = scmp.ne.s32.totalorder %s225, %s241
      %p243 = scmp.eq.s32.totalorder %s28, 0
      %p244 = por %p242, %p243
      %s245 = ssub.s32 %s29, %s41
      %s246 = ssub.s32 %s30, %s37
      %s247 = sor.u32 %s245, %s246
      %p248 = scmp.eq.s32.totalorder %s247, 0
      %s250 = sadd.s32 %s249, 1
      %s251 = scalar_select %p248, %s249, %s250
      %p254 = pneg %p248
      %p255 = scmp.eq.s32.totalorder %s22, 3
      %p256 = por %p254, %p255
      %p257 = scmp.ne.s32.totalorder %s249, %s252
      %p258 = scmp.eq.s32.totalorder %s22, 0
      %p259 = por %p257, %p258
      %p260 = scmp.ne.s32.totalorder %s249, %s252
      %p261 = scmp.eq.s32.totalorder %s27, 3
      %p262 = por %p260, %p261
      %p263 = scmp.ne.s32.totalorder %s252, %s253
      %p264 = scmp.eq.s32.totalorder %s27, 0
      %p265 = por %p263, %p264
      %p266 = scmp.ne.s32.totalorder %s252, %s253
      %p267 = scmp.eq.s32.totalorder %s28, 3
      %p268 = por %p266, %p267
      %p270 = scmp.ne.s32.totalorder %s253, %s269
      %p271 = scmp.eq.s32.totalorder %s28, 0
      %p272 = por %p270, %p271
      %s273 = ssub.s32 %s29, %s41
      %s274 = ssub.s32 %s30, %s37
      %s275 = sor.u32 %s273, %s274
      %p276 = scmp.eq.s32.totalorder %s275, 0
      %s278 = sadd.s32 %s277, 1
      %s279 = scalar_select %p276, %s277, %s278
      %p282 = pneg %p276
      %p283 = scmp.eq.s32.totalorder %s22, 3
      %p284 = por %p282, %p283
      %p285 = scmp.ne.s32.totalorder %s277, %s280
      %p286 = scmp.eq.s32.totalorder %s22, 0
      %p287 = por %p285, %p286
      %p288 = scmp.ne.s32.totalorder %s277, %s280
      %p289 = scmp.eq.s32.totalorder %s27, 3
      %p290 = por %p288, %p289
      %p291 = scmp.ne.s32.totalorder %s280, %s281
      %p292 = scmp.eq.s32.totalorder %s27, 0
      %p293 = por %p291, %p292
      %p294 = scmp.ne.s32.totalorder %s280, %s281
      %p295 = scmp.eq.s32.totalorder %s28, 3
      %p296 = por %p294, %p295
      %p298 = scmp.ne.s32.totalorder %s281, %s297
      %p299 = scmp.eq.s32.totalorder %s28, 0
      %p300 = por %p298, %p299
      %p301 = scmp.le.s32.totalorder 1, %s22
      %p302 = scmp.lt.s32.totalorder %s22, 5
      %p303 = pnand %p301, %p302
      %p304 = pneg %p303
      // Predicated region
      $region9: #{tpu_custom_call.1} parent=5 // pred_check
        _
      $region10: #{tpu_custom_call.1} parent=5 // pred_check_branch
        %306 = sbr.rel (%p303) target = $region12
      $region11: #{tpu_custom_call.1} parent=5 // pred_region
        %s307 = ssub.s32 %s22, 1
        // Predicated region
        $region13: #{tpu_custom_call.1} parent=11 // pred_check
          %p308 = pneg %p83
        $region14: #{tpu_custom_call.1} parent=11 // pred_check_branch
          %310 = sbr.rel (%p308) target = $region16
        $region15: #{tpu_custom_call.1} parent=11 // pred_region
          %312 = vsyncadd [#allocation5], 0
          %s314 = sshll.u32 %s1, 4
          %s315 = int_to_ptr.hbm [resolvable:$true] %s314
          %s316 = sshll.u32 [#allocation4], 4
          %s317 = int_to_ptr.vmem [resolvable:$true] %s316
          %319 = dma.hbm_to_vmem [thread:$0]  %s315, 16, %s317, [#allocation5]
        $region16: #{tpu_custom_call.1} parent=11 // pred_fallthru
          _
        // Predicated region
        $region17: #{tpu_custom_call.1} parent=11 // pred_check
          %p320 = pneg %p104
        $region18: #{tpu_custom_call.1} parent=11 // pred_check_branch
          %322 = sbr.rel (%p320) target = $region20
        $region19: #{tpu_custom_call.1} parent=11 // pred_region
          _
        $region20: #{tpu_custom_call.1} parent=11 // pred_fallthru
          _
        // Predicated region
        $region21: #{tpu_custom_call.1} parent=11 // pred_check
          %p323 = pneg %p125
        $region22: #{tpu_custom_call.1} parent=11 // pred_check_branch
          %325 = sbr.rel (%p323) target = $region24
        $region23: #{tpu_custom_call.1} parent=11 // pred_region
          %327 = vsyncadd [#allocation5], 0
          %s328 = sshll.u32 %s3, 4
          %s329 = int_to_ptr.hbm [resolvable:$true] %s328
          %s330 = sshll.u32 [#allocation6], 4
          %s331 = int_to_ptr.vmem [resolvable:$true] %s330
          %336 = dma.hbm_to_vmem [thread:$0]  %s329, 1024, %s331, [#allocation5], 64, 64, 4
        $region24: #{tpu_custom_call.1} parent=11 // pred_fallthru
          _
        // Predicated region
        $region25: #{tpu_custom_call.1} parent=11 // pred_check
          %p337 = pneg %p146
        $region26: #{tpu_custom_call.1} parent=11 // pred_check_branch
          %339 = sbr.rel (%p337) target = $region28
        $region27: #{tpu_custom_call.1} parent=11 // pred_region
          _
        $region28: #{tpu_custom_call.1} parent=11 // pred_fallthru
          _
        // Predicated region
        $region29: #{tpu_custom_call.1} parent=11 // pred_check
          %p340 = pneg %p167
        $region30: #{tpu_custom_call.1} parent=11 // pred_check_branch
          %342 = sbr.rel (%p340) target = $region32
        $region31: #{tpu_custom_call.1} parent=11 // pred_region
          %344 = vsyncadd [#allocation8], 0
          %s345 = sshll.u32 %s5, 4
          %s346 = int_to_ptr.hbm [resolvable:$true] %s345
          %s347 = sshll.u32 [#allocation7], 4
          %s348 = int_to_ptr.vmem [resolvable:$true] %s347
          %353 = dma.hbm_to_vmem [thread:$0]  %s346, 1024, %s348, [#allocation8], 64, 64, 4
        $region32: #{tpu_custom_call.1} parent=11 // pred_fallthru
          _
        // Predicated region
        $region33: #{tpu_custom_call.1} parent=11 // pred_check
          %p354 = pneg %p188
        $region34: #{tpu_custom_call.1} parent=11 // pred_check_branch
          %356 = sbr.rel (%p354) target = $region36
        $region35: #{tpu_custom_call.1} parent=11 // pred_region
          %358 = vsyncadd [#allocation8], 0
          %s359 = sshll.u32 %s6, 4
          %s360 = int_to_ptr.hbm [resolvable:$true] %s359
          %s361 = sshll.u32 [#allocation9], 4
          %s362 = int_to_ptr.vmem [resolvable:$true] %s361
          %367 = dma.hbm_to_vmem [thread:$0]  %s360, 1024, %s362, [#allocation8], 64, 64, 4
        $region36: #{tpu_custom_call.1} parent=11 // pred_fallthru
          _
        // Predicated region
        $region37: #{tpu_custom_call.1} parent=11 // pred_check
          %p368 = pneg %p209
        $region38: #{tpu_custom_call.1} parent=11 // pred_check_branch
          %370 = sbr.rel (%p368) target = $region40
        $region39: #{tpu_custom_call.1} parent=11 // pred_region
          _
        $region40: #{tpu_custom_call.1} parent=11 // pred_fallthru
          _
      $region12: #{tpu_custom_call.1} parent=5 // pred_fallthru
        _
      %p371 = scmp.lt.s32.totalorder %s22, 4
      // Predicated region
      $region41: #{tpu_custom_call.1} parent=5 // pred_check
        %p372 = pneg %p371
      $region42: #{tpu_custom_call.1} parent=5 // pred_check_branch
        %374 = sbr.rel (%p372) target = $region44
      $region43: #{tpu_custom_call.1} parent=5 // pred_region
        // Predicated region
        $region45: #{tpu_custom_call.1} parent=43 // pred_check
          %p375 = pneg %p56
        $region46: #{tpu_custom_call.1} parent=43 // pred_check_branch
          %377 = sbr.rel (%p375) target = $region48
        $region47: #{tpu_custom_call.1} parent=43 // pred_region
          %s378 = sand.u32 %s46, 1
          %s379 = scalar_lea.sflag [#allocation3], %s378
          %s380 = sand.u32 %s46, 1
          %s381 = smul.addr %s380, 128
          %s382 = scalar_lea.vmem [#allocation2], %s381
          %s383 = smul.u32 16, %s30
          %385 = vsyncadd %s379, 0
          %s386 = smul.addr %s29, 32
          %s387 = sadd.s32 %s383, %s386
          %s388 = smul.addr %s387, 8
          %s389 = scalar_lea.hbm %s0, %s388
          %s390 = sshll.u32 %s389, 4
          %s391 = int_to_ptr.hbm [resolvable:$true] %s390
          %s392 = sshll.u32 %s382, 4
          %s393 = int_to_ptr.vmem [resolvable:$true] %s392
          %398 = dma.hbm_to_vmem [thread:$0]  %s391, 2048, %s393, %s379, 128, 128, 8
        $region48: #{tpu_custom_call.1} parent=43 // pred_fallthru
          _
      $region44: #{tpu_custom_call.1} parent=5 // pred_fallthru
        _
      %p399 = scmp.le.s32.totalorder 1, %s22
      %p400 = scmp.lt.s32.totalorder %s22, 5
      %p401 = pnand %p399, %p400
      %p402 = pneg %p401
      // Predicated region
      $region49: #{tpu_custom_call.1} parent=5 // pred_check
        _
      $region50: #{tpu_custom_call.1} parent=5 // pred_check_branch
        %404 = sbr.rel (%p401) target = $region52
      $region51: #{tpu_custom_call.1} parent=5 // pred_region
        %s405 = ssub.s32 %s22, 1
        %s406 = sand.u32 %s49, 1
        %s407 = scalar_lea.sflag [#allocation3], %s406
        %s408 = sand.u32 %s49, 1
        %s409 = smul.addr %s408, 128
        %s410 = scalar_lea.vmem [#allocation2], %s409
        // Predicated region
        $region53: #{tpu_custom_call.1} parent=51 // pred_check
          %p411 = pneg %p62
        $region54: #{tpu_custom_call.1} parent=51 // pred_check_branch
          %413 = sbr.rel (%p411) target = $region56
        $region55: #{tpu_custom_call.1} parent=51 // pred_region
          %415 = dma.done %s407, 2048
        $region56: #{tpu_custom_call.1} parent=51 // pred_fallthru
          _
        // Predicated region
        $region57: #{tpu_custom_call.1} parent=51 // pred_check
          %p416 = pneg %p83
        $region58: #{tpu_custom_call.1} parent=51 // pred_check_branch
          %418 = sbr.rel (%p416) target = $region60
        $region59: #{tpu_custom_call.1} parent=51 // pred_region
          %420 = dma.done [#allocation5], 16
        $region60: #{tpu_custom_call.1} parent=51 // pred_fallthru
          _
        // Predicated region
        $region61: #{tpu_custom_call.1} parent=51 // pred_check
          %p421 = pneg %p125
        $region62: #{tpu_custom_call.1} parent=51 // pred_check_branch
          %423 = sbr.rel (%p421) target = $region64
        $region63: #{tpu_custom_call.1} parent=51 // pred_region
          %425 = dma.done [#allocation5], 1024
        $region64: #{tpu_custom_call.1} parent=51 // pred_fallthru
          _
        // Predicated region
        $region65: #{tpu_custom_call.1} parent=51 // pred_check
          %p426 = pneg %p167
        $region66: #{tpu_custom_call.1} parent=51 // pred_check_branch
          %428 = sbr.rel (%p426) target = $region68
        $region67: #{tpu_custom_call.1} parent=51 // pred_region
          %430 = dma.done [#allocation8], 1024
        $region68: #{tpu_custom_call.1} parent=51 // pred_fallthru
          _
        // Predicated region
        $region69: #{tpu_custom_call.1} parent=51 // pred_check
          %p431 = pneg %p188
        $region70: #{tpu_custom_call.1} parent=51 // pred_check_branch
          %433 = sbr.rel (%p431) target = $region72
        $region71: #{tpu_custom_call.1} parent=51 // pred_region
          %435 = dma.done [#allocation8], 1024
        $region72: #{tpu_custom_call.1} parent=51 // pred_fallthru
          _
        %s436 = sand.u32 %s49, 1
        %s437 = scalar_lea.sflag [#allocation3], %s436
        %s438 = sand.u32 %s49, 1
        %s439 = smul.addr %s438, 128
        %s440 = scalar_lea.vmem [#allocation2], %s439
        %p441 = pneg %p62
        %p442 = pneg %p59
        %p443 = pneg %p83
        %p444 = pneg %p80
        %p445 = pneg %p104
        %p446 = pneg %p101
        %p447 = pneg %p125
        %p448 = pneg %p122
        %p449 = pneg %p146
        %p450 = pneg %p143
        %p451 = pneg %p167
        %p452 = pneg %p164
        %p453 = pneg %p188
        %p454 = pneg %p185
        %p455 = pneg %p209
        %p456 = pneg %p206
        %p457 = pneg %p237
        %p458 = pneg %p234
        %s459 = sand.u32 %s224, 1
        %s460 = sand.u32 %s224, 1
        %s461 = smul.addr %s460, 256
        %s462 = scalar_lea.vmem [#allocation10], %s461
        %p463 = pneg %p265
        %p464 = pneg %p262
        %s465 = sand.u32 %s252, 1
        %s466 = sand.u32 %s252, 1
        %s467 = smul.addr %s466, 256
        %s468 = scalar_lea.vmem [#allocation11], %s467
        %p469 = pneg %p293
        %p470 = pneg %p290
        %s471 = sand.u32 %s280, 1
        %s472 = sand.u32 %s280, 1
        %s473 = smul.addr %s472, 256
        %s474 = scalar_lea.vmem [#allocation12], %s473
        %s475 = smul.u32 16, %s32
        %s476 = smul.u32 16, %s32
        %s477 = smul.u32 16, %s32
        %s478 = smul.u32 16, %s32
        %v479 = vld [vmem:[%s410] sm:$0xff]
        %v480 = vld [vmem:[%s410 + $0x8] sm:$0xff]
        %v481 = vld [vmem:[%s410 + $0x10] sm:$0xff]
        %v482 = vld [vmem:[%s410 + $0x18] sm:$0xff]
        %v483 = vld [vmem:[%s410 + $0x20] sm:$0xff]
        %v484 = vld [vmem:[%s410 + $0x28] sm:$0xff]
        %v485 = vld [vmem:[%s410 + $0x30] sm:$0xff]
        %v486 = vld [vmem:[%s410 + $0x38] sm:$0xff]
        %v487 = vld [vmem:[%s410 + $0x40] sm:$0xff]
        %v488 = vld [vmem:[%s410 + $0x48] sm:$0xff]
        %v489 = vld [vmem:[%s410 + $0x50] sm:$0xff]
        %v490 = vld [vmem:[%s410 + $0x58] sm:$0xff]
        %v491 = vld [vmem:[%s410 + $0x60] sm:$0xff]
        %v492 = vld [vmem:[%s410 + $0x68] sm:$0xff]
        %v493 = vld [vmem:[%s410 + $0x70] sm:$0xff]
        %v494 = vld [vmem:[%s410 + $0x78] sm:$0xff]
        %v495 = vld [vmem:[#allocation4] sm:$0x1]
        %v496 = vld [vmem:[%s2] sm:$0x1]
        %497 = vadd.xlane.f32.xlu0 %v479
        %v498 = vpop.xlane.xlu0 %497
        %499 = vadd.xlane.f32.xlu0 %v480
        %v500 = vpop.xlane.xlu0 %499
        %501 = vadd.xlane.f32.xlu0 %v481
        %v502 = vpop.xlane.xlu0 %501
        %503 = vadd.xlane.f32.xlu0 %v482
        %v504 = vpop.xlane.xlu0 %503
        %505 = vadd.xlane.f32.xlu0 %v483
        %v506 = vpop.xlane.xlu0 %505
        %507 = vadd.xlane.f32.xlu0 %v484
        %v508 = vpop.xlane.xlu0 %507
        %509 = vadd.xlane.f32.xlu0 %v485
        %v510 = vpop.xlane.xlu0 %509
        %511 = vadd.xlane.f32.xlu0 %v486
        %v512 = vpop.xlane.xlu0 %511
        %513 = vadd.xlane.f32.xlu0 %v487
        %v514 = vpop.xlane.xlu0 %513
        %515 = vadd.xlane.f32.xlu0 %v488
        %v516 = vpop.xlane.xlu0 %515
        %517 = vadd.xlane.f32.xlu0 %v489
        %v518 = vpop.xlane.xlu0 %517
        %519 = vadd.xlane.f32.xlu0 %v490
        %v520 = vpop.xlane.xlu0 %519
        %521 = vadd.xlane.f32.xlu0 %v491
        %v522 = vpop.xlane.xlu0 %521
        %523 = vadd.xlane.f32.xlu0 %v492
        %v524 = vpop.xlane.xlu0 %523
        %525 = vadd.xlane.f32.xlu0 %v493
        %v526 = vpop.xlane.xlu0 %525
        %527 = vadd.xlane.f32.xlu0 %v494
        %v528 = vpop.xlane.xlu0 %527
        %v529 = vrcp.pop 128.0
        %v530 = vmul.f32 128.0, %v529
        %v531 = vsub.f32 1.0, %v530
        %v532 = vmul.f32 %v529, %v531
        %v533 = vadd.f32 %v529, %v532
        %vm534 = vweird.f32 %v529
        %v535 = vsel %vm534, %v529, %v533
        %v536 = vmul.f32 %v498, %v535
        %v537 = vmul.f32 %v500, %v535
        %v538 = vmul.f32 %v502, %v535
        %v539 = vmul.f32 %v504, %v535
        %v540 = vmul.f32 %v506, %v535
        %v541 = vmul.f32 %v508, %v535
        %v542 = vmul.f32 %v510, %v535
        %v543 = vmul.f32 %v512, %v535
        %v544 = vmul.f32 %v514, %v535
        %v545 = vmul.f32 %v516, %v535
        %v546 = vmul.f32 %v518, %v535
        %v547 = vmul.f32 %v520, %v535
        %v548 = vmul.f32 %v522, %v535
        %v549 = vmul.f32 %v524, %v535
        %v550 = vmul.f32 %v526, %v535
        %v551 = vmul.f32 %v528, %v535
        %v552 = vsub.f32 %v479, %v536
        %v553 = vsub.f32 %v480, %v537
        %v554 = vsub.f32 %v481, %v538
        %v555 = vsub.f32 %v482, %v539
        %v556 = vsub.f32 %v483, %v540
        %v557 = vsub.f32 %v484, %v541
        %v558 = vsub.f32 %v485, %v542
        %v559 = vsub.f32 %v486, %v543
        %v560 = vsub.f32 %v487, %v544
        %v561 = vsub.f32 %v488, %v545
        %v562 = vsub.f32 %v489, %v546
        %v563 = vsub.f32 %v490, %v547
        %v564 = vsub.f32 %v491, %v548
        %v565 = vsub.f32 %v492, %v549
        %v566 = vsub.f32 %v493, %v550
        %v567 = vsub.f32 %v494, %v551
        %v568 = vmul.f32 %v552, %v552
        %v569 = vmul.f32 %v553, %v553
        %v570 = vmul.f32 %v554, %v554
        %v571 = vmul.f32 %v555, %v555
        %v572 = vmul.f32 %v556, %v556
        %v573 = vmul.f32 %v557, %v557
        %v574 = vmul.f32 %v558, %v558
        %v575 = vmul.f32 %v559, %v559
        %v576 = vmul.f32 %v560, %v560
        %v577 = vmul.f32 %v561, %v561
        %v578 = vmul.f32 %v562, %v562
        %v579 = vmul.f32 %v563, %v563
        %v580 = vmul.f32 %v564, %v564
        %v581 = vmul.f32 %v565, %v565
        %v582 = vmul.f32 %v566, %v566
        %v583 = vmul.f32 %v567, %v567
        %584 = vadd.xlane.f32.xlu0 %v568
        %v585 = vpop.xlane.xlu0 %584
        %586 = vadd.xlane.f32.xlu0 %v569
        %v587 = vpop.xlane.xlu0 %586
        %588 = vadd.xlane.f32.xlu0 %v570
        %v589 = vpop.xlane.xlu0 %588
        %590 = vadd.xlane.f32.xlu0 %v571
        %v591 = vpop.xlane.xlu0 %590
        %592 = vadd.xlane.f32.xlu0 %v572
        %v593 = vpop.xlane.xlu0 %592
        %594 = vadd.xlane.f32.xlu0 %v573
        %v595 = vpop.xlane.xlu0 %594
        %596 = vadd.xlane.f32.xlu0 %v574
        %v597 = vpop.xlane.xlu0 %596
        %598 = vadd.xlane.f32.xlu0 %v575
        %v599 = vpop.xlane.xlu0 %598
        %600 = vadd.xlane.f32.xlu0 %v576
        %v601 = vpop.xlane.xlu0 %600
        %602 = vadd.xlane.f32.xlu0 %v577
        %v603 = vpop.xlane.xlu0 %602
        %604 = vadd.xlane.f32.xlu0 %v578
        %v605 = vpop.xlane.xlu0 %604
        %606 = vadd.xlane.f32.xlu0 %v579
        %v607 = vpop.xlane.xlu0 %606
        %608 = vadd.xlane.f32.xlu0 %v580
        %v609 = vpop.xlane.xlu0 %608
        %610 = vadd.xlane.f32.xlu0 %v581
        %v611 = vpop.xlane.xlu0 %610
        %612 = vadd.xlane.f32.xlu0 %v582
        %v613 = vpop.xlane.xlu0 %612
        %614 = vadd.xlane.f32.xlu0 %v583
        %v615 = vpop.xlane.xlu0 %614
        %v616 = vmul.f32 %v585, %v535
        %v617 = vmul.f32 %v587, %v535
        %v618 = vmul.f32 %v589, %v535
        %v619 = vmul.f32 %v591, %v535
        %v620 = vmul.f32 %v593, %v535
        %v621 = vmul.f32 %v595, %v535
        %v622 = vmul.f32 %v597, %v535
        %v623 = vmul.f32 %v599, %v535
        %v624 = vmul.f32 %v601, %v535
        %v625 = vmul.f32 %v603, %v535
        %v626 = vmul.f32 %v605, %v535
        %v627 = vmul.f32 %v607, %v535
        %v628 = vmul.f32 %v609, %v535
        %v629 = vmul.f32 %v611, %v535
        %v630 = vmul.f32 %v613, %v535
        %v631 = vmul.f32 %v615, %v535
        %v632 = vadd.f32 %v616, 1e-05
        %v633 = vadd.f32 %v617, 1e-05
        %v634 = vadd.f32 %v618, 1e-05
        %v635 = vadd.f32 %v619, 1e-05
        %v636 = vadd.f32 %v620, 1e-05
        %v637 = vadd.f32 %v621, 1e-05
        %v638 = vadd.f32 %v622, 1e-05
        %v639 = vadd.f32 %v623, 1e-05
        %v640 = vadd.f32 %v624, 1e-05
        %v641 = vadd.f32 %v625, 1e-05
        %v642 = vadd.f32 %v626, 1e-05
        %v643 = vadd.f32 %v627, 1e-05
        %v644 = vadd.f32 %v628, 1e-05
        %v645 = vadd.f32 %v629, 1e-05
        %v646 = vadd.f32 %v630, 1e-05
        %v647 = vadd.f32 %v631, 1e-05
        %v648 = vrsqrt.pop %v632
        %v649 = vmul.f32 %v648, %v632
        %v650 = vmul.f32 %v649, %v648
        %v651 = vmul.f32 0.5, %v650
        %v652 = vsub.f32 1.5, %v651
        %v653 = vmul.f32 %v648, %v652
        %vm654 = vweird.f32 %v632
        %vm655 = vweird.f32 %v648
        %vm656 = vmor %vm654, %vm655
        %v657 = vsel %vm656, %v648, %v653
        %v658 = vrsqrt.pop %v633
        %v659 = vmul.f32 %v658, %v633
        %v660 = vmul.f32 %v659, %v658
        %v661 = vmul.f32 0.5, %v660
        %v662 = vsub.f32 1.5, %v661
        %v663 = vmul.f32 %v658, %v662
        %vm664 = vweird.f32 %v633
        %vm665 = vweird.f32 %v658
        %vm666 = vmor %vm664, %vm665
        %v667 = vsel %vm666, %v658, %v663
        %v668 = vrsqrt.pop %v634
        %v669 = vmul.f32 %v668, %v634
        %v670 = vmul.f32 %v669, %v668
        %v671 = vmul.f32 0.5, %v670
        %v672 = vsub.f32 1.5, %v671
        %v673 = vmul.f32 %v668, %v672
        %vm674 = vweird.f32 %v634
        %vm675 = vweird.f32 %v668
        %vm676 = vmor %vm674, %vm675
        %v677 = vsel %vm676, %v668, %v673
        %v678 = vrsqrt.pop %v635
        %v679 = vmul.f32 %v678, %v635
        %v680 = vmul.f32 %v679, %v678
        %v681 = vmul.f32 0.5, %v680
        %v682 = vsub.f32 1.5, %v681
        %v683 = vmul.f32 %v678, %v682
        %vm684 = vweird.f32 %v635
        %vm685 = vweird.f32 %v678
        %vm686 = vmor %vm684, %vm685
        %v687 = vsel %vm686, %v678, %v683
        %v688 = vrsqrt.pop %v636
        %v689 = vmul.f32 %v688, %v636
        %v690 = vmul.f32 %v689, %v688
        %v691 = vmul.f32 0.5, %v690
        %v692 = vsub.f32 1.5, %v691
        %v693 = vmul.f32 %v688, %v692
        %vm694 = vweird.f32 %v636
        %vm695 = vweird.f32 %v688
        %vm696 = vmor %vm694, %vm695
        %v697 = vsel %vm696, %v688, %v693
        %v698 = vrsqrt.pop %v637
        %v699 = vmul.f32 %v698, %v637
        %v700 = vmul.f32 %v699, %v698
        %v701 = vmul.f32 0.5, %v700
        %v702 = vsub.f32 1.5, %v701
        %v703 = vmul.f32 %v698, %v702
        %vm704 = vweird.f32 %v637
        %vm705 = vweird.f32 %v698
        %vm706 = vmor %vm704, %vm705
        %v707 = vsel %vm706, %v698, %v703
        %v708 = vrsqrt.pop %v638
        %v709 = vmul.f32 %v708, %v638
        %v710 = vmul.f32 %v709, %v708
        %v711 = vmul.f32 0.5, %v710
        %v712 = vsub.f32 1.5, %v711
        %v713 = vmul.f32 %v708, %v712
        %vm714 = vweird.f32 %v638
        %vm715 = vweird.f32 %v708
        %vm716 = vmor %vm714, %vm715
        %v717 = vsel %vm716, %v708, %v713
        %v718 = vrsqrt.pop %v639
        %v719 = vmul.f32 %v718, %v639
        %v720 = vmul.f32 %v719, %v718
        %v721 = vmul.f32 0.5, %v720
        %v722 = vsub.f32 1.5, %v721
        %v723 = vmul.f32 %v718, %v722
        %vm724 = vweird.f32 %v639
        %vm725 = vweird.f32 %v718
        %vm726 = vmor %vm724, %vm725
        %v727 = vsel %vm726, %v718, %v723
        %v728 = vrsqrt.pop %v640
        %v729 = vmul.f32 %v728, %v640
        %v730 = vmul.f32 %v729, %v728
        %v731 = vmul.f32 0.5, %v730
        %v732 = vsub.f32 1.5, %v731
        %v733 = vmul.f32 %v728, %v732
        %vm734 = vweird.f32 %v640
        %vm735 = vweird.f32 %v728
        %vm736 = vmor %vm734, %vm735
        %v737 = vsel %vm736, %v728, %v733
        %v738 = vrsqrt.pop %v641
        %v739 = vmul.f32 %v738, %v641
        %v740 = vmul.f32 %v739, %v738
        %v741 = vmul.f32 0.5, %v740
        %v742 = vsub.f32 1.5, %v741
        %v743 = vmul.f32 %v738, %v742
        %vm744 = vweird.f32 %v641
        %vm745 = vweird.f32 %v738
        %vm746 = vmor %vm744, %vm745
        %v747 = vsel %vm746, %v738, %v743
        %v748 = vrsqrt.pop %v642
        %v749 = vmul.f32 %v748, %v642
        %v750 = vmul.f32 %v749, %v748
        %v751 = vmul.f32 0.5, %v750
        %v752 = vsub.f32 1.5, %v751
        %v753 = vmul.f32 %v748, %v752
        %vm754 = vweird.f32 %v642
        %vm755 = vweird.f32 %v748
        %vm756 = vmor %vm754, %vm755
        %v757 = vsel %vm756, %v748, %v753
        %v758 = vrsqrt.pop %v643
        %v759 = vmul.f32 %v758, %v643
        %v760 = vmul.f32 %v759, %v758
        %v761 = vmul.f32 0.5, %v760
        %v762 = vsub.f32 1.5, %v761
        %v763 = vmul.f32 %v758, %v762
        %vm764 = vweird.f32 %v643
        %vm765 = vweird.f32 %v758
        %vm766 = vmor %vm764, %vm765
        %v767 = vsel %vm766, %v758, %v763
        %v768 = vrsqrt.pop %v644
        %v769 = vmul.f32 %v768, %v644
        %v770 = vmul.f32 %v769, %v768
        %v771 = vmul.f32 0.5, %v770
        %v772 = vsub.f32 1.5, %v771
        %v773 = vmul.f32 %v768, %v772
        %vm774 = vweird.f32 %v644
        %vm775 = vweird.f32 %v768
        %vm776 = vmor %vm774, %vm775
        %v777 = vsel %vm776, %v768, %v773
        %v778 = vrsqrt.pop %v645
        %v779 = vmul.f32 %v778, %v645
        %v780 = vmul.f32 %v779, %v778
        %v781 = vmul.f32 0.5, %v780
        %v782 = vsub.f32 1.5, %v781
        %v783 = vmul.f32 %v778, %v782
        %vm784 = vweird.f32 %v645
        %vm785 = vweird.f32 %v778
        %vm786 = vmor %vm784, %vm785
        %v787 = vsel %vm786, %v778, %v783
        %v788 = vrsqrt.pop %v646
        %v789 = vmul.f32 %v788, %v646
        %v790 = vmul.f32 %v789, %v788
        %v791 = vmul.f32 0.5, %v790
        %v792 = vsub.f32 1.5, %v791
        %v793 = vmul.f32 %v788, %v792
        %vm794 = vweird.f32 %v646
        %vm795 = vweird.f32 %v788
        %vm796 = vmor %vm794, %vm795
        %v797 = vsel %vm796, %v788, %v793
        %v798 = vrsqrt.pop %v647
        %v799 = vmul.f32 %v798, %v647
        %v800 = vmul.f32 %v799, %v798
        %v801 = vmul.f32 0.5, %v800
        %v802 = vsub.f32 1.5, %v801
        %v803 = vmul.f32 %v798, %v802
        %vm804 = vweird.f32 %v647
        %vm805 = vweird.f32 %v798
        %vm806 = vmor %vm804, %vm805
        %v807 = vsel %vm806, %v798, %v803
        %v808 = vmul.f32 %v552, %v657
        %v809 = vmul.f32 %v553, %v667
        %v810 = vmul.f32 %v554, %v677
        %v811 = vmul.f32 %v555, %v687
        %v812 = vmul.f32 %v556, %v697
        %v813 = vmul.f32 %v557, %v707
        %v814 = vmul.f32 %v558, %v717
        %v815 = vmul.f32 %v559, %v727
        %v816 = vmul.f32 %v560, %v737
        %v817 = vmul.f32 %v561, %v747
        %v818 = vmul.f32 %v562, %v757
        %v819 = vmul.f32 %v563, %v767
        %v820 = vmul.f32 %v564, %v777
        %v821 = vmul.f32 %v565, %v787
        %v822 = vmul.f32 %v566, %v797
        %v823 = vmul.f32 %v567, %v807
        %v825 = vperm.slane %v496, 0
        %v827 = vadd.f32 %v808, %v825
        %v828 = vadd.f32 %v809, %v825
        %v829 = vadd.f32 %v810, %v825
        %v830 = vadd.f32 %v811, %v825
        %v831 = vadd.f32 %v812, %v825
        %v832 = vadd.f32 %v813, %v825
        %v833 = vadd.f32 %v814, %v825
        %v834 = vadd.f32 %v815, %v825
        %v835 = vadd.f32 %v816, %v825
        %v836 = vadd.f32 %v817, %v825
        %v837 = vadd.f32 %v818, %v825
        %v838 = vadd.f32 %v819, %v825
        %v839 = vadd.f32 %v820, %v825
        %v840 = vadd.f32 %v821, %v825
        %v841 = vadd.f32 %v822, %v825
        %v842 = vadd.f32 %v823, %v825
        %v844 = vperm.slane %v495, 0
        %v846 = vmul.f32 %v827, %v844
        %v847 = vmul.f32 %v828, %v844
        %v848 = vmul.f32 %v829, %v844
        %v849 = vmul.f32 %v830, %v844
        %v850 = vmul.f32 %v831, %v844
        %v851 = vmul.f32 %v832, %v844
        %v852 = vmul.f32 %v833, %v844
        %v853 = vmul.f32 %v834, %v844
        %v854 = vmul.f32 %v835, %v844
        %v855 = vmul.f32 %v836, %v844
        %v856 = vmul.f32 %v837, %v844
        %v857 = vmul.f32 %v838, %v844
        %v858 = vmul.f32 %v839, %v844
        %v859 = vmul.f32 %v840, %v844
        %v860 = vmul.f32 %v841, %v844
        %v861 = vmul.f32 %v842, %v844
        %v862 = vpack.c.bf16 %v847, %v846
        %v863 = vpack.c.bf16 %v849, %v848
        %v864 = vpack.c.bf16 %v851, %v850
        %v865 = vpack.c.bf16 %v853, %v852
        %v866 = vpack.c.bf16 %v855, %v854
        %v867 = vpack.c.bf16 %v857, %v856
        %v868 = vpack.c.bf16 %v859, %v858
        %v869 = vpack.c.bf16 %v861, %v860
        %v870 = vld [vmem:[#allocation6] sm:$0xf]
        %v871 = vld [vmem:[#allocation6 + $0x4] sm:$0xf]
        %v872 = vld [vmem:[#allocation6 + $0x8] sm:$0xf]
        %v873 = vld [vmem:[#allocation6 + $0xc] sm:$0xf]
        %v874 = vld [vmem:[#allocation6 + $0x10] sm:$0xf]
        %v875 = vld [vmem:[#allocation6 + $0x14] sm:$0xf]
        %v876 = vld [vmem:[#allocation6 + $0x18] sm:$0xf]
        %v877 = vld [vmem:[#allocation6 + $0x1c] sm:$0xf]
        %v878 = vld [vmem:[#allocation6 + $0x20] sm:$0xf]
        %v879 = vld [vmem:[#allocation6 + $0x24] sm:$0xf]
        %v880 = vld [vmem:[#allocation6 + $0x28] sm:$0xf]
        %v881 = vld [vmem:[#allocation6 + $0x2c] sm:$0xf]
        %v882 = vld [vmem:[#allocation6 + $0x30] sm:$0xf]
        %v883 = vld [vmem:[#allocation6 + $0x34] sm:$0xf]
        %v884 = vld [vmem:[#allocation6 + $0x38] sm:$0xf]
        %v885 = vld [vmem:[#allocation6 + $0x3c] sm:$0xf]
        %v886 = vld [vmem:[%s4] sm:$0x1]
        %v888 = vperm.slane %v886, 0
        %v906 = vunpack.c.l.b16 %v870
        %v907 = vunpack.c.l.b16 %v871
        %v908 = vunpack.c.l.b16 %v872
        %v909 = vunpack.c.l.b16 %v873
        %v910 = vunpack.c.l.b16 %v874
        %v911 = vunpack.c.l.b16 %v875
        %v912 = vunpack.c.l.b16 %v876
        %v913 = vunpack.c.l.b16 %v877
        %v914 = vunpack.c.l.b16 %v878
        %v915 = vunpack.c.l.b16 %v879
        %v916 = vunpack.c.l.b16 %v880
        %v917 = vunpack.c.l.b16 %v881
        %v918 = vunpack.c.l.b16 %v882
        %v919 = vunpack.c.l.b16 %v883
        %v920 = vunpack.c.l.b16 %v884
        %v921 = vunpack.c.l.b16 %v885
        %v922 = vpack.c.b16 %v907, %v906
        %v923 = vpack.c.b16 %v909, %v908
        %v924 = vpack.c.b16 %v911, %v910
        %v925 = vpack.c.b16 %v913, %v912
        %v926 = vpack.c.b16 %v915, %v914
        %v927 = vpack.c.b16 %v917, %v916
        %v928 = vpack.c.b16 %v919, %v918
        %v929 = vpack.c.b16 %v921, %v920
        %938 = vmatpush.bf16.msra.mxu0 %v929
        %939 = vmatpush.bf16.msra.mxu0 %v928
        %940 = vmatpush.bf16.msra.mxu0 %v927
        %941 = vmatpush.bf16.msra.mxu0 %v926
        %942 = vmatpush.bf16.msra.mxu0 %v925
        %943 = vmatpush.bf16.msra.mxu0 %v924
        %944 = vmatpush.bf16.msra.mxu0 %v923
        %945 = vmatpush.bf16.msra.mxu0 %v922
        %946 = vmatmul.bf16.gmra.mxu0 %v862
        %v947 = vpop.f32.mrf.mxu0
        %v948 = vadd.f32 %v888, %v947
        %v949 = vpop.f32.mrf.mxu0
        %v950 = vadd.f32 %v888, %v949
        %951 = vmatmul.bf16.gmra.mxu0 %v863
        %v952 = vpop.f32.mrf.mxu0
        %v953 = vadd.f32 %v888, %v952
        %v954 = vpop.f32.mrf.mxu0
        %v955 = vadd.f32 %v888, %v954
        %956 = vmatmul.bf16.gmra.mxu0 %v864
        %v957 = vpop.f32.mrf.mxu0
        %v958 = vadd.f32 %v888, %v957
        %v959 = vpop.f32.mrf.mxu0
        %v960 = vadd.f32 %v888, %v959
        %961 = vmatmul.bf16.gmra.mxu0 %v865
        %v962 = vpop.f32.mrf.mxu0
        %v963 = vadd.f32 %v888, %v962
        %v964 = vpop.f32.mrf.mxu0
        %v965 = vadd.f32 %v888, %v964
        %966 = vmatmul.bf16.gmra.mxu0 %v866
        %v967 = vpop.f32.mrf.mxu0
        %v968 = vadd.f32 %v888, %v967
        %v969 = vpop.f32.mrf.mxu0
        %v970 = vadd.f32 %v888, %v969
        %971 = vmatmul.bf16.gmra.mxu0 %v867
        %v972 = vpop.f32.mrf.mxu0
        %v973 = vadd.f32 %v888, %v972
        %v974 = vpop.f32.mrf.mxu0
        %v975 = vadd.f32 %v888, %v974
        %976 = vmatmul.bf16.gmra.mxu0 %v868
        %v977 = vpop.f32.mrf.mxu0
        %v978 = vadd.f32 %v888, %v977
        %v979 = vpop.f32.mrf.mxu0
        %v980 = vadd.f32 %v888, %v979
        %981 = vmatmul.bf16.gmra.mxu0 %v869
        %v982 = vpop.f32.mrf.mxu0
        %v983 = vadd.f32 %v888, %v982
        %v984 = vpop.f32.mrf.mxu0
        %v985 = vadd.f32 %v888, %v984
        %986 = vdwg.mxu0
        %v987 = vpack.c.bf16 %v948, %v948
        %v988 = vpack.c.bf16 %v950, %v950
        %v989 = vpack.c.bf16 %v953, %v953
        %v990 = vpack.c.bf16 %v955, %v955
        %v991 = vpack.c.bf16 %v958, %v958
        %v992 = vpack.c.bf16 %v960, %v960
        %v993 = vpack.c.bf16 %v963, %v963
        %v994 = vpack.c.bf16 %v965, %v965
        %v995 = vpack.c.bf16 %v968, %v968
        %v996 = vpack.c.bf16 %v970, %v970
        %v997 = vpack.c.bf16 %v973, %v973
        %v998 = vpack.c.bf16 %v975, %v975
        %v999 = vpack.c.bf16 %v978, %v978
        %v1000 = vpack.c.bf16 %v980, %v980
        %v1001 = vpack.c.bf16 %v983, %v983
        %v1002 = vpack.c.bf16 %v985, %v985
        %v1003 = vld [vmem:[#allocation7] sm:$0xf]
        %v1004 = vld [vmem:[#allocation7 + $0x4] sm:$0xf]
        %v1005 = vld [vmem:[#allocation7 + $0x8] sm:$0xf]
        %v1006 = vld [vmem:[#allocation7 + $0xc] sm:$0xf]
        %v1007 = vld [vmem:[#allocation7 + $0x10] sm:$0xf]
        %v1008 = vld [vmem:[#allocation7 + $0x14] sm:$0xf]
        %v1009 = vld [vmem:[#allocation7 + $0x18] sm:$0xf]
        %v1010 = vld [vmem:[#allocation7 + $0x1c] sm:$0xf]
        %v1011 = vld [vmem:[#allocation7 + $0x20] sm:$0xf]
        %v1012 = vld [vmem:[#allocation7 + $0x24] sm:$0xf]
        %v1013 = vld [vmem:[#allocation7 + $0x28] sm:$0xf]
        %v1014 = vld [vmem:[#allocation7 + $0x2c] sm:$0xf]
        %v1015 = vld [vmem:[#allocation7 + $0x30] sm:$0xf]
        %v1016 = vld [vmem:[#allocation7 + $0x34] sm:$0xf]
        %v1017 = vld [vmem:[#allocation7 + $0x38] sm:$0xf]
        %v1018 = vld [vmem:[#allocation7 + $0x3c] sm:$0xf]
        %v1035 = vunpack.c.l.b16 %v1003
        %v1036 = vunpack.c.l.b16 %v1004
        %v1037 = vunpack.c.l.b16 %v1005
        %v1038 = vunpack.c.l.b16 %v1006
        %v1039 = vunpack.c.l.b16 %v1007
        %v1040 = vunpack.c.l.b16 %v1008
        %v1041 = vunpack.c.l.b16 %v1009
        %v1042 = vunpack.c.l.b16 %v1010
        %v1043 = vunpack.c.l.b16 %v1011
        %v1044 = vunpack.c.l.b16 %v1012
        %v1045 = vunpack.c.l.b16 %v1013
        %v1046 = vunpack.c.l.b16 %v1014
        %v1047 = vunpack.c.l.b16 %v1015
        %v1048 = vunpack.c.l.b16 %v1016
        %v1049 = vunpack.c.l.b16 %v1017
        %v1050 = vunpack.c.l.b16 %v1018
        %v1051 = vpack.c.b16 %v1036, %v1035
        %v1052 = vpack.c.b16 %v1038, %v1037
        %v1053 = vpack.c.b16 %v1040, %v1039
        %v1054 = vpack.c.b16 %v1042, %v1041
        %v1055 = vpack.c.b16 %v1044, %v1043
        %v1056 = vpack.c.b16 %v1046, %v1045
        %v1057 = vpack.c.b16 %v1048, %v1047
        %v1058 = vpack.c.b16 %v1050, %v1049
        %1067 = vmatpush.bf16.msra.mxu0 %v1058
        %1068 = vmatpush.bf16.msra.mxu0 %v1057
        %1069 = vmatpush.bf16.msra.mxu0 %v1056
        %1070 = vmatpush.bf16.msra.mxu0 %v1055
        %1071 = vmatpush.bf16.msra.mxu0 %v1054
        %1072 = vmatpush.bf16.msra.mxu0 %v1053
        %1073 = vmatpush.bf16.msra.mxu0 %v1052
        %1074 = vmatpush.bf16.msra.mxu0 %v1051
        %1075 = vmatmul.bf16.gmra.mxu0 %v862
        %v1076 = vpop.f32.mrf.mxu0
        %v1077 = vadd.f32 0.0, %v1076
        %v1078 = vpop.f32.mrf.mxu0
        %v1079 = vadd.f32 0.0, %v1078
        %1080 = vmatmul.bf16.gmra.mxu0 %v863
        %v1081 = vpop.f32.mrf.mxu0
        %v1082 = vadd.f32 0.0, %v1081
        %v1083 = vpop.f32.mrf.mxu0
        %v1084 = vadd.f32 0.0, %v1083
        %1085 = vmatmul.bf16.gmra.mxu0 %v864
        %v1086 = vpop.f32.mrf.mxu0
        %v1087 = vadd.f32 0.0, %v1086
        %v1088 = vpop.f32.mrf.mxu0
        %v1089 = vadd.f32 0.0, %v1088
        %1090 = vmatmul.bf16.gmra.mxu0 %v865
        %v1091 = vpop.f32.mrf.mxu0
        %v1092 = vadd.f32 0.0, %v1091
        %v1093 = vpop.f32.mrf.mxu0
        %v1094 = vadd.f32 0.0, %v1093
        %1095 = vmatmul.bf16.gmra.mxu0 %v866
        %v1096 = vpop.f32.mrf.mxu0
        %v1097 = vadd.f32 0.0, %v1096
        %v1098 = vpop.f32.mrf.mxu0
        %v1099 = vadd.f32 0.0, %v1098
        %1100 = vmatmul.bf16.gmra.mxu0 %v867
        %v1101 = vpop.f32.mrf.mxu0
        %v1102 = vadd.f32 0.0, %v1101
        %v1103 = vpop.f32.mrf.mxu0
        %v1104 = vadd.f32 0.0, %v1103
        %1105 = vmatmul.bf16.gmra.mxu0 %v868
        %v1106 = vpop.f32.mrf.mxu0
        %v1107 = vadd.f32 0.0, %v1106
        %v1108 = vpop.f32.mrf.mxu0
        %v1109 = vadd.f32 0.0, %v1108
        %1110 = vmatmul.bf16.gmra.mxu0 %v869
        %v1111 = vpop.f32.mrf.mxu0
        %v1112 = vadd.f32 0.0, %v1111
        %v1113 = vpop.f32.mrf.mxu0
        %v1114 = vadd.f32 0.0, %v1113
        %1115 = vdwg.mxu0
        %v1116 = vpack.c.bf16 %v1077, %v1077
        %v1117 = vpack.c.bf16 %v1079, %v1079
        %v1118 = vpack.c.bf16 %v1082, %v1082
        %v1119 = vpack.c.bf16 %v1084, %v1084
        %v1120 = vpack.c.bf16 %v1087, %v1087
        %v1121 = vpack.c.bf16 %v1089, %v1089
        %v1122 = vpack.c.bf16 %v1092, %v1092
        %v1123 = vpack.c.bf16 %v1094, %v1094
        %v1124 = vpack.c.bf16 %v1097, %v1097
        %v1125 = vpack.c.bf16 %v1099, %v1099
        %v1126 = vpack.c.bf16 %v1102, %v1102
        %v1127 = vpack.c.bf16 %v1104, %v1104
        %v1128 = vpack.c.bf16 %v1107, %v1107
        %v1129 = vpack.c.bf16 %v1109, %v1109
        %v1130 = vpack.c.bf16 %v1112, %v1112
        %v1131 = vpack.c.bf16 %v1114, %v1114
        %v1132 = vld [vmem:[#allocation9] sm:$0xf]
        %v1133 = vld [vmem:[#allocation9 + $0x4] sm:$0xf]
        %v1134 = vld [vmem:[#allocation9 + $0x8] sm:$0xf]
        %v1135 = vld [vmem:[#allocation9 + $0xc] sm:$0xf]
        %v1136 = vld [vmem:[#allocation9 + $0x10] sm:$0xf]
        %v1137 = vld [vmem:[#allocation9 + $0x14] sm:$0xf]
        %v1138 = vld [vmem:[#allocation9 + $0x18] sm:$0xf]
        %v1139 = vld [vmem:[#allocation9 + $0x1c] sm:$0xf]
        %v1140 = vld [vmem:[#allocation9 + $0x20] sm:$0xf]
        %v1141 = vld [vmem:[#allocation9 + $0x24] sm:$0xf]
        %v1142 = vld [vmem:[#allocation9 + $0x28] sm:$0xf]
        %v1143 = vld [vmem:[#allocation9 + $0x2c] sm:$0xf]
        %v1144 = vld [vmem:[#allocation9 + $0x30] sm:$0xf]
        %v1145 = vld [vmem:[#allocation9 + $0x34] sm:$0xf]
        %v1146 = vld [vmem:[#allocation9 + $0x38] sm:$0xf]
        %v1147 = vld [vmem:[#allocation9 + $0x3c] sm:$0xf]
        %v1148 = vld [vmem:[%s7] sm:$0x1]
        %v1150 = vperm.slane %v1148, 0
        %v1168 = vunpack.c.l.b16 %v1132
        %v1169 = vunpack.c.l.b16 %v1133
        %v1170 = vunpack.c.l.b16 %v1134
        %v1171 = vunpack.c.l.b16 %v1135
        %v1172 = vunpack.c.l.b16 %v1136
        %v1173 = vunpack.c.l.b16 %v1137
        %v1174 = vunpack.c.l.b16 %v1138
        %v1175 = vunpack.c.l.b16 %v1139
        %v1176 = vunpack.c.l.b16 %v1140
        %v1177 = vunpack.c.l.b16 %v1141
        %v1178 = vunpack.c.l.b16 %v1142
        %v1179 = vunpack.c.l.b16 %v1143
        %v1180 = vunpack.c.l.b16 %v1144
        %v1181 = vunpack.c.l.b16 %v1145
        %v1182 = vunpack.c.l.b16 %v1146
        %v1183 = vunpack.c.l.b16 %v1147
        %v1184 = vpack.c.b16 %v1169, %v1168
        %v1185 = vpack.c.b16 %v1171, %v1170
        %v1186 = vpack.c.b16 %v1173, %v1172
        %v1187 = vpack.c.b16 %v1175, %v1174
        %v1188 = vpack.c.b16 %v1177, %v1176
        %v1189 = vpack.c.b16 %v1179, %v1178
        %v1190 = vpack.c.b16 %v1181, %v1180
        %v1191 = vpack.c.b16 %v1183, %v1182
        %1200 = vmatpush.bf16.msra.mxu0 %v1191
        %1201 = vmatpush.bf16.msra.mxu0 %v1190
        %1202 = vmatpush.bf16.msra.mxu0 %v1189
        %1203 = vmatpush.bf16.msra.mxu0 %v1188
        %1204 = vmatpush.bf16.msra.mxu0 %v1187
        %1205 = vmatpush.bf16.msra.mxu0 %v1186
        %1206 = vmatpush.bf16.msra.mxu0 %v1185
        %1207 = vmatpush.bf16.msra.mxu0 %v1184
        %1208 = vmatmul.bf16.gmra.mxu0 %v862
        %v1209 = vpop.f32.mrf.mxu0
        %v1210 = vadd.f32 %v1150, %v1209
        %v1211 = vpop.f32.mrf.mxu0
        %v1212 = vadd.f32 %v1150, %v1211
        %1213 = vmatmul.bf16.gmra.mxu0 %v863
        %v1214 = vpop.f32.mrf.mxu0
        %v1215 = vadd.f32 %v1150, %v1214
        %v1216 = vpop.f32.mrf.mxu0
        %v1217 = vadd.f32 %v1150, %v1216
        %1218 = vmatmul.bf16.gmra.mxu0 %v864
        %v1219 = vpop.f32.mrf.mxu0
        %v1220 = vadd.f32 %v1150, %v1219
        %v1221 = vpop.f32.mrf.mxu0
        %v1222 = vadd.f32 %v1150, %v1221
        %1223 = vmatmul.bf16.gmra.mxu0 %v865
        %v1224 = vpop.f32.mrf.mxu0
        %v1225 = vadd.f32 %v1150, %v1224
        %v1226 = vpop.f32.mrf.mxu0
        %v1227 = vadd.f32 %v1150, %v1226
        %1228 = vmatmul.bf16.gmra.mxu0 %v866
        %v1229 = vpop.f32.mrf.mxu0
        %v1230 = vadd.f32 %v1150, %v1229
        %v1231 = vpop.f32.mrf.mxu0
        %v1232 = vadd.f32 %v1150, %v1231
        %1233 = vmatmul.bf16.gmra.mxu0 %v867
        %v1234 = vpop.f32.mrf.mxu0
        %v1235 = vadd.f32 %v1150, %v1234
        %v1236 = vpop.f32.mrf.mxu0
        %v1237 = vadd.f32 %v1150, %v1236
        %1238 = vmatmul.bf16.gmra.mxu0 %v868
        %v1239 = vpop.f32.mrf.mxu0
        %v1240 = vadd.f32 %v1150, %v1239
        %v1241 = vpop.f32.mrf.mxu0
        %v1242 = vadd.f32 %v1150, %v1241
        %1243 = vmatmul.bf16.gmra.mxu0 %v869
        %v1244 = vpop.f32.mrf.mxu0
        %v1245 = vadd.f32 %v1150, %v1244
        %v1246 = vpop.f32.mrf.mxu0
        %v1247 = vadd.f32 %v1150, %v1246
        %1248 = vdwg.mxu0
        %v1249 = vpack.c.bf16 %v1210, %v1210
        %v1250 = vpack.c.bf16 %v1212, %v1212
        %v1251 = vpack.c.bf16 %v1215, %v1215
        %v1252 = vpack.c.bf16 %v1217, %v1217
        %v1253 = vpack.c.bf16 %v1220, %v1220
        %v1254 = vpack.c.bf16 %v1222, %v1222
        %v1255 = vpack.c.bf16 %v1225, %v1225
        %v1256 = vpack.c.bf16 %v1227, %v1227
        %v1257 = vpack.c.bf16 %v1230, %v1230
        %v1258 = vpack.c.bf16 %v1232, %v1232
        %v1259 = vpack.c.bf16 %v1235, %v1235
        %v1260 = vpack.c.bf16 %v1237, %v1237
        %v1261 = vpack.c.bf16 %v1240, %v1240
        %v1262 = vpack.c.bf16 %v1242, %v1242
        %v1263 = vpack.c.bf16 %v1245, %v1245
        %v1264 = vpack.c.bf16 %v1247, %v1247
        %vm1265 = vcmask 257024
        %1266 = vst.msk [vmem:[%s462] sm:$0xf] %vm1265, %v987
        %1267 = vst.msk [vmem:[%s462 + $0x4] sm:$0xf] %vm1265, %v988
        %1268 = vst.msk [vmem:[%s462 + $0x8] sm:$0xf] %vm1265, %v989
        %1269 = vst.msk [vmem:[%s462 + $0xc] sm:$0xf] %vm1265, %v990
        %1270 = vst.msk [vmem:[%s462 + $0x10] sm:$0xf] %vm1265, %v991
        %1271 = vst.msk [vmem:[%s462 + $0x14] sm:$0xf] %vm1265, %v992
        %1272 = vst.msk [vmem:[%s462 + $0x18] sm:$0xf] %vm1265, %v993
        %1273 = vst.msk [vmem:[%s462 + $0x1c] sm:$0xf] %vm1265, %v994
        %1274 = vst.msk [vmem:[%s462 + $0x20] sm:$0xf] %vm1265, %v995
        %1275 = vst.msk [vmem:[%s462 + $0x24] sm:$0xf] %vm1265, %v996
        %1276 = vst.msk [vmem:[%s462 + $0x28] sm:$0xf] %vm1265, %v997
        %1277 = vst.msk [vmem:[%s462 + $0x2c] sm:$0xf] %vm1265, %v998
        %1278 = vst.msk [vmem:[%s462 + $0x30] sm:$0xf] %vm1265, %v999
        %1279 = vst.msk [vmem:[%s462 + $0x34] sm:$0xf] %vm1265, %v1000
        %1280 = vst.msk [vmem:[%s462 + $0x38] sm:$0xf] %vm1265, %v1001
        %1281 = vst.msk [vmem:[%s462 + $0x3c] sm:$0xf] %vm1265, %v1002
        %1282 = vst.msk [vmem:[%s468] sm:$0xf] %vm1265, %v1116
        %1283 = vst.msk [vmem:[%s468 + $0x4] sm:$0xf] %vm1265, %v1117
        %1284 = vst.msk [vmem:[%s468 + $0x8] sm:$0xf] %vm1265, %v1118
        %1285 = vst.msk [vmem:[%s468 + $0xc] sm:$0xf] %vm1265, %v1119
        %1286 = vst.msk [vmem:[%s468 + $0x10] sm:$0xf] %vm1265, %v1120
        %1287 = vst.msk [vmem:[%s468 + $0x14] sm:$0xf] %vm1265, %v1121
        %1288 = vst.msk [vmem:[%s468 + $0x18] sm:$0xf] %vm1265, %v1122
        %1289 = vst.msk [vmem:[%s468 + $0x1c] sm:$0xf] %vm1265, %v1123
        %1290 = vst.msk [vmem:[%s468 + $0x20] sm:$0xf] %vm1265, %v1124
        %1291 = vst.msk [vmem:[%s468 + $0x24] sm:$0xf] %vm1265, %v1125
        %1292 = vst.msk [vmem:[%s468 + $0x28] sm:$0xf] %vm1265, %v1126
        %1293 = vst.msk [vmem:[%s468 + $0x2c] sm:$0xf] %vm1265, %v1127
        %1294 = vst.msk [vmem:[%s468 + $0x30] sm:$0xf] %vm1265, %v1128
        %1295 = vst.msk [vmem:[%s468 + $0x34] sm:$0xf] %vm1265, %v1129
        %1296 = vst.msk [vmem:[%s468 + $0x38] sm:$0xf] %vm1265, %v1130
        %1297 = vst.msk [vmem:[%s468 + $0x3c] sm:$0xf] %vm1265, %v1131
        %1298 = vst.msk [vmem:[%s474] sm:$0xf] %vm1265, %v1249
        %1299 = vst.msk [vmem:[%s474 + $0x4] sm:$0xf] %vm1265, %v1250
        %1300 = vst.msk [vmem:[%s474 + $0x8] sm:$0xf] %vm1265, %v1251
        %1301 = vst.msk [vmem:[%s474 + $0xc] sm:$0xf] %vm1265, %v1252
        %1302 = vst.msk [vmem:[%s474 + $0x10] sm:$0xf] %vm1265, %v1253
        %1303 = vst.msk [vmem:[%s474 + $0x14] sm:$0xf] %vm1265, %v1254
        %1304 = vst.msk [vmem:[%s474 + $0x18] sm:$0xf] %vm1265, %v1255
        %1305 = vst.msk [vmem:[%s474 + $0x1c] sm:$0xf] %vm1265, %v1256
        %1306 = vst.msk [vmem:[%s474 + $0x20] sm:$0xf] %vm1265, %v1257
        %1307 = vst.msk [vmem:[%s474 + $0x24] sm:$0xf] %vm1265, %v1258
        %1308 = vst.msk [vmem:[%s474 + $0x28] sm:$0xf] %vm1265, %v1259
        %1309 = vst.msk [vmem:[%s474 + $0x2c] sm:$0xf] %vm1265, %v1260
        %1310 = vst.msk [vmem:[%s474 + $0x30] sm:$0xf] %vm1265, %v1261
        %1311 = vst.msk [vmem:[%s474 + $0x34] sm:$0xf] %vm1265, %v1262
        %1312 = vst.msk [vmem:[%s474 + $0x38] sm:$0xf] %vm1265, %v1263
        %1313 = vst.msk [vmem:[%s474 + $0x3c] sm:$0xf] %vm1265, %v1264
        %1330 = vrot.lane.b32.xlu0 %v987, 96
        %v1331 = vpop.permute.xlu0 %1330
        %1332 = vrot.lane.b32.xlu0 %v988, 96
        %v1333 = vpop.permute.xlu0 %1332
        %1334 = vrot.lane.b32.xlu0 %v989, 96
        %v1335 = vpop.permute.xlu0 %1334
        %1336 = vrot.lane.b32.xlu0 %v990, 96
        %v1337 = vpop.permute.xlu0 %1336
        %1338 = vrot.lane.b32.xlu0 %v991, 96
        %v1339 = vpop.permute.xlu0 %1338
        %1340 = vrot.lane.b32.xlu0 %v992, 96
        %v1341 = vpop.permute.xlu0 %1340
        %1342 = vrot.lane.b32.xlu0 %v993, 96
        %v1343 = vpop.permute.xlu0 %1342
        %1344 = vrot.lane.b32.xlu0 %v994, 96
        %v1345 = vpop.permute.xlu0 %1344
        %1346 = vrot.lane.b32.xlu0 %v995, 96
        %v1347 = vpop.permute.xlu0 %1346
        %1348 = vrot.lane.b32.xlu0 %v996, 96
        %v1349 = vpop.permute.xlu0 %1348
        %1350 = vrot.lane.b32.xlu0 %v997, 96
        %v1351 = vpop.permute.xlu0 %1350
        %1352 = vrot.lane.b32.xlu0 %v998, 96
        %v1353 = vpop.permute.xlu0 %1352
        %1354 = vrot.lane.b32.xlu0 %v999, 96
        %v1355 = vpop.permute.xlu0 %1354
        %1356 = vrot.lane.b32.xlu0 %v1000, 96
        %v1357 = vpop.permute.xlu0 %1356
        %1358 = vrot.lane.b32.xlu0 %v1001, 96
        %v1359 = vpop.permute.xlu0 %1358
        %1360 = vrot.lane.b32.xlu0 %v1002, 96
        %v1361 = vpop.permute.xlu0 %1360
        %s1378 = scalar_lea.vmem %s462, 64 [#allocation10]
        %1379 = vst.msk [vmem:[%s1378] sm:$0xf] %vm1265, %v1331
        %1380 = vst.msk [vmem:[%s1378 + $0x4] sm:$0xf] %vm1265, %v1333
        %1381 = vst.msk [vmem:[%s1378 + $0x8] sm:$0xf] %vm1265, %v1335
        %1382 = vst.msk [vmem:[%s1378 + $0xc] sm:$0xf] %vm1265, %v1337
        %1383 = vst.msk [vmem:[%s1378 + $0x10] sm:$0xf] %vm1265, %v1339
        %1384 = vst.msk [vmem:[%s1378 + $0x14] sm:$0xf] %vm1265, %v1341
        %1385 = vst.msk [vmem:[%s1378 + $0x18] sm:$0xf] %vm1265, %v1343
        %1386 = vst.msk [vmem:[%s1378 + $0x1c] sm:$0xf] %vm1265, %v1345
        %1387 = vst.msk [vmem:[%s1378 + $0x20] sm:$0xf] %vm1265, %v1347
        %1388 = vst.msk [vmem:[%s1378 + $0x24] sm:$0xf] %vm1265, %v1349
        %1389 = vst.msk [vmem:[%s1378 + $0x28] sm:$0xf] %vm1265, %v1351
        %1390 = vst.msk [vmem:[%s1378 + $0x2c] sm:$0xf] %vm1265, %v1353
        %1391 = vst.msk [vmem:[%s1378 + $0x30] sm:$0xf] %vm1265, %v1355
        %1392 = vst.msk [vmem:[%s1378 + $0x34] sm:$0xf] %vm1265, %v1357
        %1393 = vst.msk [vmem:[%s1378 + $0x38] sm:$0xf] %vm1265, %v1359
        %1394 = vst.msk [vmem:[%s1378 + $0x3c] sm:$0xf] %vm1265, %v1361
        %1411 = vrot.lane.b32.xlu0 %v1116, 96
        %v1412 = vpop.permute.xlu0 %1411
        %1413 = vrot.lane.b32.xlu0 %v1117, 96
        %v1414 = vpop.permute.xlu0 %1413
        %1415 = vrot.lane.b32.xlu0 %v1118, 96
        %v1416 = vpop.permute.xlu0 %1415
        %1417 = vrot.lane.b32.xlu0 %v1119, 96
        %v1418 = vpop.permute.xlu0 %1417
        %1419 = vrot.lane.b32.xlu0 %v1120, 96
        %v1420 = vpop.permute.xlu0 %1419
        %1421 = vrot.lane.b32.xlu0 %v1121, 96
        %v1422 = vpop.permute.xlu0 %1421
        %1423 = vrot.lane.b32.xlu0 %v1122, 96
        %v1424 = vpop.permute.xlu0 %1423
        %1425 = vrot.lane.b32.xlu0 %v1123, 96
        %v1426 = vpop.permute.xlu0 %1425
        %1427 = vrot.lane.b32.xlu0 %v1124, 96
        %v1428 = vpop.permute.xlu0 %1427
        %1429 = vrot.lane.b32.xlu0 %v1125, 96
        %v1430 = vpop.permute.xlu0 %1429
        %1431 = vrot.lane.b32.xlu0 %v1126, 96
        %v1432 = vpop.permute.xlu0 %1431
        %1433 = vrot.lane.b32.xlu0 %v1127, 96
        %v1434 = vpop.permute.xlu0 %1433
        %1435 = vrot.lane.b32.xlu0 %v1128, 96
        %v1436 = vpop.permute.xlu0 %1435
        %1437 = vrot.lane.b32.xlu0 %v1129, 96
        %v1438 = vpop.permute.xlu0 %1437
        %1439 = vrot.lane.b32.xlu0 %v1130, 96
        %v1440 = vpop.permute.xlu0 %1439
        %1441 = vrot.lane.b32.xlu0 %v1131, 96
        %v1442 = vpop.permute.xlu0 %1441
        %s1459 = scalar_lea.vmem %s468, 64 [#allocation11]
        %1460 = vst.msk [vmem:[%s1459] sm:$0xf] %vm1265, %v1412
        %1461 = vst.msk [vmem:[%s1459 + $0x4] sm:$0xf] %vm1265, %v1414
        %1462 = vst.msk [vmem:[%s1459 + $0x8] sm:$0xf] %vm1265, %v1416
        %1463 = vst.msk [vmem:[%s1459 + $0xc] sm:$0xf] %vm1265, %v1418
        %1464 = vst.msk [vmem:[%s1459 + $0x10] sm:$0xf] %vm1265, %v1420
        %1465 = vst.msk [vmem:[%s1459 + $0x14] sm:$0xf] %vm1265, %v1422
        %1466 = vst.msk [vmem:[%s1459 + $0x18] sm:$0xf] %vm1265, %v1424
        %1467 = vst.msk [vmem:[%s1459 + $0x1c] sm:$0xf] %vm1265, %v1426
        %1468 = vst.msk [vmem:[%s1459 + $0x20] sm:$0xf] %vm1265, %v1428
        %1469 = vst.msk [vmem:[%s1459 + $0x24] sm:$0xf] %vm1265, %v1430
        %1470 = vst.msk [vmem:[%s1459 + $0x28] sm:$0xf] %vm1265, %v1432
        %1471 = vst.msk [vmem:[%s1459 + $0x2c] sm:$0xf] %vm1265, %v1434
        %1472 = vst.msk [vmem:[%s1459 + $0x30] sm:$0xf] %vm1265, %v1436
        %1473 = vst.msk [vmem:[%s1459 + $0x34] sm:$0xf] %vm1265, %v1438
        %1474 = vst.msk [vmem:[%s1459 + $0x38] sm:$0xf] %vm1265, %v1440
        %1475 = vst.msk [vmem:[%s1459 + $0x3c] sm:$0xf] %vm1265, %v1442
        %1492 = vrot.lane.b32.xlu0 %v1249, 96
        %v1493 = vpop.permute.xlu0 %1492
        %1494 = vrot.lane.b32.xlu0 %v1250, 96
        %v1495 = vpop.permute.xlu0 %1494
        %1496 = vrot.lane.b32.xlu0 %v1251, 96
        %v1497 = vpop.permute.xlu0 %1496
        %1498 = vrot.lane.b32.xlu0 %v1252, 96
        %v1499 = vpop.permute.xlu0 %1498
        %1500 = vrot.lane.b32.xlu0 %v1253, 96
        %v1501 = vpop.permute.xlu0 %1500
        %1502 = vrot.lane.b32.xlu0 %v1254, 96
        %v1503 = vpop.permute.xlu0 %1502
        %1504 = vrot.lane.b32.xlu0 %v1255, 96
        %v1505 = vpop.permute.xlu0 %1504
        %1506 = vrot.lane.b32.xlu0 %v1256, 96
        %v1507 = vpop.permute.xlu0 %1506
        %1508 = vrot.lane.b32.xlu0 %v1257, 96
        %v1509 = vpop.permute.xlu0 %1508
        %1510 = vrot.lane.b32.xlu0 %v1258, 96
        %v1511 = vpop.permute.xlu0 %1510
        %1512 = vrot.lane.b32.xlu0 %v1259, 96
        %v1513 = vpop.permute.xlu0 %1512
        %1514 = vrot.lane.b32.xlu0 %v1260, 96
        %v1515 = vpop.permute.xlu0 %1514
        %1516 = vrot.lane.b32.xlu0 %v1261, 96
        %v1517 = vpop.permute.xlu0 %1516
        %1518 = vrot.lane.b32.xlu0 %v1262, 96
        %v1519 = vpop.permute.xlu0 %1518
        %1520 = vrot.lane.b32.xlu0 %v1263, 96
        %v1521 = vpop.permute.xlu0 %1520
        %1522 = vrot.lane.b32.xlu0 %v1264, 96
        %v1523 = vpop.permute.xlu0 %1522
        %s1540 = scalar_lea.vmem %s474, 64 [#allocation12]
        %1541 = vst.msk [vmem:[%s1540] sm:$0xf] %vm1265, %v1493
        %1542 = vst.msk [vmem:[%s1540 + $0x4] sm:$0xf] %vm1265, %v1495
        %1543 = vst.msk [vmem:[%s1540 + $0x8] sm:$0xf] %vm1265, %v1497
        %1544 = vst.msk [vmem:[%s1540 + $0xc] sm:$0xf] %vm1265, %v1499
        %1545 = vst.msk [vmem:[%s1540 + $0x10] sm:$0xf] %vm1265, %v1501
        %1546 = vst.msk [vmem:[%s1540 + $0x14] sm:$0xf] %vm1265, %v1503
        %1547 = vst.msk [vmem:[%s1540 + $0x18] sm:$0xf] %vm1265, %v1505
        %1548 = vst.msk [vmem:[%s1540 + $0x1c] sm:$0xf] %vm1265, %v1507
        %1549 = vst.msk [vmem:[%s1540 + $0x20] sm:$0xf] %vm1265, %v1509
        %1550 = vst.msk [vmem:[%s1540 + $0x24] sm:$0xf] %vm1265, %v1511
        %1551 = vst.msk [vmem:[%s1540 + $0x28] sm:$0xf] %vm1265, %v1513
        %1552 = vst.msk [vmem:[%s1540 + $0x2c] sm:$0xf] %vm1265, %v1515
        %1553 = vst.msk [vmem:[%s1540 + $0x30] sm:$0xf] %vm1265, %v1517
        %1554 = vst.msk [vmem:[%s1540 + $0x34] sm:$0xf] %vm1265, %v1519
        %1555 = vst.msk [vmem:[%s1540 + $0x38] sm:$0xf] %vm1265, %v1521
        %1556 = vst.msk [vmem:[%s1540 + $0x3c] sm:$0xf] %vm1265, %v1523
        %1557 = vrot.lane.b32.xlu0 %v987, 64
        %v1558 = vpop.permute.xlu0 %1557
        %1559 = vrot.lane.b32.xlu0 %v988, 64
        %v1560 = vpop.permute.xlu0 %1559
        %1561 = vrot.lane.b32.xlu0 %v989, 64
        %v1562 = vpop.permute.xlu0 %1561
        %1563 = vrot.lane.b32.xlu0 %v990, 64
        %v1564 = vpop.permute.xlu0 %1563
        %1565 = vrot.lane.b32.xlu0 %v991, 64
        %v1566 = vpop.permute.xlu0 %1565
        %1567 = vrot.lane.b32.xlu0 %v992, 64
        %v1568 = vpop.permute.xlu0 %1567
        %1569 = vrot.lane.b32.xlu0 %v993, 64
        %v1570 = vpop.permute.xlu0 %1569
        %1571 = vrot.lane.b32.xlu0 %v994, 64
        %v1572 = vpop.permute.xlu0 %1571
        %1573 = vrot.lane.b32.xlu0 %v995, 64
        %v1574 = vpop.permute.xlu0 %1573
        %1575 = vrot.lane.b32.xlu0 %v996, 64
        %v1576 = vpop.permute.xlu0 %1575
        %1577 = vrot.lane.b32.xlu0 %v997, 64
        %v1578 = vpop.permute.xlu0 %1577
        %1579 = vrot.lane.b32.xlu0 %v998, 64
        %v1580 = vpop.permute.xlu0 %1579
        %1581 = vrot.lane.b32.xlu0 %v999, 64
        %v1582 = vpop.permute.xlu0 %1581
        %1583 = vrot.lane.b32.xlu0 %v1000, 64
        %v1584 = vpop.permute.xlu0 %1583
        %1585 = vrot.lane.b32.xlu0 %v1001, 64
        %v1586 = vpop.permute.xlu0 %1585
        %1587 = vrot.lane.b32.xlu0 %v1002, 64
        %v1588 = vpop.permute.xlu0 %1587
        %s1605 = scalar_lea.vmem %s462, 128 [#allocation10]
        %1606 = vst.msk [vmem:[%s1605] sm:$0xf] %vm1265, %v1558
        %1607 = vst.msk [vmem:[%s1605 + $0x4] sm:$0xf] %vm1265, %v1560
        %1608 = vst.msk [vmem:[%s1605 + $0x8] sm:$0xf] %vm1265, %v1562
        %1609 = vst.msk [vmem:[%s1605 + $0xc] sm:$0xf] %vm1265, %v1564
        %1610 = vst.msk [vmem:[%s1605 + $0x10] sm:$0xf] %vm1265, %v1566
        %1611 = vst.msk [vmem:[%s1605 + $0x14] sm:$0xf] %vm1265, %v1568
        %1612 = vst.msk [vmem:[%s1605 + $0x18] sm:$0xf] %vm1265, %v1570
        %1613 = vst.msk [vmem:[%s1605 + $0x1c] sm:$0xf] %vm1265, %v1572
        %1614 = vst.msk [vmem:[%s1605 + $0x20] sm:$0xf] %vm1265, %v1574
        %1615 = vst.msk [vmem:[%s1605 + $0x24] sm:$0xf] %vm1265, %v1576
        %1616 = vst.msk [vmem:[%s1605 + $0x28] sm:$0xf] %vm1265, %v1578
        %1617 = vst.msk [vmem:[%s1605 + $0x2c] sm:$0xf] %vm1265, %v1580
        %1618 = vst.msk [vmem:[%s1605 + $0x30] sm:$0xf] %vm1265, %v1582
        %1619 = vst.msk [vmem:[%s1605 + $0x34] sm:$0xf] %vm1265, %v1584
        %1620 = vst.msk [vmem:[%s1605 + $0x38] sm:$0xf] %vm1265, %v1586
        %1621 = vst.msk [vmem:[%s1605 + $0x3c] sm:$0xf] %vm1265, %v1588
        %1622 = vrot.lane.b32.xlu0 %v1116, 64
        %v1623 = vpop.permute.xlu0 %1622
        %1624 = vrot.lane.b32.xlu0 %v1117, 64
        %v1625 = vpop.permute.xlu0 %1624
        %1626 = vrot.lane.b32.xlu0 %v1118, 64
        %v1627 = vpop.permute.xlu0 %1626
        %1628 = vrot.lane.b32.xlu0 %v1119, 64
        %v1629 = vpop.permute.xlu0 %1628
        %1630 = vrot.lane.b32.xlu0 %v1120, 64
        %v1631 = vpop.permute.xlu0 %1630
        %1632 = vrot.lane.b32.xlu0 %v1121, 64
        %v1633 = vpop.permute.xlu0 %1632
        %1634 = vrot.lane.b32.xlu0 %v1122, 64
        %v1635 = vpop.permute.xlu0 %1634
        %1636 = vrot.lane.b32.xlu0 %v1123, 64
        %v1637 = vpop.permute.xlu0 %1636
        %1638 = vrot.lane.b32.xlu0 %v1124, 64
        %v1639 = vpop.permute.xlu0 %1638
        %1640 = vrot.lane.b32.xlu0 %v1125, 64
        %v1641 = vpop.permute.xlu0 %1640
        %1642 = vrot.lane.b32.xlu0 %v1126, 64
        %v1643 = vpop.permute.xlu0 %1642
        %1644 = vrot.lane.b32.xlu0 %v1127, 64
        %v1645 = vpop.permute.xlu0 %1644
        %1646 = vrot.lane.b32.xlu0 %v1128, 64
        %v1647 = vpop.permute.xlu0 %1646
        %1648 = vrot.lane.b32.xlu0 %v1129, 64
        %v1649 = vpop.permute.xlu0 %1648
        %1650 = vrot.lane.b32.xlu0 %v1130, 64
        %v1651 = vpop.permute.xlu0 %1650
        %1652 = vrot.lane.b32.xlu0 %v1131, 64
        %v1653 = vpop.permute.xlu0 %1652
        %s1670 = scalar_lea.vmem %s468, 128 [#allocation11]
        %1671 = vst.msk [vmem:[%s1670] sm:$0xf] %vm1265, %v1623
        %1672 = vst.msk [vmem:[%s1670 + $0x4] sm:$0xf] %vm1265, %v1625
        %1673 = vst.msk [vmem:[%s1670 + $0x8] sm:$0xf] %vm1265, %v1627
        %1674 = vst.msk [vmem:[%s1670 + $0xc] sm:$0xf] %vm1265, %v1629
        %1675 = vst.msk [vmem:[%s1670 + $0x10] sm:$0xf] %vm1265, %v1631
        %1676 = vst.msk [vmem:[%s1670 + $0x14] sm:$0xf] %vm1265, %v1633
        %1677 = vst.msk [vmem:[%s1670 + $0x18] sm:$0xf] %vm1265, %v1635
        %1678 = vst.msk [vmem:[%s1670 + $0x1c] sm:$0xf] %vm1265, %v1637
        %1679 = vst.msk [vmem:[%s1670 + $0x20] sm:$0xf] %vm1265, %v1639
        %1680 = vst.msk [vmem:[%s1670 + $0x24] sm:$0xf] %vm1265, %v1641
        %1681 = vst.msk [vmem:[%s1670 + $0x28] sm:$0xf] %vm1265, %v1643
        %1682 = vst.msk [vmem:[%s1670 + $0x2c] sm:$0xf] %vm1265, %v1645
        %1683 = vst.msk [vmem:[%s1670 + $0x30] sm:$0xf] %vm1265, %v1647
        %1684 = vst.msk [vmem:[%s1670 + $0x34] sm:$0xf] %vm1265, %v1649
        %1685 = vst.msk [vmem:[%s1670 + $0x38] sm:$0xf] %vm1265, %v1651
        %1686 = vst.msk [vmem:[%s1670 + $0x3c] sm:$0xf] %vm1265, %v1653
        %1687 = vrot.lane.b32.xlu0 %v1249, 64
        %v1688 = vpop.permute.xlu0 %1687
        %1689 = vrot.lane.b32.xlu0 %v1250, 64
        %v1690 = vpop.permute.xlu0 %1689
        %1691 = vrot.lane.b32.xlu0 %v1251, 64
        %v1692 = vpop.permute.xlu0 %1691
        %1693 = vrot.lane.b32.xlu0 %v1252, 64
        %v1694 = vpop.permute.xlu0 %1693
        %1695 = vrot.lane.b32.xlu0 %v1253, 64
        %v1696 = vpop.permute.xlu0 %1695
        %1697 = vrot.lane.b32.xlu0 %v1254, 64
        %v1698 = vpop.permute.xlu0 %1697
        %1699 = vrot.lane.b32.xlu0 %v1255, 64
        %v1700 = vpop.permute.xlu0 %1699
        %1701 = vrot.lane.b32.xlu0 %v1256, 64
        %v1702 = vpop.permute.xlu0 %1701
        %1703 = vrot.lane.b32.xlu0 %v1257, 64
        %v1704 = vpop.permute.xlu0 %1703
        %1705 = vrot.lane.b32.xlu0 %v1258, 64
        %v1706 = vpop.permute.xlu0 %1705
        %1707 = vrot.lane.b32.xlu0 %v1259, 64
        %v1708 = vpop.permute.xlu0 %1707
        %1709 = vrot.lane.b32.xlu0 %v1260, 64
        %v1710 = vpop.permute.xlu0 %1709
        %1711 = vrot.lane.b32.xlu0 %v1261, 64
        %v1712 = vpop.permute.xlu0 %1711
        %1713 = vrot.lane.b32.xlu0 %v1262, 64
        %v1714 = vpop.permute.xlu0 %1713
        %1715 = vrot.lane.b32.xlu0 %v1263, 64
        %v1716 = vpop.permute.xlu0 %1715
        %1717 = vrot.lane.b32.xlu0 %v1264, 64
        %v1718 = vpop.permute.xlu0 %1717
        %s1735 = scalar_lea.vmem %s474, 128 [#allocation12]
        %1736 = vst.msk [vmem:[%s1735] sm:$0xf] %vm1265, %v1688
        %1737 = vst.msk [vmem:[%s1735 + $0x4] sm:$0xf] %vm1265, %v1690
        %1738 = vst.msk [vmem:[%s1735 + $0x8] sm:$0xf] %vm1265, %v1692
        %1739 = vst.msk [vmem:[%s1735 + $0xc] sm:$0xf] %vm1265, %v1694
        %1740 = vst.msk [vmem:[%s1735 + $0x10] sm:$0xf] %vm1265, %v1696
        %1741 = vst.msk [vmem:[%s1735 + $0x14] sm:$0xf] %vm1265, %v1698
        %1742 = vst.msk [vmem:[%s1735 + $0x18] sm:$0xf] %vm1265, %v1700
        %1743 = vst.msk [vmem:[%s1735 + $0x1c] sm:$0xf] %vm1265, %v1702
        %1744 = vst.msk [vmem:[%s1735 + $0x20] sm:$0xf] %vm1265, %v1704
        %1745 = vst.msk [vmem:[%s1735 + $0x24] sm:$0xf] %vm1265, %v1706
        %1746 = vst.msk [vmem:[%s1735 + $0x28] sm:$0xf] %vm1265, %v1708
        %1747 = vst.msk [vmem:[%s1735 + $0x2c] sm:$0xf] %vm1265, %v1710
        %1748 = vst.msk [vmem:[%s1735 + $0x30] sm:$0xf] %vm1265, %v1712
        %1749 = vst.msk [vmem:[%s1735 + $0x34] sm:$0xf] %vm1265, %v1714
        %1750 = vst.msk [vmem:[%s1735 + $0x38] sm:$0xf] %vm1265, %v1716
        %1751 = vst.msk [vmem:[%s1735 + $0x3c] sm:$0xf] %vm1265, %v1718
        %1752 = vrot.lane.b32.xlu0 %v987, 32
        %v1753 = vpop.permute.xlu0 %1752
        %1754 = vrot.lane.b32.xlu0 %v988, 32
        %v1755 = vpop.permute.xlu0 %1754
        %1756 = vrot.lane.b32.xlu0 %v989, 32
        %v1757 = vpop.permute.xlu0 %1756
        %1758 = vrot.lane.b32.xlu0 %v990, 32
        %v1759 = vpop.permute.xlu0 %1758
        %1760 = vrot.lane.b32.xlu0 %v991, 32
        %v1761 = vpop.permute.xlu0 %1760
        %1762 = vrot.lane.b32.xlu0 %v992, 32
        %v1763 = vpop.permute.xlu0 %1762
        %1764 = vrot.lane.b32.xlu0 %v993, 32
        %v1765 = vpop.permute.xlu0 %1764
        %1766 = vrot.lane.b32.xlu0 %v994, 32
        %v1767 = vpop.permute.xlu0 %1766
        %1768 = vrot.lane.b32.xlu0 %v995, 32
        %v1769 = vpop.permute.xlu0 %1768
        %1770 = vrot.lane.b32.xlu0 %v996, 32
        %v1771 = vpop.permute.xlu0 %1770
        %1772 = vrot.lane.b32.xlu0 %v997, 32
        %v1773 = vpop.permute.xlu0 %1772
        %1774 = vrot.lane.b32.xlu0 %v998, 32
        %v1775 = vpop.permute.xlu0 %1774
        %1776 = vrot.lane.b32.xlu0 %v999, 32
        %v1777 = vpop.permute.xlu0 %1776
        %1778 = vrot.lane.b32.xlu0 %v1000, 32
        %v1779 = vpop.permute.xlu0 %1778
        %1780 = vrot.lane.b32.xlu0 %v1001, 32
        %v1781 = vpop.permute.xlu0 %1780
        %1782 = vrot.lane.b32.xlu0 %v1002, 32
        %v1783 = vpop.permute.xlu0 %1782
        %s1800 = scalar_lea.vmem %s462, 192 [#allocation10]
        %1801 = vst.msk [vmem:[%s1800] sm:$0xf] %vm1265, %v1753
        %1802 = vst.msk [vmem:[%s1800 + $0x4] sm:$0xf] %vm1265, %v1755
        %1803 = vst.msk [vmem:[%s1800 + $0x8] sm:$0xf] %vm1265, %v1757
        %1804 = vst.msk [vmem:[%s1800 + $0xc] sm:$0xf] %vm1265, %v1759
        %1805 = vst.msk [vmem:[%s1800 + $0x10] sm:$0xf] %vm1265, %v1761
        %1806 = vst.msk [vmem:[%s1800 + $0x14] sm:$0xf] %vm1265, %v1763
        %1807 = vst.msk [vmem:[%s1800 + $0x18] sm:$0xf] %vm1265, %v1765
        %1808 = vst.msk [vmem:[%s1800 + $0x1c] sm:$0xf] %vm1265, %v1767
        %1809 = vst.msk [vmem:[%s1800 + $0x20] sm:$0xf] %vm1265, %v1769
        %1810 = vst.msk [vmem:[%s1800 + $0x24] sm:$0xf] %vm1265, %v1771
        %1811 = vst.msk [vmem:[%s1800 + $0x28] sm:$0xf] %vm1265, %v1773
        %1812 = vst.msk [vmem:[%s1800 + $0x2c] sm:$0xf] %vm1265, %v1775
        %1813 = vst.msk [vmem:[%s1800 + $0x30] sm:$0xf] %vm1265, %v1777
        %1814 = vst.msk [vmem:[%s1800 + $0x34] sm:$0xf] %vm1265, %v1779
        %1815 = vst.msk [vmem:[%s1800 + $0x38] sm:$0xf] %vm1265, %v1781
        %1816 = vst.msk [vmem:[%s1800 + $0x3c] sm:$0xf] %vm1265, %v1783
        %1817 = vrot.lane.b32.xlu0 %v1116, 32
        %v1818 = vpop.permute.xlu0 %1817
        %1819 = vrot.lane.b32.xlu0 %v1117, 32
        %v1820 = vpop.permute.xlu0 %1819
        %1821 = vrot.lane.b32.xlu0 %v1118, 32
        %v1822 = vpop.permute.xlu0 %1821
        %1823 = vrot.lane.b32.xlu0 %v1119, 32
        %v1824 = vpop.permute.xlu0 %1823
        %1825 = vrot.lane.b32.xlu0 %v1120, 32
        %v1826 = vpop.permute.xlu0 %1825
        %1827 = vrot.lane.b32.xlu0 %v1121, 32
        %v1828 = vpop.permute.xlu0 %1827
        %1829 = vrot.lane.b32.xlu0 %v1122, 32
        %v1830 = vpop.permute.xlu0 %1829
        %1831 = vrot.lane.b32.xlu0 %v1123, 32
        %v1832 = vpop.permute.xlu0 %1831
        %1833 = vrot.lane.b32.xlu0 %v1124, 32
        %v1834 = vpop.permute.xlu0 %1833
        %1835 = vrot.lane.b32.xlu0 %v1125, 32
        %v1836 = vpop.permute.xlu0 %1835
        %1837 = vrot.lane.b32.xlu0 %v1126, 32
        %v1838 = vpop.permute.xlu0 %1837
        %1839 = vrot.lane.b32.xlu0 %v1127, 32
        %v1840 = vpop.permute.xlu0 %1839
        %1841 = vrot.lane.b32.xlu0 %v1128, 32
        %v1842 = vpop.permute.xlu0 %1841
        %1843 = vrot.lane.b32.xlu0 %v1129, 32
        %v1844 = vpop.permute.xlu0 %1843
        %1845 = vrot.lane.b32.xlu0 %v1130, 32
        %v1846 = vpop.permute.xlu0 %1845
        %1847 = vrot.lane.b32.xlu0 %v1131, 32
        %v1848 = vpop.permute.xlu0 %1847
        %s1865 = scalar_lea.vmem %s468, 192 [#allocation11]
        %1866 = vst.msk [vmem:[%s1865] sm:$0xf] %vm1265, %v1818
        %1867 = vst.msk [vmem:[%s1865 + $0x4] sm:$0xf] %vm1265, %v1820
        %1868 = vst.msk [vmem:[%s1865 + $0x8] sm:$0xf] %vm1265, %v1822
        %1869 = vst.msk [vmem:[%s1865 + $0xc] sm:$0xf] %vm1265, %v1824
        %1870 = vst.msk [vmem:[%s1865 + $0x10] sm:$0xf] %vm1265, %v1826
        %1871 = vst.msk [vmem:[%s1865 + $0x14] sm:$0xf] %vm1265, %v1828
        %1872 = vst.msk [vmem:[%s1865 + $0x18] sm:$0xf] %vm1265, %v1830
        %1873 = vst.msk [vmem:[%s1865 + $0x1c] sm:$0xf] %vm1265, %v1832
        %1874 = vst.msk [vmem:[%s1865 + $0x20] sm:$0xf] %vm1265, %v1834
        %1875 = vst.msk [vmem:[%s1865 + $0x24] sm:$0xf] %vm1265, %v1836
        %1876 = vst.msk [vmem:[%s1865 + $0x28] sm:$0xf] %vm1265, %v1838
        %1877 = vst.msk [vmem:[%s1865 + $0x2c] sm:$0xf] %vm1265, %v1840
        %1878 = vst.msk [vmem:[%s1865 + $0x30] sm:$0xf] %vm1265, %v1842
        %1879 = vst.msk [vmem:[%s1865 + $0x34] sm:$0xf] %vm1265, %v1844
        %1880 = vst.msk [vmem:[%s1865 + $0x38] sm:$0xf] %vm1265, %v1846
        %1881 = vst.msk [vmem:[%s1865 + $0x3c] sm:$0xf] %vm1265, %v1848
        %1882 = vrot.lane.b32.xlu0 %v1249, 32
        %v1883 = vpop.permute.xlu0 %1882
        %1884 = vrot.lane.b32.xlu0 %v1250, 32
        %v1885 = vpop.permute.xlu0 %1884
        %1886 = vrot.lane.b32.xlu0 %v1251, 32
        %v1887 = vpop.permute.xlu0 %1886
        %1888 = vrot.lane.b32.xlu0 %v1252, 32
        %v1889 = vpop.permute.xlu0 %1888
        %1890 = vrot.lane.b32.xlu0 %v1253, 32
        %v1891 = vpop.permute.xlu0 %1890
        %1892 = vrot.lane.b32.xlu0 %v1254, 32
        %v1893 = vpop.permute.xlu0 %1892
        %1894 = vrot.lane.b32.xlu0 %v1255, 32
        %v1895 = vpop.permute.xlu0 %1894
        %1896 = vrot.lane.b32.xlu0 %v1256, 32
        %v1897 = vpop.permute.xlu0 %1896
        %1898 = vrot.lane.b32.xlu0 %v1257, 32
        %v1899 = vpop.permute.xlu0 %1898
        %1900 = vrot.lane.b32.xlu0 %v1258, 32
        %v1901 = vpop.permute.xlu0 %1900
        %1902 = vrot.lane.b32.xlu0 %v1259, 32
        %v1903 = vpop.permute.xlu0 %1902
        %1904 = vrot.lane.b32.xlu0 %v1260, 32
        %v1905 = vpop.permute.xlu0 %1904
        %1906 = vrot.lane.b32.xlu0 %v1261, 32
        %v1907 = vpop.permute.xlu0 %1906
        %1908 = vrot.lane.b32.xlu0 %v1262, 32
        %v1909 = vpop.permute.xlu0 %1908
        %1910 = vrot.lane.b32.xlu0 %v1263, 32
        %v1911 = vpop.permute.xlu0 %1910
        %1912 = vrot.lane.b32.xlu0 %v1264, 32
        %v1913 = vpop.permute.xlu0 %1912
        %s1930 = scalar_lea.vmem %s474, 192 [#allocation12]
        %1931 = vst.msk [vmem:[%s1930] sm:$0xf] %vm1265, %v1883
        %1932 = vst.msk [vmem:[%s1930 + $0x4] sm:$0xf] %vm1265, %v1885
        %1933 = vst.msk [vmem:[%s1930 + $0x8] sm:$0xf] %vm1265, %v1887
        %1934 = vst.msk [vmem:[%s1930 + $0xc] sm:$0xf] %vm1265, %v1889
        %1935 = vst.msk [vmem:[%s1930 + $0x10] sm:$0xf] %vm1265, %v1891
        %1936 = vst.msk [vmem:[%s1930 + $0x14] sm:$0xf] %vm1265, %v1893
        %1937 = vst.msk [vmem:[%s1930 + $0x18] sm:$0xf] %vm1265, %v1895
        %1938 = vst.msk [vmem:[%s1930 + $0x1c] sm:$0xf] %vm1265, %v1897
        %1939 = vst.msk [vmem:[%s1930 + $0x20] sm:$0xf] %vm1265, %v1899
        %1940 = vst.msk [vmem:[%s1930 + $0x24] sm:$0xf] %vm1265, %v1901
        %1941 = vst.msk [vmem:[%s1930 + $0x28] sm:$0xf] %vm1265, %v1903
        %1942 = vst.msk [vmem:[%s1930 + $0x2c] sm:$0xf] %vm1265, %v1905
        %1943 = vst.msk [vmem:[%s1930 + $0x30] sm:$0xf] %vm1265, %v1907
        %1944 = vst.msk [vmem:[%s1930 + $0x34] sm:$0xf] %vm1265, %v1909
        %1945 = vst.msk [vmem:[%s1930 + $0x38] sm:$0xf] %vm1265, %v1911
        %1946 = vst.msk [vmem:[%s1930 + $0x3c] sm:$0xf] %vm1265, %v1913
        %s1947 = sand.u32 %s224, 1
        %s1948 = sand.u32 %s224, 1
        %s1949 = smul.addr %s1948, 256
        %s1950 = scalar_lea.vmem [#allocation10], %s1949
        %s1951 = sand.u32 %s252, 1
        %s1952 = sand.u32 %s252, 1
        %s1953 = smul.addr %s1952, 256
        %s1954 = scalar_lea.vmem [#allocation11], %s1953
        %s1955 = sand.u32 %s280, 1
        %s1956 = sand.u32 %s280, 1
        %s1957 = smul.addr %s1956, 256
        %s1958 = scalar_lea.vmem [#allocation12], %s1957
        // Predicated region
        $region73: #{tpu_custom_call.1} parent=51 // pred_check
          %p1959 = pneg %p234
        $region74: #{tpu_custom_call.1} parent=51 // pred_check_branch
          %1961 = sbr.rel (%p1959) target = $region76
        $region75: #{tpu_custom_call.1} parent=51 // pred_region
          %s1962 = smul.u32 16, %s32
          %s1963 = smul.addr %s31, 128
          %s1964 = sadd.s32 %s1962, %s1963
          %s1965 = smul.addr %s1964, 4
          %s1966 = scalar_lea.vmem %s8, %s1965
          // Predicated region
          $region77: #{tpu_custom_call.1} parent=75 // pred_check
            _
          $region78: #{tpu_custom_call.1} parent=75 // pred_check_branch
            %1968 = sbr.rel (0) target = $region80
          $region79: #{tpu_custom_call.1} parent=75 // pred_region
            // Predicated region
            $region81: #{tpu_custom_call.1} parent=79 // pred_check
              _
            $region82: #{tpu_custom_call.1} parent=79 // pred_check_branch
              %1970 = sbr.rel target = $region84
            $region83: #{tpu_custom_call.1} parent=79 // pred_region
              // Predicated region
              $region96: #{tpu_custom_call.1} parent=83 // pred_check
                _
              $region97: #{tpu_custom_call.1} parent=83 // pred_check_branch
                %2112 = sbr.rel (0) target = $region99
              $region98: #{tpu_custom_call.1} parent=83 // pred_region
                loop: start=0, step=1, limit=1
                $region100: #{tpu_custom_call.1} parent=98 // loop_pre_header
                  _
                $region101: #{tpu_custom_call.1} parent=98 // loop_header
                  %s2114 = sphi 0, %s2118
                  %p2115 = scmp.ge.s32.totalorder %s2114, 1
                  %s2119 = sphi %s1950, %s1950
                  %s2120 = sphi %s1966, %s1966
                $region102: #{tpu_custom_call.1} parent=98 // loop_header_branch
                  %2117 = sbr.rel (%p2115) target = $region106
                $region103: #{tpu_custom_call.1} parent=98 // loop_body
                  _
                $region104: #{tpu_custom_call.1} parent=98 // loop_footer
                  %s2118 = sadd.s32 1, %s2114
                $region105: #{tpu_custom_call.1} parent=98 // loop_footer_branch
                  %2113 = sbr.rel target = $region101
                $region106: #{tpu_custom_call.1} parent=98 // loop_exit
                  _
                %s2122 = ssub.s32 16, 1
                loop: start=0, step=1, limit=1
                $region107: #{tpu_custom_call.1} parent=98 // loop_pre_header
                  _
                $region108: #{tpu_custom_call.1} parent=98 // loop_header
                  %s2124 = sphi 0, %s2128
                  %p2125 = scmp.ge.s32.totalorder %s2124, 1
                  %s2129 = sphi %s1950, %s1950
                  %s2130 = sphi %s1966, %s1966
                $region109: #{tpu_custom_call.1} parent=98 // loop_header_branch
                  %2127 = sbr.rel (%p2125) target = $region113
                $region110: #{tpu_custom_call.1} parent=98 // loop_body
                  %v2131 = vld [vmem:[%s2129] sm:%s2122]
                  %2132 = vst [vmem:[%s2130] sm:%s2122] %v2131
                  %v2133 = vld [vmem:[%s2129 + $0x4] sm:%s2122]
                  %2134 = vst [vmem:[%s2130 + $0x4] sm:%s2122] %v2133
                  %v2135 = vld [vmem:[%s2129 + $0x8] sm:%s2122]
                  %2136 = vst [vmem:[%s2130 + $0x8] sm:%s2122] %v2135
                  %v2137 = vld [vmem:[%s2129 + $0xc] sm:%s2122]
                  %2138 = vst [vmem:[%s2130 + $0xc] sm:%s2122] %v2137
                  %v2139 = vld [vmem:[%s2129 + $0x10] sm:%s2122]
                  %2140 = vst [vmem:[%s2130 + $0x10] sm:%s2122] %v2139
                  %v2141 = vld [vmem:[%s2129 + $0x14] sm:%s2122]
                  %2142 = vst [vmem:[%s2130 + $0x14] sm:%s2122] %v2141
                  %v2143 = vld [vmem:[%s2129 + $0x18] sm:%s2122]
                  %2144 = vst [vmem:[%s2130 + $0x18] sm:%s2122] %v2143
                  %v2145 = vld [vmem:[%s2129 + $0x1c] sm:%s2122]
                  %2146 = vst [vmem:[%s2130 + $0x1c] sm:%s2122] %v2145
                  %v2147 = vld [vmem:[%s2129 + $0x20] sm:%s2122]
                  %2148 = vst [vmem:[%s2130 + $0x20] sm:%s2122] %v2147
                  %v2149 = vld [vmem:[%s2129 + $0x24] sm:%s2122]
                  %2150 = vst [vmem:[%s2130 + $0x24] sm:%s2122] %v2149
                  %v2151 = vld [vmem:[%s2129 + $0x28] sm:%s2122]
                  %2152 = vst [vmem:[%s2130 + $0x28] sm:%s2122] %v2151
                  %v2153 = vld [vmem:[%s2129 + $0x2c] sm:%s2122]
                  %2154 = vst [vmem:[%s2130 + $0x2c] sm:%s2122] %v2153
                  %v2155 = vld [vmem:[%s2129 + $0x30] sm:%s2122]
                  %2156 = vst [vmem:[%s2130 + $0x30] sm:%s2122] %v2155
                  %v2157 = vld [vmem:[%s2129 + $0x34] sm:%s2122]
                  %2158 = vst [vmem:[%s2130 + $0x34] sm:%s2122] %v2157
                  %v2159 = vld [vmem:[%s2129 + $0x38] sm:%s2122]
                  %2160 = vst [vmem:[%s2130 + $0x38] sm:%s2122] %v2159
                  %v2161 = vld [vmem:[%s2129 + $0x3c] sm:%s2122]
                  %2162 = vst [vmem:[%s2130 + $0x3c] sm:%s2122] %v2161
                  %v2163 = vld [vmem:[%s2129 + $0x40] sm:%s2122]
                  %2164 = vst [vmem:[%s2130 + $0x80] sm:%s2122] %v2163
                  %v2165 = vld [vmem:[%s2129 + $0x44] sm:%s2122]
                  %2166 = vst [vmem:[%s2130 + $0x84] sm:%s2122] %v2165
                  %v2167 = vld [vmem:[%s2129 + $0x48] sm:%s2122]
                  %2168 = vst [vmem:[%s2130 + $0x88] sm:%s2122] %v2167
                  %v2169 = vld [vmem:[%s2129 + $0x4c] sm:%s2122]
                  %2170 = vst [vmem:[%s2130 + $0x8c] sm:%s2122] %v2169
                  %v2171 = vld [vmem:[%s2129 + $0x50] sm:%s2122]
                  %2172 = vst [vmem:[%s2130 + $0x90] sm:%s2122] %v2171
                  %v2173 = vld [vmem:[%s2129 + $0x54] sm:%s2122]
                  %2174 = vst [vmem:[%s2130 + $0x94] sm:%s2122] %v2173
                  %v2175 = vld [vmem:[%s2129 + $0x58] sm:%s2122]
                  %2176 = vst [vmem:[%s2130 + $0x98] sm:%s2122] %v2175
                  %v2177 = vld [vmem:[%s2129 + $0x5c] sm:%s2122]
                  %2178 = vst [vmem:[%s2130 + $0x9c] sm:%s2122] %v2177
                  %v2179 = vld [vmem:[%s2129 + $0x60] sm:%s2122]
                  %2180 = vst [vmem:[%s2130 + $0xa0] sm:%s2122] %v2179
                  %v2181 = vld [vmem:[%s2129 + $0x64] sm:%s2122]
                  %2182 = vst [vmem:[%s2130 + $0xa4] sm:%s2122] %v2181
                  %v2183 = vld [vmem:[%s2129 + $0x68] sm:%s2122]
                  %2184 = vst [vmem:[%s2130 + $0xa8] sm:%s2122] %v2183
                  %v2185 = vld [vmem:[%s2129 + $0x6c] sm:%s2122]
                  %2186 = vst [vmem:[%s2130 + $0xac] sm:%s2122] %v2185
                  %v2187 = vld [vmem:[%s2129 + $0x70] sm:%s2122]
                  %2188 = vst [vmem:[%s2130 + $0xb0] sm:%s2122] %v2187
                  %v2189 = vld [vmem:[%s2129 + $0x74] sm:%s2122]
                  %2190 = vst [vmem:[%s2130 + $0xb4] sm:%s2122] %v2189
                  %v2191 = vld [vmem:[%s2129 + $0x78] sm:%s2122]
                  %2192 = vst [vmem:[%s2130 + $0xb8] sm:%s2122] %v2191
                  %v2193 = vld [vmem:[%s2129 + $0x7c] sm:%s2122]
                  %2194 = vst [vmem:[%s2130 + $0xbc] sm:%s2122] %v2193
                  %v2195 = vld [vmem:[%s2129 + $0x80] sm:%s2122]
                  %2196 = vst [vmem:[%s2130 + $0x100] sm:%s2122] %v2195
                  %v2197 = vld [vmem:[%s2129 + $0x84] sm:%s2122]
                  %2198 = vst [vmem:[%s2130 + $0x104] sm:%s2122] %v2197
                  %v2199 = vld [vmem:[%s2129 + $0x88] sm:%s2122]
                  %2200 = vst [vmem:[%s2130 + $0x108] sm:%s2122] %v2199
                  %v2201 = vld [vmem:[%s2129 + $0x8c] sm:%s2122]
                  %2202 = vst [vmem:[%s2130 + $0x10c] sm:%s2122] %v2201
                  %v2203 = vld [vmem:[%s2129 + $0x90] sm:%s2122]
                  %2204 = vst [vmem:[%s2130 + $0x110] sm:%s2122] %v2203
                  %v2205 = vld [vmem:[%s2129 + $0x94] sm:%s2122]
                  %2206 = vst [vmem:[%s2130 + $0x114] sm:%s2122] %v2205
                  %v2207 = vld [vmem:[%s2129 + $0x98] sm:%s2122]
                  %2208 = vst [vmem:[%s2130 + $0x118] sm:%s2122] %v2207
                  %v2209 = vld [vmem:[%s2129 + $0x9c] sm:%s2122]
                  %2210 = vst [vmem:[%s2130 + $0x11c] sm:%s2122] %v2209
                  %v2211 = vld [vmem:[%s2129 + $0xa0] sm:%s2122]
                  %2212 = vst [vmem:[%s2130 + $0x120] sm:%s2122] %v2211
                  %v2213 = vld [vmem:[%s2129 + $0xa4] sm:%s2122]
                  %2214 = vst [vmem:[%s2130 + $0x124] sm:%s2122] %v2213
                  %v2215 = vld [vmem:[%s2129 + $0xa8] sm:%s2122]
                  %2216 = vst [vmem:[%s2130 + $0x128] sm:%s2122] %v2215
                  %v2217 = vld [vmem:[%s2129 + $0xac] sm:%s2122]
                  %2218 = vst [vmem:[%s2130 + $0x12c] sm:%s2122] %v2217
                  %v2219 = vld [vmem:[%s2129 + $0xb0] sm:%s2122]
                  %2220 = vst [vmem:[%s2130 + $0x130] sm:%s2122] %v2219
                  %v2221 = vld [vmem:[%s2129 + $0xb4] sm:%s2122]
                  %2222 = vst [vmem:[%s2130 + $0x134] sm:%s2122] %v2221
                  %v2223 = vld [vmem:[%s2129 + $0xb8] sm:%s2122]
                  %2224 = vst [vmem:[%s2130 + $0x138] sm:%s2122] %v2223
                  %v2225 = vld [vmem:[%s2129 + $0xbc] sm:%s2122]
                  %2226 = vst [vmem:[%s2130 + $0x13c] sm:%s2122] %v2225
                  %v2227 = vld [vmem:[%s2129 + $0xc0] sm:%s2122]
                  %2228 = vst [vmem:[%s2130 + $0x180] sm:%s2122] %v2227
                  %v2229 = vld [vmem:[%s2129 + $0xc4] sm:%s2122]
                  %2230 = vst [vmem:[%s2130 + $0x184] sm:%s2122] %v2229
                  %v2231 = vld [vmem:[%s2129 + $0xc8] sm:%s2122]
                  %2232 = vst [vmem:[%s2130 + $0x188] sm:%s2122] %v2231
                  %v2233 = vld [vmem:[%s2129 + $0xcc] sm:%s2122]
                  %2234 = vst [vmem:[%s2130 + $0x18c] sm:%s2122] %v2233
                  %v2235 = vld [vmem:[%s2129 + $0xd0] sm:%s2122]
                  %2236 = vst [vmem:[%s2130 + $0x190] sm:%s2122] %v2235
                  %v2237 = vld [vmem:[%s2129 + $0xd4] sm:%s2122]
                  %2238 = vst [vmem:[%s2130 + $0x194] sm:%s2122] %v2237
                  %v2239 = vld [vmem:[%s2129 + $0xd8] sm:%s2122]
                  %2240 = vst [vmem:[%s2130 + $0x198] sm:%s2122] %v2239
                  %v2241 = vld [vmem:[%s2129 + $0xdc] sm:%s2122]
                  %2242 = vst [vmem:[%s2130 + $0x19c] sm:%s2122] %v2241
                  %v2243 = vld [vmem:[%s2129 + $0xe0] sm:%s2122]
                  %2244 = vst [vmem:[%s2130 + $0x1a0] sm:%s2122] %v2243
                  %v2245 = vld [vmem:[%s2129 + $0xe4] sm:%s2122]
                  %2246 = vst [vmem:[%s2130 + $0x1a4] sm:%s2122] %v2245
                  %v2247 = vld [vmem:[%s2129 + $0xe8] sm:%s2122]
                  %2248 = vst [vmem:[%s2130 + $0x1a8] sm:%s2122] %v2247
                  %v2249 = vld [vmem:[%s2129 + $0xec] sm:%s2122]
                  %2250 = vst [vmem:[%s2130 + $0x1ac] sm:%s2122] %v2249
                  %v2251 = vld [vmem:[%s2129 + $0xf0] sm:%s2122]
                  %2252 = vst [vmem:[%s2130 + $0x1b0] sm:%s2122] %v2251
                  %v2253 = vld [vmem:[%s2129 + $0xf4] sm:%s2122]
                  %2254 = vst [vmem:[%s2130 + $0x1b4] sm:%s2122] %v2253
                  %v2255 = vld [vmem:[%s2129 + $0xf8] sm:%s2122]
                  %2256 = vst [vmem:[%s2130 + $0x1b8] sm:%s2122] %v2255
                  %v2257 = vld [vmem:[%s2129 + $0xfc] sm:%s2122]
                  %2258 = vst [vmem:[%s2130 + $0x1bc] sm:%s2122] %v2257
                $region111: #{tpu_custom_call.1} parent=98 // loop_footer
                  %s2128 = sadd.s32 1, %s2124
                $region112: #{tpu_custom_call.1} parent=98 // loop_footer_branch
                  %2123 = sbr.rel target = $region108
                $region113: #{tpu_custom_call.1} parent=98 // loop_exit
                  _
              $region99: #{tpu_custom_call.1} parent=83 // pred_fallthru
                _
            $region84: #{tpu_custom_call.1} parent=79 // pred_fallthru
              _
            // Predicated region
            $region85: #{tpu_custom_call.1} parent=79 // pred_check
              _
            $region86: #{tpu_custom_call.1} parent=79 // pred_check_branch
              %1972 = sbr.rel (0) target = $region88
            $region87: #{tpu_custom_call.1} parent=79 // pred_region
              %s1974 = ssub.s32 16, 1
              loop: start=0, step=1, limit=1
              $region89: #{tpu_custom_call.1} parent=87 // loop_pre_header
                _
              $region90: #{tpu_custom_call.1} parent=87 // loop_header
                %s1976 = sphi 0, %s1980
                %p1977 = scmp.ge.s32.totalorder %s1976, 1
                %s1981 = sphi %s1950, %s1950
                %s1982 = sphi %s1966, %s1966
              $region91: #{tpu_custom_call.1} parent=87 // loop_header_branch
                %1979 = sbr.rel (%p1977) target = $region95
              $region92: #{tpu_custom_call.1} parent=87 // loop_body
                %v1983 = vld [vmem:[%s1981] sm:%s1974]
                %1984 = vst [vmem:[%s1982] sm:%s1974] %v1983
                %v1985 = vld [vmem:[%s1981 + $0x4] sm:%s1974]
                %1986 = vst [vmem:[%s1982 + $0x4] sm:%s1974] %v1985
                %v1987 = vld [vmem:[%s1981 + $0x8] sm:%s1974]
                %1988 = vst [vmem:[%s1982 + $0x8] sm:%s1974] %v1987
                %v1989 = vld [vmem:[%s1981 + $0xc] sm:%s1974]
                %1990 = vst [vmem:[%s1982 + $0xc] sm:%s1974] %v1989
                %v1991 = vld [vmem:[%s1981 + $0x10] sm:%s1974]
                %1992 = vst [vmem:[%s1982 + $0x10] sm:%s1974] %v1991
                %v1993 = vld [vmem:[%s1981 + $0x14] sm:%s1974]
                %1994 = vst [vmem:[%s1982 + $0x14] sm:%s1974] %v1993
                %v1995 = vld [vmem:[%s1981 + $0x18] sm:%s1974]
                %1996 = vst [vmem:[%s1982 + $0x18] sm:%s1974] %v1995
                %v1997 = vld [vmem:[%s1981 + $0x1c] sm:%s1974]
                %1998 = vst [vmem:[%s1982 + $0x1c] sm:%s1974] %v1997
                %v1999 = vld [vmem:[%s1981 + $0x20] sm:%s1974]
                %2000 = vst [vmem:[%s1982 + $0x20] sm:%s1974] %v1999
                %v2001 = vld [vmem:[%s1981 + $0x24] sm:%s1974]
                %2002 = vst [vmem:[%s1982 + $0x24] sm:%s1974] %v2001
                %v2003 = vld [vmem:[%s1981 + $0x28] sm:%s1974]
                %2004 = vst [vmem:[%s1982 + $0x28] sm:%s1974] %v2003
                %v2005 = vld [vmem:[%s1981 + $0x2c] sm:%s1974]
                %2006 = vst [vmem:[%s1982 + $0x2c] sm:%s1974] %v2005
                %v2007 = vld [vmem:[%s1981 + $0x30] sm:%s1974]
                %2008 = vst [vmem:[%s1982 + $0x30] sm:%s1974] %v2007
                %v2009 = vld [vmem:[%s1981 + $0x34] sm:%s1974]
                %2010 = vst [vmem:[%s1982 + $0x34] sm:%s1974] %v2009
                %v2011 = vld [vmem:[%s1981 + $0x38] sm:%s1974]
                %2012 = vst [vmem:[%s1982 + $0x38] sm:%s1974] %v2011
                %v2013 = vld [vmem:[%s1981 + $0x3c] sm:%s1974]
                %2014 = vst [vmem:[%s1982 + $0x3c] sm:%s1974] %v2013
                %v2015 = vld [vmem:[%s1981 + $0x40] sm:%s1974]
                %2016 = vst [vmem:[%s1982 + $0x80] sm:%s1974] %v2015
                %v2017 = vld [vmem:[%s1981 + $0x44] sm:%s1974]
                %2018 = vst [vmem:[%s1982 + $0x84] sm:%s1974] %v2017
                %v2019 = vld [vmem:[%s1981 + $0x48] sm:%s1974]
                %2020 = vst [vmem:[%s1982 + $0x88] sm:%s1974] %v2019
                %v2021 = vld [vmem:[%s1981 + $0x4c] sm:%s1974]
                %2022 = vst [vmem:[%s1982 + $0x8c] sm:%s1974] %v2021
                %v2023 = vld [vmem:[%s1981 + $0x50] sm:%s1974]
                %2024 = vst [vmem:[%s1982 + $0x90] sm:%s1974] %v2023
                %v2025 = vld [vmem:[%s1981 + $0x54] sm:%s1974]
                %2026 = vst [vmem:[%s1982 + $0x94] sm:%s1974] %v2025
                %v2027 = vld [vmem:[%s1981 + $0x58] sm:%s1974]
                %2028 = vst [vmem:[%s1982 + $0x98] sm:%s1974] %v2027
                %v2029 = vld [vmem:[%s1981 + $0x5c] sm:%s1974]
                %2030 = vst [vmem:[%s1982 + $0x9c] sm:%s1974] %v2029
                %v2031 = vld [vmem:[%s1981 + $0x60] sm:%s1974]
                %2032 = vst [vmem:[%s1982 + $0xa0] sm:%s1974] %v2031
                %v2033 = vld [vmem:[%s1981 + $0x64] sm:%s1974]
                %2034 = vst [vmem:[%s1982 + $0xa4] sm:%s1974] %v2033
                %v2035 = vld [vmem:[%s1981 + $0x68] sm:%s1974]
                %2036 = vst [vmem:[%s1982 + $0xa8] sm:%s1974] %v2035
                %v2037 = vld [vmem:[%s1981 + $0x6c] sm:%s1974]
                %2038 = vst [vmem:[%s1982 + $0xac] sm:%s1974] %v2037
                %v2039 = vld [vmem:[%s1981 + $0x70] sm:%s1974]
                %2040 = vst [vmem:[%s1982 + $0xb0] sm:%s1974] %v2039
                %v2041 = vld [vmem:[%s1981 + $0x74] sm:%s1974]
                %2042 = vst [vmem:[%s1982 + $0xb4] sm:%s1974] %v2041
                %v2043 = vld [vmem:[%s1981 + $0x78] sm:%s1974]
                %2044 = vst [vmem:[%s1982 + $0xb8] sm:%s1974] %v2043
                %v2045 = vld [vmem:[%s1981 + $0x7c] sm:%s1974]
                %2046 = vst [vmem:[%s1982 + $0xbc] sm:%s1974] %v2045
                %v2047 = vld [vmem:[%s1981 + $0x80] sm:%s1974]
                %2048 = vst [vmem:[%s1982 + $0x100] sm:%s1974] %v2047
                %v2049 = vld [vmem:[%s1981 + $0x84] sm:%s1974]
                %2050 = vst [vmem:[%s1982 + $0x104] sm:%s1974] %v2049
                %v2051 = vld [vmem:[%s1981 + $0x88] sm:%s1974]
                %2052 = vst [vmem:[%s1982 + $0x108] sm:%s1974] %v2051
                %v2053 = vld [vmem:[%s1981 + $0x8c] sm:%s1974]
                %2054 = vst [vmem:[%s1982 + $0x10c] sm:%s1974] %v2053
                %v2055 = vld [vmem:[%s1981 + $0x90] sm:%s1974]
                %2056 = vst [vmem:[%s1982 + $0x110] sm:%s1974] %v2055
                %v2057 = vld [vmem:[%s1981 + $0x94] sm:%s1974]
                %2058 = vst [vmem:[%s1982 + $0x114] sm:%s1974] %v2057
                %v2059 = vld [vmem:[%s1981 + $0x98] sm:%s1974]
                %2060 = vst [vmem:[%s1982 + $0x118] sm:%s1974] %v2059
                %v2061 = vld [vmem:[%s1981 + $0x9c] sm:%s1974]
                %2062 = vst [vmem:[%s1982 + $0x11c] sm:%s1974] %v2061
                %v2063 = vld [vmem:[%s1981 + $0xa0] sm:%s1974]
                %2064 = vst [vmem:[%s1982 + $0x120] sm:%s1974] %v2063
                %v2065 = vld [vmem:[%s1981 + $0xa4] sm:%s1974]
                %2066 = vst [vmem:[%s1982 + $0x124] sm:%s1974] %v2065
                %v2067 = vld [vmem:[%s1981 + $0xa8] sm:%s1974]
                %2068 = vst [vmem:[%s1982 + $0x128] sm:%s1974] %v2067
                %v2069 = vld [vmem:[%s1981 + $0xac] sm:%s1974]
                %2070 = vst [vmem:[%s1982 + $0x12c] sm:%s1974] %v2069
                %v2071 = vld [vmem:[%s1981 + $0xb0] sm:%s1974]
                %2072 = vst [vmem:[%s1982 + $0x130] sm:%s1974] %v2071
                %v2073 = vld [vmem:[%s1981 + $0xb4] sm:%s1974]
                %2074 = vst [vmem:[%s1982 + $0x134] sm:%s1974] %v2073
                %v2075 = vld [vmem:[%s1981 + $0xb8] sm:%s1974]
                %2076 = vst [vmem:[%s1982 + $0x138] sm:%s1974] %v2075
                %v2077 = vld [vmem:[%s1981 + $0xbc] sm:%s1974]
                %2078 = vst [vmem:[%s1982 + $0x13c] sm:%s1974] %v2077
                %v2079 = vld [vmem:[%s1981 + $0xc0] sm:%s1974]
                %2080 = vst [vmem:[%s1982 + $0x180] sm:%s1974] %v2079
                %v2081 = vld [vmem:[%s1981 + $0xc4] sm:%s1974]
                %2082 = vst [vmem:[%s1982 + $0x184] sm:%s1974] %v2081
                %v2083 = vld [vmem:[%s1981 + $0xc8] sm:%s1974]
                %2084 = vst [vmem:[%s1982 + $0x188] sm:%s1974] %v2083
                %v2085 = vld [vmem:[%s1981 + $0xcc] sm:%s1974]
                %2086 = vst [vmem:[%s1982 + $0x18c] sm:%s1974] %v2085
                %v2087 = vld [vmem:[%s1981 + $0xd0] sm:%s1974]
                %2088 = vst [vmem:[%s1982 + $0x190] sm:%s1974] %v2087
                %v2089 = vld [vmem:[%s1981 + $0xd4] sm:%s1974]
                %2090 = vst [vmem:[%s1982 + $0x194] sm:%s1974] %v2089
                %v2091 = vld [vmem:[%s1981 + $0xd8] sm:%s1974]
                %2092 = vst [vmem:[%s1982 + $0x198] sm:%s1974] %v2091
                %v2093 = vld [vmem:[%s1981 + $0xdc] sm:%s1974]
                %2094 = vst [vmem:[%s1982 + $0x19c] sm:%s1974] %v2093
                %v2095 = vld [vmem:[%s1981 + $0xe0] sm:%s1974]
                %2096 = vst [vmem:[%s1982 + $0x1a0] sm:%s1974] %v2095
                %v2097 = vld [vmem:[%s1981 + $0xe4] sm:%s1974]
                %2098 = vst [vmem:[%s1982 + $0x1a4] sm:%s1974] %v2097
                %v2099 = vld [vmem:[%s1981 + $0xe8] sm:%s1974]
                %2100 = vst [vmem:[%s1982 + $0x1a8] sm:%s1974] %v2099
                %v2101 = vld [vmem:[%s1981 + $0xec] sm:%s1974]
                %2102 = vst [vmem:[%s1982 + $0x1ac] sm:%s1974] %v2101
                %v2103 = vld [vmem:[%s1981 + $0xf0] sm:%s1974]
                %2104 = vst [vmem:[%s1982 + $0x1b0] sm:%s1974] %v2103
                %v2105 = vld [vmem:[%s1981 + $0xf4] sm:%s1974]
                %2106 = vst [vmem:[%s1982 + $0x1b4] sm:%s1974] %v2105
                %v2107 = vld [vmem:[%s1981 + $0xf8] sm:%s1974]
                %2108 = vst [vmem:[%s1982 + $0x1b8] sm:%s1974] %v2107
                %v2109 = vld [vmem:[%s1981 + $0xfc] sm:%s1974]
                %2110 = vst [vmem:[%s1982 + $0x1bc] sm:%s1974] %v2109
              $region93: #{tpu_custom_call.1} parent=87 // loop_footer
                %s1980 = sadd.s32 1, %s1976
              $region94: #{tpu_custom_call.1} parent=87 // loop_footer_branch
                %1975 = sbr.rel target = $region90
              $region95: #{tpu_custom_call.1} parent=87 // loop_exit
                _
            $region88: #{tpu_custom_call.1} parent=79 // pred_fallthru
              _
          $region80: #{tpu_custom_call.1} parent=75 // pred_fallthru
            _
          %2259 = vnop
        $region76: #{tpu_custom_call.1} parent=51 // pred_fallthru
          _
        // Predicated region
        $region114: #{tpu_custom_call.1} parent=51 // pred_check
          %p2260 = pneg %p262
        $region115: #{tpu_custom_call.1} parent=51 // pred_check_branch
          %2262 = sbr.rel (%p2260) target = $region117
        $region116: #{tpu_custom_call.1} parent=51 // pred_region
          %s2263 = smul.u32 16, %s32
          %s2264 = smul.addr %s31, 128
          %s2265 = sadd.s32 %s2263, %s2264
          %s2266 = smul.addr %s2265, 4
          %s2267 = scalar_lea.vmem %s9, %s2266
          // Predicated region
          $region118: #{tpu_custom_call.1} parent=116 // pred_check
            _
          $region119: #{tpu_custom_call.1} parent=116 // pred_check_branch
            %2269 = sbr.rel (0) target = $region121
          $region120: #{tpu_custom_call.1} parent=116 // pred_region
            // Predicated region
            $region122: #{tpu_custom_call.1} parent=120 // pred_check
              _
            $region123: #{tpu_custom_call.1} parent=120 // pred_check_branch
              %2271 = sbr.rel target = $region125
            $region124: #{tpu_custom_call.1} parent=120 // pred_region
              // Predicated region
              $region137: #{tpu_custom_call.1} parent=124 // pred_check
                _
              $region138: #{tpu_custom_call.1} parent=124 // pred_check_branch
                %2413 = sbr.rel (0) target = $region140
              $region139: #{tpu_custom_call.1} parent=124 // pred_region
                loop: start=0, step=1, limit=1
                $region141: #{tpu_custom_call.1} parent=139 // loop_pre_header
                  _
                $region142: #{tpu_custom_call.1} parent=139 // loop_header
                  %s2415 = sphi 0, %s2419
                  %p2416 = scmp.ge.s32.totalorder %s2415, 1
                  %s2420 = sphi %s1954, %s1954
                  %s2421 = sphi %s2267, %s2267
                $region143: #{tpu_custom_call.1} parent=139 // loop_header_branch
                  %2418 = sbr.rel (%p2416) target = $region147
                $region144: #{tpu_custom_call.1} parent=139 // loop_body
                  _
                $region145: #{tpu_custom_call.1} parent=139 // loop_footer
                  %s2419 = sadd.s32 1, %s2415
                $region146: #{tpu_custom_call.1} parent=139 // loop_footer_branch
                  %2414 = sbr.rel target = $region142
                $region147: #{tpu_custom_call.1} parent=139 // loop_exit
                  _
                %s2423 = ssub.s32 16, 1
                loop: start=0, step=1, limit=1
                $region148: #{tpu_custom_call.1} parent=139 // loop_pre_header
                  _
                $region149: #{tpu_custom_call.1} parent=139 // loop_header
                  %s2425 = sphi 0, %s2429
                  %p2426 = scmp.ge.s32.totalorder %s2425, 1
                  %s2430 = sphi %s1954, %s1954
                  %s2431 = sphi %s2267, %s2267
                $region150: #{tpu_custom_call.1} parent=139 // loop_header_branch
                  %2428 = sbr.rel (%p2426) target = $region154
                $region151: #{tpu_custom_call.1} parent=139 // loop_body
                  %v2432 = vld [vmem:[%s2430] sm:%s2423]
                  %2433 = vst [vmem:[%s2431] sm:%s2423] %v2432
                  %v2434 = vld [vmem:[%s2430 + $0x4] sm:%s2423]
                  %2435 = vst [vmem:[%s2431 + $0x4] sm:%s2423] %v2434
                  %v2436 = vld [vmem:[%s2430 + $0x8] sm:%s2423]
                  %2437 = vst [vmem:[%s2431 + $0x8] sm:%s2423] %v2436
                  %v2438 = vld [vmem:[%s2430 + $0xc] sm:%s2423]
                  %2439 = vst [vmem:[%s2431 + $0xc] sm:%s2423] %v2438
                  %v2440 = vld [vmem:[%s2430 + $0x10] sm:%s2423]
                  %2441 = vst [vmem:[%s2431 + $0x10] sm:%s2423] %v2440
                  %v2442 = vld [vmem:[%s2430 + $0x14] sm:%s2423]
                  %2443 = vst [vmem:[%s2431 + $0x14] sm:%s2423] %v2442
                  %v2444 = vld [vmem:[%s2430 + $0x18] sm:%s2423]
                  %2445 = vst [vmem:[%s2431 + $0x18] sm:%s2423] %v2444
                  %v2446 = vld [vmem:[%s2430 + $0x1c] sm:%s2423]
                  %2447 = vst [vmem:[%s2431 + $0x1c] sm:%s2423] %v2446
                  %v2448 = vld [vmem:[%s2430 + $0x20] sm:%s2423]
                  %2449 = vst [vmem:[%s2431 + $0x20] sm:%s2423] %v2448
                  %v2450 = vld [vmem:[%s2430 + $0x24] sm:%s2423]
                  %2451 = vst [vmem:[%s2431 + $0x24] sm:%s2423] %v2450
                  %v2452 = vld [vmem:[%s2430 + $0x28] sm:%s2423]
                  %2453 = vst [vmem:[%s2431 + $0x28] sm:%s2423] %v2452
                  %v2454 = vld [vmem:[%s2430 + $0x2c] sm:%s2423]
                  %2455 = vst [vmem:[%s2431 + $0x2c] sm:%s2423] %v2454
                  %v2456 = vld [vmem:[%s2430 + $0x30] sm:%s2423]
                  %2457 = vst [vmem:[%s2431 + $0x30] sm:%s2423] %v2456
                  %v2458 = vld [vmem:[%s2430 + $0x34] sm:%s2423]
                  %2459 = vst [vmem:[%s2431 + $0x34] sm:%s2423] %v2458
                  %v2460 = vld [vmem:[%s2430 + $0x38] sm:%s2423]
                  %2461 = vst [vmem:[%s2431 + $0x38] sm:%s2423] %v2460
                  %v2462 = vld [vmem:[%s2430 + $0x3c] sm:%s2423]
                  %2463 = vst [vmem:[%s2431 + $0x3c] sm:%s2423] %v2462
                  %v2464 = vld [vmem:[%s2430 + $0x40] sm:%s2423]
                  %2465 = vst [vmem:[%s2431 + $0x80] sm:%s2423] %v2464
                  %v2466 = vld [vmem:[%s2430 + $0x44] sm:%s2423]
                  %2467 = vst [vmem:[%s2431 + $0x84] sm:%s2423] %v2466
                  %v2468 = vld [vmem:[%s2430 + $0x48] sm:%s2423]
                  %2469 = vst [vmem:[%s2431 + $0x88] sm:%s2423] %v2468
                  %v2470 = vld [vmem:[%s2430 + $0x4c] sm:%s2423]
                  %2471 = vst [vmem:[%s2431 + $0x8c] sm:%s2423] %v2470
                  %v2472 = vld [vmem:[%s2430 + $0x50] sm:%s2423]
                  %2473 = vst [vmem:[%s2431 + $0x90] sm:%s2423] %v2472
                  %v2474 = vld [vmem:[%s2430 + $0x54] sm:%s2423]
                  %2475 = vst [vmem:[%s2431 + $0x94] sm:%s2423] %v2474
                  %v2476 = vld [vmem:[%s2430 + $0x58] sm:%s2423]
                  %2477 = vst [vmem:[%s2431 + $0x98] sm:%s2423] %v2476
                  %v2478 = vld [vmem:[%s2430 + $0x5c] sm:%s2423]
                  %2479 = vst [vmem:[%s2431 + $0x9c] sm:%s2423] %v2478
                  %v2480 = vld [vmem:[%s2430 + $0x60] sm:%s2423]
                  %2481 = vst [vmem:[%s2431 + $0xa0] sm:%s2423] %v2480
                  %v2482 = vld [vmem:[%s2430 + $0x64] sm:%s2423]
                  %2483 = vst [vmem:[%s2431 + $0xa4] sm:%s2423] %v2482
                  %v2484 = vld [vmem:[%s2430 + $0x68] sm:%s2423]
                  %2485 = vst [vmem:[%s2431 + $0xa8] sm:%s2423] %v2484
                  %v2486 = vld [vmem:[%s2430 + $0x6c] sm:%s2423]
                  %2487 = vst [vmem:[%s2431 + $0xac] sm:%s2423] %v2486
                  %v2488 = vld [vmem:[%s2430 + $0x70] sm:%s2423]
                  %2489 = vst [vmem:[%s2431 + $0xb0] sm:%s2423] %v2488
                  %v2490 = vld [vmem:[%s2430 + $0x74] sm:%s2423]
                  %2491 = vst [vmem:[%s2431 + $0xb4] sm:%s2423] %v2490
                  %v2492 = vld [vmem:[%s2430 + $0x78] sm:%s2423]
                  %2493 = vst [vmem:[%s2431 + $0xb8] sm:%s2423] %v2492
                  %v2494 = vld [vmem:[%s2430 + $0x7c] sm:%s2423]
                  %2495 = vst [vmem:[%s2431 + $0xbc] sm:%s2423] %v2494
                  %v2496 = vld [vmem:[%s2430 + $0x80] sm:%s2423]
                  %2497 = vst [vmem:[%s2431 + $0x100] sm:%s2423] %v2496
                  %v2498 = vld [vmem:[%s2430 + $0x84] sm:%s2423]
                  %2499 = vst [vmem:[%s2431 + $0x104] sm:%s2423] %v2498
                  %v2500 = vld [vmem:[%s2430 + $0x88] sm:%s2423]
                  %2501 = vst [vmem:[%s2431 + $0x108] sm:%s2423] %v2500
                  %v2502 = vld [vmem:[%s2430 + $0x8c] sm:%s2423]
                  %2503 = vst [vmem:[%s2431 + $0x10c] sm:%s2423] %v2502
                  %v2504 = vld [vmem:[%s2430 + $0x90] sm:%s2423]
                  %2505 = vst [vmem:[%s2431 + $0x110] sm:%s2423] %v2504
                  %v2506 = vld [vmem:[%s2430 + $0x94] sm:%s2423]
                  %2507 = vst [vmem:[%s2431 + $0x114] sm:%s2423] %v2506
                  %v2508 = vld [vmem:[%s2430 + $0x98] sm:%s2423]
                  %2509 = vst [vmem:[%s2431 + $0x118] sm:%s2423] %v2508
                  %v2510 = vld [vmem:[%s2430 + $0x9c] sm:%s2423]
                  %2511 = vst [vmem:[%s2431 + $0x11c] sm:%s2423] %v2510
                  %v2512 = vld [vmem:[%s2430 + $0xa0] sm:%s2423]
                  %2513 = vst [vmem:[%s2431 + $0x120] sm:%s2423] %v2512
                  %v2514 = vld [vmem:[%s2430 + $0xa4] sm:%s2423]
                  %2515 = vst [vmem:[%s2431 + $0x124] sm:%s2423] %v2514
                  %v2516 = vld [vmem:[%s2430 + $0xa8] sm:%s2423]
                  %2517 = vst [vmem:[%s2431 + $0x128] sm:%s2423] %v2516
                  %v2518 = vld [vmem:[%s2430 + $0xac] sm:%s2423]
                  %2519 = vst [vmem:[%s2431 + $0x12c] sm:%s2423] %v2518
                  %v2520 = vld [vmem:[%s2430 + $0xb0] sm:%s2423]
                  %2521 = vst [vmem:[%s2431 + $0x130] sm:%s2423] %v2520
                  %v2522 = vld [vmem:[%s2430 + $0xb4] sm:%s2423]
                  %2523 = vst [vmem:[%s2431 + $0x134] sm:%s2423] %v2522
                  %v2524 = vld [vmem:[%s2430 + $0xb8] sm:%s2423]
                  %2525 = vst [vmem:[%s2431 + $0x138] sm:%s2423] %v2524
                  %v2526 = vld [vmem:[%s2430 + $0xbc] sm:%s2423]
                  %2527 = vst [vmem:[%s2431 + $0x13c] sm:%s2423] %v2526
                  %v2528 = vld [vmem:[%s2430 + $0xc0] sm:%s2423]
                  %2529 = vst [vmem:[%s2431 + $0x180] sm:%s2423] %v2528
                  %v2530 = vld [vmem:[%s2430 + $0xc4] sm:%s2423]
                  %2531 = vst [vmem:[%s2431 + $0x184] sm:%s2423] %v2530
                  %v2532 = vld [vmem:[%s2430 + $0xc8] sm:%s2423]
                  %2533 = vst [vmem:[%s2431 + $0x188] sm:%s2423] %v2532
                  %v2534 = vld [vmem:[%s2430 + $0xcc] sm:%s2423]
                  %2535 = vst [vmem:[%s2431 + $0x18c] sm:%s2423] %v2534
                  %v2536 = vld [vmem:[%s2430 + $0xd0] sm:%s2423]
                  %2537 = vst [vmem:[%s2431 + $0x190] sm:%s2423] %v2536
                  %v2538 = vld [vmem:[%s2430 + $0xd4] sm:%s2423]
                  %2539 = vst [vmem:[%s2431 + $0x194] sm:%s2423] %v2538
                  %v2540 = vld [vmem:[%s2430 + $0xd8] sm:%s2423]
                  %2541 = vst [vmem:[%s2431 + $0x198] sm:%s2423] %v2540
                  %v2542 = vld [vmem:[%s2430 + $0xdc] sm:%s2423]
                  %2543 = vst [vmem:[%s2431 + $0x19c] sm:%s2423] %v2542
                  %v2544 = vld [vmem:[%s2430 + $0xe0] sm:%s2423]
                  %2545 = vst [vmem:[%s2431 + $0x1a0] sm:%s2423] %v2544
                  %v2546 = vld [vmem:[%s2430 + $0xe4] sm:%s2423]
                  %2547 = vst [vmem:[%s2431 + $0x1a4] sm:%s2423] %v2546
                  %v2548 = vld [vmem:[%s2430 + $0xe8] sm:%s2423]
                  %2549 = vst [vmem:[%s2431 + $0x1a8] sm:%s2423] %v2548
                  %v2550 = vld [vmem:[%s2430 + $0xec] sm:%s2423]
                  %2551 = vst [vmem:[%s2431 + $0x1ac] sm:%s2423] %v2550
                  %v2552 = vld [vmem:[%s2430 + $0xf0] sm:%s2423]
                  %2553 = vst [vmem:[%s2431 + $0x1b0] sm:%s2423] %v2552
                  %v2554 = vld [vmem:[%s2430 + $0xf4] sm:%s2423]
                  %2555 = vst [vmem:[%s2431 + $0x1b4] sm:%s2423] %v2554
                  %v2556 = vld [vmem:[%s2430 + $0xf8] sm:%s2423]
                  %2557 = vst [vmem:[%s2431 + $0x1b8] sm:%s2423] %v2556
                  %v2558 = vld [vmem:[%s2430 + $0xfc] sm:%s2423]
                  %2559 = vst [vmem:[%s2431 + $0x1bc] sm:%s2423] %v2558
                $region152: #{tpu_custom_call.1} parent=139 // loop_footer
                  %s2429 = sadd.s32 1, %s2425
                $region153: #{tpu_custom_call.1} parent=139 // loop_footer_branch
                  %2424 = sbr.rel target = $region149
                $region154: #{tpu_custom_call.1} parent=139 // loop_exit
                  _
              $region140: #{tpu_custom_call.1} parent=124 // pred_fallthru
                _
            $region125: #{tpu_custom_call.1} parent=120 // pred_fallthru
              _
            // Predicated region
            $region126: #{tpu_custom_call.1} parent=120 // pred_check
              _
            $region127: #{tpu_custom_call.1} parent=120 // pred_check_branch
              %2273 = sbr.rel (0) target = $region129
            $region128: #{tpu_custom_call.1} parent=120 // pred_region
              %s2275 = ssub.s32 16, 1
              loop: start=0, step=1, limit=1
              $region130: #{tpu_custom_call.1} parent=128 // loop_pre_header
                _
              $region131: #{tpu_custom_call.1} parent=128 // loop_header
                %s2277 = sphi 0, %s2281
                %p2278 = scmp.ge.s32.totalorder %s2277, 1
                %s2282 = sphi %s1954, %s1954
                %s2283 = sphi %s2267, %s2267
              $region132: #{tpu_custom_call.1} parent=128 // loop_header_branch
                %2280 = sbr.rel (%p2278) target = $region136
              $region133: #{tpu_custom_call.1} parent=128 // loop_body
                %v2284 = vld [vmem:[%s2282] sm:%s2275]
                %2285 = vst [vmem:[%s2283] sm:%s2275] %v2284
                %v2286 = vld [vmem:[%s2282 + $0x4] sm:%s2275]
                %2287 = vst [vmem:[%s2283 + $0x4] sm:%s2275] %v2286
                %v2288 = vld [vmem:[%s2282 + $0x8] sm:%s2275]
                %2289 = vst [vmem:[%s2283 + $0x8] sm:%s2275] %v2288
                %v2290 = vld [vmem:[%s2282 + $0xc] sm:%s2275]
                %2291 = vst [vmem:[%s2283 + $0xc] sm:%s2275] %v2290
                %v2292 = vld [vmem:[%s2282 + $0x10] sm:%s2275]
                %2293 = vst [vmem:[%s2283 + $0x10] sm:%s2275] %v2292
                %v2294 = vld [vmem:[%s2282 + $0x14] sm:%s2275]
                %2295 = vst [vmem:[%s2283 + $0x14] sm:%s2275] %v2294
                %v2296 = vld [vmem:[%s2282 + $0x18] sm:%s2275]
                %2297 = vst [vmem:[%s2283 + $0x18] sm:%s2275] %v2296
                %v2298 = vld [vmem:[%s2282 + $0x1c] sm:%s2275]
                %2299 = vst [vmem:[%s2283 + $0x1c] sm:%s2275] %v2298
                %v2300 = vld [vmem:[%s2282 + $0x20] sm:%s2275]
                %2301 = vst [vmem:[%s2283 + $0x20] sm:%s2275] %v2300
                %v2302 = vld [vmem:[%s2282 + $0x24] sm:%s2275]
                %2303 = vst [vmem:[%s2283 + $0x24] sm:%s2275] %v2302
                %v2304 = vld [vmem:[%s2282 + $0x28] sm:%s2275]
                %2305 = vst [vmem:[%s2283 + $0x28] sm:%s2275] %v2304
                %v2306 = vld [vmem:[%s2282 + $0x2c] sm:%s2275]
                %2307 = vst [vmem:[%s2283 + $0x2c] sm:%s2275] %v2306
                %v2308 = vld [vmem:[%s2282 + $0x30] sm:%s2275]
                %2309 = vst [vmem:[%s2283 + $0x30] sm:%s2275] %v2308
                %v2310 = vld [vmem:[%s2282 + $0x34] sm:%s2275]
                %2311 = vst [vmem:[%s2283 + $0x34] sm:%s2275] %v2310
                %v2312 = vld [vmem:[%s2282 + $0x38] sm:%s2275]
                %2313 = vst [vmem:[%s2283 + $0x38] sm:%s2275] %v2312
                %v2314 = vld [vmem:[%s2282 + $0x3c] sm:%s2275]
                %2315 = vst [vmem:[%s2283 + $0x3c] sm:%s2275] %v2314
                %v2316 = vld [vmem:[%s2282 + $0x40] sm:%s2275]
                %2317 = vst [vmem:[%s2283 + $0x80] sm:%s2275] %v2316
                %v2318 = vld [vmem:[%s2282 + $0x44] sm:%s2275]
                %2319 = vst [vmem:[%s2283 + $0x84] sm:%s2275] %v2318
                %v2320 = vld [vmem:[%s2282 + $0x48] sm:%s2275]
                %2321 = vst [vmem:[%s2283 + $0x88] sm:%s2275] %v2320
                %v2322 = vld [vmem:[%s2282 + $0x4c] sm:%s2275]
                %2323 = vst [vmem:[%s2283 + $0x8c] sm:%s2275] %v2322
                %v2324 = vld [vmem:[%s2282 + $0x50] sm:%s2275]
                %2325 = vst [vmem:[%s2283 + $0x90] sm:%s2275] %v2324
                %v2326 = vld [vmem:[%s2282 + $0x54] sm:%s2275]
                %2327 = vst [vmem:[%s2283 + $0x94] sm:%s2275] %v2326
                %v2328 = vld [vmem:[%s2282 + $0x58] sm:%s2275]
                %2329 = vst [vmem:[%s2283 + $0x98] sm:%s2275] %v2328
                %v2330 = vld [vmem:[%s2282 + $0x5c] sm:%s2275]
                %2331 = vst [vmem:[%s2283 + $0x9c] sm:%s2275] %v2330
                %v2332 = vld [vmem:[%s2282 + $0x60] sm:%s2275]
                %2333 = vst [vmem:[%s2283 + $0xa0] sm:%s2275] %v2332
                %v2334 = vld [vmem:[%s2282 + $0x64] sm:%s2275]
                %2335 = vst [vmem:[%s2283 + $0xa4] sm:%s2275] %v2334
                %v2336 = vld [vmem:[%s2282 + $0x68] sm:%s2275]
                %2337 = vst [vmem:[%s2283 + $0xa8] sm:%s2275] %v2336
                %v2338 = vld [vmem:[%s2282 + $0x6c] sm:%s2275]
                %2339 = vst [vmem:[%s2283 + $0xac] sm:%s2275] %v2338
                %v2340 = vld [vmem:[%s2282 + $0x70] sm:%s2275]
                %2341 = vst [vmem:[%s2283 + $0xb0] sm:%s2275] %v2340
                %v2342 = vld [vmem:[%s2282 + $0x74] sm:%s2275]
                %2343 = vst [vmem:[%s2283 + $0xb4] sm:%s2275] %v2342
                %v2344 = vld [vmem:[%s2282 + $0x78] sm:%s2275]
                %2345 = vst [vmem:[%s2283 + $0xb8] sm:%s2275] %v2344
                %v2346 = vld [vmem:[%s2282 + $0x7c] sm:%s2275]
                %2347 = vst [vmem:[%s2283 + $0xbc] sm:%s2275] %v2346
                %v2348 = vld [vmem:[%s2282 + $0x80] sm:%s2275]
                %2349 = vst [vmem:[%s2283 + $0x100] sm:%s2275] %v2348
                %v2350 = vld [vmem:[%s2282 + $0x84] sm:%s2275]
                %2351 = vst [vmem:[%s2283 + $0x104] sm:%s2275] %v2350
                %v2352 = vld [vmem:[%s2282 + $0x88] sm:%s2275]
                %2353 = vst [vmem:[%s2283 + $0x108] sm:%s2275] %v2352
                %v2354 = vld [vmem:[%s2282 + $0x8c] sm:%s2275]
                %2355 = vst [vmem:[%s2283 + $0x10c] sm:%s2275] %v2354
                %v2356 = vld [vmem:[%s2282 + $0x90] sm:%s2275]
                %2357 = vst [vmem:[%s2283 + $0x110] sm:%s2275] %v2356
                %v2358 = vld [vmem:[%s2282 + $0x94] sm:%s2275]
                %2359 = vst [vmem:[%s2283 + $0x114] sm:%s2275] %v2358
                %v2360 = vld [vmem:[%s2282 + $0x98] sm:%s2275]
                %2361 = vst [vmem:[%s2283 + $0x118] sm:%s2275] %v2360
                %v2362 = vld [vmem:[%s2282 + $0x9c] sm:%s2275]
                %2363 = vst [vmem:[%s2283 + $0x11c] sm:%s2275] %v2362
                %v2364 = vld [vmem:[%s2282 + $0xa0] sm:%s2275]
                %2365 = vst [vmem:[%s2283 + $0x120] sm:%s2275] %v2364
                %v2366 = vld [vmem:[%s2282 + $0xa4] sm:%s2275]
                %2367 = vst [vmem:[%s2283 + $0x124] sm:%s2275] %v2366
                %v2368 = vld [vmem:[%s2282 + $0xa8] sm:%s2275]
                %2369 = vst [vmem:[%s2283 + $0x128] sm:%s2275] %v2368
                %v2370 = vld [vmem:[%s2282 + $0xac] sm:%s2275]
                %2371 = vst [vmem:[%s2283 + $0x12c] sm:%s2275] %v2370
                %v2372 = vld [vmem:[%s2282 + $0xb0] sm:%s2275]
                %2373 = vst [vmem:[%s2283 + $0x130] sm:%s2275] %v2372
                %v2374 = vld [vmem:[%s2282 + $0xb4] sm:%s2275]
                %2375 = vst [vmem:[%s2283 + $0x134] sm:%s2275] %v2374
                %v2376 = vld [vmem:[%s2282 + $0xb8] sm:%s2275]
                %2377 = vst [vmem:[%s2283 + $0x138] sm:%s2275] %v2376
                %v2378 = vld [vmem:[%s2282 + $0xbc] sm:%s2275]
                %2379 = vst [vmem:[%s2283 + $0x13c] sm:%s2275] %v2378
                %v2380 = vld [vmem:[%s2282 + $0xc0] sm:%s2275]
                %2381 = vst [vmem:[%s2283 + $0x180] sm:%s2275] %v2380
                %v2382 = vld [vmem:[%s2282 + $0xc4] sm:%s2275]
                %2383 = vst [vmem:[%s2283 + $0x184] sm:%s2275] %v2382
                %v2384 = vld [vmem:[%s2282 + $0xc8] sm:%s2275]
                %2385 = vst [vmem:[%s2283 + $0x188] sm:%s2275] %v2384
                %v2386 = vld [vmem:[%s2282 + $0xcc] sm:%s2275]
                %2387 = vst [vmem:[%s2283 + $0x18c] sm:%s2275] %v2386
                %v2388 = vld [vmem:[%s2282 + $0xd0] sm:%s2275]
                %2389 = vst [vmem:[%s2283 + $0x190] sm:%s2275] %v2388
                %v2390 = vld [vmem:[%s2282 + $0xd4] sm:%s2275]
                %2391 = vst [vmem:[%s2283 + $0x194] sm:%s2275] %v2390
                %v2392 = vld [vmem:[%s2282 + $0xd8] sm:%s2275]
                %2393 = vst [vmem:[%s2283 + $0x198] sm:%s2275] %v2392
                %v2394 = vld [vmem:[%s2282 + $0xdc] sm:%s2275]
                %2395 = vst [vmem:[%s2283 + $0x19c] sm:%s2275] %v2394
                %v2396 = vld [vmem:[%s2282 + $0xe0] sm:%s2275]
                %2397 = vst [vmem:[%s2283 + $0x1a0] sm:%s2275] %v2396
                %v2398 = vld [vmem:[%s2282 + $0xe4] sm:%s2275]
                %2399 = vst [vmem:[%s2283 + $0x1a4] sm:%s2275] %v2398
                %v2400 = vld [vmem:[%s2282 + $0xe8] sm:%s2275]
                %2401 = vst [vmem:[%s2283 + $0x1a8] sm:%s2275] %v2400
                %v2402 = vld [vmem:[%s2282 + $0xec] sm:%s2275]
                %2403 = vst [vmem:[%s2283 + $0x1ac] sm:%s2275] %v2402
                %v2404 = vld [vmem:[%s2282 + $0xf0] sm:%s2275]
                %2405 = vst [vmem:[%s2283 + $0x1b0] sm:%s2275] %v2404
                %v2406 = vld [vmem:[%s2282 + $0xf4] sm:%s2275]
                %2407 = vst [vmem:[%s2283 + $0x1b4] sm:%s2275] %v2406
                %v2408 = vld [vmem:[%s2282 + $0xf8] sm:%s2275]
                %2409 = vst [vmem:[%s2283 + $0x1b8] sm:%s2275] %v2408
                %v2410 = vld [vmem:[%s2282 + $0xfc] sm:%s2275]
                %2411 = vst [vmem:[%s2283 + $0x1bc] sm:%s2275] %v2410
              $region134: #{tpu_custom_call.1} parent=128 // loop_footer
                %s2281 = sadd.s32 1, %s2277
              $region135: #{tpu_custom_call.1} parent=128 // loop_footer_branch
                %2276 = sbr.rel target = $region131
              $region136: #{tpu_custom_call.1} parent=128 // loop_exit
                _
            $region129: #{tpu_custom_call.1} parent=120 // pred_fallthru
              _
          $region121: #{tpu_custom_call.1} parent=116 // pred_fallthru
            _
          %2560 = vnop
        $region117: #{tpu_custom_call.1} parent=51 // pred_fallthru
          _
        // Predicated region
        $region155: #{tpu_custom_call.1} parent=51 // pred_check
          %p2561 = pneg %p290
        $region156: #{tpu_custom_call.1} parent=51 // pred_check_branch
          %2563 = sbr.rel (%p2561) target = $region158
        $region157: #{tpu_custom_call.1} parent=51 // pred_region
          %s2564 = smul.u32 16, %s32
          %s2565 = smul.addr %s31, 128
          %s2566 = sadd.s32 %s2564, %s2565
          %s2567 = smul.addr %s2566, 4
          %s2568 = scalar_lea.vmem %s10, %s2567
          // Predicated region
          $region159: #{tpu_custom_call.1} parent=157 // pred_check
            _
          $region160: #{tpu_custom_call.1} parent=157 // pred_check_branch
            %2570 = sbr.rel (0) target = $region162
          $region161: #{tpu_custom_call.1} parent=157 // pred_region
            // Predicated region
            $region163: #{tpu_custom_call.1} parent=161 // pred_check
              _
            $region164: #{tpu_custom_call.1} parent=161 // pred_check_branch
              %2572 = sbr.rel target = $region166
            $region165: #{tpu_custom_call.1} parent=161 // pred_region
              // Predicated region
              $region178: #{tpu_custom_call.1} parent=165 // pred_check
                _
              $region179: #{tpu_custom_call.1} parent=165 // pred_check_branch
                %2714 = sbr.rel (0) target = $region181
              $region180: #{tpu_custom_call.1} parent=165 // pred_region
                loop: start=0, step=1, limit=1
                $region182: #{tpu_custom_call.1} parent=180 // loop_pre_header
                  _
                $region183: #{tpu_custom_call.1} parent=180 // loop_header
                  %s2716 = sphi 0, %s2720
                  %p2717 = scmp.ge.s32.totalorder %s2716, 1
                  %s2721 = sphi %s1958, %s1958
                  %s2722 = sphi %s2568, %s2568
                $region184: #{tpu_custom_call.1} parent=180 // loop_header_branch
                  %2719 = sbr.rel (%p2717) target = $region188
                $region185: #{tpu_custom_call.1} parent=180 // loop_body
                  _
                $region186: #{tpu_custom_call.1} parent=180 // loop_footer
                  %s2720 = sadd.s32 1, %s2716
                $region187: #{tpu_custom_call.1} parent=180 // loop_footer_branch
                  %2715 = sbr.rel target = $region183
                $region188: #{tpu_custom_call.1} parent=180 // loop_exit
                  _
                %s2724 = ssub.s32 16, 1
                loop: start=0, step=1, limit=1
                $region189: #{tpu_custom_call.1} parent=180 // loop_pre_header
                  _
                $region190: #{tpu_custom_call.1} parent=180 // loop_header
                  %s2726 = sphi 0, %s2730
                  %p2727 = scmp.ge.s32.totalorder %s2726, 1
                  %s2731 = sphi %s1958, %s1958
                  %s2732 = sphi %s2568, %s2568
                $region191: #{tpu_custom_call.1} parent=180 // loop_header_branch
                  %2729 = sbr.rel (%p2727) target = $region195
                $region192: #{tpu_custom_call.1} parent=180 // loop_body
                  %v2733 = vld [vmem:[%s2731] sm:%s2724]
                  %2734 = vst [vmem:[%s2732] sm:%s2724] %v2733
                  %v2735 = vld [vmem:[%s2731 + $0x4] sm:%s2724]
                  %2736 = vst [vmem:[%s2732 + $0x4] sm:%s2724] %v2735
                  %v2737 = vld [vmem:[%s2731 + $0x8] sm:%s2724]
                  %2738 = vst [vmem:[%s2732 + $0x8] sm:%s2724] %v2737
                  %v2739 = vld [vmem:[%s2731 + $0xc] sm:%s2724]
                  %2740 = vst [vmem:[%s2732 + $0xc] sm:%s2724] %v2739
                  %v2741 = vld [vmem:[%s2731 + $0x10] sm:%s2724]
                  %2742 = vst [vmem:[%s2732 + $0x10] sm:%s2724] %v2741
                  %v2743 = vld [vmem:[%s2731 + $0x14] sm:%s2724]
                  %2744 = vst [vmem:[%s2732 + $0x14] sm:%s2724] %v2743
                  %v2745 = vld [vmem:[%s2731 + $0x18] sm:%s2724]
                  %2746 = vst [vmem:[%s2732 + $0x18] sm:%s2724] %v2745
                  %v2747 = vld [vmem:[%s2731 + $0x1c] sm:%s2724]
                  %2748 = vst [vmem:[%s2732 + $0x1c] sm:%s2724] %v2747
                  %v2749 = vld [vmem:[%s2731 + $0x20] sm:%s2724]
                  %2750 = vst [vmem:[%s2732 + $0x20] sm:%s2724] %v2749
                  %v2751 = vld [vmem:[%s2731 + $0x24] sm:%s2724]
                  %2752 = vst [vmem:[%s2732 + $0x24] sm:%s2724] %v2751
                  %v2753 = vld [vmem:[%s2731 + $0x28] sm:%s2724]
                  %2754 = vst [vmem:[%s2732 + $0x28] sm:%s2724] %v2753
                  %v2755 = vld [vmem:[%s2731 + $0x2c] sm:%s2724]
                  %2756 = vst [vmem:[%s2732 + $0x2c] sm:%s2724] %v2755
                  %v2757 = vld [vmem:[%s2731 + $0x30] sm:%s2724]
                  %2758 = vst [vmem:[%s2732 + $0x30] sm:%s2724] %v2757
                  %v2759 = vld [vmem:[%s2731 + $0x34] sm:%s2724]
                  %2760 = vst [vmem:[%s2732 + $0x34] sm:%s2724] %v2759
                  %v2761 = vld [vmem:[%s2731 + $0x38] sm:%s2724]
                  %2762 = vst [vmem:[%s2732 + $0x38] sm:%s2724] %v2761
                  %v2763 = vld [vmem:[%s2731 + $0x3c] sm:%s2724]
                  %2764 = vst [vmem:[%s2732 + $0x3c] sm:%s2724] %v2763
                  %v2765 = vld [vmem:[%s2731 + $0x40] sm:%s2724]
                  %2766 = vst [vmem:[%s2732 + $0x80] sm:%s2724] %v2765
                  %v2767 = vld [vmem:[%s2731 + $0x44] sm:%s2724]
                  %2768 = vst [vmem:[%s2732 + $0x84] sm:%s2724] %v2767
                  %v2769 = vld [vmem:[%s2731 + $0x48] sm:%s2724]
                  %2770 = vst [vmem:[%s2732 + $0x88] sm:%s2724] %v2769
                  %v2771 = vld [vmem:[%s2731 + $0x4c] sm:%s2724]
                  %2772 = vst [vmem:[%s2732 + $0x8c] sm:%s2724] %v2771
                  %v2773 = vld [vmem:[%s2731 + $0x50] sm:%s2724]
                  %2774 = vst [vmem:[%s2732 + $0x90] sm:%s2724] %v2773
                  %v2775 = vld [vmem:[%s2731 + $0x54] sm:%s2724]
                  %2776 = vst [vmem:[%s2732 + $0x94] sm:%s2724] %v2775
                  %v2777 = vld [vmem:[%s2731 + $0x58] sm:%s2724]
                  %2778 = vst [vmem:[%s2732 + $0x98] sm:%s2724] %v2777
                  %v2779 = vld [vmem:[%s2731 + $0x5c] sm:%s2724]
                  %2780 = vst [vmem:[%s2732 + $0x9c] sm:%s2724] %v2779
                  %v2781 = vld [vmem:[%s2731 + $0x60] sm:%s2724]
                  %2782 = vst [vmem:[%s2732 + $0xa0] sm:%s2724] %v2781
                  %v2783 = vld [vmem:[%s2731 + $0x64] sm:%s2724]
                  %2784 = vst [vmem:[%s2732 + $0xa4] sm:%s2724] %v2783
                  %v2785 = vld [vmem:[%s2731 + $0x68] sm:%s2724]
                  %2786 = vst [vmem:[%s2732 + $0xa8] sm:%s2724] %v2785
                  %v2787 = vld [vmem:[%s2731 + $0x6c] sm:%s2724]
                  %2788 = vst [vmem:[%s2732 + $0xac] sm:%s2724] %v2787
                  %v2789 = vld [vmem:[%s2731 + $0x70] sm:%s2724]
                  %2790 = vst [vmem:[%s2732 + $0xb0] sm:%s2724] %v2789
                  %v2791 = vld [vmem:[%s2731 + $0x74] sm:%s2724]
                  %2792 = vst [vmem:[%s2732 + $0xb4] sm:%s2724] %v2791
                  %v2793 = vld [vmem:[%s2731 + $0x78] sm:%s2724]
                  %2794 = vst [vmem:[%s2732 + $0xb8] sm:%s2724] %v2793
                  %v2795 = vld [vmem:[%s2731 + $0x7c] sm:%s2724]
                  %2796 = vst [vmem:[%s2732 + $0xbc] sm:%s2724] %v2795
                  %v2797 = vld [vmem:[%s2731 + $0x80] sm:%s2724]
                  %2798 = vst [vmem:[%s2732 + $0x100] sm:%s2724] %v2797
                  %v2799 = vld [vmem:[%s2731 + $0x84] sm:%s2724]
                  %2800 = vst [vmem:[%s2732 + $0x104] sm:%s2724] %v2799
                  %v2801 = vld [vmem:[%s2731 + $0x88] sm:%s2724]
                  %2802 = vst [vmem:[%s2732 + $0x108] sm:%s2724] %v2801
                  %v2803 = vld [vmem:[%s2731 + $0x8c] sm:%s2724]
                  %2804 = vst [vmem:[%s2732 + $0x10c] sm:%s2724] %v2803
                  %v2805 = vld [vmem:[%s2731 + $0x90] sm:%s2724]
                  %2806 = vst [vmem:[%s2732 + $0x110] sm:%s2724] %v2805
                  %v2807 = vld [vmem:[%s2731 + $0x94] sm:%s2724]
                  %2808 = vst [vmem:[%s2732 + $0x114] sm:%s2724] %v2807
                  %v2809 = vld [vmem:[%s2731 + $0x98] sm:%s2724]
                  %2810 = vst [vmem:[%s2732 + $0x118] sm:%s2724] %v2809
                  %v2811 = vld [vmem:[%s2731 + $0x9c] sm:%s2724]
                  %2812 = vst [vmem:[%s2732 + $0x11c] sm:%s2724] %v2811
                  %v2813 = vld [vmem:[%s2731 + $0xa0] sm:%s2724]
                  %2814 = vst [vmem:[%s2732 + $0x120] sm:%s2724] %v2813
                  %v2815 = vld [vmem:[%s2731 + $0xa4] sm:%s2724]
                  %2816 = vst [vmem:[%s2732 + $0x124] sm:%s2724] %v2815
                  %v2817 = vld [vmem:[%s2731 + $0xa8] sm:%s2724]
                  %2818 = vst [vmem:[%s2732 + $0x128] sm:%s2724] %v2817
                  %v2819 = vld [vmem:[%s2731 + $0xac] sm:%s2724]
                  %2820 = vst [vmem:[%s2732 + $0x12c] sm:%s2724] %v2819
                  %v2821 = vld [vmem:[%s2731 + $0xb0] sm:%s2724]
                  %2822 = vst [vmem:[%s2732 + $0x130] sm:%s2724] %v2821
                  %v2823 = vld [vmem:[%s2731 + $0xb4] sm:%s2724]
                  %2824 = vst [vmem:[%s2732 + $0x134] sm:%s2724] %v2823
                  %v2825 = vld [vmem:[%s2731 + $0xb8] sm:%s2724]
                  %2826 = vst [vmem:[%s2732 + $0x138] sm:%s2724] %v2825
                  %v2827 = vld [vmem:[%s2731 + $0xbc] sm:%s2724]
                  %2828 = vst [vmem:[%s2732 + $0x13c] sm:%s2724] %v2827
                  %v2829 = vld [vmem:[%s2731 + $0xc0] sm:%s2724]
                  %2830 = vst [vmem:[%s2732 + $0x180] sm:%s2724] %v2829
                  %v2831 = vld [vmem:[%s2731 + $0xc4] sm:%s2724]
                  %2832 = vst [vmem:[%s2732 + $0x184] sm:%s2724] %v2831
                  %v2833 = vld [vmem:[%s2731 + $0xc8] sm:%s2724]
                  %2834 = vst [vmem:[%s2732 + $0x188] sm:%s2724] %v2833
                  %v2835 = vld [vmem:[%s2731 + $0xcc] sm:%s2724]
                  %2836 = vst [vmem:[%s2732 + $0x18c] sm:%s2724] %v2835
                  %v2837 = vld [vmem:[%s2731 + $0xd0] sm:%s2724]
                  %2838 = vst [vmem:[%s2732 + $0x190] sm:%s2724] %v2837
                  %v2839 = vld [vmem:[%s2731 + $0xd4] sm:%s2724]
                  %2840 = vst [vmem:[%s2732 + $0x194] sm:%s2724] %v2839
                  %v2841 = vld [vmem:[%s2731 + $0xd8] sm:%s2724]
                  %2842 = vst [vmem:[%s2732 + $0x198] sm:%s2724] %v2841
                  %v2843 = vld [vmem:[%s2731 + $0xdc] sm:%s2724]
                  %2844 = vst [vmem:[%s2732 + $0x19c] sm:%s2724] %v2843
                  %v2845 = vld [vmem:[%s2731 + $0xe0] sm:%s2724]
                  %2846 = vst [vmem:[%s2732 + $0x1a0] sm:%s2724] %v2845
                  %v2847 = vld [vmem:[%s2731 + $0xe4] sm:%s2724]
                  %2848 = vst [vmem:[%s2732 + $0x1a4] sm:%s2724] %v2847
                  %v2849 = vld [vmem:[%s2731 + $0xe8] sm:%s2724]
                  %2850 = vst [vmem:[%s2732 + $0x1a8] sm:%s2724] %v2849
                  %v2851 = vld [vmem:[%s2731 + $0xec] sm:%s2724]
                  %2852 = vst [vmem:[%s2732 + $0x1ac] sm:%s2724] %v2851
                  %v2853 = vld [vmem:[%s2731 + $0xf0] sm:%s2724]
                  %2854 = vst [vmem:[%s2732 + $0x1b0] sm:%s2724] %v2853
                  %v2855 = vld [vmem:[%s2731 + $0xf4] sm:%s2724]
                  %2856 = vst [vmem:[%s2732 + $0x1b4] sm:%s2724] %v2855
                  %v2857 = vld [vmem:[%s2731 + $0xf8] sm:%s2724]
                  %2858 = vst [vmem:[%s2732 + $0x1b8] sm:%s2724] %v2857
                  %v2859 = vld [vmem:[%s2731 + $0xfc] sm:%s2724]
                  %2860 = vst [vmem:[%s2732 + $0x1bc] sm:%s2724] %v2859
                $region193: #{tpu_custom_call.1} parent=180 // loop_footer
                  %s2730 = sadd.s32 1, %s2726
                $region194: #{tpu_custom_call.1} parent=180 // loop_footer_branch
                  %2725 = sbr.rel target = $region190
                $region195: #{tpu_custom_call.1} parent=180 // loop_exit
                  _
              $region181: #{tpu_custom_call.1} parent=165 // pred_fallthru
                _
            $region166: #{tpu_custom_call.1} parent=161 // pred_fallthru
              _
            // Predicated region
            $region167: #{tpu_custom_call.1} parent=161 // pred_check
              _
            $region168: #{tpu_custom_call.1} parent=161 // pred_check_branch
              %2574 = sbr.rel (0) target = $region170
            $region169: #{tpu_custom_call.1} parent=161 // pred_region
              %s2576 = ssub.s32 16, 1
              loop: start=0, step=1, limit=1
              $region171: #{tpu_custom_call.1} parent=169 // loop_pre_header
                _
              $region172: #{tpu_custom_call.1} parent=169 // loop_header
                %s2578 = sphi 0, %s2582
                %p2579 = scmp.ge.s32.totalorder %s2578, 1
                %s2583 = sphi %s1958, %s1958
                %s2584 = sphi %s2568, %s2568
              $region173: #{tpu_custom_call.1} parent=169 // loop_header_branch
                %2581 = sbr.rel (%p2579) target = $region177
              $region174: #{tpu_custom_call.1} parent=169 // loop_body
                %v2585 = vld [vmem:[%s2583] sm:%s2576]
                %2586 = vst [vmem:[%s2584] sm:%s2576] %v2585
                %v2587 = vld [vmem:[%s2583 + $0x4] sm:%s2576]
                %2588 = vst [vmem:[%s2584 + $0x4] sm:%s2576] %v2587
                %v2589 = vld [vmem:[%s2583 + $0x8] sm:%s2576]
                %2590 = vst [vmem:[%s2584 + $0x8] sm:%s2576] %v2589
                %v2591 = vld [vmem:[%s2583 + $0xc] sm:%s2576]
                %2592 = vst [vmem:[%s2584 + $0xc] sm:%s2576] %v2591
                %v2593 = vld [vmem:[%s2583 + $0x10] sm:%s2576]
                %2594 = vst [vmem:[%s2584 + $0x10] sm:%s2576] %v2593
                %v2595 = vld [vmem:[%s2583 + $0x14] sm:%s2576]
                %2596 = vst [vmem:[%s2584 + $0x14] sm:%s2576] %v2595
                %v2597 = vld [vmem:[%s2583 + $0x18] sm:%s2576]
                %2598 = vst [vmem:[%s2584 + $0x18] sm:%s2576] %v2597
                %v2599 = vld [vmem:[%s2583 + $0x1c] sm:%s2576]
                %2600 = vst [vmem:[%s2584 + $0x1c] sm:%s2576] %v2599
                %v2601 = vld [vmem:[%s2583 + $0x20] sm:%s2576]
                %2602 = vst [vmem:[%s2584 + $0x20] sm:%s2576] %v2601
                %v2603 = vld [vmem:[%s2583 + $0x24] sm:%s2576]
                %2604 = vst [vmem:[%s2584 + $0x24] sm:%s2576] %v2603
                %v2605 = vld [vmem:[%s2583 + $0x28] sm:%s2576]
                %2606 = vst [vmem:[%s2584 + $0x28] sm:%s2576] %v2605
                %v2607 = vld [vmem:[%s2583 + $0x2c] sm:%s2576]
                %2608 = vst [vmem:[%s2584 + $0x2c] sm:%s2576] %v2607
                %v2609 = vld [vmem:[%s2583 + $0x30] sm:%s2576]
                %2610 = vst [vmem:[%s2584 + $0x30] sm:%s2576] %v2609
                %v2611 = vld [vmem:[%s2583 + $0x34] sm:%s2576]
                %2612 = vst [vmem:[%s2584 + $0x34] sm:%s2576] %v2611
                %v2613 = vld [vmem:[%s2583 + $0x38] sm:%s2576]
                %2614 = vst [vmem:[%s2584 + $0x38] sm:%s2576] %v2613
                %v2615 = vld [vmem:[%s2583 + $0x3c] sm:%s2576]
                %2616 = vst [vmem:[%s2584 + $0x3c] sm:%s2576] %v2615
                %v2617 = vld [vmem:[%s2583 + $0x40] sm:%s2576]
                %2618 = vst [vmem:[%s2584 + $0x80] sm:%s2576] %v2617
                %v2619 = vld [vmem:[%s2583 + $0x44] sm:%s2576]
                %2620 = vst [vmem:[%s2584 + $0x84] sm:%s2576] %v2619
                %v2621 = vld [vmem:[%s2583 + $0x48] sm:%s2576]
                %2622 = vst [vmem:[%s2584 + $0x88] sm:%s2576] %v2621
                %v2623 = vld [vmem:[%s2583 + $0x4c] sm:%s2576]
                %2624 = vst [vmem:[%s2584 + $0x8c] sm:%s2576] %v2623
                %v2625 = vld [vmem:[%s2583 + $0x50] sm:%s2576]
                %2626 = vst [vmem:[%s2584 + $0x90] sm:%s2576] %v2625
                %v2627 = vld [vmem:[%s2583 + $0x54] sm:%s2576]
                %2628 = vst [vmem:[%s2584 + $0x94] sm:%s2576] %v2627
                %v2629 = vld [vmem:[%s2583 + $0x58] sm:%s2576]
                %2630 = vst [vmem:[%s2584 + $0x98] sm:%s2576] %v2629
                %v2631 = vld [vmem:[%s2583 + $0x5c] sm:%s2576]
                %2632 = vst [vmem:[%s2584 + $0x9c] sm:%s2576] %v2631
                %v2633 = vld [vmem:[%s2583 + $0x60] sm:%s2576]
                %2634 = vst [vmem:[%s2584 + $0xa0] sm:%s2576] %v2633
                %v2635 = vld [vmem:[%s2583 + $0x64] sm:%s2576]
                %2636 = vst [vmem:[%s2584 + $0xa4] sm:%s2576] %v2635
                %v2637 = vld [vmem:[%s2583 + $0x68] sm:%s2576]
                %2638 = vst [vmem:[%s2584 + $0xa8] sm:%s2576] %v2637
                %v2639 = vld [vmem:[%s2583 + $0x6c] sm:%s2576]
                %2640 = vst [vmem:[%s2584 + $0xac] sm:%s2576] %v2639
                %v2641 = vld [vmem:[%s2583 + $0x70] sm:%s2576]
                %2642 = vst [vmem:[%s2584 + $0xb0] sm:%s2576] %v2641
                %v2643 = vld [vmem:[%s2583 + $0x74] sm:%s2576]
                %2644 = vst [vmem:[%s2584 + $0xb4] sm:%s2576] %v2643
                %v2645 = vld [vmem:[%s2583 + $0x78] sm:%s2576]
                %2646 = vst [vmem:[%s2584 + $0xb8] sm:%s2576] %v2645
                %v2647 = vld [vmem:[%s2583 + $0x7c] sm:%s2576]
                %2648 = vst [vmem:[%s2584 + $0xbc] sm:%s2576] %v2647
                %v2649 = vld [vmem:[%s2583 + $0x80] sm:%s2576]
                %2650 = vst [vmem:[%s2584 + $0x100] sm:%s2576] %v2649
                %v2651 = vld [vmem:[%s2583 + $0x84] sm:%s2576]
                %2652 = vst [vmem:[%s2584 + $0x104] sm:%s2576] %v2651
                %v2653 = vld [vmem:[%s2583 + $0x88] sm:%s2576]
                %2654 = vst [vmem:[%s2584 + $0x108] sm:%s2576] %v2653
                %v2655 = vld [vmem:[%s2583 + $0x8c] sm:%s2576]
                %2656 = vst [vmem:[%s2584 + $0x10c] sm:%s2576] %v2655
                %v2657 = vld [vmem:[%s2583 + $0x90] sm:%s2576]
                %2658 = vst [vmem:[%s2584 + $0x110] sm:%s2576] %v2657
                %v2659 = vld [vmem:[%s2583 + $0x94] sm:%s2576]
                %2660 = vst [vmem:[%s2584 + $0x114] sm:%s2576] %v2659
                %v2661 = vld [vmem:[%s2583 + $0x98] sm:%s2576]
                %2662 = vst [vmem:[%s2584 + $0x118] sm:%s2576] %v2661
                %v2663 = vld [vmem:[%s2583 + $0x9c] sm:%s2576]
                %2664 = vst [vmem:[%s2584 + $0x11c] sm:%s2576] %v2663
                %v2665 = vld [vmem:[%s2583 + $0xa0] sm:%s2576]
                %2666 = vst [vmem:[%s2584 + $0x120] sm:%s2576] %v2665
                %v2667 = vld [vmem:[%s2583 + $0xa4] sm:%s2576]
                %2668 = vst [vmem:[%s2584 + $0x124] sm:%s2576] %v2667
                %v2669 = vld [vmem:[%s2583 + $0xa8] sm:%s2576]
                %2670 = vst [vmem:[%s2584 + $0x128] sm:%s2576] %v2669
                %v2671 = vld [vmem:[%s2583 + $0xac] sm:%s2576]
                %2672 = vst [vmem:[%s2584 + $0x12c] sm:%s2576] %v2671
                %v2673 = vld [vmem:[%s2583 + $0xb0] sm:%s2576]
                %2674 = vst [vmem:[%s2584 + $0x130] sm:%s2576] %v2673
                %v2675 = vld [vmem:[%s2583 + $0xb4] sm:%s2576]
                %2676 = vst [vmem:[%s2584 + $0x134] sm:%s2576] %v2675
                %v2677 = vld [vmem:[%s2583 + $0xb8] sm:%s2576]
                %2678 = vst [vmem:[%s2584 + $0x138] sm:%s2576] %v2677
                %v2679 = vld [vmem:[%s2583 + $0xbc] sm:%s2576]
                %2680 = vst [vmem:[%s2584 + $0x13c] sm:%s2576] %v2679
                %v2681 = vld [vmem:[%s2583 + $0xc0] sm:%s2576]
                %2682 = vst [vmem:[%s2584 + $0x180] sm:%s2576] %v2681
                %v2683 = vld [vmem:[%s2583 + $0xc4] sm:%s2576]
                %2684 = vst [vmem:[%s2584 + $0x184] sm:%s2576] %v2683
                %v2685 = vld [vmem:[%s2583 + $0xc8] sm:%s2576]
                %2686 = vst [vmem:[%s2584 + $0x188] sm:%s2576] %v2685
                %v2687 = vld [vmem:[%s2583 + $0xcc] sm:%s2576]
                %2688 = vst [vmem:[%s2584 + $0x18c] sm:%s2576] %v2687
                %v2689 = vld [vmem:[%s2583 + $0xd0] sm:%s2576]
                %2690 = vst [vmem:[%s2584 + $0x190] sm:%s2576] %v2689
                %v2691 = vld [vmem:[%s2583 + $0xd4] sm:%s2576]
                %2692 = vst [vmem:[%s2584 + $0x194] sm:%s2576] %v2691
                %v2693 = vld [vmem:[%s2583 + $0xd8] sm:%s2576]
                %2694 = vst [vmem:[%s2584 + $0x198] sm:%s2576] %v2693
                %v2695 = vld [vmem:[%s2583 + $0xdc] sm:%s2576]
                %2696 = vst [vmem:[%s2584 + $0x19c] sm:%s2576] %v2695
                %v2697 = vld [vmem:[%s2583 + $0xe0] sm:%s2576]
                %2698 = vst [vmem:[%s2584 + $0x1a0] sm:%s2576] %v2697
                %v2699 = vld [vmem:[%s2583 + $0xe4] sm:%s2576]
                %2700 = vst [vmem:[%s2584 + $0x1a4] sm:%s2576] %v2699
                %v2701 = vld [vmem:[%s2583 + $0xe8] sm:%s2576]
                %2702 = vst [vmem:[%s2584 + $0x1a8] sm:%s2576] %v2701
                %v2703 = vld [vmem:[%s2583 + $0xec] sm:%s2576]
                %2704 = vst [vmem:[%s2584 + $0x1ac] sm:%s2576] %v2703
                %v2705 = vld [vmem:[%s2583 + $0xf0] sm:%s2576]
                %2706 = vst [vmem:[%s2584 + $0x1b0] sm:%s2576] %v2705
                %v2707 = vld [vmem:[%s2583 + $0xf4] sm:%s2576]
                %2708 = vst [vmem:[%s2584 + $0x1b4] sm:%s2576] %v2707
                %v2709 = vld [vmem:[%s2583 + $0xf8] sm:%s2576]
                %2710 = vst [vmem:[%s2584 + $0x1b8] sm:%s2576] %v2709
                %v2711 = vld [vmem:[%s2583 + $0xfc] sm:%s2576]
                %2712 = vst [vmem:[%s2584 + $0x1bc] sm:%s2576] %v2711
              $region175: #{tpu_custom_call.1} parent=169 // loop_footer
                %s2582 = sadd.s32 1, %s2578
              $region176: #{tpu_custom_call.1} parent=169 // loop_footer_branch
                %2577 = sbr.rel target = $region172
              $region177: #{tpu_custom_call.1} parent=169 // loop_exit
                _
            $region170: #{tpu_custom_call.1} parent=161 // pred_fallthru
              _
          $region162: #{tpu_custom_call.1} parent=157 // pred_fallthru
            _
          %2861 = vnop
        $region158: #{tpu_custom_call.1} parent=51 // pred_fallthru
          _
      $region52: #{tpu_custom_call.1} parent=5 // pred_fallthru
        _
      %p2862 = scmp.le.s32.totalorder 2, %s22
      // Predicated region
      $region196: #{tpu_custom_call.1} parent=5 // pred_check
        %p2863 = pneg %p2862
      $region197: #{tpu_custom_call.1} parent=5 // pred_check_branch
        %2865 = sbr.rel (%p2863) target = $region199
      $region198: #{tpu_custom_call.1} parent=5 // pred_region
        %s2866 = ssub.s32 %s22, 2
        // Predicated region
        $region200: #{tpu_custom_call.1} parent=198 // pred_check
          %p2867 = pneg %p240
        $region201: #{tpu_custom_call.1} parent=198 // pred_check_branch
          %2869 = sbr.rel (%p2867) target = $region203
        $region202: #{tpu_custom_call.1} parent=198 // pred_region
          %s2870 = sand.u32 %s225, 1
          %s2871 = sand.u32 %s225, 1
          %s2872 = smul.addr %s2871, 256
          %s2873 = scalar_lea.vmem [#allocation10], %s2872
        $region203: #{tpu_custom_call.1} parent=198 // pred_fallthru
          _
        // Predicated region
        $region204: #{tpu_custom_call.1} parent=198 // pred_check
          %p2874 = pneg %p268
        $region205: #{tpu_custom_call.1} parent=198 // pred_check_branch
          %2876 = sbr.rel (%p2874) target = $region207
        $region206: #{tpu_custom_call.1} parent=198 // pred_region
          %s2877 = sand.u32 %s253, 1
          %s2878 = sand.u32 %s253, 1
          %s2879 = smul.addr %s2878, 256
          %s2880 = scalar_lea.vmem [#allocation11], %s2879
        $region207: #{tpu_custom_call.1} parent=198 // pred_fallthru
          _
        // Predicated region
        $region208: #{tpu_custom_call.1} parent=198 // pred_check
          %p2881 = pneg %p296
        $region209: #{tpu_custom_call.1} parent=198 // pred_check_branch
          %2883 = sbr.rel (%p2881) target = $region211
        $region210: #{tpu_custom_call.1} parent=198 // pred_region
          %s2884 = sand.u32 %s281, 1
          %s2885 = sand.u32 %s281, 1
          %s2886 = smul.addr %s2885, 256
          %s2887 = scalar_lea.vmem [#allocation12], %s2886
        $region211: #{tpu_custom_call.1} parent=198 // pred_fallthru
          _
      $region199: #{tpu_custom_call.1} parent=5 // pred_fallthru
        _
    $region6: #{tpu_custom_call.1} parent=1 // loop_footer
      %s26 = sadd.s32 1, %s22
    $region7: #{tpu_custom_call.1} parent=1 // loop_footer_branch
      %21 = sbr.rel target = $region3
    $region8: #{tpu_custom_call.1} parent=1 // loop_exit
      _
    %2888 = vsyncpa [#allocation3], 1
    %s2889 = scalar_lea.sflag [#allocation3], 1
    %2890 = vsyncpa %s2889, 1
    %2891 = vsyncpa [#allocation5], 1
    %2892 = vsyncpa [#allocation8], 1

// kernel: tpu_custom_call.1
$region0: #{tpu_custom_call.1}
  #allocation0 [shape = 'u32[]', space=smem, size = 0x4, offset = 0x4, fixed_abs, tag = 'smem constant byte address 0x4 - core index']
  #allocation1 [shape = 'u32[72,128]{1,0:T(1,128)}', space=vmem, size = 0x9000, scoped, tag = 'internal scratch']
  %s0 = inlined_call_operand.hbm [shape: f32[2,256,128], index: 0, kind: input, shape index: {}]
  %s1 = inlined_call_operand.hbm [shape: f32[1,128], index: 1, kind: input, shape index: {}]
  %s2 = inlined_call_operand.vmem [shape: f32[1,128], index: 2, kind: input, shape index: {}]
  %s3 = inlined_call_operand.hbm [shape: bf16[128,128], index: 3, kind: input, shape index: {}]
  %s4 = inlined_call_operand.vmem [shape: f32[1,128], index: 4, kind: input, shape index: {}]
  %s5 = inlined_call_operand.hbm [shape: bf16[128,128], index: 5, kind: input, shape index: {}]
  %s6 = inlined_call_operand.hbm [shape: bf16[128,128], index: 6, kind: input, shape index: {}]
  %s7 = inlined_call_operand.vmem [shape: f32[1,128], index: 7, kind: input, shape index: {}]
  %s8 = inlined_call_operand.vmem [shape: bf16[2,4,256,32], index: 8, kind: output, shape index: {0}]
  %s9 = inlined_call_operand.vmem [shape: bf16[2,4,256,32], index: 9, kind: output, shape index: {1}]
  %s10 = inlined_call_operand.vmem [shape: bf16[2,4,256,32], index: 10, kind: output, shape index: {2}]
  %11 = xla_tuple %s8, %s9, %s10
  %s12 = sld [smem:[#allocation0]]
  $region212: #{tpu_custom_call.1} parent=0
    _
  %s14 = ssub.s32 1, %s12
  %s15 = scalar_select 0, %s14, %s12
  $region1: #{tpu_custom_call.1} parent=0
    #allocation2 [shape = 'u8[131072]{0}', space=vmem, size = 0x20000, scoped, tag = 'input window, operand 0']
    #allocation3 [shape = 's32[2]{0}', space=sflag, size = 0x8, scoped, tag = 'scoped memory for tpu_custom_call.1']
    #allocation4 [shape = 'u8[512]{0}', space=vmem, size = 0x400, scoped, tag = 'input window, operand 1, single buffered']
    #allocation5 [shape = 's32[1]{0}', space=sflag, size = 0x4, scoped, tag = 'scoped memory for tpu_custom_call.1']
    #allocation6 [shape = 'u8[32768]{0}', space=vmem, size = 0x8000, scoped, tag = 'input window, operand 3, single buffered']
    #allocation7 [shape = 'u8[32768]{0}', space=vmem, size = 0x8000, scoped, tag = 'input window, operand 5, single buffered']
    #allocation8 [shape = 's32[1]{0}', space=sflag, size = 0x4, scoped, tag = 'scoped memory for tpu_custom_call.1']
    #allocation9 [shape = 'u8[32768]{0}', space=vmem, size = 0x8000, scoped, tag = 'input window, operand 6, single buffered']
    #allocation10 [shape = 'u8[262144]{0}', space=vmem, size = 0x40000, scoped, tag = 'output window, operand 0']
    #allocation11 [shape = 'u8[262144]{0}', space=vmem, size = 0x40000, scoped, tag = 'output window, operand 1']
    #allocation12 [shape = 'u8[262144]{0}', space=vmem, size = 0x40000, scoped, tag = 'output window, operand 2']
    %16 = vsyncpa [#allocation3], 0
    %s17 = scalar_lea.sflag [#allocation3], 1
    %18 = vsyncpa %s17, 0
    %19 = vsyncpa [#allocation5], 0
    %20 = vsyncpa [#allocation8], 0
    loop: start=0, step=1, limit=6
    $region2: #{tpu_custom_call.1} parent=1 // loop_pre_header
      _
    $region3: #{tpu_custom_call.1} parent=1 // loop_header
      %s22 = sphi 0, %s26
      %p23 = scmp.ge.s32.totalorder %s22, 6
      %s29 = sphi 0, %s41
      %s30 = sphi 0, %s37
      %s31 = sphi 0, %s29
      %s32 = sphi 0, %s30
      %s33 = sphi 0, %s31
      %s34 = sphi 0, %s32
      %s46 = sphi 0, %s48
      %s49 = sphi 0, %s46
      %s50 = sphi 0, %s49
      %s66 = sphi 0, %s50
      %s70 = sphi 0, %s70
      %s72 = sphi 0, %s70
      %s73 = sphi 0, %s72
      %s87 = sphi 0, %s73
      %s91 = sphi 0, %s91
      %s93 = sphi 0, %s91
      %s94 = sphi 0, %s93
      %s108 = sphi 0, %s94
      %s112 = sphi 0, %s112
      %s114 = sphi 0, %s112
      %s115 = sphi 0, %s114
      %s129 = sphi 0, %s115
      %s133 = sphi 0, %s133
      %s135 = sphi 0, %s133
      %s136 = sphi 0, %s135
      %s150 = sphi 0, %s136
      %s154 = sphi 0, %s154
      %s156 = sphi 0, %s154
      %s157 = sphi 0, %s156
      %s171 = sphi 0, %s157
      %s175 = sphi 0, %s175
      %s177 = sphi 0, %s175
      %s178 = sphi 0, %s177
      %s192 = sphi 0, %s178
      %s196 = sphi 0, %s196
      %s198 = sphi 0, %s196
      %s199 = sphi 0, %s198
      %s213 = sphi 0, %s199
      %s221 = sphi 0, %s223
      %s224 = sphi 0, %s221
      %s225 = sphi 0, %s224
      %s241 = sphi 0, %s225
      %s249 = sphi 0, %s251
      %s252 = sphi 0, %s249
      %s253 = sphi 0, %s252
      %s269 = sphi 0, %s253
      %s277 = sphi 0, %s279
      %s280 = sphi 0, %s277
      %s281 = sphi 0, %s280
      %s297 = sphi 0, %s281
    $region4: #{tpu_custom_call.1} parent=1 // loop_header_branch
      %25 = sbr.rel (%p23) target = $region8
    $region5: #{tpu_custom_call.1} parent=1 // loop_body
      %s27 = ssub.s32 %s22, 1
      %s28 = ssub.s32 %s22, 2
      %s35 = sadd.s32 1, %s30
      %p36 = scmp.ge.s32.totalorder %s35, 2
      %s37 = scalar_select %p36, 0, %s35
      %s38 = sadd.s32 1, %s29
      %s39 = scalar_select %p36, %s38, %s29
      %p40 = scmp.ge.s32.totalorder %s39, 2
      %s41 = scalar_select %p40, 0, %s39
      %s42 = ssub.s32 %s29, %s41
      %s43 = ssub.s32 %s30, %s37
      %s44 = sor.u32 %s42, %s43
      %p45 = scmp.eq.s32.totalorder %s44, 0
      %s47 = sadd.s32 %s46, 1
      %s48 = scalar_select %p45, %s46, %s47
      %p51 = pneg %p45
      %p52 = scmp.eq.s32.totalorder %s22, 3
      %p53 = por %p51, %p52
      %p54 = scmp.ne.s32.totalorder %s46, %s49
      %p55 = scmp.eq.s32.totalorder %s22, 0
      %p56 = por %p54, %p55
      %p57 = scmp.ne.s32.totalorder %s46, %s49
      %p58 = scmp.eq.s32.totalorder %s27, 3
      %p59 = por %p57, %p58
      %p60 = scmp.ne.s32.totalorder %s49, %s50
      %p61 = scmp.eq.s32.totalorder %s27, 0
      %p62 = por %p60, %p61
      %p63 = scmp.ne.s32.totalorder %s49, %s50
      %p64 = scmp.eq.s32.totalorder %s28, 3
      %p65 = por %p63, %p64
      %p67 = scmp.ne.s32.totalorder %s50, %s66
      %p68 = scmp.eq.s32.totalorder %s28, 0
      %p69 = por %p67, %p68
      %s71 = sadd.s32 %s70, 1
      %p74 = scmp.eq.s32.totalorder %s22, 3
      %p75 = scmp.ne.s32.totalorder %s70, %s72
      %p76 = scmp.eq.s32.totalorder %s22, 0
      %p77 = por %p75, %p76
      %p78 = scmp.ne.s32.totalorder %s70, %s72
      %p79 = scmp.eq.s32.totalorder %s27, 3
      %p80 = por %p78, %p79
      %p81 = scmp.ne.s32.totalorder %s72, %s73
      %p82 = scmp.eq.s32.totalorder %s27, 0
      %p83 = por %p81, %p82
      %p84 = scmp.ne.s32.totalorder %s72, %s73
      %p85 = scmp.eq.s32.totalorder %s28, 3
      %p86 = por %p84, %p85
      %p88 = scmp.ne.s32.totalorder %s73, %s87
      %p89 = scmp.eq.s32.totalorder %s28, 0
      %p90 = por %p88, %p89
      %s92 = sadd.s32 %s91, 1
      %p95 = scmp.eq.s32.totalorder %s22, 3
      %p96 = scmp.ne.s32.totalorder %s91, %s93
      %p97 = scmp.eq.s32.totalorder %s22, 0
      %p98 = por %p96, %p97
      %p99 = scmp.ne.s32.totalorder %s91, %s93
      %p100 = scmp.eq.s32.totalorder %s27, 3
      %p101 = por %p99, %p100
      %p102 = scmp.ne.s32.totalorder %s93, %s94
      %p103 = scmp.eq.s32.totalorder %s27, 0
      %p104 = por %p102, %p103
      %p105 = scmp.ne.s32.totalorder %s93, %s94
      %p106 = scmp.eq.s32.totalorder %s28, 3
      %p107 = por %p105, %p106
      %p109 = scmp.ne.s32.totalorder %s94, %s108
      %p110 = scmp.eq.s32.totalorder %s28, 0
      %p111 = por %p109, %p110
      %s113 = sadd.s32 %s112, 1
      %p116 = scmp.eq.s32.totalorder %s22, 3
      %p117 = scmp.ne.s32.totalorder %s112, %s114
      %p118 = scmp.eq.s32.totalorder %s22, 0
      %p119 = por %p117, %p118
      %p120 = scmp.ne.s32.totalorder %s112, %s114
      %p121 = scmp.eq.s32.totalorder %s27, 3
      %p122 = por %p120, %p121
      %p123 = scmp.ne.s32.totalorder %s114, %s115
      %p124 = scmp.eq.s32.totalorder %s27, 0
      %p125 = por %p123, %p124
      %p126 = scmp.ne.s32.totalorder %s114, %s115
      %p127 = scmp.eq.s32.totalorder %s28, 3
      %p128 = por %p126, %p127
      %p130 = scmp.ne.s32.totalorder %s115, %s129
      %p131 = scmp.eq.s32.totalorder %s28, 0
      %p132 = por %p130, %p131
      %s134 = sadd.s32 %s133, 1
      %p137 = scmp.eq.s32.totalorder %s22, 3
      %p138 = scmp.ne.s32.totalorder %s133, %s135
      %p139 = scmp.eq.s32.totalorder %s22, 0
      %p140 = por %p138, %p139
      %p141 = scmp.ne.s32.totalorder %s133, %s135
      %p142 = scmp.eq.s32.totalorder %s27, 3
      %p143 = por %p141, %p142
      %p144 = scmp.ne.s32.totalorder %s135, %s136
      %p145 = scmp.eq.s32.totalorder %s27, 0
      %p146 = por %p144, %p145
      %p147 = scmp.ne.s32.totalorder %s135, %s136
      %p148 = scmp.eq.s32.totalorder %s28, 3
      %p149 = por %p147, %p148
      %p151 = scmp.ne.s32.totalorder %s136, %s150
      %p152 = scmp.eq.s32.totalorder %s28, 0
      %p153 = por %p151, %p152
      %s155 = sadd.s32 %s154, 1
      %p158 = scmp.eq.s32.totalorder %s22, 3
      %p159 = scmp.ne.s32.totalorder %s154, %s156
      %p160 = scmp.eq.s32.totalorder %s22, 0
      %p161 = por %p159, %p160
      %p162 = scmp.ne.s32.totalorder %s154, %s156
      %p163 = scmp.eq.s32.totalorder %s27, 3
      %p164 = por %p162, %p163
      %p165 = scmp.ne.s32.totalorder %s156, %s157
      %p166 = scmp.eq.s32.totalorder %s27, 0
      %p167 = por %p165, %p166
      %p168 = scmp.ne.s32.totalorder %s156, %s157
      %p169 = scmp.eq.s32.totalorder %s28, 3
      %p170 = por %p168, %p169
      %p172 = scmp.ne.s32.totalorder %s157, %s171
      %p173 = scmp.eq.s32.totalorder %s28, 0
      %p174 = por %p172, %p173
      %s176 = sadd.s32 %s175, 1
      %p179 = scmp.eq.s32.totalorder %s22, 3
      %p180 = scmp.ne.s32.totalorder %s175, %s177
      %p181 = scmp.eq.s32.totalorder %s22, 0
      %p182 = por %p180, %p181
      %p183 = scmp.ne.s32.totalorder %s175, %s177
      %p184 = scmp.eq.s32.totalorder %s27, 3
      %p185 = por %p183, %p184
      %p186 = scmp.ne.s32.totalorder %s177, %s178
      %p187 = scmp.eq.s32.totalorder %s27, 0
      %p188 = por %p186, %p187
      %p189 = scmp.ne.s32.totalorder %s177, %s178
      %p190 = scmp.eq.s32.totalorder %s28, 3
      %p191 = por %p189, %p190
      %p193 = scmp.ne.s32.totalorder %s178, %s192
      %p194 = scmp.eq.s32.totalorder %s28, 0
      %p195 = por %p193, %p194
      %s197 = sadd.s32 %s196, 1
      %p200 = scmp.eq.s32.totalorder %s22, 3
      %p201 = scmp.ne.s32.totalorder %s196, %s198
      %p202 = scmp.eq.s32.totalorder %s22, 0
      %p203 = por %p201, %p202
      %p204 = scmp.ne.s32.totalorder %s196, %s198
      %p205 = scmp.eq.s32.totalorder %s27, 3
      %p206 = por %p204, %p205
      %p207 = scmp.ne.s32.totalorder %s198, %s199
      %p208 = scmp.eq.s32.totalorder %s27, 0
      %p209 = por %p207, %p208
      %p210 = scmp.ne.s32.totalorder %s198, %s199
      %p211 = scmp.eq.s32.totalorder %s28, 3
      %p212 = por %p210, %p211
      %p214 = scmp.ne.s32.totalorder %s199, %s213
      %p215 = scmp.eq.s32.totalorder %s28, 0
      %p216 = por %p214, %p215
      %s217 = ssub.s32 %s29, %s41
      %s218 = ssub.s32 %s30, %s37
      %s219 = sor.u32 %s217, %s218
      %p220 = scmp.eq.s32.totalorder %s219, 0
      %s222 = sadd.s32 %s221, 1
      %s223 = scalar_select %p220, %s221, %s222
      %p226 = pneg %p220
      %p227 = scmp.eq.s32.totalorder %s22, 3
      %p228 = por %p226, %p227
      %p229 = scmp.ne.s32.totalorder %s221, %s224
      %p230 = scmp.eq.s32.totalorder %s22, 0
      %p231 = por %p229, %p230
      %p232 = scmp.ne.s32.totalorder %s221, %s224
      %p233 = scmp.eq.s32.totalorder %s27, 3
      %p234 = por %p232, %p233
      %p235 = scmp.ne.s32.totalorder %s224, %s225
      %p236 = scmp.eq.s32.totalorder %s27, 0
      %p237 = por %p235, %p236
      %p238 = scmp.ne.s32.totalorder %s224, %s225
      %p239 = scmp.eq.s32.totalorder %s28, 3
      %p240 = por %p238, %p239
      %p242 = scmp.ne.s32.totalorder %s225, %s241
      %p243 = scmp.eq.s32.totalorder %s28, 0
      %p244 = por %p242, %p243
      %s245 = ssub.s32 %s29, %s41
      %s246 = ssub.s32 %s30, %s37
      %s247 = sor.u32 %s245, %s246
      %p248 = scmp.eq.s32.totalorder %s247, 0
      %s250 = sadd.s32 %s249, 1
      %s251 = scalar_select %p248, %s249, %s250
      %p254 = pneg %p248
      %p255 = scmp.eq.s32.totalorder %s22, 3
      %p256 = por %p254, %p255
      %p257 = scmp.ne.s32.totalorder %s249, %s252
      %p258 = scmp.eq.s32.totalorder %s22, 0
      %p259 = por %p257, %p258
      %p260 = scmp.ne.s32.totalorder %s249, %s252
      %p261 = scmp.eq.s32.totalorder %s27, 3
      %p262 = por %p260, %p261
      %p263 = scmp.ne.s32.totalorder %s252, %s253
      %p264 = scmp.eq.s32.totalorder %s27, 0
      %p265 = por %p263, %p264
      %p266 = scmp.ne.s32.totalorder %s252, %s253
      %p267 = scmp.eq.s32.totalorder %s28, 3
      %p268 = por %p266, %p267
      %p270 = scmp.ne.s32.totalorder %s253, %s269
      %p271 = scmp.eq.s32.totalorder %s28, 0
      %p272 = por %p270, %p271
      %s273 = ssub.s32 %s29, %s41
      %s274 = ssub.s32 %s30, %s37
      %s275 = sor.u32 %s273, %s274
      %p276 = scmp.eq.s32.totalorder %s275, 0
      %s278 = sadd.s32 %s277, 1
      %s279 = scalar_select %p276, %s277, %s278
      %p282 = pneg %p276
      %p283 = scmp.eq.s32.totalorder %s22, 3
      %p284 = por %p282, %p283
      %p285 = scmp.ne.s32.totalorder %s277, %s280
      %p286 = scmp.eq.s32.totalorder %s22, 0
      %p287 = por %p285, %p286
      %p288 = scmp.ne.s32.totalorder %s277, %s280
      %p289 = scmp.eq.s32.totalorder %s27, 3
      %p290 = por %p288, %p289
      %p291 = scmp.ne.s32.totalorder %s280, %s281
      %p292 = scmp.eq.s32.totalorder %s27, 0
      %p293 = por %p291, %p292
      %p294 = scmp.ne.s32.totalorder %s280, %s281
      %p295 = scmp.eq.s32.totalorder %s28, 3
      %p296 = por %p294, %p295
      %p298 = scmp.ne.s32.totalorder %s281, %s297
      %p299 = scmp.eq.s32.totalorder %s28, 0
      %p300 = por %p298, %p299
      %p301 = scmp.le.s32.totalorder 1, %s22
      %p302 = scmp.lt.s32.totalorder %s22, 5
      %p303 = pnand %p301, %p302
      %p304 = pneg %p303
      // Predicated region
      $region9: #{tpu_custom_call.1} parent=5 // pred_check
        _
      $region10: #{tpu_custom_call.1} parent=5 // pred_check_branch
        %306 = sbr.rel (%p303) target = $region12
      $region11: #{tpu_custom_call.1} parent=5 // pred_region
        %s307 = ssub.s32 %s22, 1
        // Predicated region
        $region13: #{tpu_custom_call.1} parent=11 // pred_check
          %p308 = pneg %p83
        $region14: #{tpu_custom_call.1} parent=11 // pred_check_branch
          %310 = sbr.rel (%p308) target = $region16
        $region15: #{tpu_custom_call.1} parent=11 // pred_region
          %312 = vsyncadd [#allocation5], 0
          %s314 = sshll.u32 %s1, 4
          %s315 = int_to_ptr.hbm [resolvable:$true] %s314
          %s316 = sshll.u32 [#allocation4], 4
          %s317 = int_to_ptr.vmem [resolvable:$true] %s316
          %319 = dma.hbm_to_vmem [thread:$0]  %s315, 16, %s317, [#allocation5]
        $region16: #{tpu_custom_call.1} parent=11 // pred_fallthru
          _
        // Predicated region
        $region17: #{tpu_custom_call.1} parent=11 // pred_check
          %p320 = pneg %p104
        $region18: #{tpu_custom_call.1} parent=11 // pred_check_branch
          %322 = sbr.rel (%p320) target = $region20
        $region19: #{tpu_custom_call.1} parent=11 // pred_region
          _
        $region20: #{tpu_custom_call.1} parent=11 // pred_fallthru
          _
        // Predicated region
        $region21: #{tpu_custom_call.1} parent=11 // pred_check
          %p323 = pneg %p125
        $region22: #{tpu_custom_call.1} parent=11 // pred_check_branch
          %325 = sbr.rel (%p323) target = $region24
        $region23: #{tpu_custom_call.1} parent=11 // pred_region
          %327 = vsyncadd [#allocation5], 0
          %s328 = sshll.u32 %s3, 4
          %s329 = int_to_ptr.hbm [resolvable:$true] %s328
          %s330 = sshll.u32 [#allocation6], 4
          %s331 = int_to_ptr.vmem [resolvable:$true] %s330
          %336 = dma.hbm_to_vmem [thread:$0]  %s329, 1024, %s331, [#allocation5], 64, 64, 4
        $region24: #{tpu_custom_call.1} parent=11 // pred_fallthru
          _
        // Predicated region
        $region25: #{tpu_custom_call.1} parent=11 // pred_check
          %p337 = pneg %p146
        $region26: #{tpu_custom_call.1} parent=11 // pred_check_branch
          %339 = sbr.rel (%p337) target = $region28
        $region27: #{tpu_custom_call.1} parent=11 // pred_region
          _
        $region28: #{tpu_custom_call.1} parent=11 // pred_fallthru
          _
        // Predicated region
        $region29: #{tpu_custom_call.1} parent=11 // pred_check
          %p340 = pneg %p167
        $region30: #{tpu_custom_call.1} parent=11 // pred_check_branch
          %342 = sbr.rel (%p340) target = $region32
        $region31: #{tpu_custom_call.1} parent=11 // pred_region
          %344 = vsyncadd [#allocation8], 0
          %s345 = sshll.u32 %s5, 4
          %s346 = int_to_ptr.hbm [resolvable:$true] %s345
          %s347 = sshll.u32 [#allocation7], 4
          %s348 = int_to_ptr.vmem [resolvable:$true] %s347
          %353 = dma.hbm_to_vmem [thread:$0]  %s346, 1024, %s348, [#allocation8], 64, 64, 4
        $region32: #{tpu_custom_call.1} parent=11 // pred_fallthru
          _
        // Predicated region
        $region33: #{tpu_custom_call.1} parent=11 // pred_check
          %p354 = pneg %p188
        $region34: #{tpu_custom_call.1} parent=11 // pred_check_branch
          %356 = sbr.rel (%p354) target = $region36
        $region35: #{tpu_custom_call.1} parent=11 // pred_region
          %358 = vsyncadd [#allocation8], 0
          %s359 = sshll.u32 %s6, 4
          %s360 = int_to_ptr.hbm [resolvable:$true] %s359
          %s361 = sshll.u32 [#allocation9], 4
          %s362 = int_to_ptr.vmem [resolvable:$true] %s361
          %367 = dma.hbm_to_vmem [thread:$0]  %s360, 1024, %s362, [#allocation8], 64, 64, 4
        $region36: #{tpu_custom_call.1} parent=11 // pred_fallthru
          _
        // Predicated region
        $region37: #{tpu_custom_call.1} parent=11 // pred_check
          %p368 = pneg %p209
        $region38: #{tpu_custom_call.1} parent=11 // pred_check_branch
          %370 = sbr.rel (%p368) target = $region40
        $region39: #{tpu_custom_call.1} parent=11 // pred_region
          _
        $region40: #{tpu_custom_call.1} parent=11 // pred_fallthru
          _
      $region12: #{tpu_custom_call.1} parent=5 // pred_fallthru
        _
      %p371 = scmp.lt.s32.totalorder %s22, 4
      // Predicated region
      $region41: #{tpu_custom_call.1} parent=5 // pred_check
        %p372 = pneg %p371
      $region42: #{tpu_custom_call.1} parent=5 // pred_check_branch
        %374 = sbr.rel (%p372) target = $region44
      $region43: #{tpu_custom_call.1} parent=5 // pred_region
        // Predicated region
        $region45: #{tpu_custom_call.1} parent=43 // pred_check
          %p375 = pneg %p56
        $region46: #{tpu_custom_call.1} parent=43 // pred_check_branch
          %377 = sbr.rel (%p375) target = $region48
        $region47: #{tpu_custom_call.1} parent=43 // pred_region
          %s378 = sand.u32 %s46, 1
          %s379 = scalar_lea.sflag [#allocation3], %s378
          %s380 = sand.u32 %s46, 1
          %s381 = smul.addr %s380, 128
          %s382 = scalar_lea.vmem [#allocation2], %s381
          %s383 = smul.u32 16, %s30
          %385 = vsyncadd %s379, 0
          %s386 = smul.addr %s29, 32
          %s387 = sadd.s32 %s383, %s386
          %s388 = smul.addr %s387, 8
          %s389 = scalar_lea.hbm %s0, %s388
          %s390 = sshll.u32 %s389, 4
          %s391 = int_to_ptr.hbm [resolvable:$true] %s390
          %s392 = sshll.u32 %s382, 4
          %s393 = int_to_ptr.vmem [resolvable:$true] %s392
          %398 = dma.hbm_to_vmem [thread:$0]  %s391, 2048, %s393, %s379, 128, 128, 8
        $region48: #{tpu_custom_call.1} parent=43 // pred_fallthru
          _
      $region44: #{tpu_custom_call.1} parent=5 // pred_fallthru
        _
      %p399 = scmp.le.s32.totalorder 1, %s22
      %p400 = scmp.lt.s32.totalorder %s22, 5
      %p401 = pnand %p399, %p400
      %p402 = pneg %p401
      // Predicated region
      $region49: #{tpu_custom_call.1} parent=5 // pred_check
        _
      $region50: #{tpu_custom_call.1} parent=5 // pred_check_branch
        %404 = sbr.rel (%p401) target = $region52
      $region51: #{tpu_custom_call.1} parent=5 // pred_region
        %s405 = ssub.s32 %s22, 1
        %s406 = sand.u32 %s49, 1
        %s407 = scalar_lea.sflag [#allocation3], %s406
        %s408 = sand.u32 %s49, 1
        %s409 = smul.addr %s408, 128
        %s410 = scalar_lea.vmem [#allocation2], %s409
        // Predicated region
        $region53: #{tpu_custom_call.1} parent=51 // pred_check
          %p411 = pneg %p62
        $region54: #{tpu_custom_call.1} parent=51 // pred_check_branch
          %413 = sbr.rel (%p411) target = $region56
        $region55: #{tpu_custom_call.1} parent=51 // pred_region
          %415 = dma.done %s407, 2048
        $region56: #{tpu_custom_call.1} parent=51 // pred_fallthru
          _
        // Predicated region
        $region57: #{tpu_custom_call.1} parent=51 // pred_check
          %p416 = pneg %p83
        $region58: #{tpu_custom_call.1} parent=51 // pred_check_branch
          %418 = sbr.rel (%p416) target = $region60
        $region59: #{tpu_custom_call.1} parent=51 // pred_region
          %420 = dma.done [#allocation5], 16
        $region60: #{tpu_custom_call.1} parent=51 // pred_fallthru
          _
        // Predicated region
        $region61: #{tpu_custom_call.1} parent=51 // pred_check
          %p421 = pneg %p125
        $region62: #{tpu_custom_call.1} parent=51 // pred_check_branch
          %423 = sbr.rel (%p421) target = $region64
        $region63: #{tpu_custom_call.1} parent=51 // pred_region
          %425 = dma.done [#allocation5], 1024
        $region64: #{tpu_custom_call.1} parent=51 // pred_fallthru
          _
        // Predicated region
        $region65: #{tpu_custom_call.1} parent=51 // pred_check
          %p426 = pneg %p167
        $region66: #{tpu_custom_call.1} parent=51 // pred_check_branch
          %428 = sbr.rel (%p426) target = $region68
        $region67: #{tpu_custom_call.1} parent=51 // pred_region
          %430 = dma.done [#allocation8], 1024
        $region68: #{tpu_custom_call.1} parent=51 // pred_fallthru
          _
        // Predicated region
        $region69: #{tpu_custom_call.1} parent=51 // pred_check
          %p431 = pneg %p188
        $region70: #{tpu_custom_call.1} parent=51 // pred_check_branch
          %433 = sbr.rel (%p431) target = $region72
        $region71: #{tpu_custom_call.1} parent=51 // pred_region
          %435 = dma.done [#allocation8], 1024
        $region72: #{tpu_custom_call.1} parent=51 // pred_fallthru
          _
        %s436 = sand.u32 %s49, 1
        %s437 = scalar_lea.sflag [#allocation3], %s436
        %s438 = sand.u32 %s49, 1
        %s439 = smul.addr %s438, 128
        %s440 = scalar_lea.vmem [#allocation2], %s439
        %p441 = pneg %p62
        %p442 = pneg %p59
        %p443 = pneg %p83
        %p444 = pneg %p80
        %p445 = pneg %p104
        %p446 = pneg %p101
        %p447 = pneg %p125
        %p448 = pneg %p122
        %p449 = pneg %p146
        %p450 = pneg %p143
        %p451 = pneg %p167
        %p452 = pneg %p164
        %p453 = pneg %p188
        %p454 = pneg %p185
        %p455 = pneg %p209
        %p456 = pneg %p206
        %p457 = pneg %p237
        %p458 = pneg %p234
        %s459 = sand.u32 %s224, 1
        %s460 = sand.u32 %s224, 1
        %s461 = smul.addr %s460, 256
        %s462 = scalar_lea.vmem [#allocation10], %s461
        %p463 = pneg %p265
        %p464 = pneg %p262
        %s465 = sand.u32 %s252, 1
        %s466 = sand.u32 %s252, 1
        %s467 = smul.addr %s466, 256
        %s468 = scalar_lea.vmem [#allocation11], %s467
        %p469 = pneg %p293
        %p470 = pneg %p290
        %s471 = sand.u32 %s280, 1
        %s472 = sand.u32 %s280, 1
        %s473 = smul.addr %s472, 256
        %s474 = scalar_lea.vmem [#allocation12], %s473
        %s475 = smul.u32 16, %s32
        %s476 = smul.u32 16, %s32
        %s477 = smul.u32 16, %s32
        %s478 = smul.u32 16, %s32
        %v479 = vld [vmem:[%s410] sm:$0xff]
        %v480 = vld [vmem:[%s410 + $0x8] sm:$0xff]
        %v481 = vld [vmem:[%s410 + $0x10] sm:$0xff]
        %v482 = vld [vmem:[%s410 + $0x18] sm:$0xff]
        %v483 = vld [vmem:[%s410 + $0x20] sm:$0xff]
        %v484 = vld [vmem:[%s410 + $0x28] sm:$0xff]
        %v485 = vld [vmem:[%s410 + $0x30] sm:$0xff]
        %v486 = vld [vmem:[%s410 + $0x38] sm:$0xff]
        %v487 = vld [vmem:[%s410 + $0x40] sm:$0xff]
        %v488 = vld [vmem:[%s410 + $0x48] sm:$0xff]
        %v489 = vld [vmem:[%s410 + $0x50] sm:$0xff]
        %v490 = vld [vmem:[%s410 + $0x58] sm:$0xff]
        %v491 = vld [vmem:[%s410 + $0x60] sm:$0xff]
        %v492 = vld [vmem:[%s410 + $0x68] sm:$0xff]
        %v493 = vld [vmem:[%s410 + $0x70] sm:$0xff]
        %v494 = vld [vmem:[%s410 + $0x78] sm:$0xff]
        %v495 = vld [vmem:[#allocation4] sm:$0x1]
        %v496 = vld [vmem:[%s2] sm:$0x1]
        %497 = vadd.xlane.f32.xlu0 %v479
        %v498 = vpop.xlane.xlu0 %497
        %499 = vadd.xlane.f32.xlu0 %v480
        %v500 = vpop.xlane.xlu0 %499
        %501 = vadd.xlane.f32.xlu0 %v481
        %v502 = vpop.xlane.xlu0 %501
        %503 = vadd.xlane.f32.xlu0 %v482
        %v504 = vpop.xlane.xlu0 %503
        %505 = vadd.xlane.f32.xlu0 %v483
        %v506 = vpop.xlane.xlu0 %505
        %507 = vadd.xlane.f32.xlu0 %v484
        %v508 = vpop.xlane.xlu0 %507
        %509 = vadd.xlane.f32.xlu0 %v485
        %v510 = vpop.xlane.xlu0 %509
        %511 = vadd.xlane.f32.xlu0 %v486
        %v512 = vpop.xlane.xlu0 %511
        %513 = vadd.xlane.f32.xlu0 %v487
        %v514 = vpop.xlane.xlu0 %513
        %515 = vadd.xlane.f32.xlu0 %v488
        %v516 = vpop.xlane.xlu0 %515
        %517 = vadd.xlane.f32.xlu0 %v489
        %v518 = vpop.xlane.xlu0 %517
        %519 = vadd.xlane.f32.xlu0 %v490
        %v520 = vpop.xlane.xlu0 %519
        %521 = vadd.xlane.f32.xlu0 %v491
        %v522 = vpop.xlane.xlu0 %521
        %523 = vadd.xlane.f32.xlu0 %v492
        %v524 = vpop.xlane.xlu0 %523
        %525 = vadd.xlane.f32.xlu0 %v493
        %v526 = vpop.xlane.xlu0 %525
        %527 = vadd.xlane.f32.xlu0 %v494
        %v528 = vpop.xlane.xlu0 %527
        %v529 = vrcp.pop 128.0
        %v530 = vmul.f32 128.0, %v529
        %v531 = vsub.f32 1.0, %v530
        %v532 = vmul.f32 %v529, %v531
        %v533 = vadd.f32 %v529, %v532
        %vm534 = vweird.f32 %v529
        %v535 = vsel %vm534, %v529, %v533
        %v536 = vmul.f32 %v498, %v535
        %v537 = vmul.f32 %v500, %v535
        %v538 = vmul.f32 %v502, %v535
        %v539 = vmul.f32 %v504, %v535
        %v540 = vmul.f32 %v506, %v535
        %v541 = vmul.f32 %v508, %v535
        %v542 = vmul.f32 %v510, %v535
        %v543 = vmul.f32 %v512, %v535
        %v544 = vmul.f32 %v514, %v535
        %v545 = vmul.f32 %v516, %v535
        %v546 = vmul.f32 %v518, %v535
        %v547 = vmul.f32 %v520, %v535
        %v548 = vmul.f32 %v522, %v535
        %v549 = vmul.f32 %v524, %v535
        %v550 = vmul.f32 %v526, %v535
        %v551 = vmul.f32 %v528, %v535
        %v552 = vsub.f32 %v479, %v536
        %v553 = vsub.f32 %v480, %v537
        %v554 = vsub.f32 %v481, %v538
        %v555 = vsub.f32 %v482, %v539
        %v556 = vsub.f32 %v483, %v540
        %v557 = vsub.f32 %v484, %v541
        %v558 = vsub.f32 %v485, %v542
        %v559 = vsub.f32 %v486, %v543
        %v560 = vsub.f32 %v487, %v544
        %v561 = vsub.f32 %v488, %v545
        %v562 = vsub.f32 %v489, %v546
        %v563 = vsub.f32 %v490, %v547
        %v564 = vsub.f32 %v491, %v548
        %v565 = vsub.f32 %v492, %v549
        %v566 = vsub.f32 %v493, %v550
        %v567 = vsub.f32 %v494, %v551
        %v568 = vmul.f32 %v552, %v552
        %v569 = vmul.f32 %v553, %v553
        %v570 = vmul.f32 %v554, %v554
        %v571 = vmul.f32 %v555, %v555
        %v572 = vmul.f32 %v556, %v556
        %v573 = vmul.f32 %v557, %v557
        %v574 = vmul.f32 %v558, %v558
        %v575 = vmul.f32 %v559, %v559
        %v576 = vmul.f32 %v560, %v560
        %v577 = vmul.f32 %v561, %v561
        %v578 = vmul.f32 %v562, %v562
        %v579 = vmul.f32 %v563, %v563
        %v580 = vmul.f32 %v564, %v564
        %v581 = vmul.f32 %v565, %v565
        %v582 = vmul.f32 %v566, %v566
        %v583 = vmul.f32 %v567, %v567
        %584 = vadd.xlane.f32.xlu0 %v568
        %v585 = vpop.xlane.xlu0 %584
        %586 = vadd.xlane.f32.xlu0 %v569
        %v587 = vpop.xlane.xlu0 %586
        %588 = vadd.xlane.f32.xlu0 %v570
        %v589 = vpop.xlane.xlu0 %588
        %590 = vadd.xlane.f32.xlu0 %v571
        %v591 = vpop.xlane.xlu0 %590
        %592 = vadd.xlane.f32.xlu0 %v572
        %v593 = vpop.xlane.xlu0 %592
        %594 = vadd.xlane.f32.xlu0 %v573
        %v595 = vpop.xlane.xlu0 %594
        %596 = vadd.xlane.f32.xlu0 %v574
        %v597 = vpop.xlane.xlu0 %596
        %598 = vadd.xlane.f32.xlu0 %v575
        %v599 = vpop.xlane.xlu0 %598
        %600 = vadd.xlane.f32.xlu0 %v576
        %v601 = vpop.xlane.xlu0 %600
        %602 = vadd.xlane.f32.xlu0 %v577
        %v603 = vpop.xlane.xlu0 %602
        %604 = vadd.xlane.f32.xlu0 %v578
        %v605 = vpop.xlane.xlu0 %604
        %606 = vadd.xlane.f32.xlu0 %v579
        %v607 = vpop.xlane.xlu0 %606
        %608 = vadd.xlane.f32.xlu0 %v580
        %v609 = vpop.xlane.xlu0 %608
        %610 = vadd.xlane.f32.xlu0 %v581
        %v611 = vpop.xlane.xlu0 %610
        %612 = vadd.xlane.f32.xlu0 %v582
        %v613 = vpop.xlane.xlu0 %612
        %614 = vadd.xlane.f32.xlu0 %v583
        %v615 = vpop.xlane.xlu0 %614
        %v616 = vmul.f32 %v585, %v535
        %v617 = vmul.f32 %v587, %v535
        %v618 = vmul.f32 %v589, %v535
        %v619 = vmul.f32 %v591, %v535
        %v620 = vmul.f32 %v593, %v535
        %v621 = vmul.f32 %v595, %v535
        %v622 = vmul.f32 %v597, %v535
        %v623 = vmul.f32 %v599, %v535
        %v624 = vmul.f32 %v601, %v535
        %v625 = vmul.f32 %v603, %v535
        %v626 = vmul.f32 %v605, %v535
        %v627 = vmul.f32 %v607, %v535
        %v628 = vmul.f32 %v609, %v535
        %v629 = vmul.f32 %v611, %v535
        %v630 = vmul.f32 %v613, %v535
        %v631 = vmul.f32 %v615, %v535
        %v632 = vadd.f32 %v616, 1e-05
        %v633 = vadd.f32 %v617, 1e-05
        %v634 = vadd.f32 %v618, 1e-05
        %v635 = vadd.f32 %v619, 1e-05
        %v636 = vadd.f32 %v620, 1e-05
        %v637 = vadd.f32 %v621, 1e-05
        %v638 = vadd.f32 %v622, 1e-05
        %v639 = vadd.f32 %v623, 1e-05
        %v640 = vadd.f32 %v624, 1e-05
        %v641 = vadd.f32 %v625, 1e-05
        %v642 = vadd.f32 %v626, 1e-05
        %v643 = vadd.f32 %v627, 1e-05
        %v644 = vadd.f32 %v628, 1e-05
        %v645 = vadd.f32 %v629, 1e-05
        %v646 = vadd.f32 %v630, 1e-05
        %v647 = vadd.f32 %v631, 1e-05
        %v648 = vrsqrt.pop %v632
        %v649 = vmul.f32 %v648, %v632
        %v650 = vmul.f32 %v649, %v648
        %v651 = vmul.f32 0.5, %v650
        %v652 = vsub.f32 1.5, %v651
        %v653 = vmul.f32 %v648, %v652
        %vm654 = vweird.f32 %v632
        %vm655 = vweird.f32 %v648
        %vm656 = vmor %vm654, %vm655
        %v657 = vsel %vm656, %v648, %v653
        %v658 = vrsqrt.pop %v633
        %v659 = vmul.f32 %v658, %v633
        %v660 = vmul.f32 %v659, %v658
        %v661 = vmul.f32 0.5, %v660
        %v662 = vsub.f32 1.5, %v661
        %v663 = vmul.f32 %v658, %v662
        %vm664 = vweird.f32 %v633
        %vm665 = vweird.f32 %v658
        %vm666 = vmor %vm664, %vm665
        %v667 = vsel %vm666, %v658, %v663
        %v668 = vrsqrt.pop %v634
        %v669 = vmul.f32 %v668, %v634
        %v670 = vmul.f32 %v669, %v668
        %v671 = vmul.f32 0.5, %v670
        %v672 = vsub.f32 1.5, %v671
        %v673 = vmul.f32 %v668, %v672
        %vm674 = vweird.f32 %v634
        %vm675 = vweird.f32 %v668
        %vm676 = vmor %vm674, %vm675
        %v677 = vsel %vm676, %v668, %v673
        %v678 = vrsqrt.pop %v635
        %v679 = vmul.f32 %v678, %v635
        %v680 = vmul.f32 %v679, %v678
        %v681 = vmul.f32 0.5, %v680
        %v682 = vsub.f32 1.5, %v681
        %v683 = vmul.f32 %v678, %v682
        %vm684 = vweird.f32 %v635
        %vm685 = vweird.f32 %v678
        %vm686 = vmor %vm684, %vm685
        %v687 = vsel %vm686, %v678, %v683
        %v688 = vrsqrt.pop %v636
        %v689 = vmul.f32 %v688, %v636
        %v690 = vmul.f32 %v689, %v688
        %v691 = vmul.f32 0.5, %v690
        %v692 = vsub.f32 1.5, %v691
        %v693 = vmul.f32 %v688, %v692
        %vm694 = vweird.f32 %v636
        %vm695 = vweird.f32 %v688
        %vm696 = vmor %vm694, %vm695
        %v697 = vsel %vm696, %v688, %v693
        %v698 = vrsqrt.pop %v637
        %v699 = vmul.f32 %v698, %v637
        %v700 = vmul.f32 %v699, %v698
        %v701 = vmul.f32 0.5, %v700
        %v702 = vsub.f32 1.5, %v701
        %v703 = vmul.f32 %v698, %v702
        %vm704 = vweird.f32 %v637
        %vm705 = vweird.f32 %v698
        %vm706 = vmor %vm704, %vm705
        %v707 = vsel %vm706, %v698, %v703
        %v708 = vrsqrt.pop %v638
        %v709 = vmul.f32 %v708, %v638
        %v710 = vmul.f32 %v709, %v708
        %v711 = vmul.f32 0.5, %v710
        %v712 = vsub.f32 1.5, %v711
        %v713 = vmul.f32 %v708, %v712
        %vm714 = vweird.f32 %v638
        %vm715 = vweird.f32 %v708
        %vm716 = vmor %vm714, %vm715
        %v717 = vsel %vm716, %v708, %v713
        %v718 = vrsqrt.pop %v639
        %v719 = vmul.f32 %v718, %v639
        %v720 = vmul.f32 %v719, %v718
        %v721 = vmul.f32 0.5, %v720
        %v722 = vsub.f32 1.5, %v721
        %v723 = vmul.f32 %v718, %v722
        %vm724 = vweird.f32 %v639
        %vm725 = vweird.f32 %v718
        %vm726 = vmor %vm724, %vm725
        %v727 = vsel %vm726, %v718, %v723
        %v728 = vrsqrt.pop %v640
        %v729 = vmul.f32 %v728, %v640
        %v730 = vmul.f32 %v729, %v728
        %v731 = vmul.f32 0.5, %v730
        %v732 = vsub.f32 1.5, %v731
        %v733 = vmul.f32 %v728, %v732
        %vm734 = vweird.f32 %v640
        %vm735 = vweird.f32 %v728
        %vm736 = vmor %vm734, %vm735
        %v737 = vsel %vm736, %v728, %v733
        %v738 = vrsqrt.pop %v641
        %v739 = vmul.f32 %v738, %v641
        %v740 = vmul.f32 %v739, %v738
        %v741 = vmul.f32 0.5, %v740
        %v742 = vsub.f32 1.5, %v741
        %v743 = vmul.f32 %v738, %v742
        %vm744 = vweird.f32 %v641
        %vm745 = vweird.f32 %v738
        %vm746 = vmor %vm744, %vm745
        %v747 = vsel %vm746, %v738, %v743
        %v748 = vrsqrt.pop %v642
        %v749 = vmul.f32 %v748, %v642
        %v750 = vmul.f32 %v749, %v748
        %v751 = vmul.f32 0.5, %v750
        %v752 = vsub.f32 1.5, %v751
        %v753 = vmul.f32 %v748, %v752
        %vm754 = vweird.f32 %v642
        %vm755 = vweird.f32 %v748
        %vm756 = vmor %vm754, %vm755
        %v757 = vsel %vm756, %v748, %v753
        %v758 = vrsqrt.pop %v643
        %v759 = vmul.f32 %v758, %v643
        %v760 = vmul.f32 %v759, %v758
        %v761 = vmul.f32 0.5, %v760
        %v762 = vsub.f32 1.5, %v761
        %v763 = vmul.f32 %v758, %v762
        %vm764 = vweird.f32 %v643
        %vm765 = vweird.f32 %v758
        %vm766 = vmor %vm764, %vm765
        %v767 = vsel %vm766, %v758, %v763
        %v768 = vrsqrt.pop %v644
        %v769 = vmul.f32 %v768, %v644
        %v770 = vmul.f32 %v769, %v768
        %v771 = vmul.f32 0.5, %v770
        %v772 = vsub.f32 1.5, %v771
        %v773 = vmul.f32 %v768, %v772
        %vm774 = vweird.f32 %v644
        %vm775 = vweird.f32 %v768
        %vm776 = vmor %vm774, %vm775
        %v777 = vsel %vm776, %v768, %v773
        %v778 = vrsqrt.pop %v645
        %v779 = vmul.f32 %v778, %v645
        %v780 = vmul.f32 %v779, %v778
        %v781 = vmul.f32 0.5, %v780
        %v782 = vsub.f32 1.5, %v781
        %v783 = vmul.f32 %v778, %v782
        %vm784 = vweird.f32 %v645
        %vm785 = vweird.f32 %v778
        %vm786 = vmor %vm784, %vm785
        %v787 = vsel %vm786, %v778, %v783
        %v788 = vrsqrt.pop %v646
        %v789 = vmul.f32 %v788, %v646
        %v790 = vmul.f32 %v789, %v788
        %v791 = vmul.f32 0.5, %v790
        %v792 = vsub.f32 1.5, %v791
        %v793 = vmul.f32 %v788, %v792
        %vm794 = vweird.f32 %v646
        %vm795 = vweird.f32 %v788
        %vm796 = vmor %vm794, %vm795
        %v797 = vsel %vm796, %v788, %v793
        %v798 = vrsqrt.pop %v647
        %v799 = vmul.f32 %v798, %v647
        %v800 = vmul.f32 %v799, %v798
        %v801 = vmul.f32 0.5, %v800
        %v802 = vsub.f32 1.5, %v801
        %v803 = vmul.f32 %v798, %v802
        %vm804 = vweird.f32 %v647
        %vm805 = vweird.f32 %v798
        %vm806 = vmor %vm804, %vm805
        %v807 = vsel %vm806, %v798, %v803
        %v808 = vmul.f32 %v552, %v657
        %v809 = vmul.f32 %v553, %v667
        %v810 = vmul.f32 %v554, %v677
        %v811 = vmul.f32 %v555, %v687
        %v812 = vmul.f32 %v556, %v697
        %v813 = vmul.f32 %v557, %v707
        %v814 = vmul.f32 %v558, %v717
        %v815 = vmul.f32 %v559, %v727
        %v816 = vmul.f32 %v560, %v737
        %v817 = vmul.f32 %v561, %v747
        %v818 = vmul.f32 %v562, %v757
        %v819 = vmul.f32 %v563, %v767
        %v820 = vmul.f32 %v564, %v777
        %v821 = vmul.f32 %v565, %v787
        %v822 = vmul.f32 %v566, %v797
        %v823 = vmul.f32 %v567, %v807
        %v825 = vperm.slane %v496, 0
        %v827 = vadd.f32 %v808, %v825
        %v828 = vadd.f32 %v809, %v825
        %v829 = vadd.f32 %v810, %v825
        %v830 = vadd.f32 %v811, %v825
        %v831 = vadd.f32 %v812, %v825
        %v832 = vadd.f32 %v813, %v825
        %v833 = vadd.f32 %v814, %v825
        %v834 = vadd.f32 %v815, %v825
        %v835 = vadd.f32 %v816, %v825
        %v836 = vadd.f32 %v817, %v825
        %v837 = vadd.f32 %v818, %v825
        %v838 = vadd.f32 %v819, %v825
        %v839 = vadd.f32 %v820, %v825
        %v840 = vadd.f32 %v821, %v825
        %v841 = vadd.f32 %v822, %v825
        %v842 = vadd.f32 %v823, %v825
        %v844 = vperm.slane %v495, 0
        %v846 = vmul.f32 %v827, %v844
        %v847 = vmul.f32 %v828, %v844
        %v848 = vmul.f32 %v829, %v844
        %v849 = vmul.f32 %v830, %v844
        %v850 = vmul.f32 %v831, %v844
        %v851 = vmul.f32 %v832, %v844
        %v852 = vmul.f32 %v833, %v844
        %v853 = vmul.f32 %v834, %v844
        %v854 = vmul.f32 %v835, %v844
        %v855 = vmul.f32 %v836, %v844
        %v856 = vmul.f32 %v837, %v844
        %v857 = vmul.f32 %v838, %v844
        %v858 = vmul.f32 %v839, %v844
        %v859 = vmul.f32 %v840, %v844
        %v860 = vmul.f32 %v841, %v844
        %v861 = vmul.f32 %v842, %v844
        %v862 = vpack.c.bf16 %v847, %v846
        %v863 = vpack.c.bf16 %v849, %v848
        %v864 = vpack.c.bf16 %v851, %v850
        %v865 = vpack.c.bf16 %v853, %v852
        %v866 = vpack.c.bf16 %v855, %v854
        %v867 = vpack.c.bf16 %v857, %v856
        %v868 = vpack.c.bf16 %v859, %v858
        %v869 = vpack.c.bf16 %v861, %v860
        %v870 = vld [vmem:[#allocation6] sm:$0xf]
        %v871 = vld [vmem:[#allocation6 + $0x4] sm:$0xf]
        %v872 = vld [vmem:[#allocation6 + $0x8] sm:$0xf]
        %v873 = vld [vmem:[#allocation6 + $0xc] sm:$0xf]
        %v874 = vld [vmem:[#allocation6 + $0x10] sm:$0xf]
        %v875 = vld [vmem:[#allocation6 + $0x14] sm:$0xf]
        %v876 = vld [vmem:[#allocation6 + $0x18] sm:$0xf]
        %v877 = vld [vmem:[#allocation6 + $0x1c] sm:$0xf]
        %v878 = vld [vmem:[#allocation6 + $0x20] sm:$0xf]
        %v879 = vld [vmem:[#allocation6 + $0x24] sm:$0xf]
        %v880 = vld [vmem:[#allocation6 + $0x28] sm:$0xf]
        %v881 = vld [vmem:[#allocation6 + $0x2c] sm:$0xf]
        %v882 = vld [vmem:[#allocation6 + $0x30] sm:$0xf]
        %v883 = vld [vmem:[#allocation6 + $0x34] sm:$0xf]
        %v884 = vld [vmem:[#allocation6 + $0x38] sm:$0xf]
        %v885 = vld [vmem:[#allocation6 + $0x3c] sm:$0xf]
        %v886 = vld [vmem:[%s4] sm:$0x1]
        %v888 = vperm.slane %v886, 0
        %v906 = vunpack.c.l.b16 %v870
        %v907 = vunpack.c.l.b16 %v871
        %v908 = vunpack.c.l.b16 %v872
        %v909 = vunpack.c.l.b16 %v873
        %v910 = vunpack.c.l.b16 %v874
        %v911 = vunpack.c.l.b16 %v875
        %v912 = vunpack.c.l.b16 %v876
        %v913 = vunpack.c.l.b16 %v877
        %v914 = vunpack.c.l.b16 %v878
        %v915 = vunpack.c.l.b16 %v879
        %v916 = vunpack.c.l.b16 %v880
        %v917 = vunpack.c.l.b16 %v881
        %v918 = vunpack.c.l.b16 %v882
        %v919 = vunpack.c.l.b16 %v883
        %v920 = vunpack.c.l.b16 %v884
        %v921 = vunpack.c.l.b16 %v885
        %v922 = vpack.c.b16 %v907, %v906
        %v923 = vpack.c.b16 %v909, %v908
        %v924 = vpack.c.b16 %v911, %v910
        %v925 = vpack.c.b16 %v913, %v912
        %v926 = vpack.c.b16 %v915, %v914
        %v927 = vpack.c.b16 %v917, %v916
        %v928 = vpack.c.b16 %v919, %v918
        %v929 = vpack.c.b16 %v921, %v920
        %938 = vmatpush.bf16.msra.mxu0 %v929
        %939 = vmatpush.bf16.msra.mxu0 %v928
        %940 = vmatpush.bf16.msra.mxu0 %v927
        %941 = vmatpush.bf16.msra.mxu0 %v926
        %942 = vmatpush.bf16.msra.mxu0 %v925
        %943 = vmatpush.bf16.msra.mxu0 %v924
        %944 = vmatpush.bf16.msra.mxu0 %v923
        %945 = vmatpush.bf16.msra.mxu0 %v922
        %946 = vmatmul.bf16.gmra.mxu0 %v862
        %v947 = vpop.f32.mrf.mxu0
        %v948 = vadd.f32 %v888, %v947
        %v949 = vpop.f32.mrf.mxu0
        %v950 = vadd.f32 %v888, %v949
        %951 = vmatmul.bf16.gmra.mxu0 %v863
        %v952 = vpop.f32.mrf.mxu0
        %v953 = vadd.f32 %v888, %v952
        %v954 = vpop.f32.mrf.mxu0
        %v955 = vadd.f32 %v888, %v954
        %956 = vmatmul.bf16.gmra.mxu0 %v864
        %v957 = vpop.f32.mrf.mxu0
        %v958 = vadd.f32 %v888, %v957
        %v959 = vpop.f32.mrf.mxu0
        %v960 = vadd.f32 %v888, %v959
        %961 = vmatmul.bf16.gmra.mxu0 %v865
        %v962 = vpop.f32.mrf.mxu0
        %v963 = vadd.f32 %v888, %v962
        %v964 = vpop.f32.mrf.mxu0
        %v965 = vadd.f32 %v888, %v964
        %966 = vmatmul.bf16.gmra.mxu0 %v866
        %v967 = vpop.f32.mrf.mxu0
        %v968 = vadd.f32 %v888, %v967
        %v969 = vpop.f32.mrf.mxu0
        %v970 = vadd.f32 %v888, %v969
        %971 = vmatmul.bf16.gmra.mxu0 %v867
        %v972 = vpop.f32.mrf.mxu0
        %v973 = vadd.f32 %v888, %v972
        %v974 = vpop.f32.mrf.mxu0
        %v975 = vadd.f32 %v888, %v974
        %976 = vmatmul.bf16.gmra.mxu0 %v868
        %v977 = vpop.f32.mrf.mxu0
        %v978 = vadd.f32 %v888, %v977
        %v979 = vpop.f32.mrf.mxu0
        %v980 = vadd.f32 %v888, %v979
        %981 = vmatmul.bf16.gmra.mxu0 %v869
        %v982 = vpop.f32.mrf.mxu0
        %v983 = vadd.f32 %v888, %v982
        %v984 = vpop.f32.mrf.mxu0
        %v985 = vadd.f32 %v888, %v984
        %986 = vdwg.mxu0
        %v987 = vpack.c.bf16 %v948, %v948
        %v988 = vpack.c.bf16 %v950, %v950
        %v989 = vpack.c.bf16 %v953, %v953
        %v990 = vpack.c.bf16 %v955, %v955
        %v991 = vpack.c.bf16 %v958, %v958
        %v992 = vpack.c.bf16 %v960, %v960
        %v993 = vpack.c.bf16 %v963, %v963
        %v994 = vpack.c.bf16 %v965, %v965
        %v995 = vpack.c.bf16 %v968, %v968
        %v996 = vpack.c.bf16 %v970, %v970
        %v997 = vpack.c.bf16 %v973, %v973
        %v998 = vpack.c.bf16 %v975, %v975
        %v999 = vpack.c.bf16 %v978, %v978
        %v1000 = vpack.c.bf16 %v980, %v980
        %v1001 = vpack.c.bf16 %v983, %v983
        %v1002 = vpack.c.bf16 %v985, %v985
        %v1003 = vld [vmem:[#allocation7] sm:$0xf]
        %v1004 = vld [vmem:[#allocation7 + $0x4] sm:$0xf]
        %v1005 = vld [vmem:[#allocation7 + $0x8] sm:$0xf]
        %v1006 = vld [vmem:[#allocation7 + $0xc] sm:$0xf]
        %v1007 = vld [vmem:[#allocation7 + $0x10] sm:$0xf]
        %v1008 = vld [vmem:[#allocation7 + $0x14] sm:$0xf]
        %v1009 = vld [vmem:[#allocation7 + $0x18] sm:$0xf]
        %v1010 = vld [vmem:[#allocation7 + $0x1c] sm:$0xf]
        %v1011 = vld [vmem:[#allocation7 + $0x20] sm:$0xf]
        %v1012 = vld [vmem:[#allocation7 + $0x24] sm:$0xf]
        %v1013 = vld [vmem:[#allocation7 + $0x28] sm:$0xf]
        %v1014 = vld [vmem:[#allocation7 + $0x2c] sm:$0xf]
        %v1015 = vld [vmem:[#allocation7 + $0x30] sm:$0xf]
        %v1016 = vld [vmem:[#allocation7 + $0x34] sm:$0xf]
        %v1017 = vld [vmem:[#allocation7 + $0x38] sm:$0xf]
        %v1018 = vld [vmem:[#allocation7 + $0x3c] sm:$0xf]
        %v1035 = vunpack.c.l.b16 %v1003
        %v1036 = vunpack.c.l.b16 %v1004
        %v1037 = vunpack.c.l.b16 %v1005
        %v1038 = vunpack.c.l.b16 %v1006
        %v1039 = vunpack.c.l.b16 %v1007
        %v1040 = vunpack.c.l.b16 %v1008
        %v1041 = vunpack.c.l.b16 %v1009
        %v1042 = vunpack.c.l.b16 %v1010
        %v1043 = vunpack.c.l.b16 %v1011
        %v1044 = vunpack.c.l.b16 %v1012
        %v1045 = vunpack.c.l.b16 %v1013
        %v1046 = vunpack.c.l.b16 %v1014
        %v1047 = vunpack.c.l.b16 %v1015
        %v1048 = vunpack.c.l.b16 %v1016
        %v1049 = vunpack.c.l.b16 %v1017
        %v1050 = vunpack.c.l.b16 %v1018
        %v1051 = vpack.c.b16 %v1036, %v1035
        %v1052 = vpack.c.b16 %v1038, %v1037
        %v1053 = vpack.c.b16 %v1040, %v1039
        %v1054 = vpack.c.b16 %v1042, %v1041
        %v1055 = vpack.c.b16 %v1044, %v1043
        %v1056 = vpack.c.b16 %v1046, %v1045
        %v1057 = vpack.c.b16 %v1048, %v1047
        %v1058 = vpack.c.b16 %v1050, %v1049
        %1067 = vmatpush.bf16.msra.mxu0 %v1058
        %1068 = vmatpush.bf16.msra.mxu0 %v1057
        %1069 = vmatpush.bf16.msra.mxu0 %v1056
        %1070 = vmatpush.bf16.msra.mxu0 %v1055
        %1071 = vmatpush.bf16.msra.mxu0 %v1054
        %1072 = vmatpush.bf16.msra.mxu0 %v1053
        %1073 = vmatpush.bf16.msra.mxu0 %v1052
        %1074 = vmatpush.bf16.msra.mxu0 %v1051
        %1075 = vmatmul.bf16.gmra.mxu0 %v862
        %v1076 = vpop.f32.mrf.mxu0
        %v1077 = vadd.f32 0.0, %v1076
        %v1078 = vpop.f32.mrf.mxu0
        %v1079 = vadd.f32 0.0, %v1078
        %1080 = vmatmul.bf16.gmra.mxu0 %v863
        %v1081 = vpop.f32.mrf.mxu0
        %v1082 = vadd.f32 0.0, %v1081
        %v1083 = vpop.f32.mrf.mxu0
        %v1084 = vadd.f32 0.0, %v1083
        %1085 = vmatmul.bf16.gmra.mxu0 %v864
        %v1086 = vpop.f32.mrf.mxu0
        %v1087 = vadd.f32 0.0, %v1086
        %v1088 = vpop.f32.mrf.mxu0
        %v1089 = vadd.f32 0.0, %v1088
        %1090 = vmatmul.bf16.gmra.mxu0 %v865
        %v1091 = vpop.f32.mrf.mxu0
        %v1092 = vadd.f32 0.0, %v1091
        %v1093 = vpop.f32.mrf.mxu0
        %v1094 = vadd.f32 0.0, %v1093
        %1095 = vmatmul.bf16.gmra.mxu0 %v866
        %v1096 = vpop.f32.mrf.mxu0
        %v1097 = vadd.f32 0.0, %v1096
        %v1098 = vpop.f32.mrf.mxu0
        %v1099 = vadd.f32 0.0, %v1098
        %1100 = vmatmul.bf16.gmra.mxu0 %v867
        %v1101 = vpop.f32.mrf.mxu0
        %v1102 = vadd.f32 0.0, %v1101
        %v1103 = vpop.f32.mrf.mxu0
        %v1104 = vadd.f32 0.0, %v1103
        %1105 = vmatmul.bf16.gmra.mxu0 %v868
        %v1106 = vpop.f32.mrf.mxu0
        %v1107 = vadd.f32 0.0, %v1106
        %v1108 = vpop.f32.mrf.mxu0
        %v1109 = vadd.f32 0.0, %v1108
        %1110 = vmatmul.bf16.gmra.mxu0 %v869
        %v1111 = vpop.f32.mrf.mxu0
        %v1112 = vadd.f32 0.0, %v1111
        %v1113 = vpop.f32.mrf.mxu0
        %v1114 = vadd.f32 0.0, %v1113
        %1115 = vdwg.mxu0
        %v1116 = vpack.c.bf16 %v1077, %v1077
        %v1117 = vpack.c.bf16 %v1079, %v1079
        %v1118 = vpack.c.bf16 %v1082, %v1082
        %v1119 = vpack.c.bf16 %v1084, %v1084
        %v1120 = vpack.c.bf16 %v1087, %v1087
        %v1121 = vpack.c.bf16 %v1089, %v1089
        %v1122 = vpack.c.bf16 %v1092, %v1092
        %v1123 = vpack.c.bf16 %v1094, %v1094
        %v1124 = vpack.c.bf16 %v1097, %v1097
        %v1125 = vpack.c.bf16 %v1099, %v1099
        %v1126 = vpack.c.bf16 %v1102, %v1102
        %v1127 = vpack.c.bf16 %v1104, %v1104
        %v1128 = vpack.c.bf16 %v1107, %v1107
        %v1129 = vpack.c.bf16 %v1109, %v1109
        %v1130 = vpack.c.bf16 %v1112, %v1112
        %v1131 = vpack.c.bf16 %v1114, %v1114
        %v1132 = vld [vmem:[#allocation9] sm:$0xf]
        %v1133 = vld [vmem:[#allocation9 + $0x4] sm:$0xf]
        %v1134 = vld [vmem:[#allocation9 + $0x8] sm:$0xf]
        %v1135 = vld [vmem:[#allocation9 + $0xc] sm:$0xf]
        %v1136 = vld [vmem:[#allocation9 + $0x10] sm:$0xf]
        %v1137 = vld [vmem:[#allocation9 + $0x14] sm:$0xf]
        %v1138 = vld [vmem:[#allocation9 + $0x18] sm:$0xf]
        %v1139 = vld [vmem:[#allocation9 + $0x1c] sm:$0xf]
        %v1140 = vld [vmem:[#allocation9 + $0x20] sm:$0xf]
        %v1141 = vld [vmem:[#allocation9 + $0x24] sm:$0xf]
        %v1142 = vld [vmem:[#allocation9 + $0x28] sm:$0xf]
        %v1143 = vld [vmem:[#allocation9 + $0x2c] sm:$0xf]
        %v1144 = vld [vmem:[#allocation9 + $0x30] sm:$0xf]
        %v1145 = vld [vmem:[#allocation9 + $0x34] sm:$0xf]
        %v1146 = vld [vmem:[#allocation9 + $0x38] sm:$0xf]
        %v1147 = vld [vmem:[#allocation9 + $0x3c] sm:$0xf]
        %v1148 = vld [vmem:[%s7] sm:$0x1]
        %v1150 = vperm.slane %v1148, 0
        %v1168 = vunpack.c.l.b16 %v1132
        %v1169 = vunpack.c.l.b16 %v1133
        %v1170 = vunpack.c.l.b16 %v1134
        %v1171 = vunpack.c.l.b16 %v1135
        %v1172 = vunpack.c.l.b16 %v1136
        %v1173 = vunpack.c.l.b16 %v1137
        %v1174 = vunpack.c.l.b16 %v1138
        %v1175 = vunpack.c.l.b16 %v1139
        %v1176 = vunpack.c.l.b16 %v1140
        %v1177 = vunpack.c.l.b16 %v1141
        %v1178 = vunpack.c.l.b16 %v1142
        %v1179 = vunpack.c.l.b16 %v1143
        %v1180 = vunpack.c.l.b16 %v1144
        %v1181 = vunpack.c.l.b16 %v1145
        %v1182 = vunpack.c.l.b16 %v1146
        %v1183 = vunpack.c.l.b16 %v1147
        %v1184 = vpack.c.b16 %v1169, %v1168
        %v1185 = vpack.c.b16 %v1171, %v1170
        %v1186 = vpack.c.b16 %v1173, %v1172
        %v1187 = vpack.c.b16 %v1175, %v1174
        %v1188 = vpack.c.b16 %v1177, %v1176
        %v1189 = vpack.c.b16 %v1179, %v1178
        %v1190 = vpack.c.b16 %v1181, %v1180
        %v1191 = vpack.c.b16 %v1183, %v1182
        %1200 = vmatpush.bf16.msra.mxu0 %v1191
        %1201 = vmatpush.bf16.msra.mxu0 %v1190
        %1202 = vmatpush.bf16.msra.mxu0 %v1189
        %1203 = vmatpush.bf16.msra.mxu0 %v1188
        %1204 = vmatpush.bf16.msra.mxu0 %v1187
        %1205 = vmatpush.bf16.msra.mxu0 %v1186
        %1206 = vmatpush.bf16.msra.mxu0 %v1185
        %1207 = vmatpush.bf16.msra.mxu0 %v1184
        %1208 = vmatmul.bf16.gmra.mxu0 %v862
        %v1209 = vpop.f32.mrf.mxu0
        %v1210 = vadd.f32 %v1150, %v1209
        %v1211 = vpop.f32.mrf.mxu0
        %v1212 = vadd.f32 %v1150, %v1211
        %1213 = vmatmul.bf16.gmra.mxu0 %v863
        %v1214 = vpop.f32.mrf.mxu0
        %v1215 = vadd.f32 %v1150, %v1214
        %v1216 = vpop.f32.mrf.mxu0
        %v1217 = vadd.f32 %v1150, %v1216
        %1218 = vmatmul.bf16.gmra.mxu0 %v864
        %v1219 = vpop.f32.mrf.mxu0
        %v1220 = vadd.f32 %v1150, %v1219
        %v1221 = vpop.f32.mrf.mxu0
        %v1222 = vadd.f32 %v1150, %v1221
        %1223 = vmatmul.bf16.gmra.mxu0 %v865
        %v1224 = vpop.f32.mrf.mxu0
        %v1225 = vadd.f32 %v1150, %v1224
        %v1226 = vpop.f32.mrf.mxu0
        %v1227 = vadd.f32 %v1150, %v1226
        %1228 = vmatmul.bf16.gmra.mxu0 %v866
        %v1229 = vpop.f32.mrf.mxu0
        %v1230 = vadd.f32 %v1150, %v1229
        %v1231 = vpop.f32.mrf.mxu0
        %v1232 = vadd.f32 %v1150, %v1231
        %1233 = vmatmul.bf16.gmra.mxu0 %v867
        %v1234 = vpop.f32.mrf.mxu0
        %v1235 = vadd.f32 %v1150, %v1234
        %v1236 = vpop.f32.mrf.mxu0
        %v1237 = vadd.f32 %v1150, %v1236
        %1238 = vmatmul.bf16.gmra.mxu0 %v868
        %v1239 = vpop.f32.mrf.mxu0
        %v1240 = vadd.f32 %v1150, %v1239
        %v1241 = vpop.f32.mrf.mxu0
        %v1242 = vadd.f32 %v1150, %v1241
        %1243 = vmatmul.bf16.gmra.mxu0 %v869
        %v1244 = vpop.f32.mrf.mxu0
        %v1245 = vadd.f32 %v1150, %v1244
        %v1246 = vpop.f32.mrf.mxu0
        %v1247 = vadd.f32 %v1150, %v1246
        %1248 = vdwg.mxu0
        %v1249 = vpack.c.bf16 %v1210, %v1210
        %v1250 = vpack.c.bf16 %v1212, %v1212
        %v1251 = vpack.c.bf16 %v1215, %v1215
        %v1252 = vpack.c.bf16 %v1217, %v1217
        %v1253 = vpack.c.bf16 %v1220, %v1220
        %v1254 = vpack.c.bf16 %v1222, %v1222
        %v1255 = vpack.c.bf16 %v1225, %v1225
        %v1256 = vpack.c.bf16 %v1227, %v1227
        %v1257 = vpack.c.bf16 %v1230, %v1230
        %v1258 = vpack.c.bf16 %v1232, %v1232
        %v1259 = vpack.c.bf16 %v1235, %v1235
        %v1260 = vpack.c.bf16 %v1237, %v1237
        %v1261 = vpack.c.bf16 %v1240, %v1240
        %v1262 = vpack.c.bf16 %v1242, %v1242
        %v1263 = vpack.c.bf16 %v1245, %v1245
        %v1264 = vpack.c.bf16 %v1247, %v1247
        %vm1265 = vcmask 257024
        %1266 = vst.msk [vmem:[%s462] sm:$0xf] %vm1265, %v987
        %1267 = vst.msk [vmem:[%s462 + $0x4] sm:$0xf] %vm1265, %v988
        %1268 = vst.msk [vmem:[%s462 + $0x8] sm:$0xf] %vm1265, %v989
        %1269 = vst.msk [vmem:[%s462 + $0xc] sm:$0xf] %vm1265, %v990
        %1270 = vst.msk [vmem:[%s462 + $0x10] sm:$0xf] %vm1265, %v991
        %1271 = vst.msk [vmem:[%s462 + $0x14] sm:$0xf] %vm1265, %v992
        %1272 = vst.msk [vmem:[%s462 + $0x18] sm:$0xf] %vm1265, %v993
        %1273 = vst.msk [vmem:[%s462 + $0x1c] sm:$0xf] %vm1265, %v994
        %1274 = vst.msk [vmem:[%s462 + $0x20] sm:$0xf] %vm1265, %v995
        %1275 = vst.msk [vmem:[%s462 + $0x24] sm:$0xf] %vm1265, %v996
        %1276 = vst.msk [vmem:[%s462 + $0x28] sm:$0xf] %vm1265, %v997
        %1277 = vst.msk [vmem:[%s462 + $0x2c] sm:$0xf] %vm1265, %v998
        %1278 = vst.msk [vmem:[%s462 + $0x30] sm:$0xf] %vm1265, %v999
        %1279 = vst.msk [vmem:[%s462 + $0x34] sm:$0xf] %vm1265, %v1000
        %1280 = vst.msk [vmem:[%s462 + $0x38] sm:$0xf] %vm1265, %v1001
        %1281 = vst.msk [vmem:[%s462 + $0x3c] sm:$0xf] %vm1265, %v1002
        %1282 = vst.msk [vmem:[%s468] sm:$0xf] %vm1265, %v1116
        %1283 = vst.msk [vmem:[%s468 + $0x4] sm:$0xf] %vm1265, %v1117
        %1284 = vst.msk [vmem:[%s468 + $0x8] sm:$0xf] %vm1265, %v1118
        %1285 = vst.msk [vmem:[%s468 + $0xc] sm:$0xf] %vm1265, %v1119
        %1286 = vst.msk [vmem:[%s468 + $0x10] sm:$0xf] %vm1265, %v1120
        %1287 = vst.msk [vmem:[%s468 + $0x14] sm:$0xf] %vm1265, %v1121
        %1288 = vst.msk [vmem:[%s468 + $0x18] sm:$0xf] %vm1265, %v1122
        %1289 = vst.msk [vmem:[%s468 + $0x1c] sm:$0xf] %vm1265, %v1123
        %1290 = vst.msk [vmem:[%s468 + $0x20] sm:$0xf] %vm1265, %v1124
        %1291 = vst.msk [vmem:[%s468 + $0x24] sm:$0xf] %vm1265, %v1125
        %1292 = vst.msk [vmem:[%s468 + $0x28] sm:$0xf] %vm1265, %v1126
        %1293 = vst.msk [vmem:[%s468 + $0x2c] sm:$0xf] %vm1265, %v1127
        %1294 = vst.msk [vmem:[%s468 + $0x30] sm:$0xf] %vm1265, %v1128
        %1295 = vst.msk [vmem:[%s468 + $0x34] sm:$0xf] %vm1265, %v1129
        %1296 = vst.msk [vmem:[%s468 + $0x38] sm:$0xf] %vm1265, %v1130
        %1297 = vst.msk [vmem:[%s468 + $0x3c] sm:$0xf] %vm1265, %v1131
        %1298 = vst.msk [vmem:[%s474] sm:$0xf] %vm1265, %v1249
        %1299 = vst.msk [vmem:[%s474 + $0x4] sm:$0xf] %vm1265, %v1250
        %1300 = vst.msk [vmem:[%s474 + $0x8] sm:$0xf] %vm1265, %v1251
        %1301 = vst.msk [vmem:[%s474 + $0xc] sm:$0xf] %vm1265, %v1252
        %1302 = vst.msk [vmem:[%s474 + $0x10] sm:$0xf] %vm1265, %v1253
        %1303 = vst.msk [vmem:[%s474 + $0x14] sm:$0xf] %vm1265, %v1254
        %1304 = vst.msk [vmem:[%s474 + $0x18] sm:$0xf] %vm1265, %v1255
        %1305 = vst.msk [vmem:[%s474 + $0x1c] sm:$0xf] %vm1265, %v1256
        %1306 = vst.msk [vmem:[%s474 + $0x20] sm:$0xf] %vm1265, %v1257
        %1307 = vst.msk [vmem:[%s474 + $0x24] sm:$0xf] %vm1265, %v1258
        %1308 = vst.msk [vmem:[%s474 + $0x28] sm:$0xf] %vm1265, %v1259
        %1309 = vst.msk [vmem:[%s474 + $0x2c] sm:$0xf] %vm1265, %v1260
        %1310 = vst.msk [vmem:[%s474 + $0x30] sm:$0xf] %vm1265, %v1261
        %1311 = vst.msk [vmem:[%s474 + $0x34] sm:$0xf] %vm1265, %v1262
        %1312 = vst.msk [vmem:[%s474 + $0x38] sm:$0xf] %vm1265, %v1263
        %1313 = vst.msk [vmem:[%s474 + $0x3c] sm:$0xf] %vm1265, %v1264
        %1330 = vrot.lane.b32.xlu0 %v987, 96
        %v1331 = vpop.permute.xlu0 %1330
        %1332 = vrot.lane.b32.xlu0 %v988, 96
        %v1333 = vpop.permute.xlu0 %1332
        %1334 = vrot.lane.b32.xlu0 %v989, 96
        %v1335 = vpop.permute.xlu0 %1334
        %1336 = vrot.lane.b32.xlu0 %v990, 96
        %v1337 = vpop.permute.xlu0 %1336
        %1338 = vrot.lane.b32.xlu0 %v991, 96
        %v1339 = vpop.permute.xlu0 %1338
        %1340 = vrot.lane.b32.xlu0 %v992, 96
        %v1341 = vpop.permute.xlu0 %1340
        %1342 = vrot.lane.b32.xlu0 %v993, 96
        %v1343 = vpop.permute.xlu0 %1342
        %1344 = vrot.lane.b32.xlu0 %v994, 96
        %v1345 = vpop.permute.xlu0 %1344
        %1346 = vrot.lane.b32.xlu0 %v995, 96
        %v1347 = vpop.permute.xlu0 %1346
        %1348 = vrot.lane.b32.xlu0 %v996, 96
        %v1349 = vpop.permute.xlu0 %1348
        %1350 = vrot.lane.b32.xlu0 %v997, 96
        %v1351 = vpop.permute.xlu0 %1350
        %1352 = vrot.lane.b32.xlu0 %v998, 96
        %v1353 = vpop.permute.xlu0 %1352
        %1354 = vrot.lane.b32.xlu0 %v999, 96
        %v1355 = vpop.permute.xlu0 %1354
        %1356 = vrot.lane.b32.xlu0 %v1000, 96
        %v1357 = vpop.permute.xlu0 %1356
        %1358 = vrot.lane.b32.xlu0 %v1001, 96
        %v1359 = vpop.permute.xlu0 %1358
        %1360 = vrot.lane.b32.xlu0 %v1002, 96
        %v1361 = vpop.permute.xlu0 %1360
        %s1378 = scalar_lea.vmem %s462, 64 [#allocation10]
        %1379 = vst.msk [vmem:[%s1378] sm:$0xf] %vm1265, %v1331
        %1380 = vst.msk [vmem:[%s1378 + $0x4] sm:$0xf] %vm1265, %v1333
        %1381 = vst.msk [vmem:[%s1378 + $0x8] sm:$0xf] %vm1265, %v1335
        %1382 = vst.msk [vmem:[%s1378 + $0xc] sm:$0xf] %vm1265, %v1337
        %1383 = vst.msk [vmem:[%s1378 + $0x10] sm:$0xf] %vm1265, %v1339
        %1384 = vst.msk [vmem:[%s1378 + $0x14] sm:$0xf] %vm1265, %v1341
        %1385 = vst.msk [vmem:[%s1378 + $0x18] sm:$0xf] %vm1265, %v1343
        %1386 = vst.msk [vmem:[%s1378 + $0x1c] sm:$0xf] %vm1265, %v1345
        %1387 = vst.msk [vmem:[%s1378 + $0x20] sm:$0xf] %vm1265, %v1347
        %1388 = vst.msk [vmem:[%s1378 + $0x24] sm:$0xf] %vm1265, %v1349
        %1389 = vst.msk [vmem:[%s1378 + $0x28] sm:$0xf] %vm1265, %v1351
        %1390 = vst.msk [vmem:[%s1378 + $0x2c] sm:$0xf] %vm1265, %v1353
        %1391 = vst.msk [vmem:[%s1378 + $0x30] sm:$0xf] %vm1265, %v1355
        %1392 = vst.msk [vmem:[%s1378 + $0x34] sm:$0xf] %vm1265, %v1357
        %1393 = vst.msk [vmem:[%s1378 + $0x38] sm:$0xf] %vm1265, %v1359
        %1394 = vst.msk [vmem:[%s1378 + $0x3c] sm:$0xf] %vm1265, %v1361
        %1411 = vrot.lane.b32.xlu0 %v1116, 96
        %v1412 = vpop.permute.xlu0 %1411
        %1413 = vrot.lane.b32.xlu0 %v1117, 96
        %v1414 = vpop.permute.xlu0 %1413
        %1415 = vrot.lane.b32.xlu0 %v1118, 96
        %v1416 = vpop.permute.xlu0 %1415
        %1417 = vrot.lane.b32.xlu0 %v1119, 96
        %v1418 = vpop.permute.xlu0 %1417
        %1419 = vrot.lane.b32.xlu0 %v1120, 96
        %v1420 = vpop.permute.xlu0 %1419
        %1421 = vrot.lane.b32.xlu0 %v1121, 96
        %v1422 = vpop.permute.xlu0 %1421
        %1423 = vrot.lane.b32.xlu0 %v1122, 96
        %v1424 = vpop.permute.xlu0 %1423
        %1425 = vrot.lane.b32.xlu0 %v1123, 96
        %v1426 = vpop.permute.xlu0 %1425
        %1427 = vrot.lane.b32.xlu0 %v1124, 96
        %v1428 = vpop.permute.xlu0 %1427
        %1429 = vrot.lane.b32.xlu0 %v1125, 96
        %v1430 = vpop.permute.xlu0 %1429
        %1431 = vrot.lane.b32.xlu0 %v1126, 96
        %v1432 = vpop.permute.xlu0 %1431
        %1433 = vrot.lane.b32.xlu0 %v1127, 96
        %v1434 = vpop.permute.xlu0 %1433
        %1435 = vrot.lane.b32.xlu0 %v1128, 96
        %v1436 = vpop.permute.xlu0 %1435
        %1437 = vrot.lane.b32.xlu0 %v1129, 96
        %v1438 = vpop.permute.xlu0 %1437
        %1439 = vrot.lane.b32.xlu0 %v1130, 96
        %v1440 = vpop.permute.xlu0 %1439
        %1441 = vrot.lane.b32.xlu0 %v1131, 96
        %v1442 = vpop.permute.xlu0 %1441
        %s1459 = scalar_lea.vmem %s468, 64 [#allocation11]
        %1460 = vst.msk [vmem:[%s1459] sm:$0xf] %vm1265, %v1412
        %1461 = vst.msk [vmem:[%s1459 + $0x4] sm:$0xf] %vm1265, %v1414
        %1462 = vst.msk [vmem:[%s1459 + $0x8] sm:$0xf] %vm1265, %v1416
        %1463 = vst.msk [vmem:[%s1459 + $0xc] sm:$0xf] %vm1265, %v1418
        %1464 = vst.msk [vmem:[%s1459 + $0x10] sm:$0xf] %vm1265, %v1420
        %1465 = vst.msk [vmem:[%s1459 + $0x14] sm:$0xf] %vm1265, %v1422
        %1466 = vst.msk [vmem:[%s1459 + $0x18] sm:$0xf] %vm1265, %v1424
        %1467 = vst.msk [vmem:[%s1459 + $0x1c] sm:$0xf] %vm1265, %v1426
        %1468 = vst.msk [vmem:[%s1459 + $0x20] sm:$0xf] %vm1265, %v1428
        %1469 = vst.msk [vmem:[%s1459 + $0x24] sm:$0xf] %vm1265, %v1430
        %1470 = vst.msk [vmem:[%s1459 + $0x28] sm:$0xf] %vm1265, %v1432
        %1471 = vst.msk [vmem:[%s1459 + $0x2c] sm:$0xf] %vm1265, %v1434
        %1472 = vst.msk [vmem:[%s1459 + $0x30] sm:$0xf] %vm1265, %v1436
        %1473 = vst.msk [vmem:[%s1459 + $0x34] sm:$0xf] %vm1265, %v1438
        %1474 = vst.msk [vmem:[%s1459 + $0x38] sm:$0xf] %vm1265, %v1440
        %1475 = vst.msk [vmem:[%s1459 + $0x3c] sm:$0xf] %vm1265, %v1442
        %1492 = vrot.lane.b32.xlu0 %v1249, 96
        %v1493 = vpop.permute.xlu0 %1492
        %1494 = vrot.lane.b32.xlu0 %v1250, 96
        %v1495 = vpop.permute.xlu0 %1494
        %1496 = vrot.lane.b32.xlu0 %v1251, 96
        %v1497 = vpop.permute.xlu0 %1496
        %1498 = vrot.lane.b32.xlu0 %v1252, 96
        %v1499 = vpop.permute.xlu0 %1498
        %1500 = vrot.lane.b32.xlu0 %v1253, 96
        %v1501 = vpop.permute.xlu0 %1500
        %1502 = vrot.lane.b32.xlu0 %v1254, 96
        %v1503 = vpop.permute.xlu0 %1502
        %1504 = vrot.lane.b32.xlu0 %v1255, 96
        %v1505 = vpop.permute.xlu0 %1504
        %1506 = vrot.lane.b32.xlu0 %v1256, 96
        %v1507 = vpop.permute.xlu0 %1506
        %1508 = vrot.lane.b32.xlu0 %v1257, 96
        %v1509 = vpop.permute.xlu0 %1508
        %1510 = vrot.lane.b32.xlu0 %v1258, 96
        %v1511 = vpop.permute.xlu0 %1510
        %1512 = vrot.lane.b32.xlu0 %v1259, 96
        %v1513 = vpop.permute.xlu0 %1512
        %1514 = vrot.lane.b32.xlu0 %v1260, 96
        %v1515 = vpop.permute.xlu0 %1514
        %1516 = vrot.lane.b32.xlu0 %v1261, 96
        %v1517 = vpop.permute.xlu0 %1516
        %1518 = vrot.lane.b32.xlu0 %v1262, 96
        %v1519 = vpop.permute.xlu0 %1518
        %1520 = vrot.lane.b32.xlu0 %v1263, 96
        %v1521 = vpop.permute.xlu0 %1520
        %1522 = vrot.lane.b32.xlu0 %v1264, 96
        %v1523 = vpop.permute.xlu0 %1522
        %s1540 = scalar_lea.vmem %s474, 64 [#allocation12]
        %1541 = vst.msk [vmem:[%s1540] sm:$0xf] %vm1265, %v1493
        %1542 = vst.msk [vmem:[%s1540 + $0x4] sm:$0xf] %vm1265, %v1495
        %1543 = vst.msk [vmem:[%s1540 + $0x8] sm:$0xf] %vm1265, %v1497
        %1544 = vst.msk [vmem:[%s1540 + $0xc] sm:$0xf] %vm1265, %v1499
        %1545 = vst.msk [vmem:[%s1540 + $0x10] sm:$0xf] %vm1265, %v1501
        %1546 = vst.msk [vmem:[%s1540 + $0x14] sm:$0xf] %vm1265, %v1503
        %1547 = vst.msk [vmem:[%s1540 + $0x18] sm:$0xf] %vm1265, %v1505
        %1548 = vst.msk [vmem:[%s1540 + $0x1c] sm:$0xf] %vm1265, %v1507
        %1549 = vst.msk [vmem:[%s1540 + $0x20] sm:$0xf] %vm1265, %v1509
        %1550 = vst.msk [vmem:[%s1540 + $0x24] sm:$0xf] %vm1265, %v1511
        %1551 = vst.msk [vmem:[%s1540 + $0x28] sm:$0xf] %vm1265, %v1513
        %1552 = vst.msk [vmem:[%s1540 + $0x2c] sm:$0xf] %vm1265, %v1515
        %1553 = vst.msk [vmem:[%s1540 + $0x30] sm:$0xf] %vm1265, %v1517
        %1554 = vst.msk [vmem:[%s1540 + $0x34] sm:$0xf] %vm1265, %v1519
        %1555 = vst.msk [vmem:[%s1540 + $0x38] sm:$0xf] %vm1265, %v1521
        %1556 = vst.msk [vmem:[%s1540 + $0x3c] sm:$0xf] %vm1265, %v1523
        %1557 = vrot.lane.b32.xlu0 %v987, 64
        %v1558 = vpop.permute.xlu0 %1557
        %1559 = vrot.lane.b32.xlu0 %v988, 64
        %v1560 = vpop.permute.xlu0 %1559
        %1561 = vrot.lane.b32.xlu0 %v989, 64
        %v1562 = vpop.permute.xlu0 %1561
        %1563 = vrot.lane.b32.xlu0 %v990, 64
        %v1564 = vpop.permute.xlu0 %1563
        %1565 = vrot.lane.b32.xlu0 %v991, 64
        %v1566 = vpop.permute.xlu0 %1565
        %1567 = vrot.lane.b32.xlu0 %v992, 64
        %v1568 = vpop.permute.xlu0 %1567
        %1569 = vrot.lane.b32.xlu0 %v993, 64
        %v1570 = vpop.permute.xlu0 %1569
        %1571 = vrot.lane.b32.xlu0 %v994, 64
        %v1572 = vpop.permute.xlu0 %1571
        %1573 = vrot.lane.b32.xlu0 %v995, 64
        %v1574 = vpop.permute.xlu0 %1573
        %1575 = vrot.lane.b32.xlu0 %v996, 64
        %v1576 = vpop.permute.xlu0 %1575
        %1577 = vrot.lane.b32.xlu0 %v997, 64
        %v1578 = vpop.permute.xlu0 %1577
        %1579 = vrot.lane.b32.xlu0 %v998, 64
        %v1580 = vpop.permute.xlu0 %1579
        %1581 = vrot.lane.b32.xlu0 %v999, 64
        %v1582 = vpop.permute.xlu0 %1581
        %1583 = vrot.lane.b32.xlu0 %v1000, 64
        %v1584 = vpop.permute.xlu0 %1583
        %1585 = vrot.lane.b32.xlu0 %v1001, 64
        %v1586 = vpop.permute.xlu0 %1585
        %1587 = vrot.lane.b32.xlu0 %v1002, 64
        %v1588 = vpop.permute.xlu0 %1587
        %s1605 = scalar_lea.vmem %s462, 128 [#allocation10]
        %1606 = vst.msk [vmem:[%s1605] sm:$0xf] %vm1265, %v1558
        %1607 = vst.msk [vmem:[%s1605 + $0x4] sm:$0xf] %vm1265, %v1560
        %1608 = vst.msk [vmem:[%s1605 + $0x8] sm:$0xf] %vm1265, %v1562
        %1609 = vst.msk [vmem:[%s1605 + $0xc] sm:$0xf] %vm1265, %v1564
        %1610 = vst.msk [vmem:[%s1605 + $0x10] sm:$0xf] %vm1265, %v1566
        %1611 = vst.msk [vmem:[%s1605 + $0x14] sm:$0xf] %vm1265, %v1568
        %1612 = vst.msk [vmem:[%s1605 + $0x18] sm:$0xf] %vm1265, %v1570
        %1613 = vst.msk [vmem:[%s1605 + $0x1c] sm:$0xf] %vm1265, %v1572
        %1614 = vst.msk [vmem:[%s1605 + $0x20] sm:$0xf] %vm1265, %v1574
        %1615 = vst.msk [vmem:[%s1605 + $0x24] sm:$0xf] %vm1265, %v1576
        %1616 = vst.msk [vmem:[%s1605 + $0x28] sm:$0xf] %vm1265, %v1578
        %1617 = vst.msk [vmem:[%s1605 + $0x2c] sm:$0xf] %vm1265, %v1580
        %1618 = vst.msk [vmem:[%s1605 + $0x30] sm:$0xf] %vm1265, %v1582
        %1619 = vst.msk [vmem:[%s1605 + $0x34] sm:$0xf] %vm1265, %v1584
        %1620 = vst.msk [vmem:[%s1605 + $0x38] sm:$0xf] %vm1265, %v1586
        %1621 = vst.msk [vmem:[%s1605 + $0x3c] sm:$0xf] %vm1265, %v1588
        %1622 = vrot.lane.b32.xlu0 %v1116, 64
        %v1623 = vpop.permute.xlu0 %1622
        %1624 = vrot.lane.b32.xlu0 %v1117, 64
        %v1625 = vpop.permute.xlu0 %1624
        %1626 = vrot.lane.b32.xlu0 %v1118, 64
        %v1627 = vpop.permute.xlu0 %1626
        %1628 = vrot.lane.b32.xlu0 %v1119, 64
        %v1629 = vpop.permute.xlu0 %1628
        %1630 = vrot.lane.b32.xlu0 %v1120, 64
        %v1631 = vpop.permute.xlu0 %1630
        %1632 = vrot.lane.b32.xlu0 %v1121, 64
        %v1633 = vpop.permute.xlu0 %1632
        %1634 = vrot.lane.b32.xlu0 %v1122, 64
        %v1635 = vpop.permute.xlu0 %1634
        %1636 = vrot.lane.b32.xlu0 %v1123, 64
        %v1637 = vpop.permute.xlu0 %1636
        %1638 = vrot.lane.b32.xlu0 %v1124, 64
        %v1639 = vpop.permute.xlu0 %1638
        %1640 = vrot.lane.b32.xlu0 %v1125, 64
        %v1641 = vpop.permute.xlu0 %1640
        %1642 = vrot.lane.b32.xlu0 %v1126, 64
        %v1643 = vpop.permute.xlu0 %1642
        %1644 = vrot.lane.b32.xlu0 %v1127, 64
        %v1645 = vpop.permute.xlu0 %1644
        %1646 = vrot.lane.b32.xlu0 %v1128, 64
        %v1647 = vpop.permute.xlu0 %1646
        %1648 = vrot.lane.b32.xlu0 %v1129, 64
        %v1649 = vpop.permute.xlu0 %1648
        %1650 = vrot.lane.b32.xlu0 %v1130, 64
        %v1651 = vpop.permute.xlu0 %1650
        %1652 = vrot.lane.b32.xlu0 %v1131, 64
        %v1653 = vpop.permute.xlu0 %1652
        %s1670 = scalar_lea.vmem %s468, 128 [#allocation11]
        %1671 = vst.msk [vmem:[%s1670] sm:$0xf] %vm1265, %v1623
        %1672 = vst.msk [vmem:[%s1670 + $0x4] sm:$0xf] %vm1265, %v1625
        %1673 = vst.msk [vmem:[%s1670 + $0x8] sm:$0xf] %vm1265, %v1627
        %1674 = vst.msk [vmem:[%s1670 + $0xc] sm:$0xf] %vm1265, %v1629
        %1675 = vst.msk [vmem:[%s1670 + $0x10] sm:$0xf] %vm1265, %v1631
        %1676 = vst.msk [vmem:[%s1670 + $0x14] sm:$0xf] %vm1265, %v1633
        %1677 = vst.msk [vmem:[%s1670 + $0x18] sm:$0xf] %vm1265, %v1635
        %1678 = vst.msk [vmem:[%s1670 + $0x1c] sm:$0xf] %vm1265, %v1637
        %1679 = vst.msk [vmem:[%s1670 + $0x20] sm:$0xf] %vm1265, %v1639
        %1680 = vst.msk [vmem:[%s1670 + $0x24] sm:$0xf] %vm1265, %v1641
        %1681 = vst.msk [vmem:[%s1670 + $0x28] sm:$0xf] %vm1265, %v1643
        %1682 = vst.msk [vmem:[%s1670 + $0x2c] sm:$0xf] %vm1265, %v1645
        %1683 = vst.msk [vmem:[%s1670 + $0x30] sm:$0xf] %vm1265, %v1647
        %1684 = vst.msk [vmem:[%s1670 + $0x34] sm:$0xf] %vm1265, %v1649
        %1685 = vst.msk [vmem:[%s1670 + $0x38] sm:$0xf] %vm1265, %v1651
        %1686 = vst.msk [vmem:[%s1670 + $0x3c] sm:$0xf] %vm1265, %v1653
        %1687 = vrot.lane.b32.xlu0 %v1249, 64
        %v1688 = vpop.permute.xlu0 %1687
        %1689 = vrot.lane.b32.xlu0 %v1250, 64
        %v1690 = vpop.permute.xlu0 %1689
        %1691 = vrot.lane.b32.xlu0 %v1251, 64
        %v1692 = vpop.permute.xlu0 %1691
        %1693 = vrot.lane.b32.xlu0 %v1252, 64
        %v1694 = vpop.permute.xlu0 %1693
        %1695 = vrot.lane.b32.xlu0 %v1253, 64
        %v1696 = vpop.permute.xlu0 %1695
        %1697 = vrot.lane.b32.xlu0 %v1254, 64
        %v1698 = vpop.permute.xlu0 %1697
        %1699 = vrot.lane.b32.xlu0 %v1255, 64
        %v1700 = vpop.permute.xlu0 %1699
        %1701 = vrot.lane.b32.xlu0 %v1256, 64
        %v1702 = vpop.permute.xlu0 %1701
        %1703 = vrot.lane.b32.xlu0 %v1257, 64
        %v1704 = vpop.permute.xlu0 %1703
        %1705 = vrot.lane.b32.xlu0 %v1258, 64
        %v1706 = vpop.permute.xlu0 %1705
        %1707 = vrot.lane.b32.xlu0 %v1259, 64
        %v1708 = vpop.permute.xlu0 %1707
        %1709 = vrot.lane.b32.xlu0 %v1260, 64
        %v1710 = vpop.permute.xlu0 %1709
        %1711 = vrot.lane.b32.xlu0 %v1261, 64
        %v1712 = vpop.permute.xlu0 %1711
        %1713 = vrot.lane.b32.xlu0 %v1262, 64
        %v1714 = vpop.permute.xlu0 %1713
        %1715 = vrot.lane.b32.xlu0 %v1263, 64
        %v1716 = vpop.permute.xlu0 %1715
        %1717 = vrot.lane.b32.xlu0 %v1264, 64
        %v1718 = vpop.permute.xlu0 %1717
        %s1735 = scalar_lea.vmem %s474, 128 [#allocation12]
        %1736 = vst.msk [vmem:[%s1735] sm:$0xf] %vm1265, %v1688
        %1737 = vst.msk [vmem:[%s1735 + $0x4] sm:$0xf] %vm1265, %v1690
        %1738 = vst.msk [vmem:[%s1735 + $0x8] sm:$0xf] %vm1265, %v1692
        %1739 = vst.msk [vmem:[%s1735 + $0xc] sm:$0xf] %vm1265, %v1694
        %1740 = vst.msk [vmem:[%s1735 + $0x10] sm:$0xf] %vm1265, %v1696
        %1741 = vst.msk [vmem:[%s1735 + $0x14] sm:$0xf] %vm1265, %v1698
        %1742 = vst.msk [vmem:[%s1735 + $0x18] sm:$0xf] %vm1265, %v1700
        %1743 = vst.msk [vmem:[%s1735 + $0x1c] sm:$0xf] %vm1265, %v1702
        %1744 = vst.msk [vmem:[%s1735 + $0x20] sm:$0xf] %vm1265, %v1704
        %1745 = vst.msk [vmem:[%s1735 + $0x24] sm:$0xf] %vm1265, %v1706
        %1746 = vst.msk [vmem:[%s1735 + $0x28] sm:$0xf] %vm1265, %v1708
        %1747 = vst.msk [vmem:[%s1735 + $0x2c] sm:$0xf] %vm1265, %v1710
        %1748 = vst.msk [vmem:[%s1735 + $0x30] sm:$0xf] %vm1265, %v1712
        %1749 = vst.msk [vmem:[%s1735 + $0x34] sm:$0xf] %vm1265, %v1714
        %1750 = vst.msk [vmem:[%s1735 + $0x38] sm:$0xf] %vm1265, %v1716
        %1751 = vst.msk [vmem:[%s1735 + $0x3c] sm:$0xf] %vm1265, %v1718
        %1752 = vrot.lane.b32.xlu0 %v987, 32
        %v1753 = vpop.permute.xlu0 %1752
        %1754 = vrot.lane.b32.xlu0 %v988, 32
        %v1755 = vpop.permute.xlu0 %1754
        %1756 = vrot.lane.b32.xlu0 %v989, 32
        %v1757 = vpop.permute.xlu0 %1756
        %1758 = vrot.lane.b32.xlu0 %v990, 32
        %v1759 = vpop.permute.xlu0 %1758
        %1760 = vrot.lane.b32.xlu0 %v991, 32
        %v1761 = vpop.permute.xlu0 %1760
        %1762 = vrot.lane.b32.xlu0 %v992, 32
        %v1763 = vpop.permute.xlu0 %1762
        %1764 = vrot.lane.b32.xlu0 %v993, 32
        %v1765 = vpop.permute.xlu0 %1764
        %1766 = vrot.lane.b32.xlu0 %v994, 32
        %v1767 = vpop.permute.xlu0 %1766
        %1768 = vrot.lane.b32.xlu0 %v995, 32
        %v1769 = vpop.permute.xlu0 %1768
        %1770 = vrot.lane.b32.xlu0 %v996, 32
        %v1771 = vpop.permute.xlu0 %1770
        %1772 = vrot.lane.b32.xlu0 %v997, 32
        %v1773 = vpop.permute.xlu0 %1772
        %1774 = vrot.lane.b32.xlu0 %v998, 32
        %v1775 = vpop.permute.xlu0 %1774
        %1776 = vrot.lane.b32.xlu0 %v999, 32
        %v1777 = vpop.permute.xlu0 %1776
        %1778 = vrot.lane.b32.xlu0 %v1000, 32
        %v1779 = vpop.permute.xlu0 %1778
        %1780 = vrot.lane.b32.xlu0 %v1001, 32
        %v1781 = vpop.permute.xlu0 %1780
        %1782 = vrot.lane.b32.xlu0 %v1002, 32
        %v1783 = vpop.permute.xlu0 %1782
        %s1800 = scalar_lea.vmem %s462, 192 [#allocation10]
        %1801 = vst.msk [vmem:[%s1800] sm:$0xf] %vm1265, %v1753
        %1802 = vst.msk [vmem:[%s1800 + $0x4] sm:$0xf] %vm1265, %v1755
        %1803 = vst.msk [vmem:[%s1800 + $0x8] sm:$0xf] %vm1265, %v1757
        %1804 = vst.msk [vmem:[%s1800 + $0xc] sm:$0xf] %vm1265, %v1759
        %1805 = vst.msk [vmem:[%s1800 + $0x10] sm:$0xf] %vm1265, %v1761
        %1806 = vst.msk [vmem:[%s1800 + $0x14] sm:$0xf] %vm1265, %v1763
        %1807 = vst.msk [vmem:[%s1800 + $0x18] sm:$0xf] %vm1265, %v1765
        %1808 = vst.msk [vmem:[%s1800 + $0x1c] sm:$0xf] %vm1265, %v1767
        %1809 = vst.msk [vmem:[%s1800 + $0x20] sm:$0xf] %vm1265, %v1769
        %1810 = vst.msk [vmem:[%s1800 + $0x24] sm:$0xf] %vm1265, %v1771
        %1811 = vst.msk [vmem:[%s1800 + $0x28] sm:$0xf] %vm1265, %v1773
        %1812 = vst.msk [vmem:[%s1800 + $0x2c] sm:$0xf] %vm1265, %v1775
        %1813 = vst.msk [vmem:[%s1800 + $0x30] sm:$0xf] %vm1265, %v1777
        %1814 = vst.msk [vmem:[%s1800 + $0x34] sm:$0xf] %vm1265, %v1779
        %1815 = vst.msk [vmem:[%s1800 + $0x38] sm:$0xf] %vm1265, %v1781
        %1816 = vst.msk [vmem:[%s1800 + $0x3c] sm:$0xf] %vm1265, %v1783
        %1817 = vrot.lane.b32.xlu0 %v1116, 32
        %v1818 = vpop.permute.xlu0 %1817
        %1819 = vrot.lane.b32.xlu0 %v1117, 32
        %v1820 = vpop.permute.xlu0 %1819
        %1821 = vrot.lane.b32.xlu0 %v1118, 32
        %v1822 = vpop.permute.xlu0 %1821
        %1823 = vrot.lane.b32.xlu0 %v1119, 32
        %v1824 = vpop.permute.xlu0 %1823
        %1825 = vrot.lane.b32.xlu0 %v1120, 32
        %v1826 = vpop.permute.xlu0 %1825
        %1827 = vrot.lane.b32.xlu0 %v1121, 32
        %v1828 = vpop.permute.xlu0 %1827
        %1829 = vrot.lane.b32.xlu0 %v1122, 32
        %v1830 = vpop.permute.xlu0 %1829
        %1831 = vrot.lane.b32.xlu0 %v1123, 32
        %v1832 = vpop.permute.xlu0 %1831
        %1833 = vrot.lane.b32.xlu0 %v1124, 32
        %v1834 = vpop.permute.xlu0 %1833
        %1835 = vrot.lane.b32.xlu0 %v1125, 32
        %v1836 = vpop.permute.xlu0 %1835
        %1837 = vrot.lane.b32.xlu0 %v1126, 32
        %v1838 = vpop.permute.xlu0 %1837
        %1839 = vrot.lane.b32.xlu0 %v1127, 32
        %v1840 = vpop.permute.xlu0 %1839
        %1841 = vrot.lane.b32.xlu0 %v1128, 32
        %v1842 = vpop.permute.xlu0 %1841
        %1843 = vrot.lane.b32.xlu0 %v1129, 32
        %v1844 = vpop.permute.xlu0 %1843
        %1845 = vrot.lane.b32.xlu0 %v1130, 32
        %v1846 = vpop.permute.xlu0 %1845
        %1847 = vrot.lane.b32.xlu0 %v1131, 32
        %v1848 = vpop.permute.xlu0 %1847
        %s1865 = scalar_lea.vmem %s468, 192 [#allocation11]
        %1866 = vst.msk [vmem:[%s1865] sm:$0xf] %vm1265, %v1818
        %1867 = vst.msk [vmem:[%s1865 + $0x4] sm:$0xf] %vm1265, %v1820
        %1868 = vst.msk [vmem:[%s1865 + $0x8] sm:$0xf] %vm1265, %v1822
        %1869 = vst.msk [vmem:[%s1865 + $0xc] sm:$0xf] %vm1265, %v1824
        %1870 = vst.msk [vmem:[%s1865 + $0x10] sm:$0xf] %vm1265, %v1826
        %1871 = vst.msk [vmem:[%s1865 + $0x14] sm:$0xf] %vm1265, %v1828
        %1872 = vst.msk [vmem:[%s1865 + $0x18] sm:$0xf] %vm1265, %v1830
        %1873 = vst.msk [vmem:[%s1865 + $0x1c] sm:$0xf] %vm1265, %v1832
        %1874 = vst.msk [vmem:[%s1865 + $0x20] sm:$0xf] %vm1265, %v1834
        %1875 = vst.msk [vmem:[%s1865 + $0x24] sm:$0xf] %vm1265, %v1836
        %1876 = vst.msk [vmem:[%s1865 + $0x28] sm:$0xf] %vm1265, %v1838
        %1877 = vst.msk [vmem:[%s1865 + $0x2c] sm:$0xf] %vm1265, %v1840
        %1878 = vst.msk [vmem:[%s1865 + $0x30] sm:$0xf] %vm1265, %v1842
        %1879 = vst.msk [vmem:[%s1865 + $0x34] sm:$0xf] %vm1265, %v1844
        %1880 = vst.msk [vmem:[%s1865 + $0x38] sm:$0xf] %vm1265, %v1846
        %1881 = vst.msk [vmem:[%s1865 + $0x3c] sm:$0xf] %vm1265, %v1848
        %1882 = vrot.lane.b32.xlu0 %v1249, 32
        %v1883 = vpop.permute.xlu0 %1882
        %1884 = vrot.lane.b32.xlu0 %v1250, 32
        %v1885 = vpop.permute.xlu0 %1884
        %1886 = vrot.lane.b32.xlu0 %v1251, 32
        %v1887 = vpop.permute.xlu0 %1886
        %1888 = vrot.lane.b32.xlu0 %v1252, 32
        %v1889 = vpop.permute.xlu0 %1888
        %1890 = vrot.lane.b32.xlu0 %v1253, 32
        %v1891 = vpop.permute.xlu0 %1890
        %1892 = vrot.lane.b32.xlu0 %v1254, 32
        %v1893 = vpop.permute.xlu0 %1892
        %1894 = vrot.lane.b32.xlu0 %v1255, 32
        %v1895 = vpop.permute.xlu0 %1894
        %1896 = vrot.lane.b32.xlu0 %v1256, 32
        %v1897 = vpop.permute.xlu0 %1896
        %1898 = vrot.lane.b32.xlu0 %v1257, 32
        %v1899 = vpop.permute.xlu0 %1898
        %1900 = vrot.lane.b32.xlu0 %v1258, 32
        %v1901 = vpop.permute.xlu0 %1900
        %1902 = vrot.lane.b32.xlu0 %v1259, 32
        %v1903 = vpop.permute.xlu0 %1902
        %1904 = vrot.lane.b32.xlu0 %v1260, 32
        %v1905 = vpop.permute.xlu0 %1904
        %1906 = vrot.lane.b32.xlu0 %v1261, 32
        %v1907 = vpop.permute.xlu0 %1906
        %1908 = vrot.lane.b32.xlu0 %v1262, 32
        %v1909 = vpop.permute.xlu0 %1908
        %1910 = vrot.lane.b32.xlu0 %v1263, 32
        %v1911 = vpop.permute.xlu0 %1910
        %1912 = vrot.lane.b32.xlu0 %v1264, 32
        %v1913 = vpop.permute.xlu0 %1912
        %s1930 = scalar_lea.vmem %s474, 192 [#allocation12]
        %1931 = vst.msk [vmem:[%s1930] sm:$0xf] %vm1265, %v1883
        %1932 = vst.msk [vmem:[%s1930 + $0x4] sm:$0xf] %vm1265, %v1885
        %1933 = vst.msk [vmem:[%s1930 + $0x8] sm:$0xf] %vm1265, %v1887
        %1934 = vst.msk [vmem:[%s1930 + $0xc] sm:$0xf] %vm1265, %v1889
        %1935 = vst.msk [vmem:[%s1930 + $0x10] sm:$0xf] %vm1265, %v1891
        %1936 = vst.msk [vmem:[%s1930 + $0x14] sm:$0xf] %vm1265, %v1893
        %1937 = vst.msk [vmem:[%s1930 + $0x18] sm:$0xf] %vm1265, %v1895
        %1938 = vst.msk [vmem:[%s1930 + $0x1c] sm:$0xf] %vm1265, %v1897
        %1939 = vst.msk [vmem:[%s1930 + $0x20] sm:$0xf] %vm1265, %v1899
        %1940 = vst.msk [vmem:[%s1930 + $0x24] sm:$0xf] %vm1265, %v1901
        %1941 = vst.msk [vmem:[%s1930 + $0x28] sm:$0xf] %vm1265, %v1903
        %1942 = vst.msk [vmem:[%s1930 + $0x2c] sm:$0xf] %vm1265, %v1905
        %1943 = vst.msk [vmem:[%s1930 + $0x30] sm:$0xf] %vm1265, %v1907
        %1944 = vst.msk [vmem:[%s1930 + $0x34] sm:$0xf] %vm1265, %v1909
        %1945 = vst.msk [vmem:[%s1930 + $0x38] sm:$0xf] %vm1265, %v1911
        %1946 = vst.msk [vmem:[%s1930 + $0x3c] sm:$0xf] %vm1265, %v1913
        %s1947 = sand.u32 %s224, 1
        %s1948 = sand.u32 %s224, 1
        %s1949 = smul.addr %s1948, 256
        %s1950 = scalar_lea.vmem [#allocation10], %s1949
        %s1951 = sand.u32 %s252, 1
        %s1952 = sand.u32 %s252, 1
        %s1953 = smul.addr %s1952, 256
        %s1954 = scalar_lea.vmem [#allocation11], %s1953
        %s1955 = sand.u32 %s280, 1
        %s1956 = sand.u32 %s280, 1
        %s1957 = smul.addr %s1956, 256
        %s1958 = scalar_lea.vmem [#allocation12], %s1957
        // Predicated region
        $region73: #{tpu_custom_call.1} parent=51 // pred_check
          %p1959 = pneg %p234
        $region74: #{tpu_custom_call.1} parent=51 // pred_check_branch
          %1961 = sbr.rel (%p1959) target = $region76
        $region75: #{tpu_custom_call.1} parent=51 // pred_region
          %s1962 = smul.u32 16, %s32
          %s1963 = smul.addr %s31, 128
          %s1964 = sadd.s32 %s1962, %s1963
          %s1965 = smul.addr %s1964, 4
          %s1966 = scalar_lea.vmem %s8, %s1965
          // Predicated region
          $region77: #{tpu_custom_call.1} parent=75 // pred_check
            _
          $region78: #{tpu_custom_call.1} parent=75 // pred_check_branch
            %1968 = sbr.rel (0) target = $region80
          $region79: #{tpu_custom_call.1} parent=75 // pred_region
            // Predicated region
            $region81: #{tpu_custom_call.1} parent=79 // pred_check
              _
            $region82: #{tpu_custom_call.1} parent=79 // pred_check_branch
              %1970 = sbr.rel target = $region84
            $region83: #{tpu_custom_call.1} parent=79 // pred_region
              // Predicated region
              $region96: #{tpu_custom_call.1} parent=83 // pred_check
                _
              $region97: #{tpu_custom_call.1} parent=83 // pred_check_branch
                %2112 = sbr.rel (0) target = $region99
              $region98: #{tpu_custom_call.1} parent=83 // pred_region
                loop: start=0, step=1, limit=1
                $region100: #{tpu_custom_call.1} parent=98 // loop_pre_header
                  _
                $region101: #{tpu_custom_call.1} parent=98 // loop_header
                  %s2114 = sphi 0, %s2118
                  %p2115 = scmp.ge.s32.totalorder %s2114, 1
                  %s2119 = sphi %s1950, %s1950
                  %s2120 = sphi %s1966, %s1966
                $region102: #{tpu_custom_call.1} parent=98 // loop_header_branch
                  %2117 = sbr.rel (%p2115) target = $region106
                $region103: #{tpu_custom_call.1} parent=98 // loop_body
                  _
                $region104: #{tpu_custom_call.1} parent=98 // loop_footer
                  %s2118 = sadd.s32 1, %s2114
                $region105: #{tpu_custom_call.1} parent=98 // loop_footer_branch
                  %2113 = sbr.rel target = $region101
                $region106: #{tpu_custom_call.1} parent=98 // loop_exit
                  _
                %s2122 = ssub.s32 16, 1
                loop: start=0, step=1, limit=1
                $region107: #{tpu_custom_call.1} parent=98 // loop_pre_header
                  _
                $region108: #{tpu_custom_call.1} parent=98 // loop_header
                  %s2124 = sphi 0, %s2128
                  %p2125 = scmp.ge.s32.totalorder %s2124, 1
                  %s2129 = sphi %s1950, %s1950
                  %s2130 = sphi %s1966, %s1966
                $region109: #{tpu_custom_call.1} parent=98 // loop_header_branch
                  %2127 = sbr.rel (%p2125) target = $region113
                $region110: #{tpu_custom_call.1} parent=98 // loop_body
                  %v2131 = vld [vmem:[%s2129] sm:%s2122]
                  %2132 = vst [vmem:[%s2130] sm:%s2122] %v2131
                  %v2133 = vld [vmem:[%s2129 + $0x4] sm:%s2122]
                  %2134 = vst [vmem:[%s2130 + $0x4] sm:%s2122] %v2133
                  %v2135 = vld [vmem:[%s2129 + $0x8] sm:%s2122]
                  %2136 = vst [vmem:[%s2130 + $0x8] sm:%s2122] %v2135
                  %v2137 = vld [vmem:[%s2129 + $0xc] sm:%s2122]
                  %2138 = vst [vmem:[%s2130 + $0xc] sm:%s2122] %v2137
                  %v2139 = vld [vmem:[%s2129 + $0x10] sm:%s2122]
                  %2140 = vst [vmem:[%s2130 + $0x10] sm:%s2122] %v2139
                  %v2141 = vld [vmem:[%s2129 + $0x14] sm:%s2122]
                  %2142 = vst [vmem:[%s2130 + $0x14] sm:%s2122] %v2141
                  %v2143 = vld [vmem:[%s2129 + $0x18] sm:%s2122]
                  %2144 = vst [vmem:[%s2130 + $0x18] sm:%s2122] %v2143
                  %v2145 = vld [vmem:[%s2129 + $0x1c] sm:%s2122]
                  %2146 = vst [vmem:[%s2130 + $0x1c] sm:%s2122] %v2145
                  %v2147 = vld [vmem:[%s2129 + $0x20] sm:%s2122]
                  %2148 = vst [vmem:[%s2130 + $0x20] sm:%s2122] %v2147
                  %v2149 = vld [vmem:[%s2129 + $0x24] sm:%s2122]
                  %2150 = vst [vmem:[%s2130 + $0x24] sm:%s2122] %v2149
                  %v2151 = vld [vmem:[%s2129 + $0x28] sm:%s2122]
                  %2152 = vst [vmem:[%s2130 + $0x28] sm:%s2122] %v2151
                  %v2153 = vld [vmem:[%s2129 + $0x2c] sm:%s2122]
                  %2154 = vst [vmem:[%s2130 + $0x2c] sm:%s2122] %v2153
                  %v2155 = vld [vmem:[%s2129 + $0x30] sm:%s2122]
                  %2156 = vst [vmem:[%s2130 + $0x30] sm:%s2122] %v2155
                  %v2157 = vld [vmem:[%s2129 + $0x34] sm:%s2122]
                  %2158 = vst [vmem:[%s2130 + $0x34] sm:%s2122] %v2157
                  %v2159 = vld [vmem:[%s2129 + $0x38] sm:%s2122]
                  %2160 = vst [vmem:[%s2130 + $0x38] sm:%s2122] %v2159
                  %v2161 = vld [vmem:[%s2129 + $0x3c] sm:%s2122]
                  %2162 = vst [vmem:[%s2130 + $0x3c] sm:%s2122] %v2161
                  %v2163 = vld [vmem:[%s2129 + $0x40] sm:%s2122]
                  %2164 = vst [vmem:[%s2130 + $0x80] sm:%s2122] %v2163
                  %v2165 = vld [vmem:[%s2129 + $0x44] sm:%s2122]
                  %2166 = vst [vmem:[%s2130 + $0x84] sm:%s2122] %v2165
                  %v2167 = vld [vmem:[%s2129 + $0x48] sm:%s2122]
                  %2168 = vst [vmem:[%s2130 + $0x88] sm:%s2122] %v2167
                  %v2169 = vld [vmem:[%s2129 + $0x4c] sm:%s2122]
                  %2170 = vst [vmem:[%s2130 + $0x8c] sm:%s2122] %v2169
                  %v2171 = vld [vmem:[%s2129 + $0x50] sm:%s2122]
                  %2172 = vst [vmem:[%s2130 + $0x90] sm:%s2122] %v2171
                  %v2173 = vld [vmem:[%s2129 + $0x54] sm:%s2122]
                  %2174 = vst [vmem:[%s2130 + $0x94] sm:%s2122] %v2173
                  %v2175 = vld [vmem:[%s2129 + $0x58] sm:%s2122]
                  %2176 = vst [vmem:[%s2130 + $0x98] sm:%s2122] %v2175
                  %v2177 = vld [vmem:[%s2129 + $0x5c] sm:%s2122]
                  %2178 = vst [vmem:[%s2130 + $0x9c] sm:%s2122] %v2177
                  %v2179 = vld [vmem:[%s2129 + $0x60] sm:%s2122]
                  %2180 = vst [vmem:[%s2130 + $0xa0] sm:%s2122] %v2179
                  %v2181 = vld [vmem:[%s2129 + $0x64] sm:%s2122]
                  %2182 = vst [vmem:[%s2130 + $0xa4] sm:%s2122] %v2181
                  %v2183 = vld [vmem:[%s2129 + $0x68] sm:%s2122]
                  %2184 = vst [vmem:[%s2130 + $0xa8] sm:%s2122] %v2183
                  %v2185 = vld [vmem:[%s2129 + $0x6c] sm:%s2122]
                  %2186 = vst [vmem:[%s2130 + $0xac] sm:%s2122] %v2185
                  %v2187 = vld [vmem:[%s2129 + $0x70] sm:%s2122]
                  %2188 = vst [vmem:[%s2130 + $0xb0] sm:%s2122] %v2187
                  %v2189 = vld [vmem:[%s2129 + $0x74] sm:%s2122]
                  %2190 = vst [vmem:[%s2130 + $0xb4] sm:%s2122] %v2189
                  %v2191 = vld [vmem:[%s2129 + $0x78] sm:%s2122]
                  %2192 = vst [vmem:[%s2130 + $0xb8] sm:%s2122] %v2191
                  %v2193 = vld [vmem:[%s2129 + $0x7c] sm:%s2122]
                  %2194 = vst [vmem:[%s2130 + $0xbc] sm:%s2122] %v2193
                  %v2195 = vld [vmem:[%s2129 + $0x80] sm:%s2122]
                  %2196 = vst [vmem:[%s2130 + $0x100] sm:%s2122] %v2195
                  %v2197 = vld [vmem:[%s2129 + $0x84] sm:%s2122]
                  %2198 = vst [vmem:[%s2130 + $0x104] sm:%s2122] %v2197
                  %v2199 = vld [vmem:[%s2129 + $0x88] sm:%s2122]
                  %2200 = vst [vmem:[%s2130 + $0x108] sm:%s2122] %v2199
                  %v2201 = vld [vmem:[%s2129 + $0x8c] sm:%s2122]
                  %2202 = vst [vmem:[%s2130 + $0x10c] sm:%s2122] %v2201
                  %v2203 = vld [vmem:[%s2129 + $0x90] sm:%s2122]
                  %2204 = vst [vmem:[%s2130 + $0x110] sm:%s2122] %v2203
                  %v2205 = vld [vmem:[%s2129 + $0x94] sm:%s2122]
                  %2206 = vst [vmem:[%s2130 + $0x114] sm:%s2122] %v2205
                  %v2207 = vld [vmem:[%s2129 + $0x98] sm:%s2122]
                  %2208 = vst [vmem:[%s2130 + $0x118] sm:%s2122] %v2207
                  %v2209 = vld [vmem:[%s2129 + $0x9c] sm:%s2122]
                  %2210 = vst [vmem:[%s2130 + $0x11c] sm:%s2122] %v2209
                  %v2211 = vld [vmem:[%s2129 + $0xa0] sm:%s2122]
                  %2212 = vst [vmem:[%s2130 + $0x120] sm:%s2122] %v2211
                  %v2213 = vld [vmem:[%s2129 + $0xa4] sm:%s2122]
                  %2214 = vst [vmem:[%s2130 + $0x124] sm:%s2122] %v2213
                  %v2215 = vld [vmem:[%s2129 + $0xa8] sm:%s2122]
                  %2216 = vst [vmem:[%s2130 + $0x128] sm:%s2122] %v2215
                  %v2217 = vld [vmem:[%s2129 + $0xac] sm:%s2122]
                  %2218 = vst [vmem:[%s2130 + $0x12c] sm:%s2122] %v2217
                  %v2219 = vld [vmem:[%s2129 + $0xb0] sm:%s2122]
                  %2220 = vst [vmem:[%s2130 + $0x130] sm:%s2122] %v2219
                  %v2221 = vld [vmem:[%s2129 + $0xb4] sm:%s2122]
                  %2222 = vst [vmem:[%s2130 + $0x134] sm:%s2122] %v2221
                  %v2223 = vld [vmem:[%s2129 + $0xb8] sm:%s2122]
                  %2224 = vst [vmem:[%s2130 + $0x138] sm:%s2122] %v2223
                  %v2225 = vld [vmem:[%s2129 + $0xbc] sm:%s2122]
                  %2226 = vst [vmem:[%s2130 + $0x13c] sm:%s2122] %v2225
                  %v2227 = vld [vmem:[%s2129 + $0xc0] sm:%s2122]
                  %2228 = vst [vmem:[%s2130 + $0x180] sm:%s2122] %v2227
                  %v2229 = vld [vmem:[%s2129 + $0xc4] sm:%s2122]
                  %2230 = vst [vmem:[%s2130 + $0x184] sm:%s2122] %v2229
                  %v2231 = vld [vmem:[%s2129 + $0xc8] sm:%s2122]
                  %2232 = vst [vmem:[%s2130 + $0x188] sm:%s2122] %v2231
                  %v2233 = vld [vmem:[%s2129 + $0xcc] sm:%s2122]
                  %2234 = vst [vmem:[%s2130 + $0x18c] sm:%s2122] %v2233
                  %v2235 = vld [vmem:[%s2129 + $0xd0] sm:%s2122]
                  %2236 = vst [vmem:[%s2130 + $0x190] sm:%s2122] %v2235
                  %v2237 = vld [vmem:[%s2129 + $0xd4] sm:%s2122]
                  %2238 = vst [vmem:[%s2130 + $0x194] sm:%s2122] %v2237
                  %v2239 = vld [vmem:[%s2129 + $0xd8] sm:%s2122]
                  %2240 = vst [vmem:[%s2130 + $0x198] sm:%s2122] %v2239
                  %v2241 = vld [vmem:[%s2129 + $0xdc] sm:%s2122]
                  %2242 = vst [vmem:[%s2130 + $0x19c] sm:%s2122] %v2241
                  %v2243 = vld [vmem:[%s2129 + $0xe0] sm:%s2122]
                  %2244 = vst [vmem:[%s2130 + $0x1a0] sm:%s2122] %v2243
                  %v2245 = vld [vmem:[%s2129 + $0xe4] sm:%s2122]
                  %2246 = vst [vmem:[%s2130 + $0x1a4] sm:%s2122] %v2245
                  %v2247 = vld [vmem:[%s2129 + $0xe8] sm:%s2122]
                  %2248 = vst [vmem:[%s2130 + $0x1a8] sm:%s2122] %v2247
                  %v2249 = vld [vmem:[%s2129 + $0xec] sm:%s2122]
                  %2250 = vst [vmem:[%s2130 + $0x1ac] sm:%s2122] %v2249
                  %v2251 = vld [vmem:[%s2129 + $0xf0] sm:%s2122]
                  %2252 = vst [vmem:[%s2130 + $0x1b0] sm:%s2122] %v2251
                  %v2253 = vld [vmem:[%s2129 + $0xf4] sm:%s2122]
                  %2254 = vst [vmem:[%s2130 + $0x1b4] sm:%s2122] %v2253
                  %v2255 = vld [vmem:[%s2129 + $0xf8] sm:%s2122]
                  %2256 = vst [vmem:[%s2130 + $0x1b8] sm:%s2122] %v2255
                  %v2257 = vld [vmem:[%s2129 + $0xfc] sm:%s2122]
                  %2258 = vst [vmem:[%s2130 + $0x1bc] sm:%s2122] %v2257
                $region111: #{tpu_custom_call.1} parent=98 // loop_footer
                  %s2128 = sadd.s32 1, %s2124
                $region112: #{tpu_custom_call.1} parent=98 // loop_footer_branch
                  %2123 = sbr.rel target = $region108
                $region113: #{tpu_custom_call.1} parent=98 // loop_exit
                  _
              $region99: #{tpu_custom_call.1} parent=83 // pred_fallthru
                _
            $region84: #{tpu_custom_call.1} parent=79 // pred_fallthru
              _
            // Predicated region
            $region85: #{tpu_custom_call.1} parent=79 // pred_check
              _
            $region86: #{tpu_custom_call.1} parent=79 // pred_check_branch
              %1972 = sbr.rel (0) target = $region88
            $region87: #{tpu_custom_call.1} parent=79 // pred_region
              %s1974 = ssub.s32 16, 1
              loop: start=0, step=1, limit=1
              $region89: #{tpu_custom_call.1} parent=87 // loop_pre_header
                _
              $region90: #{tpu_custom_call.1} parent=87 // loop_header
                %s1976 = sphi 0, %s1980
                %p1977 = scmp.ge.s32.totalorder %s1976, 1
                %s1981 = sphi %s1950, %s1950
                %s1982 = sphi %s1966, %s1966
              $region91: #{tpu_custom_call.1} parent=87 // loop_header_branch
                %1979 = sbr.rel (%p1977) target = $region95
              $region92: #{tpu_custom_call.1} parent=87 // loop_body
                %v1983 = vld [vmem:[%s1981] sm:%s1974]
                %1984 = vst [vmem:[%s1982] sm:%s1974] %v1983
                %v1985 = vld [vmem:[%s1981 + $0x4] sm:%s1974]
                %1986 = vst [vmem:[%s1982 + $0x4] sm:%s1974] %v1985
                %v1987 = vld [vmem:[%s1981 + $0x8] sm:%s1974]
                %1988 = vst [vmem:[%s1982 + $0x8] sm:%s1974] %v1987
                %v1989 = vld [vmem:[%s1981 + $0xc] sm:%s1974]
                %1990 = vst [vmem:[%s1982 + $0xc] sm:%s1974] %v1989
                %v1991 = vld [vmem:[%s1981 + $0x10] sm:%s1974]
                %1992 = vst [vmem:[%s1982 + $0x10] sm:%s1974] %v1991
                %v1993 = vld [vmem:[%s1981 + $0x14] sm:%s1974]
                %1994 = vst [vmem:[%s1982 + $0x14] sm:%s1974] %v1993
                %v1995 = vld [vmem:[%s1981 + $0x18] sm:%s1974]
                %1996 = vst [vmem:[%s1982 + $0x18] sm:%s1974] %v1995
                %v1997 = vld [vmem:[%s1981 + $0x1c] sm:%s1974]
                %1998 = vst [vmem:[%s1982 + $0x1c] sm:%s1974] %v1997
                %v1999 = vld [vmem:[%s1981 + $0x20] sm:%s1974]
                %2000 = vst [vmem:[%s1982 + $0x20] sm:%s1974] %v1999
                %v2001 = vld [vmem:[%s1981 + $0x24] sm:%s1974]
                %2002 = vst [vmem:[%s1982 + $0x24] sm:%s1974] %v2001
                %v2003 = vld [vmem:[%s1981 + $0x28] sm:%s1974]
                %2004 = vst [vmem:[%s1982 + $0x28] sm:%s1974] %v2003
                %v2005 = vld [vmem:[%s1981 + $0x2c] sm:%s1974]
                %2006 = vst [vmem:[%s1982 + $0x2c] sm:%s1974] %v2005
                %v2007 = vld [vmem:[%s1981 + $0x30] sm:%s1974]
                %2008 = vst [vmem:[%s1982 + $0x30] sm:%s1974] %v2007
                %v2009 = vld [vmem:[%s1981 + $0x34] sm:%s1974]
                %2010 = vst [vmem:[%s1982 + $0x34] sm:%s1974] %v2009
                %v2011 = vld [vmem:[%s1981 + $0x38] sm:%s1974]
                %2012 = vst [vmem:[%s1982 + $0x38] sm:%s1974] %v2011
                %v2013 = vld [vmem:[%s1981 + $0x3c] sm:%s1974]
                %2014 = vst [vmem:[%s1982 + $0x3c] sm:%s1974] %v2013
                %v2015 = vld [vmem:[%s1981 + $0x40] sm:%s1974]
                %2016 = vst [vmem:[%s1982 + $0x80] sm:%s1974] %v2015
                %v2017 = vld [vmem:[%s1981 + $0x44] sm:%s1974]
                %2018 = vst [vmem:[%s1982 + $0x84] sm:%s1974] %v2017
                %v2019 = vld [vmem:[%s1981 + $0x48] sm:%s1974]
                %2020 = vst [vmem:[%s1982 + $0x88] sm:%s1974] %v2019
                %v2021 = vld [vmem:[%s1981 + $0x4c] sm:%s1974]
                %2022 = vst [vmem:[%s1982 + $0x8c] sm:%s1974] %v2021
                %v2023 = vld [vmem:[%s1981 + $0x50] sm:%s1974]
                %2024 = vst [vmem:[%s1982 + $0x90] sm:%s1974] %v2023
                %v2025 = vld [vmem:[%s1981 + $0x54] sm:%s1974]
                %2026 = vst [vmem:[%s1982 + $0x94] sm:%s1974] %v2025
                %v2027 = vld [vmem:[%s1981 + $0x58] sm:%s1974]
                %2028 = vst [vmem:[%s1982 + $0x98] sm:%s1974] %v2027
                %v2029 = vld [vmem:[%s1981 + $0x5c] sm:%s1974]
                %2030 = vst [vmem:[%s1982 + $0x9c] sm:%s1974] %v2029
                %v2031 = vld [vmem:[%s1981 + $0x60] sm:%s1974]
                %2032 = vst [vmem:[%s1982 + $0xa0] sm:%s1974] %v2031
                %v2033 = vld [vmem:[%s1981 + $0x64] sm:%s1974]
                %2034 = vst [vmem:[%s1982 + $0xa4] sm:%s1974] %v2033
                %v2035 = vld [vmem:[%s1981 + $0x68] sm:%s1974]
                %2036 = vst [vmem:[%s1982 + $0xa8] sm:%s1974] %v2035
                %v2037 = vld [vmem:[%s1981 + $0x6c] sm:%s1974]
                %2038 = vst [vmem:[%s1982 + $0xac] sm:%s1974] %v2037
                %v2039 = vld [vmem:[%s1981 + $0x70] sm:%s1974]
                %2040 = vst [vmem:[%s1982 + $0xb0] sm:%s1974] %v2039
                %v2041 = vld [vmem:[%s1981 + $0x74] sm:%s1974]
                %2042 = vst [vmem:[%s1982 + $0xb4] sm:%s1974] %v2041
                %v2043 = vld [vmem:[%s1981 + $0x78] sm:%s1974]
                %2044 = vst [vmem:[%s1982 + $0xb8] sm:%s1974] %v2043
                %v2045 = vld [vmem:[%s1981 + $0x7c] sm:%s1974]
                %2046 = vst [vmem:[%s1982 + $0xbc] sm:%s1974] %v2045
                %v2047 = vld [vmem:[%s1981 + $0x80] sm:%s1974]
                %2048 = vst [vmem:[%s1982 + $0x100] sm:%s1974] %v2047
                %v2049 = vld [vmem:[%s1981 + $0x84] sm:%s1974]
                %2050 = vst [vmem:[%s1982 + $0x104] sm:%s1974] %v2049
                %v2051 = vld [vmem:[%s1981 + $0x88] sm:%s1974]
                %2052 = vst [vmem:[%s1982 + $0x108] sm:%s1974] %v2051
                %v2053 = vld [vmem:[%s1981 + $0x8c] sm:%s1974]
                %2054 = vst [vmem:[%s1982 + $0x10c] sm:%s1974] %v2053
                %v2055 = vld [vmem:[%s1981 + $0x90] sm:%s1974]
                %2056 = vst [vmem:[%s1982 + $0x110] sm:%s1974] %v2055
                %v2057 = vld [vmem:[%s1981 + $0x94] sm:%s1974]
                %2058 = vst [vmem:[%s1982 + $0x114] sm:%s1974] %v2057
                %v2059 = vld [vmem:[%s1981 + $0x98] sm:%s1974]
                %2060 = vst [vmem:[%s1982 + $0x118] sm:%s1974] %v2059
                %v2061 = vld [vmem:[%s1981 + $0x9c] sm:%s1974]
                %2062 = vst [vmem:[%s1982 + $0x11c] sm:%s1974] %v2061
                %v2063 = vld [vmem:[%s1981 + $0xa0] sm:%s1974]
                %2064 = vst [vmem:[%s1982 + $0x120] sm:%s1974] %v2063
                %v2065 = vld [vmem:[%s1981 + $0xa4] sm:%s1974]
                %2066 = vst [vmem:[%s1982 + $0x124] sm:%s1974] %v2065
                %v2067 = vld [vmem:[%s1981 + $0xa8] sm:%s1974]
                %2068 = vst [vmem:[%s1982 + $0x128] sm:%s1974] %v2067
                %v2069 = vld [vmem:[%s1981 + $0xac] sm:%s1974]
                %2070 = vst [vmem:[%s1982 + $0x12c] sm:%s1974] %v2069
                %v2071 = vld [vmem:[%s1981 + $0xb0] sm:%s1974]
                %2072 = vst [vmem:[%s1982 + $0x130] sm:%s1974] %v2071
                %v2073 = vld [vmem:[%s1981 + $0xb4] sm:%s1974]
                %2074 = vst [vmem:[%s1982 + $0x134] sm:%s1974] %v2073
                %v2075 = vld [vmem:[%s1981 + $0xb8] sm:%s1974]
                %2076 = vst [vmem:[%s1982 + $0x138] sm:%s1974] %v2075
                %v2077 = vld [vmem:[%s1981 + $0xbc] sm:%s1974]
                %2078 = vst [vmem:[%s1982 + $0x13c] sm:%s1974] %v2077
                %v2079 = vld [vmem:[%s1981 + $0xc0] sm:%s1974]
                %2080 = vst [vmem:[%s1982 + $0x180] sm:%s1974] %v2079
                %v2081 = vld [vmem:[%s1981 + $0xc4] sm:%s1974]
                %2082 = vst [vmem:[%s1982 + $0x184] sm:%s1974] %v2081
                %v2083 = vld [vmem:[%s1981 + $0xc8] sm:%s1974]
                %2084 = vst [vmem:[%s1982 + $0x188] sm:%s1974] %v2083
                %v2085 = vld [vmem:[%s1981 + $0xcc] sm:%s1974]
                %2086 = vst [vmem:[%s1982 + $0x18c] sm:%s1974] %v2085
                %v2087 = vld [vmem:[%s1981 + $0xd0] sm:%s1974]
                %2088 = vst [vmem:[%s1982 + $0x190] sm:%s1974] %v2087
                %v2089 = vld [vmem:[%s1981 + $0xd4] sm:%s1974]
                %2090 = vst [vmem:[%s1982 + $0x194] sm:%s1974] %v2089
                %v2091 = vld [vmem:[%s1981 + $0xd8] sm:%s1974]
                %2092 = vst [vmem:[%s1982 + $0x198] sm:%s1974] %v2091
                %v2093 = vld [vmem:[%s1981 + $0xdc] sm:%s1974]
                %2094 = vst [vmem:[%s1982 + $0x19c] sm:%s1974] %v2093
                %v2095 = vld [vmem:[%s1981 + $0xe0] sm:%s1974]
                %2096 = vst [vmem:[%s1982 + $0x1a0] sm:%s1974] %v2095
                %v2097 = vld [vmem:[%s1981 + $0xe4] sm:%s1974]
                %2098 = vst [vmem:[%s1982 + $0x1a4] sm:%s1974] %v2097
                %v2099 = vld [vmem:[%s1981 + $0xe8] sm:%s1974]
                %2100 = vst [vmem:[%s1982 + $0x1a8] sm:%s1974] %v2099
                %v2101 = vld [vmem:[%s1981 + $0xec] sm:%s1974]
                %2102 = vst [vmem:[%s1982 + $0x1ac] sm:%s1974] %v2101
                %v2103 = vld [vmem:[%s1981 + $0xf0] sm:%s1974]
                %2104 = vst [vmem:[%s1982 + $0x1b0] sm:%s1974] %v2103
                %v2105 = vld [vmem:[%s1981 + $0xf4] sm:%s1974]
                %2106 = vst [vmem:[%s1982 + $0x1b4] sm:%s1974] %v2105
                %v2107 = vld [vmem:[%s1981 + $0xf8] sm:%s1974]
                %2108 = vst [vmem:[%s1982 + $0x1b8] sm:%s1974] %v2107
                %v2109 = vld [vmem:[%s1981 + $0xfc] sm:%s1974]
                %2110 = vst [vmem:[%s1982 + $0x1bc] sm:%s1974] %v2109
              $region93: #{tpu_custom_call.1} parent=87 // loop_footer
                %s1980 = sadd.s32 1, %s1976
              $region94: #{tpu_custom_call.1} parent=87 // loop_footer_branch
                %1975 = sbr.rel target = $region90
              $region95: #{tpu_custom_call.1} parent=87 // loop_exit
                _
            $region88: #{tpu_custom_call.1} parent=79 // pred_fallthru
              _
          $region80: #{tpu_custom_call.1} parent=75 // pred_fallthru
            _
          %2259 = vnop
        $region76: #{tpu_custom_call.1} parent=51 // pred_fallthru
          _
        // Predicated region
        $region114: #{tpu_custom_call.1} parent=51 // pred_check
          %p2260 = pneg %p262
        $region115: #{tpu_custom_call.1} parent=51 // pred_check_branch
          %2262 = sbr.rel (%p2260) target = $region117
        $region116: #{tpu_custom_call.1} parent=51 // pred_region
          %s2263 = smul.u32 16, %s32
          %s2264 = smul.addr %s31, 128
          %s2265 = sadd.s32 %s2263, %s2264
          %s2266 = smul.addr %s2265, 4
          %s2267 = scalar_lea.vmem %s9, %s2266
          // Predicated region
          $region118: #{tpu_custom_call.1} parent=116 // pred_check
            _
          $region119: #{tpu_custom_call.1} parent=116 // pred_check_branch
            %2269 = sbr.rel (0) target = $region121
          $region120: #{tpu_custom_call.1} parent=116 // pred_region
            // Predicated region
            $region122: #{tpu_custom_call.1} parent=120 // pred_check
              _
            $region123: #{tpu_custom_call.1} parent=120 // pred_check_branch
              %2271 = sbr.rel target = $region125
            $region124: #{tpu_custom_call.1} parent=120 // pred_region
              // Predicated region
              $region137: #{tpu_custom_call.1} parent=124 // pred_check
                _
              $region138: #{tpu_custom_call.1} parent=124 // pred_check_branch
                %2413 = sbr.rel (0) target = $region140
              $region139: #{tpu_custom_call.1} parent=124 // pred_region
                loop: start=0, step=1, limit=1
                $region141: #{tpu_custom_call.1} parent=139 // loop_pre_header
                  _
                $region142: #{tpu_custom_call.1} parent=139 // loop_header
                  %s2415 = sphi 0, %s2419
                  %p2416 = scmp.ge.s32.totalorder %s2415, 1
                  %s2420 = sphi %s1954, %s1954
                  %s2421 = sphi %s2267, %s2267
                $region143: #{tpu_custom_call.1} parent=139 // loop_header_branch
                  %2418 = sbr.rel (%p2416) target = $region147
                $region144: #{tpu_custom_call.1} parent=139 // loop_body
                  _
                $region145: #{tpu_custom_call.1} parent=139 // loop_footer
                  %s2419 = sadd.s32 1, %s2415
                $region146: #{tpu_custom_call.1} parent=139 // loop_footer_branch
                  %2414 = sbr.rel target = $region142
                $region147: #{tpu_custom_call.1} parent=139 // loop_exit
                  _
                %s2423 = ssub.s32 16, 1
                loop: start=0, step=1, limit=1
                $region148: #{tpu_custom_call.1} parent=139 // loop_pre_header
                  _
                $region149: #{tpu_custom_call.1} parent=139 // loop_header
                  %s2425 = sphi 0, %s2429
                  %p2426 = scmp.ge.s32.totalorder %s2425, 1
                  %s2430 = sphi %s1954, %s1954
                  %s2431 = sphi %s2267, %s2267
                $region150: #{tpu_custom_call.1} parent=139 // loop_header_branch
                  %2428 = sbr.rel (%p2426) target = $region154
                $region151: #{tpu_custom_call.1} parent=139 // loop_body
                  %v2432 = vld [vmem:[%s2430] sm:%s2423]
                  %2433 = vst [vmem:[%s2431] sm:%s2423] %v2432
                  %v2434 = vld [vmem:[%s2430 + $0x4] sm:%s2423]
                  %2435 = vst [vmem:[%s2431 + $0x4] sm:%s2423] %v2434
                  %v2436 = vld [vmem:[%s2430 + $0x8] sm:%s2423]
                  %2437 = vst [vmem:[%s2431 + $0x8] sm:%s2423] %v2436
                  %v2438 = vld [vmem:[%s2430 + $0xc] sm:%s2423]
                  %2439 = vst [vmem:[%s2431 + $0xc] sm:%s2423] %v2438
                  %v2440 = vld [vmem:[%s2430 + $0x10] sm:%s2423]
                  %2441 = vst [vmem:[%s2431 + $0x10] sm:%s2423] %v2440
                  %v2442 = vld [vmem:[%s2430 + $0x14] sm:%s2423]
                  %2443 = vst [vmem:[%s2431 + $0x14] sm:%s2423] %v2442
                  %v2444 = vld [vmem:[%s2430 + $0x18] sm:%s2423]
                  %2445 = vst [vmem:[%s2431 + $0x18] sm:%s2423] %v2444
                  %v2446 = vld [vmem:[%s2430 + $0x1c] sm:%s2423]
                  %2447 = vst [vmem:[%s2431 + $0x1c] sm:%s2423] %v2446
                  %v2448 = vld [vmem:[%s2430 + $0x20] sm:%s2423]
                  %2449 = vst [vmem:[%s2431 + $0x20] sm:%s2423] %v2448
                  %v2450 = vld [vmem:[%s2430 + $0x24] sm:%s2423]
                  %2451 = vst [vmem:[%s2431 + $0x24] sm:%s2423] %v2450
                  %v2452 = vld [vmem:[%s2430 + $0x28] sm:%s2423]
                  %2453 = vst [vmem:[%s2431 + $0x28] sm:%s2423] %v2452
                  %v2454 = vld [vmem:[%s2430 + $0x2c] sm:%s2423]
                  %2455 = vst [vmem:[%s2431 + $0x2c] sm:%s2423] %v2454
                  %v2456 = vld [vmem:[%s2430 + $0x30] sm:%s2423]
                  %2457 = vst [vmem:[%s2431 + $0x30] sm:%s2423] %v2456
                  %v2458 = vld [vmem:[%s2430 + $0x34] sm:%s2423]
                  %2459 = vst [vmem:[%s2431 + $0x34] sm:%s2423] %v2458
                  %v2460 = vld [vmem:[%s2430 + $0x38] sm:%s2423]
                  %2461 = vst [vmem:[%s2431 + $0x38] sm:%s2423] %v2460
                  %v2462 = vld [vmem:[%s2430 + $0x3c] sm:%s2423]
                  %2463 = vst [vmem:[%s2431 + $0x3c] sm:%s2423] %v2462
                  %v2464 = vld [vmem:[%s2430 + $0x40] sm:%s2423]
                  %2465 = vst [vmem:[%s2431 + $0x80] sm:%s2423] %v2464
                  %v2466 = vld [vmem:[%s2430 + $0x44] sm:%s2423]
                  %2467 = vst [vmem:[%s2431 + $0x84] sm:%s2423] %v2466
                  %v2468 = vld [vmem:[%s2430 + $0x48] sm:%s2423]
                  %2469 = vst [vmem:[%s2431 + $0x88] sm:%s2423] %v2468
                  %v2470 = vld [vmem:[%s2430 + $0x4c] sm:%s2423]
                  %2471 = vst [vmem:[%s2431 + $0x8c] sm:%s2423] %v2470
                  %v2472 = vld [vmem:[%s2430 + $0x50] sm:%s2423]
                  %2473 = vst [vmem:[%s2431 + $0x90] sm:%s2423] %v2472
                  %v2474 = vld [vmem:[%s2430 + $0x54] sm:%s2423]
                  %2475 = vst [vmem:[%s2431 + $0x94] sm:%s2423] %v2474
                  %v2476 = vld [vmem:[%s2430 + $0x58] sm:%s2423]
                  %2477 = vst [vmem:[%s2431 + $0x98] sm:%s2423] %v2476
                  %v2478 = vld [vmem:[%s2430 + $0x5c] sm:%s2423]
                  %2479 = vst [vmem:[%s2431 + $0x9c] sm:%s2423] %v2478
                  %v2480 = vld [vmem:[%s2430 + $0x60] sm:%s2423]
                  %2481 = vst [vmem:[%s2431 + $0xa0] sm:%s2423] %v2480
                  %v2482 = vld [vmem:[%s2430 + $0x64] sm:%s2423]
                  %2483 = vst [vmem:[%s2431 + $0xa4] sm:%s2423] %v2482
                  %v2484 = vld [vmem:[%s2430 + $0x68] sm:%s2423]
                  %2485 = vst [vmem:[%s2431 + $0xa8] sm:%s2423] %v2484
                  %v2486 = vld [vmem:[%s2430 + $0x6c] sm:%s2423]
                  %2487 = vst [vmem:[%s2431 + $0xac] sm:%s2423] %v2486
                  %v2488 = vld [vmem:[%s2430 + $0x70] sm:%s2423]
                  %2489 = vst [vmem:[%s2431 + $0xb0] sm:%s2423] %v2488
                  %v2490 = vld [vmem:[%s2430 + $0x74] sm:%s2423]
                  %2491 = vst [vmem:[%s2431 + $0xb4] sm:%s2423] %v2490
                  %v2492 = vld [vmem:[%s2430 + $0x78] sm:%s2423]
                  %2493 = vst [vmem:[%s2431 + $0xb8] sm:%s2423] %v2492
                  %v2494 = vld [vmem:[%s2430 + $0x7c] sm:%s2423]
                  %2495 = vst [vmem:[%s2431 + $0xbc] sm:%s2423] %v2494
                  %v2496 = vld [vmem:[%s2430 + $0x80] sm:%s2423]
                  %2497 = vst [vmem:[%s2431 + $0x100] sm:%s2423] %v2496
                  %v2498 = vld [vmem:[%s2430 + $0x84] sm:%s2423]
                  %2499 = vst [vmem:[%s2431 + $0x104] sm:%s2423] %v2498
                  %v2500 = vld [vmem:[%s2430 + $0x88] sm:%s2423]
                  %2501 = vst [vmem:[%s2431 + $0x108] sm:%s2423] %v2500
                  %v2502 = vld [vmem:[%s2430 + $0x8c] sm:%s2423]
                  %2503 = vst [vmem:[%s2431 + $0x10c] sm:%s2423] %v2502
                  %v2504 = vld [vmem:[%s2430 + $0x90] sm:%s2423]
                  %2505 = vst [vmem:[%s2431 + $0x110] sm:%s2423] %v2504
                  %v2506 = vld [vmem:[%s2430 + $0x94] sm:%s2423]
                  %2507 = vst [vmem:[%s2431 + $0x114] sm:%s2423] %v2506
                  %v2508 = vld [vmem:[%s2430 + $0x98] sm:%s2423]
                  %2509 = vst [vmem:[%s2431 + $0x118] sm:%s2423] %v2508
                  %v2510 = vld [vmem:[%s2430 + $0x9c] sm:%s2423]
                  %2511 = vst [vmem:[%s2431 + $0x11c] sm:%s2423] %v2510
                  %v2512 = vld [vmem:[%s2430 + $0xa0] sm:%s2423]
                  %2513 = vst [vmem:[%s2431 + $0x120] sm:%s2423] %v2512
                  %v2514 = vld [vmem:[%s2430 + $0xa4] sm:%s2423]
                  %2515 = vst [vmem:[%s2431 + $0x124] sm:%s2423] %v2514
                  %v2516 = vld [vmem:[%s2430 + $0xa8] sm:%s2423]
                  %2517 = vst [vmem:[%s2431 + $0x128] sm:%s2423] %v2516
                  %v2518 = vld [vmem:[%s2430 + $0xac] sm:%s2423]
                  %2519 = vst [vmem:[%s2431 + $0x12c] sm:%s2423] %v2518
                  %v2520 = vld [vmem:[%s2430 + $0xb0] sm:%s2423]
                  %2521 = vst [vmem:[%s2431 + $0x130] sm:%s2423] %v2520
                  %v2522 = vld [vmem:[%s2430 + $0xb4] sm:%s2423]
                  %2523 = vst [vmem:[%s2431 + $0x134] sm:%s2423] %v2522
                  %v2524 = vld [vmem:[%s2430 + $0xb8] sm:%s2423]
                  %2525 = vst [vmem:[%s2431 + $0x138] sm:%s2423] %v2524
                  %v2526 = vld [vmem:[%s2430 + $0xbc] sm:%s2423]
                  %2527 = vst [vmem:[%s2431 + $0x13c] sm:%s2423] %v2526
                  %v2528 = vld [vmem:[%s2430 + $0xc0] sm:%s2423]
                  %2529 = vst [vmem:[%s2431 + $0x180] sm:%s2423] %v2528
                  %v2530 = vld [vmem:[%s2430 + $0xc4] sm:%s2423]
                  %2531 = vst [vmem:[%s2431 + $0x184] sm:%s2423] %v2530
                  %v2532 = vld [vmem:[%s2430 + $0xc8] sm:%s2423]
                  %2533 = vst [vmem:[%s2431 + $0x188] sm:%s2423] %v2532
                  %v2534 = vld [vmem:[%s2430 + $0xcc] sm:%s2423]
                  %2535 = vst [vmem:[%s2431 + $0x18c] sm:%s2423] %v2534
                  %v2536 = vld [vmem:[%s2430 + $0xd0] sm:%s2423]
                  %2537 = vst [vmem:[%s2431 + $0x190] sm:%s2423] %v2536
                  %v2538 = vld [vmem:[%s2430 + $0xd4] sm:%s2423]
                  %2539 = vst [vmem:[%s2431 + $0x194] sm:%s2423] %v2538
                  %v2540 = vld [vmem:[%s2430 + $0xd8] sm:%s2423]
                  %2541 = vst [vmem:[%s2431 + $0x198] sm:%s2423] %v2540
                  %v2542 = vld [vmem:[%s2430 + $0xdc] sm:%s2423]
                  %2543 = vst [vmem:[%s2431 + $0x19c] sm:%s2423] %v2542
                  %v2544 = vld [vmem:[%s2430 + $0xe0] sm:%s2423]
                  %2545 = vst [vmem:[%s2431 + $0x1a0] sm:%s2423] %v2544
                  %v2546 = vld [vmem:[%s2430 + $0xe4] sm:%s2423]
                  %2547 = vst [vmem:[%s2431 + $0x1a4] sm:%s2423] %v2546
                  %v2548 = vld [vmem:[%s2430 + $0xe8] sm:%s2423]
                  %2549 = vst [vmem:[%s2431 + $0x1a8] sm:%s2423] %v2548
                  %v2550 = vld [vmem:[%s2430 + $0xec] sm:%s2423]
                  %2551 = vst [vmem:[%s2431 + $0x1ac] sm:%s2423] %v2550
                  %v2552 = vld [vmem:[%s2430 + $0xf0] sm:%s2423]
                  %2553 = vst [vmem:[%s2431 + $0x1b0] sm:%s2423] %v2552
                  %v2554 = vld [vmem:[%s2430 + $0xf4] sm:%s2423]
                  %2555 = vst [vmem:[%s2431 + $0x1b4] sm:%s2423] %v2554
                  %v2556 = vld [vmem:[%s2430 + $0xf8] sm:%s2423]
                  %2557 = vst [vmem:[%s2431 + $0x1b8] sm:%s2423] %v2556
                  %v2558 = vld [vmem:[%s2430 + $0xfc] sm:%s2423]
                  %2559 = vst [vmem:[%s2431 + $0x1bc] sm:%s2423] %v2558
                $region152: #{tpu_custom_call.1} parent=139 // loop_footer
                  %s2429 = sadd.s32 1, %s2425
                $region153: #{tpu_custom_call.1} parent=139 // loop_footer_branch
                  %2424 = sbr.rel target = $region149
                $region154: #{tpu_custom_call.1} parent=139 // loop_exit
                  _
              $region140: #{tpu_custom_call.1} parent=124 // pred_fallthru
                _
            $region125: #{tpu_custom_call.1} parent=120 // pred_fallthru
              _
            // Predicated region
            $region126: #{tpu_custom_call.1} parent=120 // pred_check
              _
            $region127: #{tpu_custom_call.1} parent=120 // pred_check_branch
              %2273 = sbr.rel (0) target = $region129
            $region128: #{tpu_custom_call.1} parent=120 // pred_region
              %s2275 = ssub.s32 16, 1
              loop: start=0, step=1, limit=1
              $region130: #{tpu_custom_call.1} parent=128 // loop_pre_header
                _
              $region131: #{tpu_custom_call.1} parent=128 // loop_header
                %s2277 = sphi 0, %s2281
                %p2278 = scmp.ge.s32.totalorder %s2277, 1
                %s2282 = sphi %s1954, %s1954
                %s2283 = sphi %s2267, %s2267
              $region132: #{tpu_custom_call.1} parent=128 // loop_header_branch
                %2280 = sbr.rel (%p2278) target = $region136
              $region133: #{tpu_custom_call.1} parent=128 // loop_body
                %v2284 = vld [vmem:[%s2282] sm:%s2275]
                %2285 = vst [vmem:[%s2283] sm:%s2275] %v2284
                %v2286 = vld [vmem:[%s2282 + $0x4] sm:%s2275]
                %2287 = vst [vmem:[%s2283 + $0x4] sm:%s2275] %v2286
                %v2288 = vld [vmem:[%s2282 + $0x8] sm:%s2275]
                %2289 = vst [vmem:[%s2283 + $0x8] sm:%s2275] %v2288
                %v2290 = vld [vmem:[%s2282 + $0xc] sm:%s2275]
                %2291 = vst [vmem:[%s2283 + $0xc] sm:%s2275] %v2290
                %v2292 = vld [vmem:[%s2282 + $0x10] sm:%s2275]
                %2293 = vst [vmem:[%s2283 + $0x10] sm:%s2275] %v2292
                %v2294 = vld [vmem:[%s2282 + $0x14] sm:%s2275]
                %2295 = vst [vmem:[%s2283 + $0x14] sm:%s2275] %v2294
                %v2296 = vld [vmem:[%s2282 + $0x18] sm:%s2275]
                %2297 = vst [vmem:[%s2283 + $0x18] sm:%s2275] %v2296
                %v2298 = vld [vmem:[%s2282 + $0x1c] sm:%s2275]
                %2299 = vst [vmem:[%s2283 + $0x1c] sm:%s2275] %v2298
                %v2300 = vld [vmem:[%s2282 + $0x20] sm:%s2275]
                %2301 = vst [vmem:[%s2283 + $0x20] sm:%s2275] %v2300
                %v2302 = vld [vmem:[%s2282 + $0x24] sm:%s2275]
                %2303 = vst [vmem:[%s2283 + $0x24] sm:%s2275] %v2302
                %v2304 = vld [vmem:[%s2282 + $0x28] sm:%s2275]
                %2305 = vst [vmem:[%s2283 + $0x28] sm:%s2275] %v2304
                %v2306 = vld [vmem:[%s2282 + $0x2c] sm:%s2275]
                %2307 = vst [vmem:[%s2283 + $0x2c] sm:%s2275] %v2306
                %v2308 = vld [vmem:[%s2282 + $0x30] sm:%s2275]
                %2309 = vst [vmem:[%s2283 + $0x30] sm:%s2275] %v2308
                %v2310 = vld [vmem:[%s2282 + $0x34] sm:%s2275]
                %2311 = vst [vmem:[%s2283 + $0x34] sm:%s2275] %v2310
                %v2312 = vld [vmem:[%s2282 + $0x38] sm:%s2275]
                %2313 = vst [vmem:[%s2283 + $0x38] sm:%s2275] %v2312
                %v2314 = vld [vmem:[%s2282 + $0x3c] sm:%s2275]
                %2315 = vst [vmem:[%s2283 + $0x3c] sm:%s2275] %v2314
                %v2316 = vld [vmem:[%s2282 + $0x40] sm:%s2275]
                %2317 = vst [vmem:[%s2283 + $0x80] sm:%s2275] %v2316
                %v2318 = vld [vmem:[%s2282 + $0x44] sm:%s2275]
                %2319 = vst [vmem:[%s2283 + $0x84] sm:%s2275] %v2318
                %v2320 = vld [vmem:[%s2282 + $0x48] sm:%s2275]
                %2321 = vst [vmem:[%s2283 + $0x88] sm:%s2275] %v2320
                %v2322 = vld [vmem:[%s2282 + $0x4c] sm:%s2275]
                %2323 = vst [vmem:[%s2283 + $0x8c] sm:%s2275] %v2322
                %v2324 = vld [vmem:[%s2282 + $0x50] sm:%s2275]
                %2325 = vst [vmem:[%s2283 + $0x90] sm:%s2275] %v2324
                %v2326 = vld [vmem:[%s2282 + $0x54] sm:%s2275]
                %2327 = vst [vmem:[%s2283 + $0x94] sm:%s2275] %v2326
                %v2328 = vld [vmem:[%s2282 + $0x58] sm:%s2275]
                %2329 = vst [vmem:[%s2283 + $0x98] sm:%s2275] %v2328
                %v2330 = vld [vmem:[%s2282 + $0x5c] sm:%s2275]
                %2331 = vst [vmem:[%s2283 + $0x9c] sm:%s2275] %v2330
                %v2332 = vld [vmem:[%s2282 + $0x60] sm:%s2275]
                %2333 = vst [vmem:[%s2283 + $0xa0] sm:%s2275] %v2332
                %v2334 = vld [vmem:[%s2282 + $0x64] sm:%s2275]
                %2335 = vst [vmem:[%s2283 + $0xa4] sm:%s2275] %v2334
                %v2336 = vld [vmem:[%s2282 + $0x68] sm:%s2275]
                %2337 = vst [vmem:[%s2283 + $0xa8] sm:%s2275] %v2336
                %v2338 = vld [vmem:[%s2282 + $0x6c] sm:%s2275]
                %2339 = vst [vmem:[%s2283 + $0xac] sm:%s2275] %v2338
                %v2340 = vld [vmem:[%s2282 + $0x70] sm:%s2275]
                %2341 = vst [vmem:[%s2283 + $0xb0] sm:%s2275] %v2340
                %v2342 = vld [vmem:[%s2282 + $0x74] sm:%s2275]
                %2343 = vst [vmem:[%s2283 + $0xb4] sm:%s2275] %v2342
                %v2344 = vld [vmem:[%s2282 + $0x78] sm:%s2275]
                %2345 = vst [vmem:[%s2283 + $0xb8] sm:%s2275] %v2344
                %v2346 = vld [vmem:[%s2282 + $0x7c] sm:%s2275]
                %2347 = vst [vmem:[%s2283 + $0xbc] sm:%s2275] %v2346
                %v2348 = vld [vmem:[%s2282 + $0x80] sm:%s2275]
                %2349 = vst [vmem:[%s2283 + $0x100] sm:%s2275] %v2348
                %v2350 = vld [vmem:[%s2282 + $0x84] sm:%s2275]
                %2351 = vst [vmem:[%s2283 + $0x104] sm:%s2275] %v2350
                %v2352 = vld [vmem:[%s2282 + $0x88] sm:%s2275]
                %2353 = vst [vmem:[%s2283 + $0x108] sm:%s2275] %v2352
                %v2354 = vld [vmem:[%s2282 + $0x8c] sm:%s2275]
                %2355 = vst [vmem:[%s2283 + $0x10c] sm:%s2275] %v2354
                %v2356 = vld [vmem:[%s2282 + $0x90] sm:%s2275]
                %2357 = vst [vmem:[%s2283 + $0x110] sm:%s2275] %v2356
                %v2358 = vld [vmem:[%s2282 + $0x94] sm:%s2275]
                %2359 = vst [vmem:[%s2283 + $0x114] sm:%s2275] %v2358
                %v2360 = vld [vmem:[%s2282 + $0x98] sm:%s2275]
                %2361 = vst [vmem:[%s2283 + $0x118] sm:%s2275] %v2360
                %v2362 = vld [vmem:[%s2282 + $0x9c] sm:%s2275]
                %2363 = vst [vmem:[%s2283 + $0x11c] sm:%s2275] %v2362
                %v2364 = vld [vmem:[%s2282 + $0xa0] sm:%s2275]
                %2365 = vst [vmem:[%s2283 + $0x120] sm:%s2275] %v2364
                %v2366 = vld [vmem:[%s2282 + $0xa4] sm:%s2275]
                %2367 = vst [vmem:[%s2283 + $0x124] sm:%s2275] %v2366
                %v2368 = vld [vmem:[%s2282 + $0xa8] sm:%s2275]
                %2369 = vst [vmem:[%s2283 + $0x128] sm:%s2275] %v2368
                %v2370 = vld [vmem:[%s2282 + $0xac] sm:%s2275]
                %2371 = vst [vmem:[%s2283 + $0x12c] sm:%s2275] %v2370
                %v2372 = vld [vmem:[%s2282 + $0xb0] sm:%s2275]
                %2373 = vst [vmem:[%s2283 + $0x130] sm:%s2275] %v2372
                %v2374 = vld [vmem:[%s2282 + $0xb4] sm:%s2275]
                %2375 = vst [vmem:[%s2283 + $0x134] sm:%s2275] %v2374
                %v2376 = vld [vmem:[%s2282 + $0xb8] sm:%s2275]
                %2377 = vst [vmem:[%s2283 + $0x138] sm:%s2275] %v2376
                %v2378 = vld [vmem:[%s2282 + $0xbc] sm:%s2275]
                %2379 = vst [vmem:[%s2283 + $0x13c] sm:%s2275] %v2378
                %v2380 = vld [vmem:[%s2282 + $0xc0] sm:%s2275]
                %2381 = vst [vmem:[%s2283 + $0x180] sm:%s2275] %v2380
                %v2382 = vld [vmem:[%s2282 + $0xc4] sm:%s2275]
                %2383 = vst [vmem:[%s2283 + $0x184] sm:%s2275] %v2382
                %v2384 = vld [vmem:[%s2282 + $0xc8] sm:%s2275]
                %2385 = vst [vmem:[%s2283 + $0x188] sm:%s2275] %v2384
                %v2386 = vld [vmem:[%s2282 + $0xcc] sm:%s2275]
                %2387 = vst [vmem:[%s2283 + $0x18c] sm:%s2275] %v2386
                %v2388 = vld [vmem:[%s2282 + $0xd0] sm:%s2275]
                %2389 = vst [vmem:[%s2283 + $0x190] sm:%s2275] %v2388
                %v2390 = vld [vmem:[%s2282 + $0xd4] sm:%s2275]
                %2391 = vst [vmem:[%s2283 + $0x194] sm:%s2275] %v2390
                %v2392 = vld [vmem:[%s2282 + $0xd8] sm:%s2275]
                %2393 = vst [vmem:[%s2283 + $0x198] sm:%s2275] %v2392
                %v2394 = vld [vmem:[%s2282 + $0xdc] sm:%s2275]
                %2395 = vst [vmem:[%s2283 + $0x19c] sm:%s2275] %v2394
                %v2396 = vld [vmem:[%s2282 + $0xe0] sm:%s2275]
                %2397 = vst [vmem:[%s2283 + $0x1a0] sm:%s2275] %v2396
                %v2398 = vld [vmem:[%s2282 + $0xe4] sm:%s2275]
                %2399 = vst [vmem:[%s2283 + $0x1a4] sm:%s2275] %v2398
                %v2400 = vld [vmem:[%s2282 + $0xe8] sm:%s2275]
                %2401 = vst [vmem:[%s2283 + $0x1a8] sm:%s2275] %v2400
                %v2402 = vld [vmem:[%s2282 + $0xec] sm:%s2275]
                %2403 = vst [vmem:[%s2283 + $0x1ac] sm:%s2275] %v2402
                %v2404 = vld [vmem:[%s2282 + $0xf0] sm:%s2275]
                %2405 = vst [vmem:[%s2283 + $0x1b0] sm:%s2275] %v2404
                %v2406 = vld [vmem:[%s2282 + $0xf4] sm:%s2275]
                %2407 = vst [vmem:[%s2283 + $0x1b4] sm:%s2275] %v2406
                %v2408 = vld [vmem:[%s2282 + $0xf8] sm:%s2275]
                %2409 = vst [vmem:[%s2283 + $0x1b8] sm:%s2275] %v2408
                %v2410 = vld [vmem:[%s2282 + $0xfc] sm:%s2275]
                %2411 = vst [vmem:[%s2283 + $0x1bc] sm:%s2275] %v2410
              $region134: #{tpu_custom_call.1} parent=128 // loop_footer
                %s2281 = sadd.s32 1, %s2277
              $region135: #{tpu_custom_call.1} parent=128 // loop_footer_branch
                %2276 = sbr.rel target = $region131
              $region136: #{tpu_custom_call.1} parent=128 // loop_exit
                _
            $region129: #{tpu_custom_call.1} parent=120 // pred_fallthru
              _
          $region121: #{tpu_custom_call.1} parent=116 // pred_fallthru
            _
          %2560 = vnop
        $region117: #{tpu_custom_call.1} parent=51 // pred_fallthru
          _
        // Predicated region
        $region155: #{tpu_custom_call.1} parent=51 // pred_check
          %p2561 = pneg %p290
        $region156: #{tpu_custom_call.1} parent=51 // pred_check_branch
          %2563 = sbr.rel (%p2561) target = $region158
        $region157: #{tpu_custom_call.1} parent=51 // pred_region
          %s2564 = smul.u32 16, %s32
          %s2565 = smul.addr %s31, 128
          %s2566 = sadd.s32 %s2564, %s2565
          %s2567 = smul.addr %s2566, 4
          %s2568 = scalar_lea.vmem %s10, %s2567
          // Predicated region
          $region159: #{tpu_custom_call.1} parent=157 // pred_check
            _
          $region160: #{tpu_custom_call.1} parent=157 // pred_check_branch
            %2570 = sbr.rel (0) target = $region162
          $region161: #{tpu_custom_call.1} parent=157 // pred_region
            // Predicated region
            $region163: #{tpu_custom_call.1} parent=161 // pred_check
              _
            $region164: #{tpu_custom_call.1} parent=161 // pred_check_branch
              %2572 = sbr.rel target = $region166
            $region165: #{tpu_custom_call.1} parent=161 // pred_region
              // Predicated region
              $region178: #{tpu_custom_call.1} parent=165 // pred_check
                _
              $region179: #{tpu_custom_call.1} parent=165 // pred_check_branch
                %2714 = sbr.rel (0) target = $region181
              $region180: #{tpu_custom_call.1} parent=165 // pred_region
                loop: start=0, step=1, limit=1
                $region182: #{tpu_custom_call.1} parent=180 // loop_pre_header
                  _
                $region183: #{tpu_custom_call.1} parent=180 // loop_header
                  %s2716 = sphi 0, %s2720
                  %p2717 = scmp.ge.s32.totalorder %s2716, 1
                  %s2721 = sphi %s1958, %s1958
                  %s2722 = sphi %s2568, %s2568
                $region184: #{tpu_custom_call.1} parent=180 // loop_header_branch
                  %2719 = sbr.rel (%p2717) target = $region188
                $region185: #{tpu_custom_call.1} parent=180 // loop_body
                  _
                $region186: #{tpu_custom_call.1} parent=180 // loop_footer
                  %s2720 = sadd.s32 1, %s2716
                $region187: #{tpu_custom_call.1} parent=180 // loop_footer_branch
                  %2715 = sbr.rel target = $region183
                $region188: #{tpu_custom_call.1} parent=180 // loop_exit
                  _
                %s2724 = ssub.s32 16, 1
                loop: start=0, step=1, limit=1
                $region189: #{tpu_custom_call.1} parent=180 // loop_pre_header
                  _
                $region190: #{tpu_custom_call.1} parent=180 // loop_header
                  %s2726 = sphi 0, %s2730
                  %p2727 = scmp.ge.s32.totalorder %s2726, 1
                  %s2731 = sphi %s1958, %s1958
                  %s2732 = sphi %s2568, %s2568
                $region191: #{tpu_custom_call.1} parent=180 // loop_header_branch
                  %2729 = sbr.rel (%p2727) target = $region195
                $region192: #{tpu_custom_call.1} parent=180 // loop_body
                  %v2733 = vld [vmem:[%s2731] sm:%s2724]
                  %2734 = vst [vmem:[%s2732] sm:%s2724] %v2733
                  %v2735 = vld [vmem:[%s2731 + $0x4] sm:%s2724]
                  %2736 = vst [vmem:[%s2732 + $0x4] sm:%s2724] %v2735
                  %v2737 = vld [vmem:[%s2731 + $0x8] sm:%s2724]
                  %2738 = vst [vmem:[%s2732 + $0x8] sm:%s2724] %v2737
                  %v2739 = vld [vmem:[%s2731 + $0xc] sm:%s2724]
                  %2740 = vst [vmem:[%s2732 + $0xc] sm:%s2724] %v2739
                  %v2741 = vld [vmem:[%s2731 + $0x10] sm:%s2724]
                  %2742 = vst [vmem:[%s2732 + $0x10] sm:%s2724] %v2741
                  %v2743 = vld [vmem:[%s2731 + $0x14] sm:%s2724]
                  %2744 = vst [vmem:[%s2732 + $0x14] sm:%s2724] %v2743
                  %v2745 = vld [vmem:[%s2731 + $0x18] sm:%s2724]
                  %2746 = vst [vmem:[%s2732 + $0x18] sm:%s2724] %v2745
                  %v2747 = vld [vmem:[%s2731 + $0x1c] sm:%s2724]
                  %2748 = vst [vmem:[%s2732 + $0x1c] sm:%s2724] %v2747
                  %v2749 = vld [vmem:[%s2731 + $0x20] sm:%s2724]
                  %2750 = vst [vmem:[%s2732 + $0x20] sm:%s2724] %v2749
                  %v2751 = vld [vmem:[%s2731 + $0x24] sm:%s2724]
                  %2752 = vst [vmem:[%s2732 + $0x24] sm:%s2724] %v2751
                  %v2753 = vld [vmem:[%s2731 + $0x28] sm:%s2724]
                  %2754 = vst [vmem:[%s2732 + $0x28] sm:%s2724] %v2753
                  %v2755 = vld [vmem:[%s2731 + $0x2c] sm:%s2724]
                  %2756 = vst [vmem:[%s2732 + $0x2c] sm:%s2724] %v2755
                  %v2757 = vld [vmem:[%s2731 + $0x30] sm:%s2724]
                  %2758 = vst [vmem:[%s2732 + $0x30] sm:%s2724] %v2757
                  %v2759 = vld [vmem:[%s2731 + $0x34] sm:%s2724]
                  %2760 = vst [vmem:[%s2732 + $0x34] sm:%s2724] %v2759
                  %v2761 = vld [vmem:[%s2731 + $0x38] sm:%s2724]
                  %2762 = vst [vmem:[%s2732 + $0x38] sm:%s2724] %v2761
                  %v2763 = vld [vmem:[%s2731 + $0x3c] sm:%s2724]
                  %2764 = vst [vmem:[%s2732 + $0x3c] sm:%s2724] %v2763
                  %v2765 = vld [vmem:[%s2731 + $0x40] sm:%s2724]
                  %2766 = vst [vmem:[%s2732 + $0x80] sm:%s2724] %v2765
                  %v2767 = vld [vmem:[%s2731 + $0x44] sm:%s2724]
                  %2768 = vst [vmem:[%s2732 + $0x84] sm:%s2724] %v2767
                  %v2769 = vld [vmem:[%s2731 + $0x48] sm:%s2724]
                  %2770 = vst [vmem:[%s2732 + $0x88] sm:%s2724] %v2769
                  %v2771 = vld [vmem:[%s2731 + $0x4c] sm:%s2724]
                  %2772 = vst [vmem:[%s2732 + $0x8c] sm:%s2724] %v2771
                  %v2773 = vld [vmem:[%s2731 + $0x50] sm:%s2724]
                  %2774 = vst [vmem:[%s2732 + $0x90] sm:%s2724] %v2773
                  %v2775 = vld [vmem:[%s2731 + $0x54] sm:%s2724]
                  %2776 = vst [vmem:[%s2732 + $0x94] sm:%s2724] %v2775
                  %v2777 = vld [vmem:[%s2731 + $0x58] sm:%s2724]
                  %2778 = vst [vmem:[%s2732 + $0x98] sm:%s2724] %v2777
                  %v2779 = vld [vmem:[%s2731 + $0x5c] sm:%s2724]
                  %2780 = vst [vmem:[%s2732 + $0x9c] sm:%s2724] %v2779
                  %v2781 = vld [vmem:[%s2731 + $0x60] sm:%s2724]
                  %2782 = vst [vmem:[%s2732 + $0xa0] sm:%s2724] %v2781
                  %v2783 = vld [vmem:[%s2731 + $0x64] sm:%s2724]
                  %2784 = vst [vmem:[%s2732 + $0xa4] sm:%s2724] %v2783
                  %v2785 = vld [vmem:[%s2731 + $0x68] sm:%s2724]
                  %2786 = vst [vmem:[%s2732 + $0xa8] sm:%s2724] %v2785
                  %v2787 = vld [vmem:[%s2731 + $0x6c] sm:%s2724]
                  %2788 = vst [vmem:[%s2732 + $0xac] sm:%s2724] %v2787
                  %v2789 = vld [vmem:[%s2731 + $0x70] sm:%s2724]
                  %2790 = vst [vmem:[%s2732 + $0xb0] sm:%s2724] %v2789
                  %v2791 = vld [vmem:[%s2731 + $0x74] sm:%s2724]
                  %2792 = vst [vmem:[%s2732 + $0xb4] sm:%s2724] %v2791
                  %v2793 = vld [vmem:[%s2731 + $0x78] sm:%s2724]
                  %2794 = vst [vmem:[%s2732 + $0xb8] sm:%s2724] %v2793
                  %v2795 = vld [vmem:[%s2731 + $0x7c] sm:%s2724]
                  %2796 = vst [vmem:[%s2732 + $0xbc] sm:%s2724] %v2795
                  %v2797 = vld [vmem:[%s2731 + $0x80] sm:%s2724]
                  %2798 = vst [vmem:[%s2732 + $0x100] sm:%s2724] %v2797
                  %v2799 = vld [vmem:[%s2731 + $0x84] sm:%s2724]
                  %2800 = vst [vmem:[%s2732 + $0x104] sm:%s2724] %v2799
                  %v2801 = vld [vmem:[%s2731 + $0x88] sm:%s2724]
                  %2802 = vst [vmem:[%s2732 + $0x108] sm:%s2724] %v2801
                  %v2803 = vld [vmem:[%s2731 + $0x8c] sm:%s2724]
                  %2804 = vst [vmem:[%s2732 + $0x10c] sm:%s2724] %v2803
                  %v2805 = vld [vmem:[%s2731 + $0x90] sm:%s2724]
                  %2806 = vst [vmem:[%s2732 + $0x110] sm:%s2724] %v2805
                  %v2807 = vld [vmem:[%s2731 + $0x94] sm:%s2724]
                  %2808 = vst [vmem:[%s2732 + $0x114] sm:%s2724] %v2807
                  %v2809 = vld [vmem:[%s2731 + $0x98] sm:%s2724]
                  %2810 = vst [vmem:[%s2732 + $0x118] sm:%s2724] %v2809
                  %v2811 = vld [vmem:[%s2731 + $0x9c] sm:%s2724]
                  %2812 = vst [vmem:[%s2732 + $0x11c] sm:%s2724] %v2811
                  %v2813 = vld [vmem:[%s2731 + $0xa0] sm:%s2724]
                  %2814 = vst [vmem:[%s2732 + $0x120] sm:%s2724] %v2813
                  %v2815 = vld [vmem:[%s2731 + $0xa4] sm:%s2724]
                  %2816 = vst [vmem:[%s2732 + $0x124] sm:%s2724] %v2815
                  %v2817 = vld [vmem:[%s2731 + $0xa8] sm:%s2724]
                  %2818 = vst [vmem:[%s2732 + $0x128] sm:%s2724] %v2817
                  %v2819 = vld [vmem:[%s2731 + $0xac] sm:%s2724]
                  %2820 = vst [vmem:[%s2732 + $0x12c] sm:%s2724] %v2819
                  %v2821 = vld [vmem:[%s2731 + $0xb0] sm:%s2724]
                  %2822 = vst [vmem:[%s2732 + $0x130] sm:%s2724] %v2821
                  %v2823 = vld [vmem:[%s2731 + $0xb4] sm:%s2724]
                  %2824 = vst [vmem:[%s2732 + $0x134] sm:%s2724] %v2823
                  %v2825 = vld [vmem:[%s2731 + $0xb8] sm:%s2724]
                  %2826 = vst [vmem:[%s2732 + $0x138] sm:%s2724] %v2825
                  %v2827 = vld [vmem:[%s2731 + $0xbc] sm:%s2724]
                  %2828 = vst [vmem:[%s2732 + $0x13c] sm:%s2724] %v2827
                  %v2829 = vld [vmem:[%s2731 + $0xc0] sm:%s2724]
                  %2830 = vst [vmem:[%s2732 + $0x180] sm:%s2724] %v2829
                  %v2831 = vld [vmem:[%s2731 + $0xc4] sm:%s2724]
                  %2832 = vst [vmem:[%s2732 + $0x184] sm:%s2724] %v2831
                  %v2833 = vld [vmem:[%s2731 + $0xc8] sm:%s2724]
                  %2834 = vst [vmem:[%s2732 + $0x188] sm:%s2724] %v2833
                  %v2835 = vld [vmem:[%s2731 + $0xcc] sm:%s2724]
                  %2836 = vst [vmem:[%s2732 + $0x18c] sm:%s2724] %v2835
                  %v2837 = vld [vmem:[%s2731 + $0xd0] sm:%s2724]
                  %2838 = vst [vmem:[%s2732 + $0x190] sm:%s2724] %v2837
                  %v2839 = vld [vmem:[%s2731 + $0xd4] sm:%s2724]
                  %2840 = vst [vmem:[%s2732 + $0x194] sm:%s2724] %v2839
                  %v2841 = vld [vmem:[%s2731 + $0xd8] sm:%s2724]
                  %2842 = vst [vmem:[%s2732 + $0x198] sm:%s2724] %v2841
                  %v2843 = vld [vmem:[%s2731 + $0xdc] sm:%s2724]
                  %2844 = vst [vmem:[%s2732 + $0x19c] sm:%s2724] %v2843
                  %v2845 = vld [vmem:[%s2731 + $0xe0] sm:%s2724]
                  %2846 = vst [vmem:[%s2732 + $0x1a0] sm:%s2724] %v2845
                  %v2847 = vld [vmem:[%s2731 + $0xe4] sm:%s2724]
                  %2848 = vst [vmem:[%s2732 + $0x1a4] sm:%s2724] %v2847
                  %v2849 = vld [vmem:[%s2731 + $0xe8] sm:%s2724]
                  %2850 = vst [vmem:[%s2732 + $0x1a8] sm:%s2724] %v2849
                  %v2851 = vld [vmem:[%s2731 + $0xec] sm:%s2724]
                  %2852 = vst [vmem:[%s2732 + $0x1ac] sm:%s2724] %v2851
                  %v2853 = vld [vmem:[%s2731 + $0xf0] sm:%s2724]
                  %2854 = vst [vmem:[%s2732 + $0x1b0] sm:%s2724] %v2853
                  %v2855 = vld [vmem:[%s2731 + $0xf4] sm:%s2724]
                  %2856 = vst [vmem:[%s2732 + $0x1b4] sm:%s2724] %v2855
                  %v2857 = vld [vmem:[%s2731 + $0xf8] sm:%s2724]
                  %2858 = vst [vmem:[%s2732 + $0x1b8] sm:%s2724] %v2857
                  %v2859 = vld [vmem:[%s2731 + $0xfc] sm:%s2724]
                  %2860 = vst [vmem:[%s2732 + $0x1bc] sm:%s2724] %v2859
                $region193: #{tpu_custom_call.1} parent=180 // loop_footer
                  %s2730 = sadd.s32 1, %s2726
                $region194: #{tpu_custom_call.1} parent=180 // loop_footer_branch
                  %2725 = sbr.rel target = $region190
                $region195: #{tpu_custom_call.1} parent=180 // loop_exit
                  _
              $region181: #{tpu_custom_call.1} parent=165 // pred_fallthru
                _
            $region166: #{tpu_custom_call.1} parent=161 // pred_fallthru
              _
            // Predicated region
            $region167: #{tpu_custom_call.1} parent=161 // pred_check
              _
            $region168: #{tpu_custom_call.1} parent=161 // pred_check_branch
              %2574 = sbr.rel (0) target = $region170
            $region169: #{tpu_custom_call.1} parent=161 // pred_region
              %s2576 = ssub.s32 16, 1
              loop: start=0, step=1, limit=1
              $region171: #{tpu_custom_call.1} parent=169 // loop_pre_header
                _
              $region172: #{tpu_custom_call.1} parent=169 // loop_header
                %s2578 = sphi 0, %s2582
                %p2579 = scmp.ge.s32.totalorder %s2578, 1
                %s2583 = sphi %s1958, %s1958
                %s2584 = sphi %s2568, %s2568
              $region173: #{tpu_custom_call.1} parent=169 // loop_header_branch
                %2581 = sbr.rel (%p2579) target = $region177
              $region174: #{tpu_custom_call.1} parent=169 // loop_body
                %v2585 = vld [vmem:[%s2583] sm:%s2576]
                %2586 = vst [vmem:[%s2584] sm:%s2576] %v2585
                %v2587 = vld [vmem:[%s2583 + $0x4] sm:%s2576]
                %2588 = vst [vmem:[%s2584 + $0x4] sm:%s2576] %v2587
                %v2589 = vld [vmem:[%s2583 + $0x8] sm:%s2576]
                %2590 = vst [vmem:[%s2584 + $0x8] sm:%s2576] %v2589
                %v2591 = vld [vmem:[%s2583 + $0xc] sm:%s2576]
                %2592 = vst [vmem:[%s2584 + $0xc] sm:%s2576] %v2591
                %v2593 = vld [vmem:[%s2583 + $0x10] sm:%s2576]
                %2594 = vst [vmem:[%s2584 + $0x10] sm:%s2576] %v2593
                %v2595 = vld [vmem:[%s2583 + $0x14] sm:%s2576]
                %2596 = vst [vmem:[%s2584 + $0x14] sm:%s2576] %v2595
                %v2597 = vld [vmem:[%s2583 + $0x18] sm:%s2576]
                %2598 = vst [vmem:[%s2584 + $0x18] sm:%s2576] %v2597
                %v2599 = vld [vmem:[%s2583 + $0x1c] sm:%s2576]
                %2600 = vst [vmem:[%s2584 + $0x1c] sm:%s2576] %v2599
                %v2601 = vld [vmem:[%s2583 + $0x20] sm:%s2576]
                %2602 = vst [vmem:[%s2584 + $0x20] sm:%s2576] %v2601
                %v2603 = vld [vmem:[%s2583 + $0x24] sm:%s2576]
                %2604 = vst [vmem:[%s2584 + $0x24] sm:%s2576] %v2603
                %v2605 = vld [vmem:[%s2583 + $0x28] sm:%s2576]
                %2606 = vst [vmem:[%s2584 + $0x28] sm:%s2576] %v2605
                %v2607 = vld [vmem:[%s2583 + $0x2c] sm:%s2576]
                %2608 = vst [vmem:[%s2584 + $0x2c] sm:%s2576] %v2607
                %v2609 = vld [vmem:[%s2583 + $0x30] sm:%s2576]
                %2610 = vst [vmem:[%s2584 + $0x30] sm:%s2576] %v2609
                %v2611 = vld [vmem:[%s2583 + $0x34] sm:%s2576]
                %2612 = vst [vmem:[%s2584 + $0x34] sm:%s2576] %v2611
                %v2613 = vld [vmem:[%s2583 + $0x38] sm:%s2576]
                %2614 = vst [vmem:[%s2584 + $0x38] sm:%s2576] %v2613
                %v2615 = vld [vmem:[%s2583 + $0x3c] sm:%s2576]
                %2616 = vst [vmem:[%s2584 + $0x3c] sm:%s2576] %v2615
                %v2617 = vld [vmem:[%s2583 + $0x40] sm:%s2576]
                %2618 = vst [vmem:[%s2584 + $0x80] sm:%s2576] %v2617
                %v2619 = vld [vmem:[%s2583 + $0x44] sm:%s2576]
                %2620 = vst [vmem:[%s2584 + $0x84] sm:%s2576] %v2619
                %v2621 = vld [vmem:[%s2583 + $0x48] sm:%s2576]
                %2622 = vst [vmem:[%s2584 + $0x88] sm:%s2576] %v2621
                %v2623 = vld [vmem:[%s2583 + $0x4c] sm:%s2576]
                %2624 = vst [vmem:[%s2584 + $0x8c] sm:%s2576] %v2623
                %v2625 = vld [vmem:[%s2583 + $0x50] sm:%s2576]
                %2626 = vst [vmem:[%s2584 + $0x90] sm:%s2576] %v2625
                %v2627 = vld [vmem:[%s2583 + $0x54] sm:%s2576]
                %2628 = vst [vmem:[%s2584 + $0x94] sm:%s2576] %v2627
                %v2629 = vld [vmem:[%s2583 + $0x58] sm:%s2576]
                %2630 = vst [vmem:[%s2584 + $0x98] sm:%s2576] %v2629
                %v2631 = vld [vmem:[%s2583 + $0x5c] sm:%s2576]
                %2632 = vst [vmem:[%s2584 + $0x9c] sm:%s2576] %v2631
                %v2633 = vld [vmem:[%s2583 + $0x60] sm:%s2576]
                %2634 = vst [vmem:[%s2584 + $0xa0] sm:%s2576] %v2633
                %v2635 = vld [vmem:[%s2583 + $0x64] sm:%s2576]
                %2636 = vst [vmem:[%s2584 + $0xa4] sm:%s2576] %v2635
                %v2637 = vld [vmem:[%s2583 + $0x68] sm:%s2576]
                %2638 = vst [vmem:[%s2584 + $0xa8] sm:%s2576] %v2637
                %v2639 = vld [vmem:[%s2583 + $0x6c] sm:%s2576]
                %2640 = vst [vmem:[%s2584 + $0xac] sm:%s2576] %v2639
                %v2641 = vld [vmem:[%s2583 + $0x70] sm:%s2576]
                %2642 = vst [vmem:[%s2584 + $0xb0] sm:%s2576] %v2641
                %v2643 = vld [vmem:[%s2583 + $0x74] sm:%s2576]
                %2644 = vst [vmem:[%s2584 + $0xb4] sm:%s2576] %v2643
                %v2645 = vld [vmem:[%s2583 + $0x78] sm:%s2576]
                %2646 = vst [vmem:[%s2584 + $0xb8] sm:%s2576] %v2645
                %v2647 = vld [vmem:[%s2583 + $0x7c] sm:%s2576]
                %2648 = vst [vmem:[%s2584 + $0xbc] sm:%s2576] %v2647
                %v2649 = vld [vmem:[%s2583 + $0x80] sm:%s2576]
                %2650 = vst [vmem:[%s2584 + $0x100] sm:%s2576] %v2649
                %v2651 = vld [vmem:[%s2583 + $0x84] sm:%s2576]
                %2652 = vst [vmem:[%s2584 + $0x104] sm:%s2576] %v2651
                %v2653 = vld [vmem:[%s2583 + $0x88] sm:%s2576]
                %2654 = vst [vmem:[%s2584 + $0x108] sm:%s2576] %v2653
                %v2655 = vld [vmem:[%s2583 + $0x8c] sm:%s2576]
                %2656 = vst [vmem:[%s2584 + $0x10c] sm:%s2576] %v2655
                %v2657 = vld [vmem:[%s2583 + $0x90] sm:%s2576]
                %2658 = vst [vmem:[%s2584 + $0x110] sm:%s2576] %v2657
                %v2659 = vld [vmem:[%s2583 + $0x94] sm:%s2576]
                %2660 = vst [vmem:[%s2584 + $0x114] sm:%s2576] %v2659
                %v2661 = vld [vmem:[%s2583 + $0x98] sm:%s2576]
                %2662 = vst [vmem:[%s2584 + $0x118] sm:%s2576] %v2661
                %v2663 = vld [vmem:[%s2583 + $0x9c] sm:%s2576]
                %2664 = vst [vmem:[%s2584 + $0x11c] sm:%s2576] %v2663
                %v2665 = vld [vmem:[%s2583 + $0xa0] sm:%s2576]
                %2666 = vst [vmem:[%s2584 + $0x120] sm:%s2576] %v2665
                %v2667 = vld [vmem:[%s2583 + $0xa4] sm:%s2576]
                %2668 = vst [vmem:[%s2584 + $0x124] sm:%s2576] %v2667
                %v2669 = vld [vmem:[%s2583 + $0xa8] sm:%s2576]
                %2670 = vst [vmem:[%s2584 + $0x128] sm:%s2576] %v2669
                %v2671 = vld [vmem:[%s2583 + $0xac] sm:%s2576]
                %2672 = vst [vmem:[%s2584 + $0x12c] sm:%s2576] %v2671
                %v2673 = vld [vmem:[%s2583 + $0xb0] sm:%s2576]
                %2674 = vst [vmem:[%s2584 + $0x130] sm:%s2576] %v2673
                %v2675 = vld [vmem:[%s2583 + $0xb4] sm:%s2576]
                %2676 = vst [vmem:[%s2584 + $0x134] sm:%s2576] %v2675
                %v2677 = vld [vmem:[%s2583 + $0xb8] sm:%s2576]
                %2678 = vst [vmem:[%s2584 + $0x138] sm:%s2576] %v2677
                %v2679 = vld [vmem:[%s2583 + $0xbc] sm:%s2576]
                %2680 = vst [vmem:[%s2584 + $0x13c] sm:%s2576] %v2679
                %v2681 = vld [vmem:[%s2583 + $0xc0] sm:%s2576]
                %2682 = vst [vmem:[%s2584 + $0x180] sm:%s2576] %v2681
                %v2683 = vld [vmem:[%s2583 + $0xc4] sm:%s2576]
                %2684 = vst [vmem:[%s2584 + $0x184] sm:%s2576] %v2683
                %v2685 = vld [vmem:[%s2583 + $0xc8] sm:%s2576]
                %2686 = vst [vmem:[%s2584 + $0x188] sm:%s2576] %v2685
                %v2687 = vld [vmem:[%s2583 + $0xcc] sm:%s2576]
                %2688 = vst [vmem:[%s2584 + $0x18c] sm:%s2576] %v2687
                %v2689 = vld [vmem:[%s2583 + $0xd0] sm:%s2576]
                %2690 = vst [vmem:[%s2584 + $0x190] sm:%s2576] %v2689
                %v2691 = vld [vmem:[%s2583 + $0xd4] sm:%s2576]
                %2692 = vst [vmem:[%s2584 + $0x194] sm:%s2576] %v2691
                %v2693 = vld [vmem:[%s2583 + $0xd8] sm:%s2576]
                %2694 = vst [vmem:[%s2584 + $0x198] sm:%s2576] %v2693
                %v2695 = vld [vmem:[%s2583 + $0xdc] sm:%s2576]
                %2696 = vst [vmem:[%s2584 + $0x19c] sm:%s2576] %v2695
                %v2697 = vld [vmem:[%s2583 + $0xe0] sm:%s2576]
                %2698 = vst [vmem:[%s2584 + $0x1a0] sm:%s2576] %v2697
                %v2699 = vld [vmem:[%s2583 + $0xe4] sm:%s2576]
                %2700 = vst [vmem:[%s2584 + $0x1a4] sm:%s2576] %v2699
                %v2701 = vld [vmem:[%s2583 + $0xe8] sm:%s2576]
                %2702 = vst [vmem:[%s2584 + $0x1a8] sm:%s2576] %v2701
                %v2703 = vld [vmem:[%s2583 + $0xec] sm:%s2576]
                %2704 = vst [vmem:[%s2584 + $0x1ac] sm:%s2576] %v2703
                %v2705 = vld [vmem:[%s2583 + $0xf0] sm:%s2576]
                %2706 = vst [vmem:[%s2584 + $0x1b0] sm:%s2576] %v2705
                %v2707 = vld [vmem:[%s2583 + $0xf4] sm:%s2576]
                %2708 = vst [vmem:[%s2584 + $0x1b4] sm:%s2576] %v2707
                %v2709 = vld [vmem:[%s2583 + $0xf8] sm:%s2576]
                %2710 = vst [vmem:[%s2584 + $0x1b8] sm:%s2576] %v2709
                %v2711 = vld [vmem:[%s2583 + $0xfc] sm:%s2576]
                %2712 = vst [vmem:[%s2584 + $0x1bc] sm:%s2576] %v2711
              $region175: #{tpu_custom_call.1} parent=169 // loop_footer
                %s2582 = sadd.s32 1, %s2578
              $region176: #{tpu_custom_call.1} parent=169 // loop_footer_branch
                %2577 = sbr.rel target = $region172
              $region177: #{tpu_custom_call.1} parent=169 // loop_exit
                _
            $region170: #{tpu_custom_call.1} parent=161 // pred_fallthru
              _
          $region162: #{tpu_custom_call.1} parent=157 // pred_fallthru
            _
          %2861 = vnop
        $region158: #{tpu_custom_call.1} parent=51 // pred_fallthru
          _
      $region52: #{tpu_custom_call.1} parent=5 // pred_fallthru
        _
      %p2862 = scmp.le.s32.totalorder 2, %s22
      // Predicated region
      $region196: #{tpu_custom_call.1} parent=5 // pred_check
        %p2863 = pneg %p2862
      $region197: #{tpu_custom_call.1} parent=5 // pred_check_branch
        %2865 = sbr.rel (%p2863) target = $region199
      $region198: #{tpu_custom_call.1} parent=5 // pred_region
        %s2866 = ssub.s32 %s22, 2
        // Predicated region
        $region200: #{tpu_custom_call.1} parent=198 // pred_check
          %p2867 = pneg %p240
        $region201: #{tpu_custom_call.1} parent=198 // pred_check_branch
          %2869 = sbr.rel (%p2867) target = $region203
        $region202: #{tpu_custom_call.1} parent=198 // pred_region
          %s2870 = sand.u32 %s225, 1
          %s2871 = sand.u32 %s225, 1
          %s2872 = smul.addr %s2871, 256
          %s2873 = scalar_lea.vmem [#allocation10], %s2872
        $region203: #{tpu_custom_call.1} parent=198 // pred_fallthru
          _
        // Predicated region
        $region204: #{tpu_custom_call.1} parent=198 // pred_check
          %p2874 = pneg %p268
        $region205: #{tpu_custom_call.1} parent=198 // pred_check_branch
          %2876 = sbr.rel (%p2874) target = $region207
        $region206: #{tpu_custom_call.1} parent=198 // pred_region
          %s2877 = sand.u32 %s253, 1
          %s2878 = sand.u32 %s253, 1
          %s2879 = smul.addr %s2878, 256
          %s2880 = scalar_lea.vmem [#allocation11], %s2879
        $region207: #{tpu_custom_call.1} parent=198 // pred_fallthru
          _
        // Predicated region
        $region208: #{tpu_custom_call.1} parent=198 // pred_check
          %p2881 = pneg %p296
        $region209: #{tpu_custom_call.1} parent=198 // pred_check_branch
          %2883 = sbr.rel (%p2881) target = $region211
        $region210: #{tpu_custom_call.1} parent=198 // pred_region
          %s2884 = sand.u32 %s281, 1
          %s2885 = sand.u32 %s281, 1
          %s2886 = smul.addr %s2885, 256
          %s2887 = scalar_lea.vmem [#allocation12], %s2886
        $region211: #{tpu_custom_call.1} parent=198 // pred_fallthru
          _
      $region199: #{tpu_custom_call.1} parent=5 // pred_fallthru
        _
    $region6: #{tpu_custom_call.1} parent=1 // loop_footer
      %s26 = sadd.s32 1, %s22
    $region7: #{tpu_custom_call.1} parent=1 // loop_footer_branch
      %21 = sbr.rel target = $region3
    $region8: #{tpu_custom_call.1} parent=1 // loop_exit
      _
    %2888 = vsyncpa [#allocation3], 1
    %s2889 = scalar_lea.sflag [#allocation3], 1
    %2890 = vsyncpa %s2889, 1
    %2891 = vsyncpa [#allocation5], 1
    %2892 = vsyncpa [#allocation8], 1

</llo_original>
